<compile_context>
chip_gen: v7x
topology: tpu7x:2x2x1
jax: 0.10.0
libtpu: 0.0.40
codegen_flags: <defaults>
</compile_context>

<pallas_src>
import math
from functools import partial

import numpy as np
import jax
import jax.numpy as jnp
from jax.experimental import pallas as pl
from jax.experimental.pallas import tpu as pltpu

# ---------------------------------------------------------------------------
# small synthetic hyper-parameters (consistent with the torch Model __init__)
# ---------------------------------------------------------------------------
SAMPLE_RATE = 1600
FFT_SIZE = 64
WINDOW_SIZE = 64
HOP_SIZE = 16
MEL_SIZE = 8
MIN_FREQ = 20.0
MAX_FREQ = 760.0
D_MODEL = 32
REDUCTION_FACTOR = 2
SEGMENT_SIZE = 4
LAMBDA_FM = 2.0
LAMBDA_MEL = 45.0
LAMBDA_ALIGN = 2.0
LAMBDA_VAR = 1.0

N_FREQ = FFT_SIZE // 2 + 1          # 33
N_FREQ_PAD = 64                     # cos block lanes 0..63, sin block 64..127
N_TAPS = WINDOW_SIZE // HOP_SIZE    # 4
PAD_BLOCKS = (WINDOW_SIZE // 2) // HOP_SIZE   # 2
SEG_SAMPLES = SEGMENT_SIZE * HOP_SIZE         # 64
SEG_FRAMES = SEG_SAMPLES // HOP_SIZE + 1      # 5
SEG_NBLK = SEG_FRAMES - 1 + N_TAPS            # 8

# discriminator geometry (conv via selection matrices)
DISC_CH1, DISC_CH2 = 8, 16


def _conv_out_len(lin, k, stride, pad):
    return (lin + 2 * pad - k) // stride + 1


DISC_L1 = _conv_out_len(SEG_SAMPLES, 5, 2, 2)   # 32
DISC_L2 = _conv_out_len(DISC_L1, 5, 2, 2)       # 16
DISC_L3 = _conv_out_len(DISC_L2, 3, 1, 1)       # 16


# ---------------------------------------------------------------------------
# fixed DSP / selection constants
# ---------------------------------------------------------------------------
def _build_mel_fb():
    def hz_to_mel(f):
        return 2595.0 * np.log10(1.0 + np.asarray(f) / 700.0)

    def mel_to_hz(m):
        return 700.0 * (10.0 ** (np.asarray(m) / 2595.0) - 1.0)

    freqs = np.linspace(0.0, SAMPLE_RATE / 2.0, N_FREQ)
    mpts = mel_to_hz(np.linspace(hz_to_mel(MIN_FREQ), hz_to_mel(MAX_FREQ),
                                 MEL_SIZE + 2))
    fb = np.zeros((N_FREQ, MEL_SIZE), dtype=np.float32)
    for m in range(MEL_SIZE):
        lo, ctr, hi = mpts[m], mpts[m + 1], mpts[m + 2]
        up = (freqs - lo) / max(ctr - lo, 1e-6)
        down = (hi - freqs) / max(hi - ctr, 1e-6)
        fb[:, m] = np.maximum(0.0, np.minimum(up, down))
    return fb


_w = np.arange(WINDOW_SIZE)[:, None]
_k = np.arange(N_FREQ)[None, :]
_ang = 2.0 * np.pi * _w * _k / FFT_SIZE
_hann = (0.5 - 0.5 * np.cos(2.0 * np.pi * np.arange(WINDOW_SIZE)
                            / WINDOW_SIZE)).astype(np.float32)
# Hann folded into the DFT operand; cos block in lanes [0,64), -sin in [64,128)
_F = np.zeros((WINDOW_SIZE, 2 * N_FREQ_PAD), dtype=np.float32)
_F[:, :N_FREQ] = _hann[:, None] * np.cos(_ang)
_F[:, N_FREQ_PAD:N_FREQ_PAD + N_FREQ] = -_hann[:, None] * np.sin(_ang)
FOURIER_PAD = jnp.asarray(_F)

_M = np.zeros((N_FREQ_PAD, MEL_SIZE), dtype=np.float32)
_M[:N_FREQ, :] = _build_mel_fb()
MEL_FB_PAD = jnp.asarray(_M)


def _conv_sel(lin, lout, k, stride, pad):
    a = np.zeros((k, lout, lin), dtype=np.float32)
    for tap in range(k):
        for t in range(lout):
            src = t * stride + tap - pad
            if 0 <= src < lin:
                a[tap, t, src] = 1.0
    return jnp.asarray(a)


A1_SEL = _conv_sel(SEG_SAMPLES, DISC_L1, 5, 2, 2)   # (5, 32, 64)
A2_SEL = _conv_sel(DISC_L1, DISC_L2, 5, 2, 2)       # (5, 16, 32)
A3_SEL = _conv_sel(DISC_L2, DISC_L3, 3, 1, 1)       # (3, 16, 16)


# ---------------------------------------------------------------------------
# in-kernel helpers
# ---------------------------------------------------------------------------
def _stft_logmel(blocks, n_frames, fourier, melfb, with_energy=False):
    """blocks: (nblk, HOP) hop-sized chunks of the center-padded signal.
    Framing is done with iota-built selection matmuls (no gathers / unaligned
    slices); the Hann window is pre-folded into `fourier`."""
    nblk = blocks.shape[0]
    row = jax.lax.broadcasted_iota(jnp.int32, (n_frames, nblk), 0)
    col = jax.lax.broadcasted_iota(jnp.int32, (n_frames, nblk), 1)
    re_im = None
    for tap in range(N_TAPS):
        sel = jnp.where(col == row + tap, 1.0, 0.0)
        shifted = jnp.dot(sel, blocks, preferred_element_type=jnp.float32)
        term = jnp.dot(shifted,
                       fourier[tap * HOP_SIZE:(tap + 1) * HOP_SIZE, :],
                       preferred_element_type=jnp.float32)
        re_im = term if re_im is None else re_im + term          # (T, 128)
    power = re_im[:, :N_FREQ_PAD] ** 2 + re_im[:, N_FREQ_PAD:] ** 2
    mag = jnp.sqrt(power + 1e-9)
    logmel = jnp.log(jnp.maximum(
        jnp.dot(mag, melfb, preferred_element_type=jnp.float32), 1e-5))
    if with_energy:
        energy = jnp.sqrt(jnp.sum(power, axis=-1, keepdims=True) + 1e-9)
        return logmel, energy
    return logmel


# ---------------------------------------------------------------------------
# Kernel A: framing + logmel + energy + per-utterance normalization
# ---------------------------------------------------------------------------
def _feat_norm_kernel(audio_ref, mask_ref, fourier_ref, melfb_ref,
                      feat_ref, energy_ref, *, n_frames, eps):
    blocks = audio_ref[0]                               # (nblk, HOP)
    logmel, energy = _stft_logmel(blocks, n_frames, fourier_ref[...],
                                  melfb_ref[...], with_energy=True)
    m = mask_ref[0]                                     # (T, 1)
    nf = jnp.float32(n_frames)
    mean = jnp.mean(logmel, axis=0, keepdims=True)
    var = jnp.sum((logmel - mean) ** 2, axis=0, keepdims=True) / (nf - 1.0)
    feat_ref[0] = ((logmel - mean) / (jnp.sqrt(var) + eps)) * m
    e_mean = jnp.mean(energy, axis=0, keepdims=True)
    e_var = jnp.sum((energy - e_mean) ** 2, axis=0, keepdims=True) / (nf - 1.0)
    energy_ref[0] = ((energy - e_mean) / (jnp.sqrt(e_var) + eps)) * m


def mel_norm_features(audio, mask, eps=1e-12):
    nb, length = audio.shape
    pad = WINDOW_SIZE // 2
    n_frames = length // HOP_SIZE + 1
    nblk = n_frames - 1 + N_TAPS
    need = nblk * HOP_SIZE
    xp = jnp.pad(audio, ((0, 0), (pad, pad)))
    if xp.shape[1] < need:
        xp = jnp.pad(xp, ((0, 0), (0, need - xp.shape[1])))
    blocks = xp[:, :need].reshape(nb, nblk, HOP_SIZE)
    maskf = mask.astype(jnp.float32)[..., None]          # (nb, T, 1)
    feat, energy = pl.pallas_call(
        partial(_feat_norm_kernel, n_frames=n_frames, eps=eps),
        grid=(nb,),
        out_shape=(jax.ShapeDtypeStruct((nb, n_frames, MEL_SIZE), jnp.float32),
                   jax.ShapeDtypeStruct((nb, n_frames, 1), jnp.float32)),
        in_specs=[pl.BlockSpec((1, nblk, HOP_SIZE), lambda i: (i, 0, 0)),
                  pl.BlockSpec((1, n_frames, 1), lambda i: (i, 0, 0)),
                  pl.BlockSpec((WINDOW_SIZE, 2 * N_FREQ_PAD),
                               lambda i: (0, 0)),
                  pl.BlockSpec((N_FREQ_PAD, MEL_SIZE), lambda i: (0, 0))],
        out_specs=(pl.BlockSpec((1, n_frames, MEL_SIZE), lambda i: (i, 0, 0)),
                   pl.BlockSpec((1, n_frames, 1), lambda i: (i, 0, 0))),
        compiler_params=pltpu.CompilerParams(
            dimension_semantics=("parallel",)),
    )(blocks, maskf, FOURIER_PAD, MEL_FB_PAD)
    return feat, energy


# ---------------------------------------------------------------------------
# Kernel B: generator core + alignment + vocoder + mel-loss features + loss
#           partial sums (per utterance)
# ---------------------------------------------------------------------------
def _gen_loss_kernel(src_ref, tgt_ref, smask_ref, tmask_ref, pe_ref, seg_ref,
                     wenc_ref, benc_ref, wtgt_ref, whead_t_ref, wvoc_ref,
                     fourier_ref, melfb_ref, fake_ref, stats_ref,
                     *, scale, seg):
    src = src_ref[0]                    # (Ts, Cin)
    tgt = tgt_ref[0]                    # (Tt, M)
    smask = smask_ref[0]                # (1, Ts)
    tmask = tmask_ref[0]                # (Tt, 1)
    pe = pe_ref[0]                      # (2, Tt)
    ts = src.shape[0]
    tt = tgt.shape[0]

    # encoder + fused duration/pitch/energy heads (row-oriented, lane = Ts)
    h_src = jnp.maximum(
        jnp.dot(src, wenc_ref[...], preferred_element_type=jnp.float32)
        + benc_ref[...], 0.0)                                    # (Ts, D)
    heads_t = jax.lax.dot_general(whead_t_ref[...], h_src,
                                  (((1,), (1,)), ((), ())),
                                  preferred_element_type=jnp.float32)  # (3, Ts)

    # alignment scores + masked log-softmax
    h_tgt = jnp.dot(tgt, wtgt_ref[...], preferred_element_type=jnp.float32)
    scores = jax.lax.dot_general(h_tgt, h_src, (((1,), (1,)), ((), ())),
                                 preferred_element_type=jnp.float32) * scale
    scores = jnp.where(smask > 0.0, scores, jnp.float32(-1e9))   # (Tt, Ts)
    best = jnp.max(scores, axis=-1, keepdims=True)
    log_a = (scores - best) - jnp.log(
        jnp.sum(jnp.exp(scores - best), axis=-1, keepdims=True))

    # hard alignment (argmax via iota, first-index tie break), tgt-masked
    col = jax.lax.broadcasted_iota(jnp.int32, (tt, ts), 1)
    cand = jnp.where(scores >= best, col, ts)
    first = jnp.min(cand, axis=-1, keepdims=True)
    a_hard = jnp.where(col == first, 1.0, 0.0) * tmask            # (Tt, Ts)

    dur = jnp.sum(a_hard, axis=0, keepdims=True)                  # (1, Ts)
    denom = jnp.maximum(dur, 1.0)
    pe_tok = jnp.dot(pe, a_hard, preferred_element_type=jnp.float32) / denom

    d_hat = heads_t[0:1, :]
    p_hat = heads_t[1:2, :]
    e_hat = heads_t[2:3, :]
    d_tgt = jnp.log(dur + 1.0)
    d_num = jnp.sum(((d_hat - d_tgt) ** 2) * smask, keepdims=True)
    p_num = jnp.sum(((p_hat - pe_tok[0:1, :]) ** 2) * smask, keepdims=True)
    e_num = jnp.sum(((e_hat - pe_tok[1:2, :]) ** 2) * smask, keepdims=True)
    mask_sum = jnp.sum(smask, keepdims=True)

    bin_num = jnp.sum(jnp.where(a_hard > 0.0, log_a, 0.0), keepdims=True)
    bin_den = jnp.sum(a_hard, keepdims=True)

    # alignment-expanded hidden states -> tanh vocoder (fake segment)
    h_seg = jnp.dot(a_hard[:seg, :], h_src,
                    preferred_element_type=jnp.float32)           # (seg, D)
    fake = jnp.tanh(jnp.dot(h_seg, wvoc_ref[...],
                            preferred_element_type=jnp.float32))  # (seg, HOP)
    fake_ref[0] = fake

    # mel-loss features for the fake and real segments, fused here
    r8 = jax.lax.broadcasted_iota(jnp.int32, (SEG_NBLK, seg), 0)
    c8 = jax.lax.broadcasted_iota(jnp.int32, (SEG_NBLK, seg), 1)
    pad_sel = jnp.where(r8 == c8 + PAD_BLOCKS, 1.0, 0.0)          # (8, seg)
    fake_blk = jnp.dot(pad_sel, fake, preferred_element_type=jnp.float32)
    mel_fake = _stft_logmel(fake_blk, SEG_FRAMES, fourier_ref[...],
                            melfb_ref[...])
    mel_real = _stft_logmel(seg_ref[0], SEG_FRAMES, fourier_ref[...],
                            melfb_ref[...])
    mel_abs = jnp.sum(jnp.abs(mel_fake - mel_real), keepdims=True)

    cs = jax.lax.broadcasted_iota(jnp.int32, (1, 8), 1)
    stats = (jnp.where(cs == 0, d_num, 0.0) + jnp.where(cs == 1, p_num, 0.0)
             + jnp.where(cs == 2, e_num, 0.0)
             + jnp.where(cs == 3, mask_sum, 0.0)
             + jnp.where(cs == 4, bin_num, 0.0)
             + jnp.where(cs == 5, bin_den, 0.0)
             + jnp.where(cs == 6, mel_abs, 0.0))
    stats_ref[0] = stats


def gen_core_call(params, src_feat, tgt_feat, src_mask, tgt_mask, pe,
                  seg_blocks):
    bsz, ts, cin = src_feat.shape
    tt = tgt_feat.shape[1]
    smask_row = src_mask.astype(jnp.float32).reshape(bsz, 1, ts)
    tmask_col = tgt_mask.astype(jnp.float32).reshape(bsz, tt, 1)
    fake, stats = pl.pallas_call(
        partial(_gen_loss_kernel, scale=1.0 / math.sqrt(D_MODEL),
                seg=SEGMENT_SIZE),
        grid=(bsz,),
        out_shape=(jax.ShapeDtypeStruct((bsz, SEGMENT_SIZE, HOP_SIZE),
                                        jnp.float32),
                   jax.ShapeDtypeStruct((bsz, 1, 8), jnp.float32)),
        in_specs=[pl.BlockSpec((1, ts, cin), lambda b: (b, 0, 0)),
                  pl.BlockSpec((1, tt, MEL_SIZE), lambda b: (b, 0, 0)),
                  pl.BlockSpec((1, 1, ts), lambda b: (b, 0, 0)),
                  pl.BlockSpec((1, tt, 1), lambda b: (b, 0, 0)),
                  pl.BlockSpec((1, 2, tt), lambda b: (b, 0, 0)),
                  pl.BlockSpec((1, SEG_NBLK, HOP_SIZE), lambda b: (b, 0, 0)),
                  pl.BlockSpec((cin, D_MODEL), lambda b: (0, 0)),
                  pl.BlockSpec((1, D_MODEL), lambda b: (0, 0)),
                  pl.BlockSpec((MEL_SIZE, D_MODEL), lambda b: (0, 0)),
                  pl.BlockSpec((3, D_MODEL), lambda b: (0, 0)),
                  pl.BlockSpec((D_MODEL, HOP_SIZE), lambda b: (0, 0)),
                  pl.BlockSpec((WINDOW_SIZE, 2 * N_FREQ_PAD),
                               lambda b: (0, 0)),
                  pl.BlockSpec((N_FREQ_PAD, MEL_SIZE), lambda b: (0, 0))],
        out_specs=(pl.BlockSpec((1, SEGMENT_SIZE, HOP_SIZE),
                                lambda b: (b, 0, 0)),
                   pl.BlockSpec((1, 1, 8), lambda b: (b, 0, 0))),
        compiler_params=pltpu.CompilerParams(
            dimension_semantics=("parallel",)),
    )(src_feat, tgt_feat, smask_row, tmask_col, pe, seg_blocks,
      params["w_enc"], params["b_enc"].reshape(1, -1), params["w_tgt"],
      params["w_heads_t"], params["w_voc"], FOURIER_PAD, MEL_FB_PAD)
    return fake, stats


# ---------------------------------------------------------------------------
# Kernel C: fused 3-layer strided-conv discriminator + adv/fm partial sums
# ---------------------------------------------------------------------------
def _disc_kernel(fake_ref, real_ref, a1_ref, a2_ref, a3_ref,
                 w1_ref, b1_ref, w2_ref, b2_ref, w3_ref, b3_ref, stats_ref):
    def leaky(v):
        return jnp.where(v >= 0.0, v, 0.1 * v)

    def stack(x):                                   # x: (SEG_SAMPLES, 1)
        acc1 = jnp.zeros((DISC_L1, DISC_CH1), jnp.float32)
        for tap in range(5):
            xa = jnp.dot(a1_ref[tap], x, preferred_element_type=jnp.float32)
            acc1 = acc1 + xa * w1_ref[tap:tap + 1, :]
        h1 = leaky(acc1 + b1_ref[...])              # (32, 8)
        acc2 = jnp.zeros((DISC_L2, DISC_CH2), jnp.float32)
        for tap in range(5):
            xa = jnp.dot(a2_ref[tap], h1, preferred_element_type=jnp.float32)
            acc2 = acc2 + jnp.dot(
                xa, w2_ref[tap * DISC_CH1:(tap + 1) * DISC_CH1, :],
                preferred_element_type=jnp.float32)
        h2 = leaky(acc2 + b2_ref[...])              # (16, 16)
        acc3 = jnp.zeros((DISC_L3, 1), jnp.float32)
        for tap in range(3):
            xa = jnp.dot(a3_ref[tap], h2, preferred_element_type=jnp.float32)
            acc3 = acc3 + jnp.dot(
                xa, w3_ref[tap * DISC_CH2:(tap + 1) * DISC_CH2, :],
                preferred_element_type=jnp.float32)
        score = acc3 + b3_ref[...]                  # (16, 1)
        return h1, h2, score

    h1f, h2f, sf = stack(fake_ref[0])
    h1r, h2r, _ = stack(real_ref[0])
    adv = jnp.sum((1.0 - sf) ** 2, keepdims=True)
    fm1 = jnp.sum(jnp.abs(h1r - h1f), keepdims=True)
    fm2 = jnp.sum(jnp.abs(h2r - h2f), keepdims=True)
    cs = jax.lax.broadcasted_iota(jnp.int32, (1, 4), 1)
    stats_ref[0] = (jnp.where(cs == 0, adv, 0.0)
                    + jnp.where(cs == 1, fm1, 0.0)
                    + jnp.where(cs == 2, fm2, 0.0))


def disc_call(params, fake_x, real_x):
    bsz = fake_x.shape[0]
    return pl.pallas_call(
        _disc_kernel,
        grid=(bsz,),
        out_shape=jax.ShapeDtypeStruct((bsz, 1, 4), jnp.float32),
        in_specs=[pl.BlockSpec((1, SEG_SAMPLES, 1), lambda b: (b, 0, 0)),
                  pl.BlockSpec((1, SEG_SAMPLES, 1), lambda b: (b, 0, 0)),
                  pl.BlockSpec((5, DISC_L1, SEG_SAMPLES), lambda b: (0, 0, 0)),
                  pl.BlockSpec((5, DISC_L2, DISC_L1), lambda b: (0, 0, 0)),
                  pl.BlockSpec((3, DISC_L3, DISC_L2), lambda b: (0, 0, 0)),
                  pl.BlockSpec((5, DISC_CH1), lambda b: (0, 0)),
                  pl.BlockSpec((1, DISC_CH1), lambda b: (0, 0)),
                  pl.BlockSpec((5 * DISC_CH1, DISC_CH2), lambda b: (0, 0)),
                  pl.BlockSpec((1, DISC_CH2), lambda b: (0, 0)),
                  pl.BlockSpec((3 * DISC_CH2, 1), lambda b: (0, 0)),
                  pl.BlockSpec((1, 1), lambda b: (0, 0))],
        out_specs=pl.BlockSpec((1, 1, 4), lambda b: (b, 0, 0)),
        compiler_params=pltpu.CompilerParams(
            dimension_semantics=("parallel",)),
    )(fake_x, real_x, A1_SEL, A2_SEL, A3_SEL,
      params["w_disc1"], params["b_disc1"].reshape(1, -1),
      params["w_disc2"], params["b_disc2"].reshape(1, -1),
      params["w_disc3"], params["b_disc3"].reshape(1, -1))


# ---------------------------------------------------------------------------
# params / glue
# ---------------------------------------------------------------------------
def init_params(key):
    ks = jax.random.split(key, 7)
    s = 0.1
    return dict(
        w_enc=s * jax.random.normal(ks[0], (REDUCTION_FACTOR * MEL_SIZE,
                                            D_MODEL), jnp.float32),
        b_enc=jnp.zeros((D_MODEL,), jnp.float32),
        w_tgt=s * jax.random.normal(ks[1], (MEL_SIZE, D_MODEL), jnp.float32),
        # duration / pitch / energy heads fused, stored transposed (3, D)
        w_heads_t=s * jax.random.normal(ks[2], (3, D_MODEL), jnp.float32),
        w_voc=s * jax.random.normal(ks[3], (D_MODEL, HOP_SIZE), jnp.float32),
        w_disc1=s * jax.random.normal(ks[4], (5 * 1, DISC_CH1), jnp.float32),
        b_disc1=jnp.zeros((DISC_CH1,), jnp.float32),
        w_disc2=s * jax.random.normal(ks[5], (5 * DISC_CH1, DISC_CH2),
                                      jnp.float32),
        b_disc2=jnp.zeros((DISC_CH2,), jnp.float32),
        w_disc3=s * jax.random.normal(ks[6], (3 * DISC_CH2, 1), jnp.float32),
        b_disc3=jnp.zeros((1,), jnp.float32),
    )


def feat_mask_from_length(length, n_frames):
    valid = length // HOP_SIZE + 1
    return jnp.arange(n_frames)[None, :] < valid[:, None]


# ---------------------------------------------------------------------------
# Model.forward
# ---------------------------------------------------------------------------
def forward(params, src_audio, src_audio_length, tgt_audio, tgt_audio_length,
            eps=1e-12):
    bsz = src_audio.shape[0]
    t_src = src_audio.shape[1] // HOP_SIZE + 1
    t_tgt = tgt_audio.shape[1] // HOP_SIZE + 1
    src_mask = feat_mask_from_length(src_audio_length, t_src)
    tgt_mask_full = feat_mask_from_length(tgt_audio_length, t_tgt)

    # --- fused framing+STFT+mel+energy+normalize (src|tgt in one launch) ---
    if src_audio.shape[1] == tgt_audio.shape[1]:
        feat_all, energy_all = mel_norm_features(
            jnp.concatenate([src_audio, tgt_audio], axis=0),
            jnp.concatenate([src_mask, tgt_mask_full], axis=0), eps)
        src_feat, tgt_feat_full = feat_all[:bsz], feat_all[bsz:]
        energy_full = energy_all[bsz:, :, 0]
    else:  # fallback: unequal sample lengths
        src_feat, _ = mel_norm_features(src_audio, src_mask, eps)
        tgt_feat_full, tgt_energy = mel_norm_features(tgt_audio,
                                                      tgt_mask_full, eps)
        energy_full = tgt_energy[:, :, 0]

    # TODO(synk): Pitch (F0) DSP estimator has no clean Pallas equivalent; zeros placeholder.
    pitch_full = jnp.zeros_like(energy_full)

    tgt_feat = tgt_feat_full[:, :-1, :]
    tgt_mask = tgt_mask_full[:, :-1]
    energy = energy_full[:, :-1]
    pitch = pitch_full[:, :-1]

    src_length = jnp.sum(src_mask.astype(jnp.int32), axis=1)
    # tgt_length consumed only by the untranslated ForwardSumLoss

    _, src_frame_length, mel_size = src_feat.shape
    new_frame_length = math.ceil(src_frame_length / REDUCTION_FACTOR)
    pad_frames = REDUCTION_FACTOR * new_frame_length - src_frame_length
    src_feat = jnp.pad(src_feat, ((0, 0), (0, pad_frames), (0, 0)))
    src_feat = src_feat.reshape(bsz, new_frame_length,
                                REDUCTION_FACTOR * mel_size)
    src_length = jnp.ceil(src_length / REDUCTION_FACTOR).astype(jnp.int32)
    src_mask = jnp.arange(new_frame_length)[None, :] < src_length[:, None]

    # real target segment (TODO(synk): start_frame fixed to 0 stand-in)
    tgt_seg = tgt_audio[:, :SEG_SAMPLES]
    pad = WINDOW_SIZE // 2
    seg_blocks = jnp.pad(tgt_seg, ((0, 0), (pad, pad))).reshape(
        bsz, SEG_NBLK, HOP_SIZE)

    pe = jnp.stack([pitch, energy], axis=1)                # (B, 2, Tt)

    # --- fused generator + alignment + vocoder + mel-loss features ---
    fake_wav, gstats = gen_core_call(params, src_feat, tgt_feat, src_mask,
                                     tgt_mask, pe, seg_blocks)
    gs = jnp.sum(gstats[:, 0, :], axis=0)
    msum = jnp.maximum(gs[3], 1.0)
    d_loss, p_loss, e_loss = gs[0] / msum, gs[1] / msum, gs[2] / msum
    loss_var = d_loss + p_loss + e_loss
    loss_bin = -gs[4] / jnp.maximum(gs[5], 1.0)
    # TODO(synk): ForwardSumLoss (CTC-style alignment forward algorithm) not translated.
    loss_fs = jnp.float32(0.0)
    loss_align = loss_fs + loss_bin
    loss_mel = gs[6] / (bsz * SEG_FRAMES * MEL_SIZE)

    # --- fused discriminator (fake & real together) ---
    fake_flat = fake_wav.reshape(bsz, SEG_SAMPLES)
    dstats = disc_call(params, fake_flat[..., None], tgt_seg[..., None])
    ds = jnp.sum(dstats[:, 0, :], axis=0)
    loss_adv = ds[0] / (bsz * DISC_L3)
    loss_fm = (ds[1] / (bsz * DISC_L1 * DISC_CH1)
               + ds[2] / (bsz * DISC_L2 * DISC_CH2)) / 2.0

    loss = (loss_adv + LAMBDA_FM * loss_fm + LAMBDA_MEL * loss_mel
            + LAMBDA_ALIGN * loss_align + LAMBDA_VAR * loss_var)
    stats = dict(loss=loss, loss_adv=loss_adv, loss_fm=loss_fm,
                 loss_mel=loss_mel, loss_fs=loss_fs, loss_bin=loss_bin,
                 loss_d=d_loss, loss_p=p_loss, loss_e=e_loss)
    return loss, stats


# ---------------------------------------------------------------------------
if __name__ == "__main__":
    key = jax.random.PRNGKey(0)
    k1, k2, k3 = jax.random.split(key, 3)
    B, L = 2, 256
    src_audio = 0.1 * jax.random.normal(k1, (B, L), dtype=jnp.float32)
    tgt_audio = 0.1 * jax.random.normal(k2, (B, L), dtype=jnp.float32)
    src_audio_length = jnp.array([256, 224], dtype=jnp.int32)
    tgt_audio_length = jnp.array([256, 224], dtype=jnp.int32)
    assert all(int(v) % HOP_SIZE == 0 for v in np.asarray(tgt_audio_length))

    params = init_params(k3)
    loss, stats = jax.jit(forward)(params, src_audio, src_audio_length,
                                   tgt_audio, tgt_audio_length)
    jax.block_until_ready(loss)
    assert np.isfinite(float(loss))
    print("KERNEL_OK")
</pallas_src>

<mosaic_0001>
module attributes {stable_mosaic.version = 11 : i64} {
  func.func @_feat_norm_kernel(%arg0: i32, %arg1: memref<1x20x16xf32, #tpu.memory_space<vmem>>, %arg2: memref<1x17x1xf32, #tpu.memory_space<vmem>>, %arg3: memref<64x128xf32, #tpu.memory_space<vmem>>, %arg4: memref<64x8xf32, #tpu.memory_space<vmem>>, %arg5: memref<1x17x8xf32, #tpu.memory_space<vmem>>, %arg6: memref<1x17x1xf32, #tpu.memory_space<vmem>>) attributes {dimension_semantics = [#tpu.dimension_semantics<parallel>], iteration_bounds = array<i64: 4>, scalar_prefetch = 0 : i64, scratch_operands = 0 : i64, tpu.core_type = #tpu.core_type<tc>, window_params = [{transform_indices = @transform_0, window_bounds = array<i64: 1, 20, 16>}, {transform_indices = @transform_1, window_bounds = array<i64: 1, 17, 1>}, {pipeline_mode = #tpu.pipeline_mode<synchronous>, transform_indices = @transform_2, window_bounds = array<i64: 64, 128>}, {pipeline_mode = #tpu.pipeline_mode<synchronous>, transform_indices = @transform_3, window_bounds = array<i64: 64, 8>}, {transform_indices = @transform_4, window_bounds = array<i64: 1, 17, 8>}, {transform_indices = @transform_5, window_bounds = array<i64: 1, 17, 1>}]} {
    %c0 = arith.constant 0 : index
    %c0_0 = arith.constant 0 : index
    %c0_1 = arith.constant 0 : index
    %0 = vector.load %arg1[%c0, %c0_0, %c0_1] : memref<1x20x16xf32, #tpu.memory_space<vmem>>, vector<1x20x16xf32>
    %1 = vector.shape_cast %0 : vector<1x20x16xf32> to vector<20x16xf32>
    %c0_2 = arith.constant 0 : index
    %c0_3 = arith.constant 0 : index
    %2 = vector.load %arg3[%c0_2, %c0_3] : memref<64x128xf32, #tpu.memory_space<vmem>>, vector<64x128xf32>
    %c0_4 = arith.constant 0 : index
    %c0_5 = arith.constant 0 : index
    %3 = vector.load %arg4[%c0_4, %c0_5] : memref<64x8xf32, #tpu.memory_space<vmem>>, vector<64x8xf32>
    %4 = tpu.iota {dimensions = array<i32: 0>} : vector<17x20xi32>
    %5 = tpu.iota {dimensions = array<i32: 1>} : vector<17x20xi32>
    %c0_i32 = arith.constant 0 : i32
    %6 = vector.broadcast %c0_i32 : i32 to vector<17x20xi32>
    %7 = arith.addi %4, %6 : vector<17x20xi32>
    %8 = arith.cmpi eq, %5, %7 : vector<17x20xi32>
    %cst = arith.constant 1.000000e+00 : f32
    %cst_6 = arith.constant 0.000000e+00 : f32
    %9 = vector.broadcast %cst : f32 to vector<17x20xf32>
    %10 = vector.broadcast %cst_6 : f32 to vector<17x20xf32>
    %11 = arith.select %8, %9, %10 : vector<17x20xi1>, vector<17x20xf32>
    %cst_7 = arith.constant dense<0.000000e+00> : vector<17x16xf32>
    %12 = tpu.matmul %11, %1, %cst_7 {dimension_numbers = #tpu.dot_dimension_numbers<[1], [0], [0], [1], [0, 0, 1, 1], [], []>} : vector<17x20xf32>, vector<20x16xf32>, vector<17x16xf32> -> vector<17x16xf32>
    %13 = vector.extract_strided_slice %2 {offsets = [0, 0], sizes = [16, 128], strides = [1, 1]} : vector<64x128xf32> to vector<16x128xf32>
    %cst_8 = arith.constant dense<0.000000e+00> : vector<17x128xf32>
    %14 = tpu.matmul %12, %13, %cst_8 {dimension_numbers = #tpu.dot_dimension_numbers<[1], [0], [0], [1], [0, 0, 1, 1], [], []>} : vector<17x16xf32>, vector<16x128xf32>, vector<17x128xf32> -> vector<17x128xf32>
    %c1_i32 = arith.constant 1 : i32
    %15 = vector.broadcast %c1_i32 : i32 to vector<17x20xi32>
    %16 = arith.addi %4, %15 : vector<17x20xi32>
    %17 = arith.cmpi eq, %5, %16 : vector<17x20xi32>
    %cst_9 = arith.constant 1.000000e+00 : f32
    %cst_10 = arith.constant 0.000000e+00 : f32
    %18 = vector.broadcast %cst_9 : f32 to vector<17x20xf32>
    %19 = vector.broadcast %cst_10 : f32 to vector<17x20xf32>
    %20 = arith.select %17, %18, %19 : vector<17x20xi1>, vector<17x20xf32>
    %cst_11 = arith.constant dense<0.000000e+00> : vector<17x16xf32>
    %21 = tpu.matmul %20, %1, %cst_11 {dimension_numbers = #tpu.dot_dimension_numbers<[1], [0], [0], [1], [0, 0, 1, 1], [], []>} : vector<17x20xf32>, vector<20x16xf32>, vector<17x16xf32> -> vector<17x16xf32>
    %22 = vector.extract_strided_slice %2 {offsets = [16, 0], sizes = [16, 128], strides = [1, 1]} : vector<64x128xf32> to vector<16x128xf32>
    %cst_12 = arith.constant dense<0.000000e+00> : vector<17x128xf32>
    %23 = tpu.matmul %21, %22, %cst_12 {dimension_numbers = #tpu.dot_dimension_numbers<[1], [0], [0], [1], [0, 0, 1, 1], [], []>} : vector<17x16xf32>, vector<16x128xf32>, vector<17x128xf32> -> vector<17x128xf32>
    %24 = arith.addf %14, %23 : vector<17x128xf32>
    %c2_i32 = arith.constant 2 : i32
    %25 = vector.broadcast %c2_i32 : i32 to vector<17x20xi32>
    %26 = arith.addi %4, %25 : vector<17x20xi32>
    %27 = arith.cmpi eq, %5, %26 : vector<17x20xi32>
    %cst_13 = arith.constant 1.000000e+00 : f32
    %cst_14 = arith.constant 0.000000e+00 : f32
    %28 = vector.broadcast %cst_13 : f32 to vector<17x20xf32>
    %29 = vector.broadcast %cst_14 : f32 to vector<17x20xf32>
    %30 = arith.select %27, %28, %29 : vector<17x20xi1>, vector<17x20xf32>
    %cst_15 = arith.constant dense<0.000000e+00> : vector<17x16xf32>
    %31 = tpu.matmul %30, %1, %cst_15 {dimension_numbers = #tpu.dot_dimension_numbers<[1], [0], [0], [1], [0, 0, 1, 1], [], []>} : vector<17x20xf32>, vector<20x16xf32>, vector<17x16xf32> -> vector<17x16xf32>
    %32 = vector.extract_strided_slice %2 {offsets = [32, 0], sizes = [16, 128], strides = [1, 1]} : vector<64x128xf32> to vector<16x128xf32>
    %cst_16 = arith.constant dense<0.000000e+00> : vector<17x128xf32>
    %33 = tpu.matmul %31, %32, %cst_16 {dimension_numbers = #tpu.dot_dimension_numbers<[1], [0], [0], [1], [0, 0, 1, 1], [], []>} : vector<17x16xf32>, vector<16x128xf32>, vector<17x128xf32> -> vector<17x128xf32>
    %34 = arith.addf %24, %33 : vector<17x128xf32>
    %c3_i32 = arith.constant 3 : i32
    %35 = vector.broadcast %c3_i32 : i32 to vector<17x20xi32>
    %36 = arith.addi %4, %35 : vector<17x20xi32>
    %37 = arith.cmpi eq, %5, %36 : vector<17x20xi32>
    %cst_17 = arith.constant 1.000000e+00 : f32
    %cst_18 = arith.constant 0.000000e+00 : f32
    %38 = vector.broadcast %cst_17 : f32 to vector<17x20xf32>
    %39 = vector.broadcast %cst_18 : f32 to vector<17x20xf32>
    %40 = arith.select %37, %38, %39 : vector<17x20xi1>, vector<17x20xf32>
    %cst_19 = arith.constant dense<0.000000e+00> : vector<17x16xf32>
    %41 = tpu.matmul %40, %1, %cst_19 {dimension_numbers = #tpu.dot_dimension_numbers<[1], [0], [0], [1], [0, 0, 1, 1], [], []>} : vector<17x20xf32>, vector<20x16xf32>, vector<17x16xf32> -> vector<17x16xf32>
    %42 = vector.extract_strided_slice %2 {offsets = [48, 0], sizes = [16, 128], strides = [1, 1]} : vector<64x128xf32> to vector<16x128xf32>
    %cst_20 = arith.constant dense<0.000000e+00> : vector<17x128xf32>
    %43 = tpu.matmul %41, %42, %cst_20 {dimension_numbers = #tpu.dot_dimension_numbers<[1], [0], [0], [1], [0, 0, 1, 1], [], []>} : vector<17x16xf32>, vector<16x128xf32>, vector<17x128xf32> -> vector<17x128xf32>
    %44 = arith.addf %34, %43 : vector<17x128xf32>
    %45 = vector.extract_strided_slice %44 {offsets = [0, 0], sizes = [17, 64], strides = [1, 1]} : vector<17x128xf32> to vector<17x64xf32>
    %46 = arith.mulf %45, %45 : vector<17x64xf32>
    %47 = vector.extract_strided_slice %44 {offsets = [0, 64], sizes = [17, 64], strides = [1, 1]} : vector<17x128xf32> to vector<17x64xf32>
    %48 = arith.mulf %47, %47 : vector<17x64xf32>
    %49 = arith.addf %46, %48 : vector<17x64xf32>
    %cst_21 = arith.constant 9.99999971E-10 : f32
    %50 = vector.broadcast %cst_21 : f32 to vector<17x64xf32>
    %51 = arith.addf %49, %50 : vector<17x64xf32>
    %52 = math.sqrt %51 : vector<17x64xf32>
    %cst_22 = arith.constant dense<0.000000e+00> : vector<17x8xf32>
    %53 = tpu.matmul %52, %3, %cst_22 {dimension_numbers = #tpu.dot_dimension_numbers<[1], [0], [0], [1], [0, 0, 1, 1], [], []>} : vector<17x64xf32>, vector<64x8xf32>, vector<17x8xf32> -> vector<17x8xf32>
    %cst_23 = arith.constant 9.99999974E-6 : f32
    %54 = vector.broadcast %cst_23 : f32 to vector<17x8xf32>
    %55 = arith.maximumf %53, %54 : vector<17x8xf32>
    %56 = math.log %55 : vector<17x8xf32>
    %cst_24 = arith.constant dense<0.000000e+00> : vector<17xf32>
    %57 = vector.multi_reduction <add>, %49, %cst_24 [1] : vector<17x64xf32> to vector<17xf32>
    %58 = vector.shape_cast %57 : vector<17xf32> to vector<17x1xf32>
    %cst_25 = arith.constant 9.99999971E-10 : f32
    %59 = vector.broadcast %cst_25 : f32 to vector<17x1xf32>
    %60 = arith.addf %58, %59 : vector<17x1xf32>
    %61 = math.sqrt %60 : vector<17x1xf32>
    %c0_26 = arith.constant 0 : index
    %c0_27 = arith.constant 0 : index
    %c0_28 = arith.constant 0 : index
    %62 = vector.load %arg2[%c0_26, %c0_27, %c0_28] : memref<1x17x1xf32, #tpu.memory_space<vmem>>, vector<1x17x1xf32>
    %63 = vector.shape_cast %62 : vector<1x17x1xf32> to vector<17x1xf32>
    %cst_29 = arith.constant dense<0.000000e+00> : vector<8xf32>
    %64 = vector.multi_reduction <add>, %56, %cst_29 [0] : vector<17x8xf32> to vector<8xf32>
    %65 = vector.shape_cast %64 : vector<8xf32> to vector<1x8xf32>
    %cst_30 = arith.constant 1.700000e+01 : f32
    %66 = vector.broadcast %cst_30 : f32 to vector<1x8xf32>
    %67 = arith.divf %65, %66 : vector<1x8xf32>
    %68 = vector.broadcast %67 : vector<1x8xf32> to vector<17x8xf32>
    %69 = arith.subf %56, %68 : vector<17x8xf32>
    %70 = arith.mulf %69, %69 : vector<17x8xf32>
    %cst_31 = arith.constant dense<0.000000e+00> : vector<8xf32>
    %71 = vector.multi_reduction <add>, %70, %cst_31 [0] : vector<17x8xf32> to vector<8xf32>
    %72 = vector.shape_cast %71 : vector<8xf32> to vector<1x8xf32>
    %cst_32 = arith.constant 1.700000e+01 : f32
    %cst_33 = arith.constant 1.000000e+00 : f32
    %73 = arith.subf %cst_32, %cst_33 : f32
    %74 = vector.broadcast %73 : f32 to vector<1x8xf32>
    %75 = arith.divf %72, %74 : vector<1x8xf32>
    %76 = vector.broadcast %67 : vector<1x8xf32> to vector<17x8xf32>
    %77 = arith.subf %56, %76 : vector<17x8xf32>
    %78 = math.sqrt %75 : vector<1x8xf32>
    %cst_34 = arith.constant 9.99999996E-13 : f32
    %79 = vector.broadcast %cst_34 : f32 to vector<1x8xf32>
    %80 = arith.addf %78, %79 : vector<1x8xf32>
    %81 = vector.broadcast %80 : vector<1x8xf32> to vector<17x8xf32>
    %82 = arith.divf %77, %81 : vector<17x8xf32>
    %83 = vector.broadcast %63 : vector<17x1xf32> to vector<17x8xf32>
    %84 = arith.mulf %82, %83 : vector<17x8xf32>
    %c0_35 = arith.constant 0 : index
    %c0_36 = arith.constant 0 : index
    %c0_37 = arith.constant 0 : index
    %85 = vector.load %arg5[%c0_35, %c0_36, %c0_37] : memref<1x17x8xf32, #tpu.memory_space<vmem>>, vector<1x17x8xf32>
    %86 = vector.shape_cast %85 : vector<1x17x8xf32> to vector<17x8xf32>
    %87 = vector.shape_cast %84 : vector<17x8xf32> to vector<1x17x8xf32>
    tpu.vector_store %arg5[%c0_35, %c0_36, %c0_37], %87 {strides = array<i32>} : memref<1x17x8xf32, #tpu.memory_space<vmem>>, vector<1x17x8xf32>,
    %cst_38 = arith.constant dense<0.000000e+00> : vector<1xf32>
    %88 = vector.multi_reduction <add>, %61, %cst_38 [0] : vector<17x1xf32> to vector<1xf32>
    %89 = vector.shape_cast %88 : vector<1xf32> to vector<1x1xf32>
    %cst_39 = arith.constant 1.700000e+01 : f32
    %90 = vector.broadcast %cst_39 : f32 to vector<1x1xf32>
    %91 = arith.divf %89, %90 : vector<1x1xf32>
    %92 = vector.broadcast %91 : vector<1x1xf32> to vector<17x1xf32>
    %93 = arith.subf %61, %92 : vector<17x1xf32>
    %94 = arith.mulf %93, %93 : vector<17x1xf32>
    %cst_40 = arith.constant dense<0.000000e+00> : vector<1xf32>
    %95 = vector.multi_reduction <add>, %94, %cst_40 [0] : vector<17x1xf32> to vector<1xf32>
    %96 = vector.shape_cast %95 : vector<1xf32> to vector<1x1xf32>
    %cst_41 = arith.constant 1.700000e+01 : f32
    %cst_42 = arith.constant 1.000000e+00 : f32
    %97 = arith.subf %cst_41, %cst_42 : f32
    %98 = vector.broadcast %97 : f32 to vector<1x1xf32>
    %99 = arith.divf %96, %98 : vector<1x1xf32>
    %100 = vector.broadcast %91 : vector<1x1xf32> to vector<17x1xf32>
    %101 = arith.subf %61, %100 : vector<17x1xf32>
    %102 = math.sqrt %99 : vector<1x1xf32>
    %cst_43 = arith.constant 9.99999996E-13 : f32
    %103 = vector.broadcast %cst_43 : f32 to vector<1x1xf32>
    %104 = arith.addf %102, %103 : vector<1x1xf32>
    %105 = vector.broadcast %104 : vector<1x1xf32> to vector<17x1xf32>
    %106 = arith.divf %101, %105 : vector<17x1xf32>
    %107 = arith.mulf %106, %63 : vector<17x1xf32>
    %c0_44 = arith.constant 0 : index
    %c0_45 = arith.constant 0 : index
    %c0_46 = arith.constant 0 : index
    %108 = vector.load %arg6[%c0_44, %c0_45, %c0_46] : memref<1x17x1xf32, #tpu.memory_space<vmem>>, vector<1x17x1xf32>
    %109 = vector.shape_cast %108 : vector<1x17x1xf32> to vector<17x1xf32>
    %110 = vector.shape_cast %107 : vector<17x1xf32> to vector<1x17x1xf32>
    tpu.vector_store %arg6[%c0_44, %c0_45, %c0_46], %110 {strides = array<i32>} : memref<1x17x1xf32, #tpu.memory_space<vmem>>, vector<1x17x1xf32>,
    return
  }
  func.func @transform_0(%arg0: i32) -> (i32, i32, i32) {
    %c0_i32 = arith.constant 0 : i32
    %c0_i32_0 = arith.constant 0 : i32
    %c0_i32_1 = arith.constant 0 : i32
    return %arg0, %c0_i32, %c0_i32_0 : i32, i32, i32
  }
  func.func @transform_1(%arg0: i32) -> (i32, i32, i32) {
    %c0_i32 = arith.constant 0 : i32
    %c0_i32_0 = arith.constant 0 : i32
    %c0_i32_1 = arith.constant 0 : i32
    return %arg0, %c0_i32, %c0_i32_0 : i32, i32, i32
  }
  func.func @transform_2(%arg0: i32) -> (i32, i32) {
    %c0_i32 = arith.constant 0 : i32
    %c0_i32_0 = arith.constant 0 : i32
    %c0_i32_1 = arith.constant 0 : i32
    return %c0_i32, %c0_i32_0 : i32, i32
  }
  func.func @transform_3(%arg0: i32) -> (i32, i32) {
    %c0_i32 = arith.constant 0 : i32
    %c0_i32_0 = arith.constant 0 : i32
    %c0_i32_1 = arith.constant 0 : i32
    return %c0_i32, %c0_i32_0 : i32, i32
  }
  func.func @transform_4(%arg0: i32) -> (i32, i32, i32) {
    %c0_i32 = arith.constant 0 : i32
    %c0_i32_0 = arith.constant 0 : i32
    %c0_i32_1 = arith.constant 0 : i32
    return %arg0, %c0_i32, %c0_i32_0 : i32, i32, i32
  }
  func.func @transform_5(%arg0: i32) -> (i32, i32, i32) {
    %c0_i32 = arith.constant 0 : i32
    %c0_i32_0 = arith.constant 0 : i32
    %c0_i32_1 = arith.constant 0 : i32
    return %arg0, %c0_i32, %c0_i32_0 : i32, i32, i32
  }
}

module attributes {stable_mosaic.version = 11 : i64} {
  func.func @_gen_loss_kernel(%arg0: i32, %arg1: memref<1x9x16xf32, #tpu.memory_space<vmem>>, %arg2: memref<1x16x8xf32, #tpu.memory_space<vmem>>, %arg3: memref<1x1x9xf32, #tpu.memory_space<vmem>>, %arg4: memref<1x16x1xf32, #tpu.memory_space<vmem>>, %arg5: memref<1x2x16xf32, #tpu.memory_space<vmem>>, %arg6: memref<1x8x16xf32, #tpu.memory_space<vmem>>, %arg7: memref<16x32xf32, #tpu.memory_space<vmem>>, %arg8: memref<1x32xf32, #tpu.memory_space<vmem>>, %arg9: memref<8x32xf32, #tpu.memory_space<vmem>>, %arg10: memref<3x32xf32, #tpu.memory_space<vmem>>, %arg11: memref<32x16xf32, #tpu.memory_space<vmem>>, %arg12: memref<64x128xf32, #tpu.memory_space<vmem>>, %arg13: memref<64x8xf32, #tpu.memory_space<vmem>>, %arg14: memref<1x4x16xf32, #tpu.memory_space<vmem>>, %arg15: memref<1x1x8xf32, #tpu.memory_space<vmem>>) attributes {dimension_semantics = [#tpu.dimension_semantics<parallel>], iteration_bounds = array<i64: 2>, scalar_prefetch = 0 : i64, scratch_operands = 0 : i64, tpu.core_type = #tpu.core_type<tc>, window_params = [{transform_indices = @transform_0, window_bounds = array<i64: 1, 9, 16>}, {transform_indices = @transform_1, window_bounds = array<i64: 1, 16, 8>}, {transform_indices = @transform_2, window_bounds = array<i64: 1, 1, 9>}, {transform_indices = @transform_3, window_bounds = array<i64: 1, 16, 1>}, {transform_indices = @transform_4, window_bounds = array<i64: 1, 2, 16>}, {transform_indices = @transform_5, window_bounds = array<i64: 1, 8, 16>}, {pipeline_mode = #tpu.pipeline_mode<synchronous>, transform_indices = @transform_6, window_bounds = array<i64: 16, 32>}, {pipeline_mode = #tpu.pipeline_mode<synchronous>, transform_indices = @transform_7, window_bounds = array<i64: 1, 32>}, {pipeline_mode = #tpu.pipeline_mode<synchronous>, transform_indices = @transform_8, window_bounds = array<i64: 8, 32>}, {pipeline_mode = #tpu.pipeline_mode<synchronous>, transform_indices = @transform_9, window_bounds = array<i64: 3, 32>}, {pipeline_mode = #tpu.pipeline_mode<synchronous>, transform_indices = @transform_10, window_bounds = array<i64: 32, 16>}, {pipeline_mode = #tpu.pipeline_mode<synchronous>, transform_indices = @transform_11, window_bounds = array<i64: 64, 128>}, {pipeline_mode = #tpu.pipeline_mode<synchronous>, transform_indices = @transform_12, window_bounds = array<i64: 64, 8>}, {transform_indices = @transform_13, window_bounds = array<i64: 1, 4, 16>}, {transform_indices = @transform_14, window_bounds = array<i64: 1, 1, 8>}]} {
    %c0 = arith.constant 0 : index
    %c0_0 = arith.constant 0 : index
    %c0_1 = arith.constant 0 : index
    %0 = vector.load %arg1[%c0, %c0_0, %c0_1] : memref<1x9x16xf32, #tpu.memory_space<vmem>>, vector<1x9x16xf32>
    %1 = vector.shape_cast %0 : vector<1x9x16xf32> to vector<9x16xf32>
    %c0_2 = arith.constant 0 : index
    %c0_3 = arith.constant 0 : index
    %c0_4 = arith.constant 0 : index
    %2 = vector.load %arg2[%c0_2, %c0_3, %c0_4] : memref<1x16x8xf32, #tpu.memory_space<vmem>>, vector<1x16x8xf32>
    %3 = vector.shape_cast %2 : vector<1x16x8xf32> to vector<16x8xf32>
    %c0_5 = arith.constant 0 : index
    %c0_6 = arith.constant 0 : index
    %c0_7 = arith.constant 0 : index
    %4 = vector.load %arg3[%c0_5, %c0_6, %c0_7] : memref<1x1x9xf32, #tpu.memory_space<vmem>>, vector<1x1x9xf32>
    %5 = vector.shape_cast %4 : vector<1x1x9xf32> to vector<1x9xf32>
    %c0_8 = arith.constant 0 : index
    %c0_9 = arith.constant 0 : index
    %c0_10 = arith.constant 0 : index
    %6 = vector.load %arg4[%c0_8, %c0_9, %c0_10] : memref<1x16x1xf32, #tpu.memory_space<vmem>>, vector<1x16x1xf32>
    %7 = vector.shape_cast %6 : vector<1x16x1xf32> to vector<16x1xf32>
    %c0_11 = arith.constant 0 : index
    %c0_12 = arith.constant 0 : index
    %c0_13 = arith.constant 0 : index
    %8 = vector.load %arg5[%c0_11, %c0_12, %c0_13] : memref<1x2x16xf32, #tpu.memory_space<vmem>>, vector<1x2x16xf32>
    %9 = vector.shape_cast %8 : vector<1x2x16xf32> to vector<2x16xf32>
    %c0_14 = arith.constant 0 : index
    %c0_15 = arith.constant 0 : index
    %10 = vector.load %arg7[%c0_14, %c0_15] : memref<16x32xf32, #tpu.memory_space<vmem>>, vector<16x32xf32>
    %cst = arith.constant dense<0.000000e+00> : vector<9x32xf32>
    %11 = tpu.matmul %1, %10, %cst {dimension_numbers = #tpu.dot_dimension_numbers<[1], [0], [0], [1], [0, 0, 1, 1], [], []>} : vector<9x16xf32>, vector<16x32xf32>, vector<9x32xf32> -> vector<9x32xf32>
    %c0_16 = arith.constant 0 : index
    %c0_17 = arith.constant 0 : index
    %12 = vector.load %arg8[%c0_16, %c0_17] : memref<1x32xf32, #tpu.memory_space<vmem>>, vector<1x32xf32>
    %13 = vector.broadcast %12 : vector<1x32xf32> to vector<9x32xf32>
    %14 = arith.addf %11, %13 : vector<9x32xf32>
    %cst_18 = arith.constant 0.000000e+00 : f32
    %15 = vector.broadcast %cst_18 : f32 to vector<9x32xf32>
    %16 = arith.maximumf %14, %15 : vector<9x32xf32>
    %c0_19 = arith.constant 0 : index
    %c0_20 = arith.constant 0 : index
    %17 = vector.load %arg10[%c0_19, %c0_20] : memref<3x32xf32, #tpu.memory_space<vmem>>, vector<3x32xf32>
    %cst_21 = arith.constant dense<0.000000e+00> : vector<3x9xf32>
    %18 = tpu.matmul %17, %16, %cst_21 {dimension_numbers = #tpu.dot_dimension_numbers<[1], [1], [0], [0], [0, 0, 1, 0], [], []>} : vector<3x32xf32>, vector<9x32xf32>, vector<3x9xf32> -> vector<3x9xf32>
    %c0_22 = arith.constant 0 : index
    %c0_23 = arith.constant 0 : index
    %19 = vector.load %arg9[%c0_22, %c0_23] : memref<8x32xf32, #tpu.memory_space<vmem>>, vector<8x32xf32>
    %cst_24 = arith.constant dense<0.000000e+00> : vector<16x32xf32>
    %20 = tpu.matmul %3, %19, %cst_24 {dimension_numbers = #tpu.dot_dimension_numbers<[1], [0], [0], [1], [0, 0, 1, 1], [], []>} : vector<16x8xf32>, vector<8x32xf32>, vector<16x32xf32> -> vector<16x32xf32>
    %cst_25 = arith.constant dense<0.000000e+00> : vector<16x9xf32>
    %21 = tpu.matmul %20, %16, %cst_25 {dimension_numbers = #tpu.dot_dimension_numbers<[1], [1], [0], [0], [0, 0, 1, 0], [], []>} : vector<16x32xf32>, vector<9x32xf32>, vector<16x9xf32> -> vector<16x9xf32>
    %cst_26 = arith.constant 0.176776692 : f32
    %22 = vector.broadcast %cst_26 : f32 to vector<16x9xf32>
    %23 = arith.mulf %21, %22 : vector<16x9xf32>
    %cst_27 = arith.constant 0.000000e+00 : f32
    %24 = vector.broadcast %cst_27 : f32 to vector<1x9xf32>
    %25 = arith.cmpf ogt, %5, %24 : vector<1x9xf32>
    %cst_28 = arith.constant -1.000000e+09 : f32
    %26 = vector.shape_cast %25 : vector<1x9xi1> to vector<1x9xi1>
    %27 = vector.broadcast %26 : vector<1x9xi1> to vector<16x9xi1>
    %28 = vector.broadcast %cst_28 : f32 to vector<16x9xf32>
    %29 = arith.select %27, %23, %28 : vector<16x9xi1>, vector<16x9xf32>
    %cst_29 = arith.constant dense<0xFF800000> : vector<16xf32>
    %30 = vector.multi_reduction <maximumf>, %29, %cst_29 [1] : vector<16x9xf32> to vector<16xf32>
    %31 = vector.shape_cast %30 : vector<16xf32> to vector<16x1xf32>
    %32 = vector.broadcast %31 : vector<16x1xf32> to vector<16x9xf32>
    %33 = arith.subf %29, %32 : vector<16x9xf32>
    %34 = vector.broadcast %31 : vector<16x1xf32> to vector<16x9xf32>
    %35 = arith.subf %29, %34 : vector<16x9xf32>
    %36 = math.exp %35 : vector<16x9xf32>
    %cst_30 = arith.constant dense<0.000000e+00> : vector<16xf32>
    %37 = vector.multi_reduction <add>, %36, %cst_30 [1] : vector<16x9xf32> to vector<16xf32>
    %38 = vector.shape_cast %37 : vector<16xf32> to vector<16x1xf32>
    %39 = math.log %38 : vector<16x1xf32>
    %40 = vector.broadcast %39 : vector<16x1xf32> to vector<16x9xf32>
    %41 = arith.subf %33, %40 : vector<16x9xf32>
    %42 = tpu.iota {dimensions = array<i32: 1>} : vector<16x9xi32>
    %43 = vector.broadcast %31 : vector<16x1xf32> to vector<16x9xf32>
    %44 = arith.cmpf oge, %29, %43 : vector<16x9xf32>
    %c9_i32 = arith.constant 9 : i32
    %45 = vector.broadcast %c9_i32 : i32 to vector<16x9xi32>
    %46 = arith.select %44, %42, %45 : vector<16x9xi1>, vector<16x9xi32>
    %cst_31 = arith.constant dense<2147483647> : vector<16xi32>
    %47 = vector.multi_reduction <minsi>, %46, %cst_31 [1] : vector<16x9xi32> to vector<16xi32>
    %48 = vector.shape_cast %47 : vector<16xi32> to vector<16x1xi32>
    %49 = vector.broadcast %48 : vector<16x1xi32> to vector<16x9xi32>
    %50 = arith.cmpi eq, %42, %49 : vector<16x9xi32>
    %cst_32 = arith.constant 1.000000e+00 : f32
    %cst_33 = arith.constant 0.000000e+00 : f32
    %51 = vector.broadcast %cst_32 : f32 to vector<16x9xf32>
    %52 = vector.broadcast %cst_33 : f32 to vector<16x9xf32>
    %53 = arith.select %50, %51, %52 : vector<16x9xi1>, vector<16x9xf32>
    %54 = vector.broadcast %7 : vector<16x1xf32> to vector<16x9xf32>
    %55 = arith.mulf %53, %54 : vector<16x9xf32>
    %cst_34 = arith.constant dense<0.000000e+00> : vector<9xf32>
    %56 = vector.multi_reduction <add>, %55, %cst_34 [0] : vector<16x9xf32> to vector<9xf32>
    %57 = vector.shape_cast %56 : vector<9xf32> to vector<1x9xf32>
    %cst_35 = arith.constant 1.000000e+00 : f32
    %58 = vector.broadcast %cst_35 : f32 to vector<1x9xf32>
    %59 = arith.maximumf %57, %58 : vector<1x9xf32>
    %cst_36 = arith.constant dense<0.000000e+00> : vector<2x9xf32>
    %60 = tpu.matmul %9, %55, %cst_36 {dimension_numbers = #tpu.dot_dimension_numbers<[1], [0], [0], [1], [0, 0, 1, 1], [], []>} : vector<2x16xf32>, vector<16x9xf32>, vector<2x9xf32> -> vector<2x9xf32>
    %61 = vector.broadcast %59 : vector<1x9xf32> to vector<2x9xf32>
    %62 = arith.divf %60, %61 : vector<2x9xf32>
    %63 = vector.extract_strided_slice %18 {offsets = [0, 0], sizes = [1, 9], strides = [1, 1]} : vector<3x9xf32> to vector<1x9xf32>
    %64 = vector.extract_strided_slice %18 {offsets = [1, 0], sizes = [1, 9], strides = [1, 1]} : vector<3x9xf32> to vector<1x9xf32>
    %65 = vector.extract_strided_slice %18 {offsets = [2, 0], sizes = [1, 9], strides = [1, 1]} : vector<3x9xf32> to vector<1x9xf32>
    %cst_37 = arith.constant 1.000000e+00 : f32
    %66 = vector.broadcast %cst_37 : f32 to vector<1x9xf32>
    %67 = arith.addf %57, %66 : vector<1x9xf32>
    %68 = math.log %67 : vector<1x9xf32>
    %69 = arith.subf %63, %68 : vector<1x9xf32>
    %70 = arith.mulf %69, %69 : vector<1x9xf32>
    %71 = arith.mulf %70, %5 : vector<1x9xf32>
    %72 = vector.shape_cast %71 : vector<1x9xf32> to vector<1x1x9xf32>
    %cst_38 = arith.constant dense<0.000000e+00> : vector<1xf32>
    %73 = vector.multi_reduction <add>, %72, %cst_38 [1, 2] : vector<1x1x9xf32> to vector<1xf32>
    %74 = vector.shape_cast %73 : vector<1xf32> to vector<1x1x1xf32>
    %75 = vector.extract %74[0, 0, 0] : f32 from vector<1x1x1xf32>
    %76 = vector.broadcast %75 : f32 to vector<1x1xf32>
    %77 = vector.extract_strided_slice %62 {offsets = [0, 0], sizes = [1, 9], strides = [1, 1]} : vector<2x9xf32> to vector<1x9xf32>
    %78 = arith.subf %64, %77 : vector<1x9xf32>
    %79 = arith.mulf %78, %78 : vector<1x9xf32>
    %80 = arith.mulf %79, %5 : vector<1x9xf32>
    %81 = vector.shape_cast %80 : vector<1x9xf32> to vector<1x1x9xf32>
    %cst_39 = arith.constant dense<0.000000e+00> : vector<1xf32>
    %82 = vector.multi_reduction <add>, %81, %cst_39 [1, 2] : vector<1x1x9xf32> to vector<1xf32>
    %83 = vector.shape_cast %82 : vector<1xf32> to vector<1x1x1xf32>
    %84 = vector.extract %83[0, 0, 0] : f32 from vector<1x1x1xf32>
    %85 = vector.broadcast %84 : f32 to vector<1x1xf32>
    %86 = vector.extract_strided_slice %62 {offsets = [1, 0], sizes = [1, 9], strides = [1, 1]} : vector<2x9xf32> to vector<1x9xf32>
    %87 = arith.subf %65, %86 : vector<1x9xf32>
    %88 = arith.mulf %87, %87 : vector<1x9xf32>
    %89 = arith.mulf %88, %5 : vector<1x9xf32>
    %90 = vector.shape_cast %89 : vector<1x9xf32> to vector<1x1x9xf32>
    %cst_40 = arith.constant dense<0.000000e+00> : vector<1xf32>
    %91 = vector.multi_reduction <add>, %90, %cst_40 [1, 2] : vector<1x1x9xf32> to vector<1xf32>
    %92 = vector.shape_cast %91 : vector<1xf32> to vector<1x1x1xf32>
    %93 = vector.extract %92[0, 0, 0] : f32 from vector<1x1x1xf32>
    %94 = vector.broadcast %93 : f32 to vector<1x1xf32>
    %95 = vector.shape_cast %5 : vector<1x9xf32> to vector<1x1x9xf32>
    %cst_41 = arith.constant dense<0.000000e+00> : vector<1xf32>
    %96 = vector.multi_reduction <add>, %95, %cst_41 [1, 2] : vector<1x1x9xf32> to vector<1xf32>
    %97 = vector.shape_cast %96 : vector<1xf32> to vector<1x1x1xf32>
    %98 = vector.extract %97[0, 0, 0] : f32 from vector<1x1x1xf32>
    %99 = vector.broadcast %98 : f32 to vector<1x1xf32>
    %cst_42 = arith.constant 0.000000e+00 : f32
    %100 = vector.broadcast %cst_42 : f32 to vector<16x9xf32>
    %101 = arith.cmpf ogt, %55, %100 : vector<16x9xf32>
    %cst_43 = arith.constant 0.000000e+00 : f32
    %102 = vector.broadcast %cst_43 : f32 to vector<16x9xf32>
    %103 = arith.select %101, %41, %102 : vector<16x9xi1>, vector<16x9xf32>
    %104 = vector.shape_cast %103 : vector<16x9xf32> to vector<1x16x9xf32>
    %cst_44 = arith.constant dense<0.000000e+00> : vector<1xf32>
    %105 = vector.multi_reduction <add>, %104, %cst_44 [1, 2] : vector<1x16x9xf32> to vector<1xf32>
    %106 = vector.shape_cast %105 : vector<1xf32> to vector<1x1x1xf32>
    %107 = vector.extract %106[0, 0, 0] : f32 from vector<1x1x1xf32>
    %108 = vector.broadcast %107 : f32 to vector<1x1xf32>
    %109 = vector.shape_cast %55 : vector<16x9xf32> to vector<1x16x9xf32>
    %cst_45 = arith.constant dense<0.000000e+00> : vector<1xf32>
    %110 = vector.multi_reduction <add>, %109, %cst_45 [1, 2] : vector<1x16x9xf32> to vector<1xf32>
    %111 = vector.shape_cast %110 : vector<1xf32> to vector<1x1x1xf32>
    %112 = vector.extract %111[0, 0, 0] : f32 from vector<1x1x1xf32>
    %113 = vector.broadcast %112 : f32 to vector<1x1xf32>
    %114 = vector.extract_strided_slice %55 {offsets = [0, 0], sizes = [4, 9], strides = [1, 1]} : vector<16x9xf32> to vector<4x9xf32>
    %cst_46 = arith.constant dense<0.000000e+00> : vector<4x32xf32>
    %115 = tpu.matmul %114, %16, %cst_46 {dimension_numbers = #tpu.dot_dimension_numbers<[1], [0], [0], [1], [0, 0, 1, 1], [], []>} : vector<4x9xf32>, vector<9x32xf32>, vector<4x32xf32> -> vector<4x32xf32>
    %c0_47 = arith.constant 0 : index
    %c0_48 = arith.constant 0 : index
    %116 = vector.load %arg11[%c0_47, %c0_48] : memref<32x16xf32, #tpu.memory_space<vmem>>, vector<32x16xf32>
    %cst_49 = arith.constant dense<0.000000e+00> : vector<4x16xf32>
    %117 = tpu.matmul %115, %116, %cst_49 {dimension_numbers = #tpu.dot_dimension_numbers<[1], [0], [0], [1], [0, 0, 1, 1], [], []>} : vector<4x32xf32>, vector<32x16xf32>, vector<4x16xf32> -> vector<4x16xf32>
    %118 = math.tanh %117 : vector<4x16xf32>
    %c0_50 = arith.constant 0 : index
    %c0_51 = arith.constant 0 : index
    %c0_52 = arith.constant 0 : index
    %119 = vector.load %arg14[%c0_50, %c0_51, %c0_52] : memref<1x4x16xf32, #tpu.memory_space<vmem>>, vector<1x4x16xf32>
    %120 = vector.shape_cast %119 : vector<1x4x16xf32> to vector<4x16xf32>
    %121 = vector.shape_cast %118 : vector<4x16xf32> to vector<1x4x16xf32>
    tpu.vector_store %arg14[%c0_50, %c0_51, %c0_52], %121 {strides = array<i32>} : memref<1x4x16xf32, #tpu.memory_space<vmem>>, vector<1x4x16xf32>,
    %122 = tpu.iota {dimensions = array<i32: 0>} : vector<8x4xi32>
    %123 = tpu.iota {dimensions = array<i32: 1>} : vector<8x4xi32>
    %c2_i32 = arith.constant 2 : i32
    %124 = vector.broadcast %c2_i32 : i32 to vector<8x4xi32>
    %125 = arith.addi %123, %124 : vector<8x4xi32>
    %126 = arith.cmpi eq, %122, %125 : vector<8x4xi32>
    %cst_53 = arith.constant 1.000000e+00 : f32
    %cst_54 = arith.constant 0.000000e+00 : f32
    %127 = vector.broadcast %cst_53 : f32 to vector<8x4xf32>
    %128 = vector.broadcast %cst_54 : f32 to vector<8x4xf32>
    %129 = arith.select %126, %127, %128 : vector<8x4xi1>, vector<8x4xf32>
    %cst_55 = arith.constant dense<0.000000e+00> : vector<8x16xf32>
    %130 = tpu.matmul %129, %118, %cst_55 {dimension_numbers = #tpu.dot_dimension_numbers<[1], [0], [0], [1], [0, 0, 1, 1], [], []>} : vector<8x4xf32>, vector<4x16xf32>, vector<8x16xf32> -> vector<8x16xf32>
    %c0_56 = arith.constant 0 : index
    %c0_57 = arith.constant 0 : index
    %131 = vector.load %arg12[%c0_56, %c0_57] : memref<64x128xf32, #tpu.memory_space<vmem>>, vector<64x128xf32>
    %c0_58 = arith.constant 0 : index
    %c0_59 = arith.constant 0 : index
    %132 = vector.load %arg13[%c0_58, %c0_59] : memref<64x8xf32, #tpu.memory_space<vmem>>, vector<64x8xf32>
    %133 = tpu.iota {dimensions = array<i32: 0>} : vector<5x8xi32>
    %134 = tpu.iota {dimensions = array<i32: 1>} : vector<5x8xi32>
    %c0_i32 = arith.constant 0 : i32
    %135 = vector.broadcast %c0_i32 : i32 to vector<5x8xi32>
    %136 = arith.addi %133, %135 : vector<5x8xi32>
    %137 = arith.cmpi eq, %134, %136 : vector<5x8xi32>
    %cst_60 = arith.constant 1.000000e+00 : f32
    %cst_61 = arith.constant 0.000000e+00 : f32
    %138 = vector.broadcast %cst_60 : f32 to vector<5x8xf32>
    %139 = vector.broadcast %cst_61 : f32 to vector<5x8xf32>
    %140 = arith.select %137, %138, %139 : vector<5x8xi1>, vector<5x8xf32>
    %cst_62 = arith.constant dense<0.000000e+00> : vector<5x16xf32>
    %141 = tpu.matmul %140, %130, %cst_62 {dimension_numbers = #tpu.dot_dimension_numbers<[1], [0], [0], [1], [0, 0, 1, 1], [], []>} : vector<5x8xf32>, vector<8x16xf32>, vector<5x16xf32> -> vector<5x16xf32>
    %142 = vector.extract_strided_slice %131 {offsets = [0, 0], sizes = [16, 128], strides = [1, 1]} : vector<64x128xf32> to vector<16x128xf32>
    %cst_63 = arith.constant dense<0.000000e+00> : vector<5x128xf32>
    %143 = tpu.matmul %141, %142, %cst_63 {dimension_numbers = #tpu.dot_dimension_numbers<[1], [0], [0], [1], [0, 0, 1, 1], [], []>} : vector<5x16xf32>, vector<16x128xf32>, vector<5x128xf32> -> vector<5x128xf32>
    %c1_i32 = arith.constant 1 : i32
    %144 = vector.broadcast %c1_i32 : i32 to vector<5x8xi32>
    %145 = arith.addi %133, %144 : vector<5x8xi32>
    %146 = arith.cmpi eq, %134, %145 : vector<5x8xi32>
    %cst_64 = arith.constant 1.000000e+00 : f32
    %cst_65 = arith.constant 0.000000e+00 : f32
    %147 = vector.broadcast %cst_64 : f32 to vector<5x8xf32>
    %148 = vector.broadcast %cst_65 : f32 to vector<5x8xf32>
    %149 = arith.select %146, %147, %148 : vector<5x8xi1>, vector<5x8xf32>
    %cst_66 = arith.constant dense<0.000000e+00> : vector<5x16xf32>
    %150 = tpu.matmul %149, %130, %cst_66 {dimension_numbers = #tpu.dot_dimension_numbers<[1], [0], [0], [1], [0, 0, 1, 1], [], []>} : vector<5x8xf32>, vector<8x16xf32>, vector<5x16xf32> -> vector<5x16xf32>
    %151 = vector.extract_strided_slice %131 {offsets = [16, 0], sizes = [16, 128], strides = [1, 1]} : vector<64x128xf32> to vector<16x128xf32>
    %cst_67 = arith.constant dense<0.000000e+00> : vector<5x128xf32>
    %152 = tpu.matmul %150, %151, %cst_67 {dimension_numbers = #tpu.dot_dimension_numbers<[1], [0], [0], [1], [0, 0, 1, 1], [], []>} : vector<5x16xf32>, vector<16x128xf32>, vector<5x128xf32> -> vector<5x128xf32>
    %153 = arith.addf %143, %152 : vector<5x128xf32>
    %c2_i32_68 = arith.constant 2 : i32
    %154 = vector.broadcast %c2_i32_68 : i32 to vector<5x8xi32>
    %155 = arith.addi %133, %154 : vector<5x8xi32>
    %156 = arith.cmpi eq, %134, %155 : vector<5x8xi32>
    %cst_69 = arith.constant 1.000000e+00 : f32
    %cst_70 = arith.constant 0.000000e+00 : f32
    %157 = vector.broadcast %cst_69 : f32 to vector<5x8xf32>
    %158 = vector.broadcast %cst_70 : f32 to vector<5x8xf32>
    %159 = arith.select %156, %157, %158 : vector<5x8xi1>, vector<5x8xf32>
    %cst_71 = arith.constant dense<0.000000e+00> : vector<5x16xf32>
    %160 = tpu.matmul %159, %130, %cst_71 {dimension_numbers = #tpu.dot_dimension_numbers<[1], [0], [0], [1], [0, 0, 1, 1], [], []>} : vector<5x8xf32>, vector<8x16xf32>, vector<5x16xf32> -> vector<5x16xf32>
    %161 = vector.extract_strided_slice %131 {offsets = [32, 0], sizes = [16, 128], strides = [1, 1]} : vector<64x128xf32> to vector<16x128xf32>
    %cst_72 = arith.constant dense<0.000000e+00> : vector<5x128xf32>
    %162 = tpu.matmul %160, %161, %cst_72 {dimension_numbers = #tpu.dot_dimension_numbers<[1], [0], [0], [1], [0, 0, 1, 1], [], []>} : vector<5x16xf32>, vector<16x128xf32>, vector<5x128xf32> -> vector<5x128xf32>
    %163 = arith.addf %153, %162 : vector<5x128xf32>
    %c3_i32 = arith.constant 3 : i32
    %164 = vector.broadcast %c3_i32 : i32 to vector<5x8xi32>
    %165 = arith.addi %133, %164 : vector<5x8xi32>
    %166 = arith.cmpi eq, %134, %165 : vector<5x8xi32>
    %cst_73 = arith.constant 1.000000e+00 : f32
    %cst_74 = arith.constant 0.000000e+00 : f32
    %167 = vector.broadcast %cst_73 : f32 to vector<5x8xf32>
    %168 = vector.broadcast %cst_74 : f32 to vector<5x8xf32>
    %169 = arith.select %166, %167, %168 : vector<5x8xi1>, vector<5x8xf32>
    %cst_75 = arith.constant dense<0.000000e+00> : vector<5x16xf32>
    %170 = tpu.matmul %169, %130, %cst_75 {dimension_numbers = #tpu.dot_dimension_numbers<[1], [0], [0], [1], [0, 0, 1, 1], [], []>} : vector<5x8xf32>, vector<8x16xf32>, vector<5x16xf32> -> vector<5x16xf32>
    %171 = vector.extract_strided_slice %131 {offsets = [48, 0], sizes = [16, 128], strides = [1, 1]} : vector<64x128xf32> to vector<16x128xf32>
    %cst_76 = arith.constant dense<0.000000e+00> : vector<5x128xf32>
    %172 = tpu.matmul %170, %171, %cst_76 {dimension_numbers = #tpu.dot_dimension_numbers<[1], [0], [0], [1], [0, 0, 1, 1], [], []>} : vector<5x16xf32>, vector<16x128xf32>, vector<5x128xf32> -> vector<5x128xf32>
    %173 = arith.addf %163, %172 : vector<5x128xf32>
    %174 = vector.extract_strided_slice %173 {offsets = [0, 0], sizes = [5, 64], strides = [1, 1]} : vector<5x128xf32> to vector<5x64xf32>
    %175 = arith.mulf %174, %174 : vector<5x64xf32>
    %176 = vector.extract_strided_slice %173 {offsets = [0, 64], sizes = [5, 64], strides = [1, 1]} : vector<5x128xf32> to vector<5x64xf32>
    %177 = arith.mulf %176, %176 : vector<5x64xf32>
    %178 = arith.addf %175, %177 : vector<5x64xf32>
    %cst_77 = arith.constant 9.99999971E-10 : f32
    %179 = vector.broadcast %cst_77 : f32 to vector<5x64xf32>
    %180 = arith.addf %178, %179 : vector<5x64xf32>
    %181 = math.sqrt %180 : vector<5x64xf32>
    %cst_78 = arith.constant dense<0.000000e+00> : vector<5x8xf32>
    %182 = tpu.matmul %181, %132, %cst_78 {dimension_numbers = #tpu.dot_dimension_numbers<[1], [0], [0], [1], [0, 0, 1, 1], [], []>} : vector<5x64xf32>, vector<64x8xf32>, vector<5x8xf32> -> vector<5x8xf32>
    %cst_79 = arith.constant 9.99999974E-6 : f32
    %183 = vector.broadcast %cst_79 : f32 to vector<5x8xf32>
    %184 = arith.maximumf %182, %183 : vector<5x8xf32>
    %185 = math.log %184 : vector<5x8xf32>
    %c0_80 = arith.constant 0 : index
    %c0_81 = arith.constant 0 : index
    %c0_82 = arith.constant 0 : index
    %186 = vector.load %arg6[%c0_80, %c0_81, %c0_82] : memref<1x8x16xf32, #tpu.memory_space<vmem>>, vector<1x8x16xf32>
    %187 = vector.shape_cast %186 : vector<1x8x16xf32> to vector<8x16xf32>
    %c0_83 = arith.constant 0 : index
    %c0_84 = arith.constant 0 : index
    %188 = vector.load %arg12[%c0_83, %c0_84] : memref<64x128xf32, #tpu.memory_space<vmem>>, vector<64x128xf32>
    %c0_85 = arith.constant 0 : index
    %c0_86 = arith.constant 0 : index
    %189 = vector.load %arg13[%c0_85, %c0_86] : memref<64x8xf32, #tpu.memory_space<vmem>>, vector<64x8xf32>
    %190 = tpu.iota {dimensions = array<i32: 0>} : vector<5x8xi32>
    %191 = tpu.iota {dimensions = array<i32: 1>} : vector<5x8xi32>
    %c0_i32_87 = arith.constant 0 : i32
    %192 = vector.broadcast %c0_i32_87 : i32 to vector<5x8xi32>
    %193 = arith.addi %190, %192 : vector<5x8xi32>
    %194 = arith.cmpi eq, %191, %193 : vector<5x8xi32>
    %cst_88 = arith.constant 1.000000e+00 : f32
    %cst_89 = arith.constant 0.000000e+00 : f32
    %195 = vector.broadcast %cst_88 : f32 to vector<5x8xf32>
    %196 = vector.broadcast %cst_89 : f32 to vector<5x8xf32>
    %197 = arith.select %194, %195, %196 : vector<5x8xi1>, vector<5x8xf32>
    %cst_90 = arith.constant dense<0.000000e+00> : vector<5x16xf32>
    %198 = tpu.matmul %197, %187, %cst_90 {dimension_numbers = #tpu.dot_dimension_numbers<[1], [0], [0], [1], [0, 0, 1, 1], [], []>} : vector<5x8xf32>, vector<8x16xf32>, vector<5x16xf32> -> vector<5x16xf32>
    %199 = vector.extract_strided_slice %188 {offsets = [0, 0], sizes = [16, 128], strides = [1, 1]} : vector<64x128xf32> to vector<16x128xf32>
    %cst_91 = arith.constant dense<0.000000e+00> : vector<5x128xf32>
    %200 = tpu.matmul %198, %199, %cst_91 {dimension_numbers = #tpu.dot_dimension_numbers<[1], [0], [0], [1], [0, 0, 1, 1], [], []>} : vector<5x16xf32>, vector<16x128xf32>, vector<5x128xf32> -> vector<5x128xf32>
    %c1_i32_92 = arith.constant 1 : i32
    %201 = vector.broadcast %c1_i32_92 : i32 to vector<5x8xi32>
    %202 = arith.addi %190, %201 : vector<5x8xi32>
    %203 = arith.cmpi eq, %191, %202 : vector<5x8xi32>
    %cst_93 = arith.constant 1.000000e+00 : f32
    %cst_94 = arith.constant 0.000000e+00 : f32
    %204 = vector.broadcast %cst_93 : f32 to vector<5x8xf32>
    %205 = vector.broadcast %cst_94 : f32 to vector<5x8xf32>
    %206 = arith.select %203, %204, %205 : vector<5x8xi1>, vector<5x8xf32>
    %cst_95 = arith.constant dense<0.000000e+00> : vector<5x16xf32>
    %207 = tpu.matmul %206, %187, %cst_95 {dimension_numbers = #tpu.dot_dimension_numbers<[1], [0], [0], [1], [0, 0, 1, 1], [], []>} : vector<5x8xf32>, vector<8x16xf32>, vector<5x16xf32> -> vector<5x16xf32>
    %208 = vector.extract_strided_slice %188 {offsets = [16, 0], sizes = [16, 128], strides = [1, 1]} : vector<64x128xf32> to vector<16x128xf32>
    %cst_96 = arith.constant dense<0.000000e+00> : vector<5x128xf32>
    %209 = tpu.matmul %207, %208, %cst_96 {dimension_numbers = #tpu.dot_dimension_numbers<[1], [0], [0], [1], [0, 0, 1, 1], [], []>} : vector<5x16xf32>, vector<16x128xf32>, vector<5x128xf32> -> vector<5x128xf32>
    %210 = arith.addf %200, %209 : vector<5x128xf32>
    %c2_i32_97 = arith.constant 2 : i32
    %211 = vector.broadcast %c2_i32_97 : i32 to vector<5x8xi32>
    %212 = arith.addi %190, %211 : vector<5x8xi32>
    %213 = arith.cmpi eq, %191, %212 : vector<5x8xi32>
    %cst_98 = arith.constant 1.000000e+00 : f32
    %cst_99 = arith.constant 0.000000e+00 : f32
    %214 = vector.broadcast %cst_98 : f32 to vector<5x8xf32>
    %215 = vector.broadcast %cst_99 : f32 to vector<5x8xf32>
    %216 = arith.select %213, %214, %215 : vector<5x8xi1>, vector<5x8xf32>
    %cst_100 = arith.constant dense<0.000000e+00> : vector<5x16xf32>
    %217 = tpu.matmul %216, %187, %cst_100 {dimension_numbers = #tpu.dot_dimension_numbers<[1], [0], [0], [1], [0, 0, 1, 1], [], []>} : vector<5x8xf32>, vector<8x16xf32>, vector<5x16xf32> -> vector<5x16xf32>
    %218 = vector.extract_strided_slice %188 {offsets = [32, 0], sizes = [16, 128], strides = [1, 1]} : vector<64x128xf32> to vector<16x128xf32>
    %cst_101 = arith.constant dense<0.000000e+00> : vector<5x128xf32>
    %219 = tpu.matmul %217, %218, %cst_101 {dimension_numbers = #tpu.dot_dimension_numbers<[1], [0], [0], [1], [0, 0, 1, 1], [], []>} : vector<5x16xf32>, vector<16x128xf32>, vector<5x128xf32> -> vector<5x128xf32>
    %220 = arith.addf %210, %219 : vector<5x128xf32>
    %c3_i32_102 = arith.constant 3 : i32
    %221 = vector.broadcast %c3_i32_102 : i32 to vector<5x8xi32>
    %222 = arith.addi %190, %221 : vector<5x8xi32>
    %223 = arith.cmpi eq, %191, %222 : vector<5x8xi32>
    %cst_103 = arith.constant 1.000000e+00 : f32
    %cst_104 = arith.constant 0.000000e+00 : f32
    %224 = vector.broadcast %cst_103 : f32 to vector<5x8xf32>
    %225 = vector.broadcast %cst_104 : f32 to vector<5x8xf32>
    %226 = arith.select %223, %224, %225 : vector<5x8xi1>, vector<5x8xf32>
    %cst_105 = arith.constant dense<0.000000e+00> : vector<5x16xf32>
    %227 = tpu.matmul %226, %187, %cst_105 {dimension_numbers = #tpu.dot_dimension_numbers<[1], [0], [0], [1], [0, 0, 1, 1], [], []>} : vector<5x8xf32>, vector<8x16xf32>, vector<5x16xf32> -> vector<5x16xf32>
    %228 = vector.extract_strided_slice %188 {offsets = [48, 0], sizes = [16, 128], strides = [1, 1]} : vector<64x128xf32> to vector<16x128xf32>
    %cst_106 = arith.constant dense<0.000000e+00> : vector<5x128xf32>
    %229 = tpu.matmul %227, %228, %cst_106 {dimension_numbers = #tpu.dot_dimension_numbers<[1], [0], [0], [1], [0, 0, 1, 1], [], []>} : vector<5x16xf32>, vector<16x128xf32>, vector<5x128xf32> -> vector<5x128xf32>
    %230 = arith.addf %220, %229 : vector<5x128xf32>
    %231 = vector.extract_strided_slice %230 {offsets = [0, 0], sizes = [5, 64], strides = [1, 1]} : vector<5x128xf32> to vector<5x64xf32>
    %232 = arith.mulf %231, %231 : vector<5x64xf32>
    %233 = vector.extract_strided_slice %230 {offsets = [0, 64], sizes = [5, 64], strides = [1, 1]} : vector<5x128xf32> to vector<5x64xf32>
    %234 = arith.mulf %233, %233 : vector<5x64xf32>
    %235 = arith.addf %232, %234 : vector<5x64xf32>
    %cst_107 = arith.constant 9.99999971E-10 : f32
    %236 = vector.broadcast %cst_107 : f32 to vector<5x64xf32>
    %237 = arith.addf %235, %236 : vector<5x64xf32>
    %238 = math.sqrt %237 : vector<5x64xf32>
    %cst_108 = arith.constant dense<0.000000e+00> : vector<5x8xf32>
    %239 = tpu.matmul %238, %189, %cst_108 {dimension_numbers = #tpu.dot_dimension_numbers<[1], [0], [0], [1], [0, 0, 1, 1], [], []>} : vector<5x64xf32>, vector<64x8xf32>, vector<5x8xf32> -> vector<5x8xf32>
    %cst_109 = arith.constant 9.99999974E-6 : f32
    %240 = vector.broadcast %cst_109 : f32 to vector<5x8xf32>
    %241 = arith.maximumf %239, %240 : vector<5x8xf32>
    %242 = math.log %241 : vector<5x8xf32>
    %243 = arith.subf %185, %242 : vector<5x8xf32>
    %244 = math.absf %243 : vector<5x8xf32>
    %245 = vector.shape_cast %244 : vector<5x8xf32> to vector<1x5x8xf32>
    %cst_110 = arith.constant dense<0.000000e+00> : vector<1xf32>
    %246 = vector.multi_reduction <add>, %245, %cst_110 [1, 2] : vector<1x5x8xf32> to vector<1xf32>
    %247 = vector.shape_cast %246 : vector<1xf32> to vector<1x1x1xf32>
    %248 = vector.extract %247[0, 0, 0] : f32 from vector<1x1x1xf32>
    %249 = vector.broadcast %248 : f32 to vector<1x1xf32>
    %250 = tpu.iota {dimensions = array<i32: 1>} : vector<1x8xi32>
    %c0_i32_111 = arith.constant 0 : i32
    %251 = vector.broadcast %c0_i32_111 : i32 to vector<1x8xi32>
    %252 = arith.cmpi eq, %250, %251 : vector<1x8xi32>
    %cst_112 = arith.constant 0.000000e+00 : f32
    %253 = vector.shape_cast %76 : vector<1x1xf32> to vector<1x1xf32>
    %254 = vector.broadcast %253 : vector<1x1xf32> to vector<1x8xf32>
    %255 = vector.broadcast %cst_112 : f32 to vector<1x8xf32>
    %256 = arith.select %252, %254, %255 : vector<1x8xi1>, vector<1x8xf32>
    %c1_i32_113 = arith.constant 1 : i32
    %257 = vector.broadcast %c1_i32_113 : i32 to vector<1x8xi32>
    %258 = arith.cmpi eq, %250, %257 : vector<1x8xi32>
    %cst_114 = arith.constant 0.000000e+00 : f32
    %259 = vector.shape_cast %85 : vector<1x1xf32> to vector<1x1xf32>
    %260 = vector.broadcast %259 : vector<1x1xf32> to vector<1x8xf32>
    %261 = vector.broadcast %cst_114 : f32 to vector<1x8xf32>
    %262 = arith.select %258, %260, %261 : vector<1x8xi1>, vector<1x8xf32>
    %263 = arith.addf %256, %262 : vector<1x8xf32>
    %c2_i32_115 = arith.constant 2 : i32
    %264 = vector.broadcast %c2_i32_115 : i32 to vector<1x8xi32>
    %265 = arith.cmpi eq, %250, %264 : vector<1x8xi32>
    %cst_116 = arith.constant 0.000000e+00 : f32
    %266 = vector.shape_cast %94 : vector<1x1xf32> to vector<1x1xf32>
    %267 = vector.broadcast %266 : vector<1x1xf32> to vector<1x8xf32>
    %268 = vector.broadcast %cst_116 : f32 to vector<1x8xf32>
    %269 = arith.select %265, %267, %268 : vector<1x8xi1>, vector<1x8xf32>
    %270 = arith.addf %263, %269 : vector<1x8xf32>
    %c3_i32_117 = arith.constant 3 : i32
    %271 = vector.broadcast %c3_i32_117 : i32 to vector<1x8xi32>
    %272 = arith.cmpi eq, %250, %271 : vector<1x8xi32>
    %cst_118 = arith.constant 0.000000e+00 : f32
    %273 = vector.shape_cast %99 : vector<1x1xf32> to vector<1x1xf32>
    %274 = vector.broadcast %273 : vector<1x1xf32> to vector<1x8xf32>
    %275 = vector.broadcast %cst_118 : f32 to vector<1x8xf32>
    %276 = arith.select %272, %274, %275 : vector<1x8xi1>, vector<1x8xf32>
    %277 = arith.addf %270, %276 : vector<1x8xf32>
    %c4_i32 = arith.constant 4 : i32
    %278 = vector.broadcast %c4_i32 : i32 to vector<1x8xi32>
    %279 = arith.cmpi eq, %250, %278 : vector<1x8xi32>
    %cst_119 = arith.constant 0.000000e+00 : f32
    %280 = vector.shape_cast %108 : vector<1x1xf32> to vector<1x1xf32>
    %281 = vector.broadcast %280 : vector<1x1xf32> to vector<1x8xf32>
    %282 = vector.broadcast %cst_119 : f32 to vector<1x8xf32>
    %283 = arith.select %279, %281, %282 : vector<1x8xi1>, vector<1x8xf32>
    %284 = arith.addf %277, %283 : vector<1x8xf32>
    %c5_i32 = arith.constant 5 : i32
    %285 = vector.broadcast %c5_i32 : i32 to vector<1x8xi32>
    %286 = arith.cmpi eq, %250, %285 : vector<1x8xi32>
    %cst_120 = arith.constant 0.000000e+00 : f32
    %287 = vector.shape_cast %113 : vector<1x1xf32> to vector<1x1xf32>
    %288 = vector.broadcast %287 : vector<1x1xf32> to vector<1x8xf32>
    %289 = vector.broadcast %cst_120 : f32 to vector<1x8xf32>
    %290 = arith.select %286, %288, %289 : vector<1x8xi1>, vector<1x8xf32>
    %291 = arith.addf %284, %290 : vector<1x8xf32>
    %c6_i32 = arith.constant 6 : i32
    %292 = vector.broadcast %c6_i32 : i32 to vector<1x8xi32>
    %293 = arith.cmpi eq, %250, %292 : vector<1x8xi32>
    %cst_121 = arith.constant 0.000000e+00 : f32
    %294 = vector.shape_cast %249 : vector<1x1xf32> to vector<1x1xf32>
    %295 = vector.broadcast %294 : vector<1x1xf32> to vector<1x8xf32>
    %296 = vector.broadcast %cst_121 : f32 to vector<1x8xf32>
    %297 = arith.select %293, %295, %296 : vector<1x8xi1>, vector<1x8xf32>
    %298 = arith.addf %291, %297 : vector<1x8xf32>
    %c0_122 = arith.constant 0 : index
    %c0_123 = arith.constant 0 : index
    %c0_124 = arith.constant 0 : index
    %299 = vector.load %arg15[%c0_122, %c0_123, %c0_124] : memref<1x1x8xf32, #tpu.memory_space<vmem>>, vector<1x1x8xf32>
    %300 = vector.shape_cast %299 : vector<1x1x8xf32> to vector<1x8xf32>
    %301 = vector.shape_cast %298 : vector<1x8xf32> to vector<1x1x8xf32>
    tpu.vector_store %arg15[%c0_122, %c0_123, %c0_124], %301 {strides = array<i32>} : memref<1x1x8xf32, #tpu.memory_space<vmem>>, vector<1x1x8xf32>,
    return
  }
  func.func @transform_0(%arg0: i32) -> (i32, i32, i32) {
    %c0_i32 = arith.constant 0 : i32
    %c0_i32_0 = arith.constant 0 : i32
    %c0_i32_1 = arith.constant 0 : i32
    return %arg0, %c0_i32, %c0_i32_0 : i32, i32, i32
  }
  func.func @transform_1(%arg0: i32) -> (i32, i32, i32) {
    %c0_i32 = arith.constant 0 : i32
    %c0_i32_0 = arith.constant 0 : i32
    %c0_i32_1 = arith.constant 0 : i32
    return %arg0, %c0_i32, %c0_i32_0 : i32, i32, i32
  }
  func.func @transform_2(%arg0: i32) -> (i32, i32, i32) {
    %c0_i32 = arith.constant 0 : i32
    %c0_i32_0 = arith.constant 0 : i32
    %c0_i32_1 = arith.constant 0 : i32
    return %arg0, %c0_i32, %c0_i32_0 : i32, i32, i32
  }
  func.func @transform_3(%arg0: i32) -> (i32, i32, i32) {
    %c0_i32 = arith.constant 0 : i32
    %c0_i32_0 = arith.constant 0 : i32
    %c0_i32_1 = arith.constant 0 : i32
    return %arg0, %c0_i32, %c0_i32_0 : i32, i32, i32
  }
  func.func @transform_4(%arg0: i32) -> (i32, i32, i32) {
    %c0_i32 = arith.constant 0 : i32
    %c0_i32_0 = arith.constant 0 : i32
    %c0_i32_1 = arith.constant 0 : i32
    return %arg0, %c0_i32, %c0_i32_0 : i32, i32, i32
  }
  func.func @transform_5(%arg0: i32) -> (i32, i32, i32) {
    %c0_i32 = arith.constant 0 : i32
    %c0_i32_0 = arith.constant 0 : i32
    %c0_i32_1 = arith.constant 0 : i32
    return %arg0, %c0_i32, %c0_i32_0 : i32, i32, i32
  }
  func.func @transform_6(%arg0: i32) -> (i32, i32) {
    %c0_i32 = arith.constant 0 : i32
    %c0_i32_0 = arith.constant 0 : i32
    %c0_i32_1 = arith.constant 0 : i32
    return %c0_i32, %c0_i32_0 : i32, i32
  }
  func.func @transform_7(%arg0: i32) -> (i32, i32) {
    %c0_i32 = arith.constant 0 : i32
    %c0_i32_0 = arith.constant 0 : i32
    %c0_i32_1 = arith.constant 0 : i32
    return %c0_i32, %c0_i32_0 : i32, i32
  }
  func.func @transform_8(%arg0: i32) -> (i32, i32) {
    %c0_i32 = arith.constant 0 : i32
    %c0_i32_0 = arith.constant 0 : i32
    %c0_i32_1 = arith.constant 0 : i32
    return %c0_i32, %c0_i32_0 : i32, i32
  }
  func.func @transform_9(%arg0: i32) -> (i32, i32) {
    %c0_i32 = arith.constant 0 : i32
    %c0_i32_0 = arith.constant 0 : i32
    %c0_i32_1 = arith.constant 0 : i32
    return %c0_i32, %c0_i32_0 : i32, i32
  }
  func.func @transform_10(%arg0: i32) -> (i32, i32) {
    %c0_i32 = arith.constant 0 : i32
    %c0_i32_0 = arith.constant 0 : i32
    %c0_i32_1 = arith.constant 0 : i32
    return %c0_i32, %c0_i32_0 : i32, i32
  }
  func.func @transform_11(%arg0: i32) -> (i32, i32) {
    %c0_i32 = arith.constant 0 : i32
    %c0_i32_0 = arith.constant 0 : i32
    %c0_i32_1 = arith.constant 0 : i32
    return %c0_i32, %c0_i32_0 : i32, i32
  }
  func.func @transform_12(%arg0: i32) -> (i32, i32) {
    %c0_i32 = arith.constant 0 : i32
    %c0_i32_0 = arith.constant 0 : i32
    %c0_i32_1 = arith.constant 0 : i32
    return %c0_i32, %c0_i32_0 : i32, i32
  }
  func.func @transform_13(%arg0: i32) -> (i32, i32, i32) {
    %c0_i32 = arith.constant 0 : i32
    %c0_i32_0 = arith.constant 0 : i32
    %c0_i32_1 = arith.constant 0 : i32
    return %arg0, %c0_i32, %c0_i32_0 : i32, i32, i32
  }
  func.func @transform_14(%arg0: i32) -> (i32, i32, i32) {
    %c0_i32 = arith.constant 0 : i32
    %c0_i32_0 = arith.constant 0 : i32
    %c0_i32_1 = arith.constant 0 : i32
    return %arg0, %c0_i32, %c0_i32_0 : i32, i32, i32
  }
}

module attributes {stable_mosaic.version = 11 : i64} {
  func.func @_disc_kernel(%arg0: i32, %arg1: memref<1x64x1xf32, #tpu.memory_space<vmem>>, %arg2: memref<1x64x1xf32, #tpu.memory_space<vmem>>, %arg3: memref<5x32x64xf32, #tpu.memory_space<vmem>>, %arg4: memref<5x16x32xf32, #tpu.memory_space<vmem>>, %arg5: memref<3x16x16xf32, #tpu.memory_space<vmem>>, %arg6: memref<5x8xf32, #tpu.memory_space<vmem>>, %arg7: memref<1x8xf32, #tpu.memory_space<vmem>>, %arg8: memref<40x16xf32, #tpu.memory_space<vmem>>, %arg9: memref<1x16xf32, #tpu.memory_space<vmem>>, %arg10: memref<48x1xf32, #tpu.memory_space<vmem>>, %arg11: memref<1x1xf32, #tpu.memory_space<vmem>>, %arg12: memref<1x1x4xf32, #tpu.memory_space<vmem>>) attributes {dimension_semantics = [#tpu.dimension_semantics<parallel>], iteration_bounds = array<i64: 2>, scalar_prefetch = 0 : i64, scratch_operands = 0 : i64, tpu.core_type = #tpu.core_type<tc>, window_params = [{transform_indices = @transform_0, window_bounds = array<i64: 1, 64, 1>}, {transform_indices = @transform_1, window_bounds = array<i64: 1, 64, 1>}, {pipeline_mode = #tpu.pipeline_mode<synchronous>, transform_indices = @transform_2, window_bounds = array<i64: 5, 32, 64>}, {pipeline_mode = #tpu.pipeline_mode<synchronous>, transform_indices = @transform_3, window_bounds = array<i64: 5, 16, 32>}, {pipeline_mode = #tpu.pipeline_mode<synchronous>, transform_indices = @transform_4, window_bounds = array<i64: 3, 16, 16>}, {pipeline_mode = #tpu.pipeline_mode<synchronous>, transform_indices = @transform_5, window_bounds = array<i64: 5, 8>}, {pipeline_mode = #tpu.pipeline_mode<synchronous>, transform_indices = @transform_6, window_bounds = array<i64: 1, 8>}, {pipeline_mode = #tpu.pipeline_mode<synchronous>, transform_indices = @transform_7, window_bounds = array<i64: 40, 16>}, {pipeline_mode = #tpu.pipeline_mode<synchronous>, transform_indices = @transform_8, window_bounds = array<i64: 1, 16>}, {pipeline_mode = #tpu.pipeline_mode<synchronous>, transform_indices = @transform_9, window_bounds = array<i64: 48, 1>}, {pipeline_mode = #tpu.pipeline_mode<synchronous>, transform_indices = @transform_10, window_bounds = array<i64: 1, 1>}, {transform_indices = @transform_11, window_bounds = array<i64: 1, 1, 4>}]} {
    %c0 = arith.constant 0 : index
    %c0_0 = arith.constant 0 : index
    %c0_1 = arith.constant 0 : index
    %0 = vector.load %arg1[%c0, %c0_0, %c0_1] : memref<1x64x1xf32, #tpu.memory_space<vmem>>, vector<1x64x1xf32>
    %1 = vector.shape_cast %0 : vector<1x64x1xf32> to vector<64x1xf32>
    %cst = arith.constant 0.000000e+00 : f32
    %2 = vector.broadcast %cst : f32 to vector<32x8xf32>
    %c0_2 = arith.constant 0 : index
    %c0_3 = arith.constant 0 : index
    %c0_4 = arith.constant 0 : index
    %3 = vector.load %arg3[%c0_2, %c0_3, %c0_4] : memref<5x32x64xf32, #tpu.memory_space<vmem>>, vector<1x32x64xf32>
    %4 = vector.shape_cast %3 : vector<1x32x64xf32> to vector<32x64xf32>
    %cst_5 = arith.constant dense<0.000000e+00> : vector<32x1xf32>
    %5 = tpu.matmul %4, %1, %cst_5 {dimension_numbers = #tpu.dot_dimension_numbers<[1], [0], [0], [1], [0, 0, 1, 1], [], []>} : vector<32x64xf32>, vector<64x1xf32>, vector<32x1xf32> -> vector<32x1xf32>
    %c0_6 = arith.constant 0 : index
    %c0_7 = arith.constant 0 : index
    %6 = vector.load %arg6[%c0_6, %c0_7] : memref<5x8xf32, #tpu.memory_space<vmem>>, vector<1x8xf32>
    %7 = vector.broadcast %5 : vector<32x1xf32> to vector<32x8xf32>
    %8 = vector.broadcast %6 : vector<1x8xf32> to vector<32x8xf32>
    %9 = arith.mulf %7, %8 : vector<32x8xf32>
    %10 = arith.addf %2, %9 : vector<32x8xf32>
    %c1 = arith.constant 1 : index
    %c0_8 = arith.constant 0 : index
    %c0_9 = arith.constant 0 : index
    %11 = vector.load %arg3[%c1, %c0_8, %c0_9] : memref<5x32x64xf32, #tpu.memory_space<vmem>>, vector<1x32x64xf32>
    %12 = vector.shape_cast %11 : vector<1x32x64xf32> to vector<32x64xf32>
    %cst_10 = arith.constant dense<0.000000e+00> : vector<32x1xf32>
    %13 = tpu.matmul %12, %1, %cst_10 {dimension_numbers = #tpu.dot_dimension_numbers<[1], [0], [0], [1], [0, 0, 1, 1], [], []>} : vector<32x64xf32>, vector<64x1xf32>, vector<32x1xf32> -> vector<32x1xf32>
    %c1_11 = arith.constant 1 : index
    %c0_12 = arith.constant 0 : index
    %14 = vector.load %arg6[%c1_11, %c0_12] : memref<5x8xf32, #tpu.memory_space<vmem>>, vector<1x8xf32>
    %15 = vector.broadcast %13 : vector<32x1xf32> to vector<32x8xf32>
    %16 = vector.broadcast %14 : vector<1x8xf32> to vector<32x8xf32>
    %17 = arith.mulf %15, %16 : vector<32x8xf32>
    %18 = arith.addf %10, %17 : vector<32x8xf32>
    %c2 = arith.constant 2 : index
    %c0_13 = arith.constant 0 : index
    %c0_14 = arith.constant 0 : index
    %19 = vector.load %arg3[%c2, %c0_13, %c0_14] : memref<5x32x64xf32, #tpu.memory_space<vmem>>, vector<1x32x64xf32>
    %20 = vector.shape_cast %19 : vector<1x32x64xf32> to vector<32x64xf32>
    %cst_15 = arith.constant dense<0.000000e+00> : vector<32x1xf32>
    %21 = tpu.matmul %20, %1, %cst_15 {dimension_numbers = #tpu.dot_dimension_numbers<[1], [0], [0], [1], [0, 0, 1, 1], [], []>} : vector<32x64xf32>, vector<64x1xf32>, vector<32x1xf32> -> vector<32x1xf32>
    %c2_16 = arith.constant 2 : index
    %c0_17 = arith.constant 0 : index
    %22 = vector.load %arg6[%c2_16, %c0_17] : memref<5x8xf32, #tpu.memory_space<vmem>>, vector<1x8xf32>
    %23 = vector.broadcast %21 : vector<32x1xf32> to vector<32x8xf32>
    %24 = vector.broadcast %22 : vector<1x8xf32> to vector<32x8xf32>
    %25 = arith.mulf %23, %24 : vector<32x8xf32>
    %26 = arith.addf %18, %25 : vector<32x8xf32>
    %c3 = arith.constant 3 : index
    %c0_18 = arith.constant 0 : index
    %c0_19 = arith.constant 0 : index
    %27 = vector.load %arg3[%c3, %c0_18, %c0_19] : memref<5x32x64xf32, #tpu.memory_space<vmem>>, vector<1x32x64xf32>
    %28 = vector.shape_cast %27 : vector<1x32x64xf32> to vector<32x64xf32>
    %cst_20 = arith.constant dense<0.000000e+00> : vector<32x1xf32>
    %29 = tpu.matmul %28, %1, %cst_20 {dimension_numbers = #tpu.dot_dimension_numbers<[1], [0], [0], [1], [0, 0, 1, 1], [], []>} : vector<32x64xf32>, vector<64x1xf32>, vector<32x1xf32> -> vector<32x1xf32>
    %c3_21 = arith.constant 3 : index
    %c0_22 = arith.constant 0 : index
    %30 = vector.load %arg6[%c3_21, %c0_22] : memref<5x8xf32, #tpu.memory_space<vmem>>, vector<1x8xf32>
    %31 = vector.broadcast %29 : vector<32x1xf32> to vector<32x8xf32>
    %32 = vector.broadcast %30 : vector<1x8xf32> to vector<32x8xf32>
    %33 = arith.mulf %31, %32 : vector<32x8xf32>
    %34 = arith.addf %26, %33 : vector<32x8xf32>
    %c4 = arith.constant 4 : index
    %c0_23 = arith.constant 0 : index
    %c0_24 = arith.constant 0 : index
    %35 = vector.load %arg3[%c4, %c0_23, %c0_24] : memref<5x32x64xf32, #tpu.memory_space<vmem>>, vector<1x32x64xf32>
    %36 = vector.shape_cast %35 : vector<1x32x64xf32> to vector<32x64xf32>
    %cst_25 = arith.constant dense<0.000000e+00> : vector<32x1xf32>
    %37 = tpu.matmul %36, %1, %cst_25 {dimension_numbers = #tpu.dot_dimension_numbers<[1], [0], [0], [1], [0, 0, 1, 1], [], []>} : vector<32x64xf32>, vector<64x1xf32>, vector<32x1xf32> -> vector<32x1xf32>
    %c4_26 = arith.constant 4 : index
    %c0_27 = arith.constant 0 : index
    %38 = vector.load %arg6[%c4_26, %c0_27] : memref<5x8xf32, #tpu.memory_space<vmem>>, vector<1x8xf32>
    %39 = vector.broadcast %37 : vector<32x1xf32> to vector<32x8xf32>
    %40 = vector.broadcast %38 : vector<1x8xf32> to vector<32x8xf32>
    %41 = arith.mulf %39, %40 : vector<32x8xf32>
    %42 = arith.addf %34, %41 : vector<32x8xf32>
    %c0_28 = arith.constant 0 : index
    %c0_29 = arith.constant 0 : index
    %43 = vector.load %arg7[%c0_28, %c0_29] : memref<1x8xf32, #tpu.memory_space<vmem>>, vector<1x8xf32>
    %44 = vector.broadcast %43 : vector<1x8xf32> to vector<32x8xf32>
    %45 = arith.addf %42, %44 : vector<32x8xf32>
    %cst_30 = arith.constant 0.000000e+00 : f32
    %46 = vector.broadcast %cst_30 : f32 to vector<32x8xf32>
    %47 = arith.cmpf oge, %45, %46 : vector<32x8xf32>
    %cst_31 = arith.constant 1.000000e-01 : f32
    %48 = vector.broadcast %cst_31 : f32 to vector<32x8xf32>
    %49 = arith.mulf %48, %45 : vector<32x8xf32>
    %50 = arith.select %47, %45, %49 : vector<32x8xi1>, vector<32x8xf32>
    %cst_32 = arith.constant 0.000000e+00 : f32
    %51 = vector.broadcast %cst_32 : f32 to vector<16x16xf32>
    %c0_33 = arith.constant 0 : index
    %c0_34 = arith.constant 0 : index
    %c0_35 = arith.constant 0 : index
    %52 = vector.load %arg4[%c0_33, %c0_34, %c0_35] : memref<5x16x32xf32, #tpu.memory_space<vmem>>, vector<1x16x32xf32>
    %53 = vector.shape_cast %52 : vector<1x16x32xf32> to vector<16x32xf32>
    %cst_36 = arith.constant dense<0.000000e+00> : vector<16x8xf32>
    %54 = tpu.matmul %53, %50, %cst_36 {dimension_numbers = #tpu.dot_dimension_numbers<[1], [0], [0], [1], [0, 0, 1, 1], [], []>} : vector<16x32xf32>, vector<32x8xf32>, vector<16x8xf32> -> vector<16x8xf32>
    %c0_37 = arith.constant 0 : index
    %c0_38 = arith.constant 0 : index
    %55 = vector.load %arg8[%c0_37, %c0_38] : memref<40x16xf32, #tpu.memory_space<vmem>>, vector<8x16xf32>
    %cst_39 = arith.constant dense<0.000000e+00> : vector<16x16xf32>
    %56 = tpu.matmul %54, %55, %cst_39 {dimension_numbers = #tpu.dot_dimension_numbers<[1], [0], [0], [1], [0, 0, 1, 1], [], []>} : vector<16x8xf32>, vector<8x16xf32>, vector<16x16xf32> -> vector<16x16xf32>
    %57 = arith.addf %51, %56 : vector<16x16xf32>
    %c1_40 = arith.constant 1 : index
    %c0_41 = arith.constant 0 : index
    %c0_42 = arith.constant 0 : index
    %58 = vector.load %arg4[%c1_40, %c0_41, %c0_42] : memref<5x16x32xf32, #tpu.memory_space<vmem>>, vector<1x16x32xf32>
    %59 = vector.shape_cast %58 : vector<1x16x32xf32> to vector<16x32xf32>
    %cst_43 = arith.constant dense<0.000000e+00> : vector<16x8xf32>
    %60 = tpu.matmul %59, %50, %cst_43 {dimension_numbers = #tpu.dot_dimension_numbers<[1], [0], [0], [1], [0, 0, 1, 1], [], []>} : vector<16x32xf32>, vector<32x8xf32>, vector<16x8xf32> -> vector<16x8xf32>
    %c8 = arith.constant 8 : index
    %c0_44 = arith.constant 0 : index
    %61 = vector.load %arg8[%c8, %c0_44] : memref<40x16xf32, #tpu.memory_space<vmem>>, vector<8x16xf32>
    %cst_45 = arith.constant dense<0.000000e+00> : vector<16x16xf32>
    %62 = tpu.matmul %60, %61, %cst_45 {dimension_numbers = #tpu.dot_dimension_numbers<[1], [0], [0], [1], [0, 0, 1, 1], [], []>} : vector<16x8xf32>, vector<8x16xf32>, vector<16x16xf32> -> vector<16x16xf32>
    %63 = arith.addf %57, %62 : vector<16x16xf32>
    %c2_46 = arith.constant 2 : index
    %c0_47 = arith.constant 0 : index
    %c0_48 = arith.constant 0 : index
    %64 = vector.load %arg4[%c2_46, %c0_47, %c0_48] : memref<5x16x32xf32, #tpu.memory_space<vmem>>, vector<1x16x32xf32>
    %65 = vector.shape_cast %64 : vector<1x16x32xf32> to vector<16x32xf32>
    %cst_49 = arith.constant dense<0.000000e+00> : vector<16x8xf32>
    %66 = tpu.matmul %65, %50, %cst_49 {dimension_numbers = #tpu.dot_dimension_numbers<[1], [0], [0], [1], [0, 0, 1, 1], [], []>} : vector<16x32xf32>, vector<32x8xf32>, vector<16x8xf32> -> vector<16x8xf32>
    %c16 = arith.constant 16 : index
    %c0_50 = arith.constant 0 : index
    %67 = vector.load %arg8[%c16, %c0_50] : memref<40x16xf32, #tpu.memory_space<vmem>>, vector<8x16xf32>
    %cst_51 = arith.constant dense<0.000000e+00> : vector<16x16xf32>
    %68 = tpu.matmul %66, %67, %cst_51 {dimension_numbers = #tpu.dot_dimension_numbers<[1], [0], [0], [1], [0, 0, 1, 1], [], []>} : vector<16x8xf32>, vector<8x16xf32>, vector<16x16xf32> -> vector<16x16xf32>
    %69 = arith.addf %63, %68 : vector<16x16xf32>
    %c3_52 = arith.constant 3 : index
    %c0_53 = arith.constant 0 : index
    %c0_54 = arith.constant 0 : index
    %70 = vector.load %arg4[%c3_52, %c0_53, %c0_54] : memref<5x16x32xf32, #tpu.memory_space<vmem>>, vector<1x16x32xf32>
    %71 = vector.shape_cast %70 : vector<1x16x32xf32> to vector<16x32xf32>
    %cst_55 = arith.constant dense<0.000000e+00> : vector<16x8xf32>
    %72 = tpu.matmul %71, %50, %cst_55 {dimension_numbers = #tpu.dot_dimension_numbers<[1], [0], [0], [1], [0, 0, 1, 1], [], []>} : vector<16x32xf32>, vector<32x8xf32>, vector<16x8xf32> -> vector<16x8xf32>
    %c24 = arith.constant 24 : index
    %c0_56 = arith.constant 0 : index
    %73 = vector.load %arg8[%c24, %c0_56] : memref<40x16xf32, #tpu.memory_space<vmem>>, vector<8x16xf32>
    %cst_57 = arith.constant dense<0.000000e+00> : vector<16x16xf32>
    %74 = tpu.matmul %72, %73, %cst_57 {dimension_numbers = #tpu.dot_dimension_numbers<[1], [0], [0], [1], [0, 0, 1, 1], [], []>} : vector<16x8xf32>, vector<8x16xf32>, vector<16x16xf32> -> vector<16x16xf32>
    %75 = arith.addf %69, %74 : vector<16x16xf32>
    %c4_58 = arith.constant 4 : index
    %c0_59 = arith.constant 0 : index
    %c0_60 = arith.constant 0 : index
    %76 = vector.load %arg4[%c4_58, %c0_59, %c0_60] : memref<5x16x32xf32, #tpu.memory_space<vmem>>, vector<1x16x32xf32>
    %77 = vector.shape_cast %76 : vector<1x16x32xf32> to vector<16x32xf32>
    %cst_61 = arith.constant dense<0.000000e+00> : vector<16x8xf32>
    %78 = tpu.matmul %77, %50, %cst_61 {dimension_numbers = #tpu.dot_dimension_numbers<[1], [0], [0], [1], [0, 0, 1, 1], [], []>} : vector<16x32xf32>, vector<32x8xf32>, vector<16x8xf32> -> vector<16x8xf32>
    %c32 = arith.constant 32 : index
    %c0_62 = arith.constant 0 : index
    %79 = vector.load %arg8[%c32, %c0_62] : memref<40x16xf32, #tpu.memory_space<vmem>>, vector<8x16xf32>
    %cst_63 = arith.constant dense<0.000000e+00> : vector<16x16xf32>
    %80 = tpu.matmul %78, %79, %cst_63 {dimension_numbers = #tpu.dot_dimension_numbers<[1], [0], [0], [1], [0, 0, 1, 1], [], []>} : vector<16x8xf32>, vector<8x16xf32>, vector<16x16xf32> -> vector<16x16xf32>
    %81 = arith.addf %75, %80 : vector<16x16xf32>
    %c0_64 = arith.constant 0 : index
    %c0_65 = arith.constant 0 : index
    %82 = vector.load %arg9[%c0_64, %c0_65] : memref<1x16xf32, #tpu.memory_space<vmem>>, vector<1x16xf32>
    %83 = vector.broadcast %82 : vector<1x16xf32> to vector<16x16xf32>
    %84 = arith.addf %81, %83 : vector<16x16xf32>
    %cst_66 = arith.constant 0.000000e+00 : f32
    %85 = vector.broadcast %cst_66 : f32 to vector<16x16xf32>
    %86 = arith.cmpf oge, %84, %85 : vector<16x16xf32>
    %cst_67 = arith.constant 1.000000e-01 : f32
    %87 = vector.broadcast %cst_67 : f32 to vector<16x16xf32>
    %88 = arith.mulf %87, %84 : vector<16x16xf32>
    %89 = arith.select %86, %84, %88 : vector<16x16xi1>, vector<16x16xf32>
    %cst_68 = arith.constant 0.000000e+00 : f32
    %90 = vector.broadcast %cst_68 : f32 to vector<16x1xf32>
    %c0_69 = arith.constant 0 : index
    %c0_70 = arith.constant 0 : index
    %c0_71 = arith.constant 0 : index
    %91 = vector.load %arg5[%c0_69, %c0_70, %c0_71] : memref<3x16x16xf32, #tpu.memory_space<vmem>>, vector<1x16x16xf32>
    %92 = vector.shape_cast %91 : vector<1x16x16xf32> to vector<16x16xf32>
    %cst_72 = arith.constant dense<0.000000e+00> : vector<16x16xf32>
    %93 = tpu.matmul %92, %89, %cst_72 {dimension_numbers = #tpu.dot_dimension_numbers<[1], [0], [0], [1], [0, 0, 1, 1], [], []>} : vector<16x16xf32>, vector<16x16xf32>, vector<16x16xf32> -> vector<16x16xf32>
    %c0_73 = arith.constant 0 : index
    %c0_74 = arith.constant 0 : index
    %94 = vector.load %arg10[%c0_73, %c0_74] : memref<48x1xf32, #tpu.memory_space<vmem>>, vector<16x1xf32>
    %cst_75 = arith.constant dense<0.000000e+00> : vector<16x1xf32>
    %95 = tpu.matmul %93, %94, %cst_75 {dimension_numbers = #tpu.dot_dimension_numbers<[1], [0], [0], [1], [0, 0, 1, 1], [], []>} : vector<16x16xf32>, vector<16x1xf32>, vector<16x1xf32> -> vector<16x1xf32>
    %96 = arith.addf %90, %95 : vector<16x1xf32>
    %c1_76 = arith.constant 1 : index
    %c0_77 = arith.constant 0 : index
    %c0_78 = arith.constant 0 : index
    %97 = vector.load %arg5[%c1_76, %c0_77, %c0_78] : memref<3x16x16xf32, #tpu.memory_space<vmem>>, vector<1x16x16xf32>
    %98 = vector.shape_cast %97 : vector<1x16x16xf32> to vector<16x16xf32>
    %cst_79 = arith.constant dense<0.000000e+00> : vector<16x16xf32>
    %99 = tpu.matmul %98, %89, %cst_79 {dimension_numbers = #tpu.dot_dimension_numbers<[1], [0], [0], [1], [0, 0, 1, 1], [], []>} : vector<16x16xf32>, vector<16x16xf32>, vector<16x16xf32> -> vector<16x16xf32>
    %c16_80 = arith.constant 16 : index
    %c0_81 = arith.constant 0 : index
    %100 = vector.load %arg10[%c16_80, %c0_81] : memref<48x1xf32, #tpu.memory_space<vmem>>, vector<16x1xf32>
    %cst_82 = arith.constant dense<0.000000e+00> : vector<16x1xf32>
    %101 = tpu.matmul %99, %100, %cst_82 {dimension_numbers = #tpu.dot_dimension_numbers<[1], [0], [0], [1], [0, 0, 1, 1], [], []>} : vector<16x16xf32>, vector<16x1xf32>, vector<16x1xf32> -> vector<16x1xf32>
    %102 = arith.addf %96, %101 : vector<16x1xf32>
    %c2_83 = arith.constant 2 : index
    %c0_84 = arith.constant 0 : index
    %c0_85 = arith.constant 0 : index
    %103 = vector.load %arg5[%c2_83, %c0_84, %c0_85] : memref<3x16x16xf32, #tpu.memory_space<vmem>>, vector<1x16x16xf32>
    %104 = vector.shape_cast %103 : vector<1x16x16xf32> to vector<16x16xf32>
    %cst_86 = arith.constant dense<0.000000e+00> : vector<16x16xf32>
    %105 = tpu.matmul %104, %89, %cst_86 {dimension_numbers = #tpu.dot_dimension_numbers<[1], [0], [0], [1], [0, 0, 1, 1], [], []>} : vector<16x16xf32>, vector<16x16xf32>, vector<16x16xf32> -> vector<16x16xf32>
    %c32_87 = arith.constant 32 : index
    %c0_88 = arith.constant 0 : index
    %106 = vector.load %arg10[%c32_87, %c0_88] : memref<48x1xf32, #tpu.memory_space<vmem>>, vector<16x1xf32>
    %cst_89 = arith.constant dense<0.000000e+00> : vector<16x1xf32>
    %107 = tpu.matmul %105, %106, %cst_89 {dimension_numbers = #tpu.dot_dimension_numbers<[1], [0], [0], [1], [0, 0, 1, 1], [], []>} : vector<16x16xf32>, vector<16x1xf32>, vector<16x1xf32> -> vector<16x1xf32>
    %108 = arith.addf %102, %107 : vector<16x1xf32>
    %c0_90 = arith.constant 0 : index
    %c0_91 = arith.constant 0 : index
    %109 = vector.load %arg11[%c0_90, %c0_91] : memref<1x1xf32, #tpu.memory_space<vmem>>, vector<1x1xf32>
    %110 = vector.broadcast %109 : vector<1x1xf32> to vector<16x1xf32>
    %111 = arith.addf %108, %110 : vector<16x1xf32>
    %c0_92 = arith.constant 0 : index
    %c0_93 = arith.constant 0 : index
    %c0_94 = arith.constant 0 : index
    %112 = vector.load %arg2[%c0_92, %c0_93, %c0_94] : memref<1x64x1xf32, #tpu.memory_space<vmem>>, vector<1x64x1xf32>
    %113 = vector.shape_cast %112 : vector<1x64x1xf32> to vector<64x1xf32>
    %cst_95 = arith.constant 0.000000e+00 : f32
    %114 = vector.broadcast %cst_95 : f32 to vector<32x8xf32>
    %c0_96 = arith.constant 0 : index
    %c0_97 = arith.constant 0 : index
    %c0_98 = arith.constant 0 : index
    %115 = vector.load %arg3[%c0_96, %c0_97, %c0_98] : memref<5x32x64xf32, #tpu.memory_space<vmem>>, vector<1x32x64xf32>
    %116 = vector.shape_cast %115 : vector<1x32x64xf32> to vector<32x64xf32>
    %cst_99 = arith.constant dense<0.000000e+00> : vector<32x1xf32>
    %117 = tpu.matmul %116, %113, %cst_99 {dimension_numbers = #tpu.dot_dimension_numbers<[1], [0], [0], [1], [0, 0, 1, 1], [], []>} : vector<32x64xf32>, vector<64x1xf32>, vector<32x1xf32> -> vector<32x1xf32>
    %c0_100 = arith.constant 0 : index
    %c0_101 = arith.constant 0 : index
    %118 = vector.load %arg6[%c0_100, %c0_101] : memref<5x8xf32, #tpu.memory_space<vmem>>, vector<1x8xf32>
    %119 = vector.broadcast %117 : vector<32x1xf32> to vector<32x8xf32>
    %120 = vector.broadcast %118 : vector<1x8xf32> to vector<32x8xf32>
    %121 = arith.mulf %119, %120 : vector<32x8xf32>
    %122 = arith.addf %114, %121 : vector<32x8xf32>
    %c1_102 = arith.constant 1 : index
    %c0_103 = arith.constant 0 : index
    %c0_104 = arith.constant 0 : index
    %123 = vector.load %arg3[%c1_102, %c0_103, %c0_104] : memref<5x32x64xf32, #tpu.memory_space<vmem>>, vector<1x32x64xf32>
    %124 = vector.shape_cast %123 : vector<1x32x64xf32> to vector<32x64xf32>
    %cst_105 = arith.constant dense<0.000000e+00> : vector<32x1xf32>
    %125 = tpu.matmul %124, %113, %cst_105 {dimension_numbers = #tpu.dot_dimension_numbers<[1], [0], [0], [1], [0, 0, 1, 1], [], []>} : vector<32x64xf32>, vector<64x1xf32>, vector<32x1xf32> -> vector<32x1xf32>
    %c1_106 = arith.constant 1 : index
    %c0_107 = arith.constant 0 : index
    %126 = vector.load %arg6[%c1_106, %c0_107] : memref<5x8xf32, #tpu.memory_space<vmem>>, vector<1x8xf32>
    %127 = vector.broadcast %125 : vector<32x1xf32> to vector<32x8xf32>
    %128 = vector.broadcast %126 : vector<1x8xf32> to vector<32x8xf32>
    %129 = arith.mulf %127, %128 : vector<32x8xf32>
    %130 = arith.addf %122, %129 : vector<32x8xf32>
    %c2_108 = arith.constant 2 : index
    %c0_109 = arith.constant 0 : index
    %c0_110 = arith.constant 0 : index
    %131 = vector.load %arg3[%c2_108, %c0_109, %c0_110] : memref<5x32x64xf32, #tpu.memory_space<vmem>>, vector<1x32x64xf32>
    %132 = vector.shape_cast %131 : vector<1x32x64xf32> to vector<32x64xf32>
    %cst_111 = arith.constant dense<0.000000e+00> : vector<32x1xf32>
    %133 = tpu.matmul %132, %113, %cst_111 {dimension_numbers = #tpu.dot_dimension_numbers<[1], [0], [0], [1], [0, 0, 1, 1], [], []>} : vector<32x64xf32>, vector<64x1xf32>, vector<32x1xf32> -> vector<32x1xf32>
    %c2_112 = arith.constant 2 : index
    %c0_113 = arith.constant 0 : index
    %134 = vector.load %arg6[%c2_112, %c0_113] : memref<5x8xf32, #tpu.memory_space<vmem>>, vector<1x8xf32>
    %135 = vector.broadcast %133 : vector<32x1xf32> to vector<32x8xf32>
    %136 = vector.broadcast %134 : vector<1x8xf32> to vector<32x8xf32>
    %137 = arith.mulf %135, %136 : vector<32x8xf32>
    %138 = arith.addf %130, %137 : vector<32x8xf32>
    %c3_114 = arith.constant 3 : index
    %c0_115 = arith.constant 0 : index
    %c0_116 = arith.constant 0 : index
    %139 = vector.load %arg3[%c3_114, %c0_115, %c0_116] : memref<5x32x64xf32, #tpu.memory_space<vmem>>, vector<1x32x64xf32>
    %140 = vector.shape_cast %139 : vector<1x32x64xf32> to vector<32x64xf32>
    %cst_117 = arith.constant dense<0.000000e+00> : vector<32x1xf32>
    %141 = tpu.matmul %140, %113, %cst_117 {dimension_numbers = #tpu.dot_dimension_numbers<[1], [0], [0], [1], [0, 0, 1, 1], [], []>} : vector<32x64xf32>, vector<64x1xf32>, vector<32x1xf32> -> vector<32x1xf32>
    %c3_118 = arith.constant 3 : index
    %c0_119 = arith.constant 0 : index
    %142 = vector.load %arg6[%c3_118, %c0_119] : memref<5x8xf32, #tpu.memory_space<vmem>>, vector<1x8xf32>
    %143 = vector.broadcast %141 : vector<32x1xf32> to vector<32x8xf32>
    %144 = vector.broadcast %142 : vector<1x8xf32> to vector<32x8xf32>
    %145 = arith.mulf %143, %144 : vector<32x8xf32>
    %146 = arith.addf %138, %145 : vector<32x8xf32>
    %c4_120 = arith.constant 4 : index
    %c0_121 = arith.constant 0 : index
    %c0_122 = arith.constant 0 : index
    %147 = vector.load %arg3[%c4_120, %c0_121, %c0_122] : memref<5x32x64xf32, #tpu.memory_space<vmem>>, vector<1x32x64xf32>
    %148 = vector.shape_cast %147 : vector<1x32x64xf32> to vector<32x64xf32>
    %cst_123 = arith.constant dense<0.000000e+00> : vector<32x1xf32>
    %149 = tpu.matmul %148, %113, %cst_123 {dimension_numbers = #tpu.dot_dimension_numbers<[1], [0], [0], [1], [0, 0, 1, 1], [], []>} : vector<32x64xf32>, vector<64x1xf32>, vector<32x1xf32> -> vector<32x1xf32>
    %c4_124 = arith.constant 4 : index
    %c0_125 = arith.constant 0 : index
    %150 = vector.load %arg6[%c4_124, %c0_125] : memref<5x8xf32, #tpu.memory_space<vmem>>, vector<1x8xf32>
    %151 = vector.broadcast %149 : vector<32x1xf32> to vector<32x8xf32>
    %152 = vector.broadcast %150 : vector<1x8xf32> to vector<32x8xf32>
    %153 = arith.mulf %151, %152 : vector<32x8xf32>
    %154 = arith.addf %146, %153 : vector<32x8xf32>
    %c0_126 = arith.constant 0 : index
    %c0_127 = arith.constant 0 : index
    %155 = vector.load %arg7[%c0_126, %c0_127] : memref<1x8xf32, #tpu.memory_space<vmem>>, vector<1x8xf32>
    %156 = vector.broadcast %155 : vector<1x8xf32> to vector<32x8xf32>
    %157 = arith.addf %154, %156 : vector<32x8xf32>
    %cst_128 = arith.constant 0.000000e+00 : f32
    %158 = vector.broadcast %cst_128 : f32 to vector<32x8xf32>
    %159 = arith.cmpf oge, %157, %158 : vector<32x8xf32>
    %cst_129 = arith.constant 1.000000e-01 : f32
    %160 = vector.broadcast %cst_129 : f32 to vector<32x8xf32>
    %161 = arith.mulf %160, %157 : vector<32x8xf32>
    %162 = arith.select %159, %157, %161 : vector<32x8xi1>, vector<32x8xf32>
    %cst_130 = arith.constant 0.000000e+00 : f32
    %163 = vector.broadcast %cst_130 : f32 to vector<16x16xf32>
    %c0_131 = arith.constant 0 : index
    %c0_132 = arith.constant 0 : index
    %c0_133 = arith.constant 0 : index
    %164 = vector.load %arg4[%c0_131, %c0_132, %c0_133] : memref<5x16x32xf32, #tpu.memory_space<vmem>>, vector<1x16x32xf32>
    %165 = vector.shape_cast %164 : vector<1x16x32xf32> to vector<16x32xf32>
    %cst_134 = arith.constant dense<0.000000e+00> : vector<16x8xf32>
    %166 = tpu.matmul %165, %162, %cst_134 {dimension_numbers = #tpu.dot_dimension_numbers<[1], [0], [0], [1], [0, 0, 1, 1], [], []>} : vector<16x32xf32>, vector<32x8xf32>, vector<16x8xf32> -> vector<16x8xf32>
    %c0_135 = arith.constant 0 : index
    %c0_136 = arith.constant 0 : index
    %167 = vector.load %arg8[%c0_135, %c0_136] : memref<40x16xf32, #tpu.memory_space<vmem>>, vector<8x16xf32>
    %cst_137 = arith.constant dense<0.000000e+00> : vector<16x16xf32>
    %168 = tpu.matmul %166, %167, %cst_137 {dimension_numbers = #tpu.dot_dimension_numbers<[1], [0], [0], [1], [0, 0, 1, 1], [], []>} : vector<16x8xf32>, vector<8x16xf32>, vector<16x16xf32> -> vector<16x16xf32>
    %169 = arith.addf %163, %168 : vector<16x16xf32>
    %c1_138 = arith.constant 1 : index
    %c0_139 = arith.constant 0 : index
    %c0_140 = arith.constant 0 : index
    %170 = vector.load %arg4[%c1_138, %c0_139, %c0_140] : memref<5x16x32xf32, #tpu.memory_space<vmem>>, vector<1x16x32xf32>
    %171 = vector.shape_cast %170 : vector<1x16x32xf32> to vector<16x32xf32>
    %cst_141 = arith.constant dense<0.000000e+00> : vector<16x8xf32>
    %172 = tpu.matmul %171, %162, %cst_141 {dimension_numbers = #tpu.dot_dimension_numbers<[1], [0], [0], [1], [0, 0, 1, 1], [], []>} : vector<16x32xf32>, vector<32x8xf32>, vector<16x8xf32> -> vector<16x8xf32>
    %c8_142 = arith.constant 8 : index
    %c0_143 = arith.constant 0 : index
    %173 = vector.load %arg8[%c8_142, %c0_143] : memref<40x16xf32, #tpu.memory_space<vmem>>, vector<8x16xf32>
    %cst_144 = arith.constant dense<0.000000e+00> : vector<16x16xf32>
    %174 = tpu.matmul %172, %173, %cst_144 {dimension_numbers = #tpu.dot_dimension_numbers<[1], [0], [0], [1], [0, 0, 1, 1], [], []>} : vector<16x8xf32>, vector<8x16xf32>, vector<16x16xf32> -> vector<16x16xf32>
    %175 = arith.addf %169, %174 : vector<16x16xf32>
    %c2_145 = arith.constant 2 : index
    %c0_146 = arith.constant 0 : index
    %c0_147 = arith.constant 0 : index
    %176 = vector.load %arg4[%c2_145, %c0_146, %c0_147] : memref<5x16x32xf32, #tpu.memory_space<vmem>>, vector<1x16x32xf32>
    %177 = vector.shape_cast %176 : vector<1x16x32xf32> to vector<16x32xf32>
    %cst_148 = arith.constant dense<0.000000e+00> : vector<16x8xf32>
    %178 = tpu.matmul %177, %162, %cst_148 {dimension_numbers = #tpu.dot_dimension_numbers<[1], [0], [0], [1], [0, 0, 1, 1], [], []>} : vector<16x32xf32>, vector<32x8xf32>, vector<16x8xf32> -> vector<16x8xf32>
    %c16_149 = arith.constant 16 : index
    %c0_150 = arith.constant 0 : index
    %179 = vector.load %arg8[%c16_149, %c0_150] : memref<40x16xf32, #tpu.memory_space<vmem>>, vector<8x16xf32>
    %cst_151 = arith.constant dense<0.000000e+00> : vector<16x16xf32>
    %180 = tpu.matmul %178, %179, %cst_151 {dimension_numbers = #tpu.dot_dimension_numbers<[1], [0], [0], [1], [0, 0, 1, 1], [], []>} : vector<16x8xf32>, vector<8x16xf32>, vector<16x16xf32> -> vector<16x16xf32>
    %181 = arith.addf %175, %180 : vector<16x16xf32>
    %c3_152 = arith.constant 3 : index
    %c0_153 = arith.constant 0 : index
    %c0_154 = arith.constant 0 : index
    %182 = vector.load %arg4[%c3_152, %c0_153, %c0_154] : memref<5x16x32xf32, #tpu.memory_space<vmem>>, vector<1x16x32xf32>
    %183 = vector.shape_cast %182 : vector<1x16x32xf32> to vector<16x32xf32>
    %cst_155 = arith.constant dense<0.000000e+00> : vector<16x8xf32>
    %184 = tpu.matmul %183, %162, %cst_155 {dimension_numbers = #tpu.dot_dimension_numbers<[1], [0], [0], [1], [0, 0, 1, 1], [], []>} : vector<16x32xf32>, vector<32x8xf32>, vector<16x8xf32> -> vector<16x8xf32>
    %c24_156 = arith.constant 24 : index
    %c0_157 = arith.constant 0 : index
    %185 = vector.load %arg8[%c24_156, %c0_157] : memref<40x16xf32, #tpu.memory_space<vmem>>, vector<8x16xf32>
    %cst_158 = arith.constant dense<0.000000e+00> : vector<16x16xf32>
    %186 = tpu.matmul %184, %185, %cst_158 {dimension_numbers = #tpu.dot_dimension_numbers<[1], [0], [0], [1], [0, 0, 1, 1], [], []>} : vector<16x8xf32>, vector<8x16xf32>, vector<16x16xf32> -> vector<16x16xf32>
    %187 = arith.addf %181, %186 : vector<16x16xf32>
    %c4_159 = arith.constant 4 : index
    %c0_160 = arith.constant 0 : index
    %c0_161 = arith.constant 0 : index
    %188 = vector.load %arg4[%c4_159, %c0_160, %c0_161] : memref<5x16x32xf32, #tpu.memory_space<vmem>>, vector<1x16x32xf32>
    %189 = vector.shape_cast %188 : vector<1x16x32xf32> to vector<16x32xf32>
    %cst_162 = arith.constant dense<0.000000e+00> : vector<16x8xf32>
    %190 = tpu.matmul %189, %162, %cst_162 {dimension_numbers = #tpu.dot_dimension_numbers<[1], [0], [0], [1], [0, 0, 1, 1], [], []>} : vector<16x32xf32>, vector<32x8xf32>, vector<16x8xf32> -> vector<16x8xf32>
    %c32_163 = arith.constant 32 : index
    %c0_164 = arith.constant 0 : index
    %191 = vector.load %arg8[%c32_163, %c0_164] : memref<40x16xf32, #tpu.memory_space<vmem>>, vector<8x16xf32>
    %cst_165 = arith.constant dense<0.000000e+00> : vector<16x16xf32>
    %192 = tpu.matmul %190, %191, %cst_165 {dimension_numbers = #tpu.dot_dimension_numbers<[1], [0], [0], [1], [0, 0, 1, 1], [], []>} : vector<16x8xf32>, vector<8x16xf32>, vector<16x16xf32> -> vector<16x16xf32>
    %193 = arith.addf %187, %192 : vector<16x16xf32>
    %c0_166 = arith.constant 0 : index
    %c0_167 = arith.constant 0 : index
    %194 = vector.load %arg9[%c0_166, %c0_167] : memref<1x16xf32, #tpu.memory_space<vmem>>, vector<1x16xf32>
    %195 = vector.broadcast %194 : vector<1x16xf32> to vector<16x16xf32>
    %196 = arith.addf %193, %195 : vector<16x16xf32>
    %cst_168 = arith.constant 0.000000e+00 : f32
    %197 = vector.broadcast %cst_168 : f32 to vector<16x16xf32>
    %198 = arith.cmpf oge, %196, %197 : vector<16x16xf32>
    %cst_169 = arith.constant 1.000000e-01 : f32
    %199 = vector.broadcast %cst_169 : f32 to vector<16x16xf32>
    %200 = arith.mulf %199, %196 : vector<16x16xf32>
    %201 = arith.select %198, %196, %200 : vector<16x16xi1>, vector<16x16xf32>
    %cst_170 = arith.constant 1.000000e+00 : f32
    %202 = vector.broadcast %cst_170 : f32 to vector<16x1xf32>
    %203 = arith.subf %202, %111 : vector<16x1xf32>
    %204 = arith.mulf %203, %203 : vector<16x1xf32>
    %205 = vector.shape_cast %204 : vector<16x1xf32> to vector<1x16x1xf32>
    %cst_171 = arith.constant dense<0.000000e+00> : vector<1xf32>
    %206 = vector.multi_reduction <add>, %205, %cst_171 [1, 2] : vector<1x16x1xf32> to vector<1xf32>
    %207 = vector.shape_cast %206 : vector<1xf32> to vector<1x1x1xf32>
    %208 = vector.extract %207[0, 0, 0] : f32 from vector<1x1x1xf32>
    %209 = vector.broadcast %208 : f32 to vector<1x1xf32>
    %210 = arith.subf %162, %50 : vector<32x8xf32>
    %211 = math.absf %210 : vector<32x8xf32>
    %212 = vector.shape_cast %211 : vector<32x8xf32> to vector<1x32x8xf32>
    %cst_172 = arith.constant dense<0.000000e+00> : vector<1xf32>
    %213 = vector.multi_reduction <add>, %212, %cst_172 [1, 2] : vector<1x32x8xf32> to vector<1xf32>
    %214 = vector.shape_cast %213 : vector<1xf32> to vector<1x1x1xf32>
    %215 = vector.extract %214[0, 0, 0] : f32 from vector<1x1x1xf32>
    %216 = vector.broadcast %215 : f32 to vector<1x1xf32>
    %217 = arith.subf %201, %89 : vector<16x16xf32>
    %218 = math.absf %217 : vector<16x16xf32>
    %219 = vector.shape_cast %218 : vector<16x16xf32> to vector<1x16x16xf32>
    %cst_173 = arith.constant dense<0.000000e+00> : vector<1xf32>
    %220 = vector.multi_reduction <add>, %219, %cst_173 [1, 2] : vector<1x16x16xf32> to vector<1xf32>
    %221 = vector.shape_cast %220 : vector<1xf32> to vector<1x1x1xf32>
    %222 = vector.extract %221[0, 0, 0] : f32 from vector<1x1x1xf32>
    %223 = vector.broadcast %222 : f32 to vector<1x1xf32>
    %224 = tpu.iota {dimensions = array<i32: 1>} : vector<1x4xi32>
    %c0_i32 = arith.constant 0 : i32
    %225 = vector.broadcast %c0_i32 : i32 to vector<1x4xi32>
    %226 = arith.cmpi eq, %224, %225 : vector<1x4xi32>
    %cst_174 = arith.constant 0.000000e+00 : f32
    %227 = vector.shape_cast %209 : vector<1x1xf32> to vector<1x1xf32>
    %228 = vector.broadcast %227 : vector<1x1xf32> to vector<1x4xf32>
    %229 = vector.broadcast %cst_174 : f32 to vector<1x4xf32>
    %230 = arith.select %226, %228, %229 : vector<1x4xi1>, vector<1x4xf32>
    %c1_i32 = arith.constant 1 : i32
    %231 = vector.broadcast %c1_i32 : i32 to vector<1x4xi32>
    %232 = arith.cmpi eq, %224, %231 : vector<1x4xi32>
    %cst_175 = arith.constant 0.000000e+00 : f32
    %233 = vector.shape_cast %216 : vector<1x1xf32> to vector<1x1xf32>
    %234 = vector.broadcast %233 : vector<1x1xf32> to vector<1x4xf32>
    %235 = vector.broadcast %cst_175 : f32 to vector<1x4xf32>
    %236 = arith.select %232, %234, %235 : vector<1x4xi1>, vector<1x4xf32>
    %237 = arith.addf %230, %236 : vector<1x4xf32>
    %c2_i32 = arith.constant 2 : i32
    %238 = vector.broadcast %c2_i32 : i32 to vector<1x4xi32>
    %239 = arith.cmpi eq, %224, %238 : vector<1x4xi32>
    %cst_176 = arith.constant 0.000000e+00 : f32
    %240 = vector.shape_cast %223 : vector<1x1xf32> to vector<1x1xf32>
    %241 = vector.broadcast %240 : vector<1x1xf32> to vector<1x4xf32>
    %242 = vector.broadcast %cst_176 : f32 to vector<1x4xf32>
    %243 = arith.select %239, %241, %242 : vector<1x4xi1>, vector<1x4xf32>
    %244 = arith.addf %237, %243 : vector<1x4xf32>
    %c0_177 = arith.constant 0 : index
    %c0_178 = arith.constant 0 : index
    %c0_179 = arith.constant 0 : index
    %245 = vector.load %arg12[%c0_177, %c0_178, %c0_179] : memref<1x1x4xf32, #tpu.memory_space<vmem>>, vector<1x1x4xf32>
    %246 = vector.shape_cast %245 : vector<1x1x4xf32> to vector<1x4xf32>
    %247 = vector.shape_cast %244 : vector<1x4xf32> to vector<1x1x4xf32>
    tpu.vector_store %arg12[%c0_177, %c0_178, %c0_179], %247 {strides = array<i32>} : memref<1x1x4xf32, #tpu.memory_space<vmem>>, vector<1x1x4xf32>,
    return
  }
  func.func @transform_0(%arg0: i32) -> (i32, i32, i32) {
    %c0_i32 = arith.constant 0 : i32
    %c0_i32_0 = arith.constant 0 : i32
    %c0_i32_1 = arith.constant 0 : i32
    return %arg0, %c0_i32, %c0_i32_0 : i32, i32, i32
  }
  func.func @transform_1(%arg0: i32) -> (i32, i32, i32) {
    %c0_i32 = arith.constant 0 : i32
    %c0_i32_0 = arith.constant 0 : i32
    %c0_i32_1 = arith.constant 0 : i32
    return %arg0, %c0_i32, %c0_i32_0 : i32, i32, i32
  }
  func.func @transform_2(%arg0: i32) -> (i32, i32, i32) {
    %c0_i32 = arith.constant 0 : i32
    %c0_i32_0 = arith.constant 0 : i32
    %c0_i32_1 = arith.constant 0 : i32
    %c0_i32_2 = arith.constant 0 : i32
    return %c0_i32, %c0_i32_0, %c0_i32_1 : i32, i32, i32
  }
  func.func @transform_3(%arg0: i32) -> (i32, i32, i32) {
    %c0_i32 = arith.constant 0 : i32
    %c0_i32_0 = arith.constant 0 : i32
    %c0_i32_1 = arith.constant 0 : i32
    %c0_i32_2 = arith.constant 0 : i32
    return %c0_i32, %c0_i32_0, %c0_i32_1 : i32, i32, i32
  }
  func.func @transform_4(%arg0: i32) -> (i32, i32, i32) {
    %c0_i32 = arith.constant 0 : i32
    %c0_i32_0 = arith.constant 0 : i32
    %c0_i32_1 = arith.constant 0 : i32
    %c0_i32_2 = arith.constant 0 : i32
    return %c0_i32, %c0_i32_0, %c0_i32_1 : i32, i32, i32
  }
  func.func @transform_5(%arg0: i32) -> (i32, i32) {
    %c0_i32 = arith.constant 0 : i32
    %c0_i32_0 = arith.constant 0 : i32
    %c0_i32_1 = arith.constant 0 : i32
    return %c0_i32, %c0_i32_0 : i32, i32
  }
  func.func @transform_6(%arg0: i32) -> (i32, i32) {
    %c0_i32 = arith.constant 0 : i32
    %c0_i32_0 = arith.constant 0 : i32
    %c0_i32_1 = arith.constant 0 : i32
    return %c0_i32, %c0_i32_0 : i32, i32
  }
  func.func @transform_7(%arg0: i32) -> (i32, i32) {
    %c0_i32 = arith.constant 0 : i32
    %c0_i32_0 = arith.constant 0 : i32
    %c0_i32_1 = arith.constant 0 : i32
    return %c0_i32, %c0_i32_0 : i32, i32
  }
  func.func @transform_8(%arg0: i32) -> (i32, i32) {
    %c0_i32 = arith.constant 0 : i32
    %c0_i32_0 = arith.constant 0 : i32
    %c0_i32_1 = arith.constant 0 : i32
    return %c0_i32, %c0_i32_0 : i32, i32
  }
  func.func @transform_9(%arg0: i32) -> (i32, i32) {
    %c0_i32 = arith.constant 0 : i32
    %c0_i32_0 = arith.constant 0 : i32
    %c0_i32_1 = arith.constant 0 : i32
    return %c0_i32, %c0_i32_0 : i32, i32
  }
  func.func @transform_10(%arg0: i32) -> (i32, i32) {
    %c0_i32 = arith.constant 0 : i32
    %c0_i32_0 = arith.constant 0 : i32
    %c0_i32_1 = arith.constant 0 : i32
    return %c0_i32, %c0_i32_0 : i32, i32
  }
  func.func @transform_11(%arg0: i32) -> (i32, i32, i32) {
    %c0_i32 = arith.constant 0 : i32
    %c0_i32_0 = arith.constant 0 : i32
    %c0_i32_1 = arith.constant 0 : i32
    return %arg0, %c0_i32, %c0_i32_0 : i32, i32, i32
  }
}

</mosaic_0001>

<llo_original>
// kernel: forward.3
$region0: #{forward.3}
  #allocation0 [shape = 'u32[]', space=smem, size = 0x4, offset = 0x4, fixed_abs, tag = 'smem constant byte address 0x4 - core index']
  #allocation1 [shape = 'u32[144,128]{1,0:T(1,128)}', space=vmem, size = 0x12000, scoped, tag = 'internal scratch']
  %s0 = inlined_call_operand.vmem [shape: f32[4,20,16], index: 0, kind: input, shape index: {}]
  %s1 = inlined_call_operand.vmem [shape: f32[4,17,1], index: 1, kind: input, shape index: {}]
  %s2 = inlined_call_operand.vmem [shape: f32[64,128], index: 2, kind: input, shape index: {}]
  %s3 = inlined_call_operand.vmem [shape: f32[64,8], index: 3, kind: input, shape index: {}]
  %s4 = inlined_call_operand.vmem [shape: f32[4,17,8], index: 4, kind: output, shape index: {0}]
  %s5 = inlined_call_operand.vmem [shape: f32[4,17,1], index: 5, kind: output, shape index: {1}]
  %6 = xla_tuple %s4, %s5
  %s7 = sld [smem:[#allocation0]]
  $region57: #{forward.3} parent=0
    _
  %s9 = ssub.s32 1, %s7
  %s10 = scalar_select 0, %s9, %s7
  loop: start=0, step=1, limit=6
  $region2: #{forward.3} parent=0 // loop_pre_header
    _
  $region3: #{forward.3} parent=0 // loop_header
    %s12 = sphi 0, %s16
    %p13 = scmp.ge.s32.totalorder %s12, 6
    %s22 = sphi 0, %s24
    %s25 = sphi 0, %s22
    %s26 = sphi 0, %s25
    %s42 = sphi 0, %s26
    %s48 = sphi 0, %s50
    %s51 = sphi 0, %s48
    %s52 = sphi 0, %s51
    %s68 = sphi 0, %s52
    %s72 = sphi 0, %s72
    %s74 = sphi 0, %s72
    %s75 = sphi 0, %s74
    %s89 = sphi 0, %s75
    %s93 = sphi 0, %s93
    %s95 = sphi 0, %s93
    %s96 = sphi 0, %s95
    %s110 = sphi 0, %s96
    %s116 = sphi 0, %s118
    %s119 = sphi 0, %s116
    %s120 = sphi 0, %s119
    %s136 = sphi 0, %s120
    %s142 = sphi 0, %s144
    %s145 = sphi 0, %s142
    %s146 = sphi 0, %s145
    %s162 = sphi 0, %s146
  $region4: #{forward.3} parent=0 // loop_header_branch
    %15 = sbr.rel (%p13) target = $region8
  $region5: #{forward.3} parent=0 // loop_body
    %s17 = ssub.s32 %s12, 1
    %s18 = ssub.s32 %s12, 2
    %s19 = sadd.s32 %s12, 1
    %s20 = ssub.s32 %s12, %s19
    %p21 = scmp.eq.s32.totalorder %s20, 0
    %s23 = sadd.s32 %s22, 1
    %s24 = scalar_select %p21, %s22, %s23
    %p27 = pneg %p21
    %p28 = scmp.eq.s32.totalorder %s12, 3
    %p29 = por %p27, %p28
    %p30 = scmp.ne.s32.totalorder %s22, %s25
    %p31 = scmp.eq.s32.totalorder %s12, 0
    %p32 = por %p30, %p31
    %p33 = scmp.ne.s32.totalorder %s22, %s25
    %p34 = scmp.eq.s32.totalorder %s17, 3
    %p35 = por %p33, %p34
    %p36 = scmp.ne.s32.totalorder %s25, %s26
    %p37 = scmp.eq.s32.totalorder %s17, 0
    %p38 = por %p36, %p37
    %p39 = scmp.ne.s32.totalorder %s25, %s26
    %p40 = scmp.eq.s32.totalorder %s18, 3
    %p41 = por %p39, %p40
    %p43 = scmp.ne.s32.totalorder %s26, %s42
    %p44 = scmp.eq.s32.totalorder %s18, 0
    %p45 = por %p43, %p44
    %s46 = ssub.s32 %s12, %s19
    %p47 = scmp.eq.s32.totalorder %s46, 0
    %s49 = sadd.s32 %s48, 1
    %s50 = scalar_select %p47, %s48, %s49
    %p53 = pneg %p47
    %p54 = scmp.eq.s32.totalorder %s12, 3
    %p55 = por %p53, %p54
    %p56 = scmp.ne.s32.totalorder %s48, %s51
    %p57 = scmp.eq.s32.totalorder %s12, 0
    %p58 = por %p56, %p57
    %p59 = scmp.ne.s32.totalorder %s48, %s51
    %p60 = scmp.eq.s32.totalorder %s17, 3
    %p61 = por %p59, %p60
    %p62 = scmp.ne.s32.totalorder %s51, %s52
    %p63 = scmp.eq.s32.totalorder %s17, 0
    %p64 = por %p62, %p63
    %p65 = scmp.ne.s32.totalorder %s51, %s52
    %p66 = scmp.eq.s32.totalorder %s18, 3
    %p67 = por %p65, %p66
    %p69 = scmp.ne.s32.totalorder %s52, %s68
    %p70 = scmp.eq.s32.totalorder %s18, 0
    %p71 = por %p69, %p70
    %s73 = sadd.s32 %s72, 1
    %p76 = scmp.eq.s32.totalorder %s12, 3
    %p77 = scmp.ne.s32.totalorder %s72, %s74
    %p78 = scmp.eq.s32.totalorder %s12, 0
    %p79 = por %p77, %p78
    %p80 = scmp.ne.s32.totalorder %s72, %s74
    %p81 = scmp.eq.s32.totalorder %s17, 3
    %p82 = por %p80, %p81
    %p83 = scmp.ne.s32.totalorder %s74, %s75
    %p84 = scmp.eq.s32.totalorder %s17, 0
    %p85 = por %p83, %p84
    %p86 = scmp.ne.s32.totalorder %s74, %s75
    %p87 = scmp.eq.s32.totalorder %s18, 3
    %p88 = por %p86, %p87
    %p90 = scmp.ne.s32.totalorder %s75, %s89
    %p91 = scmp.eq.s32.totalorder %s18, 0
    %p92 = por %p90, %p91
    %s94 = sadd.s32 %s93, 1
    %p97 = scmp.eq.s32.totalorder %s12, 3
    %p98 = scmp.ne.s32.totalorder %s93, %s95
    %p99 = scmp.eq.s32.totalorder %s12, 0
    %p100 = por %p98, %p99
    %p101 = scmp.ne.s32.totalorder %s93, %s95
    %p102 = scmp.eq.s32.totalorder %s17, 3
    %p103 = por %p101, %p102
    %p104 = scmp.ne.s32.totalorder %s95, %s96
    %p105 = scmp.eq.s32.totalorder %s17, 0
    %p106 = por %p104, %p105
    %p107 = scmp.ne.s32.totalorder %s95, %s96
    %p108 = scmp.eq.s32.totalorder %s18, 3
    %p109 = por %p107, %p108
    %p111 = scmp.ne.s32.totalorder %s96, %s110
    %p112 = scmp.eq.s32.totalorder %s18, 0
    %p113 = por %p111, %p112
    %s114 = ssub.s32 %s12, %s19
    %p115 = scmp.eq.s32.totalorder %s114, 0
    %s117 = sadd.s32 %s116, 1
    %s118 = scalar_select %p115, %s116, %s117
    %p121 = pneg %p115
    %p122 = scmp.eq.s32.totalorder %s12, 3
    %p123 = por %p121, %p122
    %p124 = scmp.ne.s32.totalorder %s116, %s119
    %p125 = scmp.eq.s32.totalorder %s12, 0
    %p126 = por %p124, %p125
    %p127 = scmp.ne.s32.totalorder %s116, %s119
    %p128 = scmp.eq.s32.totalorder %s17, 3
    %p129 = por %p127, %p128
    %p130 = scmp.ne.s32.totalorder %s119, %s120
    %p131 = scmp.eq.s32.totalorder %s17, 0
    %p132 = por %p130, %p131
    %p133 = scmp.ne.s32.totalorder %s119, %s120
    %p134 = scmp.eq.s32.totalorder %s18, 3
    %p135 = por %p133, %p134
    %p137 = scmp.ne.s32.totalorder %s120, %s136
    %p138 = scmp.eq.s32.totalorder %s18, 0
    %p139 = por %p137, %p138
    %s140 = ssub.s32 %s12, %s19
    %p141 = scmp.eq.s32.totalorder %s140, 0
    %s143 = sadd.s32 %s142, 1
    %s144 = scalar_select %p141, %s142, %s143
    %p147 = pneg %p141
    %p148 = scmp.eq.s32.totalorder %s12, 3
    %p149 = por %p147, %p148
    %p150 = scmp.ne.s32.totalorder %s142, %s145
    %p151 = scmp.eq.s32.totalorder %s12, 0
    %p152 = por %p150, %p151
    %p153 = scmp.ne.s32.totalorder %s142, %s145
    %p154 = scmp.eq.s32.totalorder %s17, 3
    %p155 = por %p153, %p154
    %p156 = scmp.ne.s32.totalorder %s145, %s146
    %p157 = scmp.eq.s32.totalorder %s17, 0
    %p158 = por %p156, %p157
    %p159 = scmp.ne.s32.totalorder %s145, %s146
    %p160 = scmp.eq.s32.totalorder %s18, 3
    %p161 = por %p159, %p160
    %p163 = scmp.ne.s32.totalorder %s146, %s162
    %p164 = scmp.eq.s32.totalorder %s18, 0
    %p165 = por %p163, %p164
    %p166 = scmp.le.s32.totalorder 1, %s12
    %p167 = scmp.lt.s32.totalorder %s12, 5
    %p168 = pnand %p166, %p167
    %p169 = pneg %p168
    // Predicated region
    $region9: #{forward.3} parent=5 // pred_check
      _
    $region10: #{forward.3} parent=5 // pred_check_branch
      %171 = sbr.rel (%p168) target = $region12
    $region11: #{forward.3} parent=5 // pred_region
      %s172 = ssub.s32 %s12, 1
      // Predicated region
      $region13: #{forward.3} parent=11 // pred_check
        %p173 = pneg %p85
      $region14: #{forward.3} parent=11 // pred_check_branch
        %175 = sbr.rel (%p173) target = $region16
      $region15: #{forward.3} parent=11 // pred_region
        _
      $region16: #{forward.3} parent=11 // pred_fallthru
        _
      // Predicated region
      $region17: #{forward.3} parent=11 // pred_check
        %p176 = pneg %p106
      $region18: #{forward.3} parent=11 // pred_check_branch
        %178 = sbr.rel (%p176) target = $region20
      $region19: #{forward.3} parent=11 // pred_region
        _
      $region20: #{forward.3} parent=11 // pred_fallthru
        _
    $region12: #{forward.3} parent=5 // pred_fallthru
      _
    %p179 = scmp.lt.s32.totalorder %s12, 4
    // Predicated region
    $region21: #{forward.3} parent=5 // pred_check
      %p180 = pneg %p179
    $region22: #{forward.3} parent=5 // pred_check_branch
      %182 = sbr.rel (%p180) target = $region24
    $region23: #{forward.3} parent=5 // pred_region
      // Predicated region
      $region25: #{forward.3} parent=23 // pred_check
        %p183 = pneg %p32
      $region26: #{forward.3} parent=23 // pred_check_branch
        %185 = sbr.rel (%p183) target = $region28
      $region27: #{forward.3} parent=23 // pred_region
        %p186 = scmp.lt.s32.totalorder %s12, 3
        %s187 = scalar_select %p186, %s12, 3
        %s188 = smul.addr %s187, 3
        %s189 = smul.addr %s188, 8
        %s190 = scalar_lea.vmem %s0, %s189
      $region28: #{forward.3} parent=23 // pred_fallthru
        _
      // Predicated region
      $region29: #{forward.3} parent=23 // pred_check
        %p191 = pneg %p58
      $region30: #{forward.3} parent=23 // pred_check_branch
        %193 = sbr.rel (%p191) target = $region32
      $region31: #{forward.3} parent=23 // pred_region
        %p194 = scmp.lt.s32.totalorder %s12, 3
        %s195 = scalar_select %p194, %s12, 3
        %s196 = smul.addr %s195, 3
        %s197 = smul.addr %s196, 8
        %s198 = scalar_lea.vmem %s1, %s197
      $region32: #{forward.3} parent=23 // pred_fallthru
        _
    $region24: #{forward.3} parent=5 // pred_fallthru
      _
    %p199 = scmp.le.s32.totalorder 1, %s12
    %p200 = scmp.lt.s32.totalorder %s12, 5
    %p201 = pnand %p199, %p200
    %p202 = pneg %p201
    // Predicated region
    $region33: #{forward.3} parent=5 // pred_check
      _
    $region34: #{forward.3} parent=5 // pred_check_branch
      %204 = sbr.rel (%p201) target = $region36
    $region35: #{forward.3} parent=5 // pred_region
      %s205 = ssub.s32 %s12, 1
      %p206 = scmp.lt.s32.totalorder %s17, 3
      %s207 = scalar_select %p206, %s17, 3
      %s208 = smul.addr %s207, 3
      %s209 = smul.addr %s208, 8
      %s210 = scalar_lea.vmem %s0, %s209
      %p211 = pneg %p38
      %p212 = pneg %p35
      %p213 = scmp.lt.s32.totalorder %s17, 3
      %s214 = scalar_select %p213, %s17, 3
      %s215 = smul.addr %s214, 3
      %s216 = smul.addr %s215, 8
      %s217 = scalar_lea.vmem %s1, %s216
      %p218 = pneg %p64
      %p219 = pneg %p61
      %p220 = pneg %p85
      %p221 = pneg %p82
      %p222 = pneg %p106
      %p223 = pneg %p103
      %p224 = pneg %p132
      %p225 = pneg %p129
      %p226 = scmp.lt.s32.totalorder %s17, 3
      %s227 = scalar_select %p226, %s17, 3
      %s228 = smul.addr %s227, 3
      %s229 = smul.addr %s228, 8
      %s230 = scalar_lea.vmem %s4, %s229
      %p231 = pneg %p158
      %p232 = pneg %p155
      %p233 = scmp.lt.s32.totalorder %s17, 3
      %s234 = scalar_select %p233, %s17, 3
      %s235 = smul.addr %s234, 3
      %s236 = smul.addr %s235, 8
      %s237 = scalar_lea.vmem %s5, %s236
      %p238 = scmp.lt.s32.totalorder %s17, 3
      %s239 = scalar_select %p238, %s17, 3
      %s240 = smul.addr %s239, 3
      %s241 = smul.addr %s240, 8
      %s242 = scalar_lea.vmem %s0, %s241
      %p243 = scmp.lt.s32.totalorder %s17, 3
      %s244 = scalar_select %p243, %s17, 3
      %s245 = smul.addr %s244, 3
      %s246 = smul.addr %s245, 8
      %s247 = scalar_lea.vmem %s1, %s246
      %p248 = scmp.lt.s32.totalorder %s17, 3
      %s249 = scalar_select %p248, %s17, 3
      %s250 = smul.addr %s249, 3
      %s251 = smul.addr %s250, 8
      %s252 = scalar_lea.vmem %s4, %s251
      %p253 = scmp.lt.s32.totalorder %s17, 3
      %s254 = scalar_select %p253, %s17, 3
      %s255 = smul.addr %s254, 3
      %s256 = smul.addr %s255, 8
      %s257 = scalar_lea.vmem %s5, %s256
      %v258 = vld [vmem:[%s242] sm:$0xff]
      %v259 = vld [vmem:[%s242 + $0x8] sm:$0xff]
      %v260 = vld [vmem:[%s242 + $0x10] sm:$0xf]
      %v261 = vld [vmem:[%s2] sm:$0xff]
      %v262 = vld [vmem:[%s2 + $0x8] sm:$0xff]
      %v263 = vld [vmem:[%s2 + $0x10] sm:$0xff]
      %v264 = vld [vmem:[%s2 + $0x18] sm:$0xff]
      %v265 = vld [vmem:[%s2 + $0x20] sm:$0xff]
      %v266 = vld [vmem:[%s2 + $0x28] sm:$0xff]
      %v267 = vld [vmem:[%s2 + $0x30] sm:$0xff]
      %v268 = vld [vmem:[%s2 + $0x38] sm:$0xff]
      %v269 = vld [vmem:[%s3] sm:$0xff]
      %v270 = vld [vmem:[%s3 + $0x8] sm:$0xff]
      %v271 = vld [vmem:[%s3 + $0x10] sm:$0xff]
      %v272 = vld [vmem:[%s3 + $0x18] sm:$0xff]
      %v273 = vld [vmem:[%s3 + $0x20] sm:$0xff]
      %v274 = vld [vmem:[%s3 + $0x28] sm:$0xff]
      %v275 = vld [vmem:[%s3 + $0x30] sm:$0xff]
      %v276 = vld [vmem:[%s3 + $0x38] sm:$0xff]
      %v277 = vlaneseq
      %v278 = vshrl.u32 %v277, 7
      %v279 = vadd.s32 %v278, 8
      %v280 = vadd.s32 %v278, 16
      %v281 = vlaneseq
      %v282 = vand.u32 %v281, 127
      %vm283 = vcmp.eq.s32.totalorder %v282, %v278
      %vm284 = vcmp.eq.s32.totalorder %v282, %v279
      %vm285 = vcmp.eq.s32.totalorder %v282, %v280
      %v286 = vsel %vm283, 1.0, 0.0
      %v287 = vsel %vm284, 1.0, 0.0
      %v288 = vsel %vm285, 1.0, 0.0
      %vm289 = vcmask 162816
      %v291 = vsel %vm289, %v286, 0
      %v294 = vsel %vm289, %v287, 0
      %v297 = vsel %vm289, %v288, 0
      %vm299 = vcmask 1043456
      %v301 = vsel %vm299, %v260, 0
      %303 = vmatprep.subr.mxu0 0.0
      %304 = vmatpush1.msra.mxu0 %v258
      %305 = vmatprep.subr.mxu0 0.0
      %306 = vmatpush1.msra.mxu0 %v259
      %307 = vmatprep.subr.mxu0 0.0
      %308 = vmatpush1.msra.mxu0 %v301
      %309 = vmatprep.subr.mxu0 0.0
      %310 = vmatpush1.msra.mxu0 0.0
      %311 = vmatprep.subr.mxu0 0.0
      %312 = vmatpush1.msra.mxu0 0.0
      %313 = vmatprep.subr.mxu0 0.0
      %314 = vmatpush1.msra.mxu0 0.0
      %315 = vmatprep.subr.mxu0 0.0
      %316 = vmatpush1.msra.mxu0 0.0
      %317 = vmatprep.subr.mxu0 0.0
      %318 = vmatpush1.msra.mxu0 0.0
      %319 = vmatprep.subr.mxu0 0.0
      %320 = vmatpush1.msra.mxu0 0.0
      %321 = vmatprep.subr.mxu0 0.0
      %322 = vmatpush1.msra.mxu0 0.0
      %323 = vmatprep.subr.mxu0 0.0
      %324 = vmatpush1.msra.mxu0 0.0
      %325 = vmatprep.subr.mxu0 0.0
      %326 = vmatpush1.msra.mxu0 0.0
      %327 = vmatprep.subr.mxu0 0.0
      %328 = vmatpush1.msra.mxu0 0.0
      %329 = vmatprep.subr.mxu0 0.0
      %330 = vmatpush1.msra.mxu0 0.0
      %331 = vmatprep.subr.mxu0 0.0
      %332 = vmatpush1.msra.mxu0 0.0
      %333 = vmatprep.subr.mxu0 0.0
      %334 = vmatpush1.msra.mxu0 0.0
      %335 = vmatprep.subr.mxu0 0.0
      %336 = vmatpush1.msra.mxu0 0.0
      %337 = vmatprep.subr.mxu0 0.0
      %338 = vmatpush1.msra.mxu0 0.0
      %339 = vmatprep.subr.mxu0 0.0
      %340 = vmatpush1.msra.mxu0 0.0
      %341 = vmatprep.subr.mxu0 0.0
      %342 = vmatpush1.msra.mxu0 0.0
      %343 = vmatprep.subr.mxu0 0.0
      %344 = vmatpush1.msra.mxu0 0.0
      %345 = vmatprep.subr.mxu0 0.0
      %346 = vmatpush1.msra.mxu0 0.0
      %347 = vmatprep.subr.mxu0 0.0
      %348 = vmatpush1.msra.mxu0 0.0
      %349 = vmatprep.subr.mxu0 0.0
      %350 = vmatpush1.msra.mxu0 0.0
      %351 = vmatprep.subr.mxu0 0.0
      %352 = vmatpush1.msra.mxu0 0.0
      %353 = vmatprep.subr.mxu0 0.0
      %354 = vmatpush1.msra.mxu0 0.0
      %355 = vmatprep.subr.mxu0 0.0
      %356 = vmatpush1.msra.mxu0 0.0
      %357 = vmatprep.subr.mxu0 0.0
      %358 = vmatpush1.msra.mxu0 0.0
      %359 = vmatprep.subr.mxu0 0.0
      %360 = vmatpush1.msra.mxu0 0.0
      %361 = vmatprep.subr.mxu0 0.0
      %362 = vmatpush1.msra.mxu0 0.0
      %363 = vmatprep.subr.mxu0 0.0
      %364 = vmatpush1.msra.mxu0 0.0
      %365 = vmatprep.subr.mxu0 0.0
      %366 = vmatpush1.msra.mxu0 0.0
      %367 = vmatprep.mubr.f32.mxu0 0.0
      %368 = vmatmul.mubr.f32.gmra.mrb[0].mxu0 %v291
      %v369 = vpop.f32.mrb[0].mxu0
      %v370 = vadd.f32 0.0, %v369
      %v371 = vpop.f32.mrb[0].mxu0
      %372 = vmatprep.mubr.f32.mxu0 0.0
      %373 = vmatmul.mubr.f32.gmra.mrb[0].mxu0 %v294
      %v374 = vpop.f32.mrb[0].mxu0
      %v375 = vadd.f32 0.0, %v374
      %v376 = vpop.f32.mrb[0].mxu0
      %377 = vmatprep.mubr.f32.mxu0 0.0
      %378 = vmatmul.mubr.f32.gmra.mrb[0].mxu0 %v297
      %v379 = vpop.f32.mrb[0].mxu0
      %v380 = vadd.f32 0.0, %v379
      %v381 = vpop.f32.mrb[0].mxu0
      %382 = vdwg.mxu0
      %v383 = vadd.s32 %v278, 1
      %v384 = vadd.s32 %v279, 1
      %v385 = vadd.s32 %v280, 1
      %vm386 = vcmp.eq.s32.totalorder %v282, %v383
      %vm387 = vcmp.eq.s32.totalorder %v282, %v384
      %vm388 = vcmp.eq.s32.totalorder %v282, %v385
      %v389 = vsel %vm386, 1.0, 0.0
      %v390 = vsel %vm387, 1.0, 0.0
      %v391 = vsel %vm388, 1.0, 0.0
      %v393 = vsel %vm289, %v389, 0
      %v396 = vsel %vm289, %v390, 0
      %v399 = vsel %vm289, %v391, 0
      %401 = vmatprep.subr.mxu0 0.0
      %402 = vmatpush1.msra.mxu0 %v258
      %403 = vmatprep.subr.mxu0 0.0
      %404 = vmatpush1.msra.mxu0 %v259
      %405 = vmatprep.subr.mxu0 0.0
      %406 = vmatpush1.msra.mxu0 %v301
      %407 = vmatprep.subr.mxu0 0.0
      %408 = vmatpush1.msra.mxu0 0.0
      %409 = vmatprep.subr.mxu0 0.0
      %410 = vmatpush1.msra.mxu0 0.0
      %411 = vmatprep.subr.mxu0 0.0
      %412 = vmatpush1.msra.mxu0 0.0
      %413 = vmatprep.subr.mxu0 0.0
      %414 = vmatpush1.msra.mxu0 0.0
      %415 = vmatprep.subr.mxu0 0.0
      %416 = vmatpush1.msra.mxu0 0.0
      %417 = vmatprep.subr.mxu0 0.0
      %418 = vmatpush1.msra.mxu0 0.0
      %419 = vmatprep.subr.mxu0 0.0
      %420 = vmatpush1.msra.mxu0 0.0
      %421 = vmatprep.subr.mxu0 0.0
      %422 = vmatpush1.msra.mxu0 0.0
      %423 = vmatprep.subr.mxu0 0.0
      %424 = vmatpush1.msra.mxu0 0.0
      %425 = vmatprep.subr.mxu0 0.0
      %426 = vmatpush1.msra.mxu0 0.0
      %427 = vmatprep.subr.mxu0 0.0
      %428 = vmatpush1.msra.mxu0 0.0
      %429 = vmatprep.subr.mxu0 0.0
      %430 = vmatpush1.msra.mxu0 0.0
      %431 = vmatprep.subr.mxu0 0.0
      %432 = vmatpush1.msra.mxu0 0.0
      %433 = vmatprep.subr.mxu0 0.0
      %434 = vmatpush1.msra.mxu0 0.0
      %435 = vmatprep.subr.mxu0 0.0
      %436 = vmatpush1.msra.mxu0 0.0
      %437 = vmatprep.subr.mxu0 0.0
      %438 = vmatpush1.msra.mxu0 0.0
      %439 = vmatprep.subr.mxu0 0.0
      %440 = vmatpush1.msra.mxu0 0.0
      %441 = vmatprep.subr.mxu0 0.0
      %442 = vmatpush1.msra.mxu0 0.0
      %443 = vmatprep.subr.mxu0 0.0
      %444 = vmatpush1.msra.mxu0 0.0
      %445 = vmatprep.subr.mxu0 0.0
      %446 = vmatpush1.msra.mxu0 0.0
      %447 = vmatprep.subr.mxu0 0.0
      %448 = vmatpush1.msra.mxu0 0.0
      %449 = vmatprep.subr.mxu0 0.0
      %450 = vmatpush1.msra.mxu0 0.0
      %451 = vmatprep.subr.mxu0 0.0
      %452 = vmatpush1.msra.mxu0 0.0
      %453 = vmatprep.subr.mxu0 0.0
      %454 = vmatpush1.msra.mxu0 0.0
      %455 = vmatprep.subr.mxu0 0.0
      %456 = vmatpush1.msra.mxu0 0.0
      %457 = vmatprep.subr.mxu0 0.0
      %458 = vmatpush1.msra.mxu0 0.0
      %459 = vmatprep.subr.mxu0 0.0
      %460 = vmatpush1.msra.mxu0 0.0
      %461 = vmatprep.subr.mxu0 0.0
      %462 = vmatpush1.msra.mxu0 0.0
      %463 = vmatprep.subr.mxu0 0.0
      %464 = vmatpush1.msra.mxu0 0.0
      %465 = vmatprep.mubr.f32.mxu0 0.0
      %466 = vmatmul.mubr.f32.gmra.mrb[0].mxu0 %v393
      %v467 = vpop.f32.mrb[0].mxu0
      %v468 = vadd.f32 0.0, %v467
      %v469 = vpop.f32.mrb[0].mxu0
      %470 = vmatprep.mubr.f32.mxu0 0.0
      %471 = vmatmul.mubr.f32.gmra.mrb[0].mxu0 %v396
      %v472 = vpop.f32.mrb[0].mxu0
      %v473 = vadd.f32 0.0, %v472
      %v474 = vpop.f32.mrb[0].mxu0
      %475 = vmatprep.mubr.f32.mxu0 0.0
      %476 = vmatmul.mubr.f32.gmra.mrb[0].mxu0 %v399
      %v477 = vpop.f32.mrb[0].mxu0
      %v478 = vadd.f32 0.0, %v477
      %v479 = vpop.f32.mrb[0].mxu0
      %480 = vdwg.mxu0
      %vm481 = vcmask 130048
      %v483 = vsel %vm481, %v468, 0
      %v486 = vsel %vm481, %v473, 0
      %v489 = vsel %vm481, %v478, 0
      %491 = vmatprep.subr.mxu0 0.0
      %492 = vmatpush1.msra.mxu0 %v263
      %493 = vmatprep.subr.mxu0 0.0
      %494 = vmatpush1.msra.mxu0 %v264
      %495 = vmatprep.subr.mxu0 0.0
      %496 = vmatpush1.msra.mxu0 0.0
      %497 = vmatprep.subr.mxu0 0.0
      %498 = vmatpush1.msra.mxu0 0.0
      %499 = vmatprep.subr.mxu0 0.0
      %500 = vmatpush1.msra.mxu0 0.0
      %501 = vmatprep.subr.mxu0 0.0
      %502 = vmatpush1.msra.mxu0 0.0
      %503 = vmatprep.subr.mxu0 0.0
      %504 = vmatpush1.msra.mxu0 0.0
      %505 = vmatprep.subr.mxu0 0.0
      %506 = vmatpush1.msra.mxu0 0.0
      %507 = vmatprep.subr.mxu0 0.0
      %508 = vmatpush1.msra.mxu0 0.0
      %509 = vmatprep.subr.mxu0 0.0
      %510 = vmatpush1.msra.mxu0 0.0
      %511 = vmatprep.subr.mxu0 0.0
      %512 = vmatpush1.msra.mxu0 0.0
      %513 = vmatprep.subr.mxu0 0.0
      %514 = vmatpush1.msra.mxu0 0.0
      %515 = vmatprep.subr.mxu0 0.0
      %516 = vmatpush1.msra.mxu0 0.0
      %517 = vmatprep.subr.mxu0 0.0
      %518 = vmatpush1.msra.mxu0 0.0
      %519 = vmatprep.subr.mxu0 0.0
      %520 = vmatpush1.msra.mxu0 0.0
      %521 = vmatprep.subr.mxu0 0.0
      %522 = vmatpush1.msra.mxu0 0.0
      %523 = vmatprep.subr.mxu0 0.0
      %524 = vmatpush1.msra.mxu0 0.0
      %525 = vmatprep.subr.mxu0 0.0
      %526 = vmatpush1.msra.mxu0 0.0
      %527 = vmatprep.subr.mxu0 0.0
      %528 = vmatpush1.msra.mxu0 0.0
      %529 = vmatprep.subr.mxu0 0.0
      %530 = vmatpush1.msra.mxu0 0.0
      %531 = vmatprep.subr.mxu0 0.0
      %532 = vmatpush1.msra.mxu0 0.0
      %533 = vmatprep.subr.mxu0 0.0
      %534 = vmatpush1.msra.mxu0 0.0
      %535 = vmatprep.subr.mxu0 0.0
      %536 = vmatpush1.msra.mxu0 0.0
      %537 = vmatprep.subr.mxu0 0.0
      %538 = vmatpush1.msra.mxu0 0.0
      %539 = vmatprep.subr.mxu0 0.0
      %540 = vmatpush1.msra.mxu0 0.0
      %541 = vmatprep.subr.mxu0 0.0
      %542 = vmatpush1.msra.mxu0 0.0
      %543 = vmatprep.subr.mxu0 0.0
      %544 = vmatpush1.msra.mxu0 0.0
      %545 = vmatprep.subr.mxu0 0.0
      %546 = vmatpush1.msra.mxu0 0.0
      %547 = vmatprep.subr.mxu0 0.0
      %548 = vmatpush1.msra.mxu0 0.0
      %549 = vmatprep.subr.mxu0 0.0
      %550 = vmatpush1.msra.mxu0 0.0
      %551 = vmatprep.subr.mxu0 0.0
      %552 = vmatpush1.msra.mxu0 0.0
      %553 = vmatprep.subr.mxu0 0.0
      %554 = vmatpush1.msra.mxu0 0.0
      %555 = vmatprep.mubr.f32.mxu0 0.0
      %556 = vmatmul.mubr.f32.gmra.mrb[0].mxu0 %v483
      %v557 = vpop.f32.mrb[0].mxu0
      %v558 = vadd.f32 0.0, %v557
      %v559 = vpop.f32.mrb[0].mxu0
      %560 = vmatprep.mubr.f32.mxu0 0.0
      %561 = vmatmul.mubr.f32.gmra.mrb[0].mxu0 %v486
      %v562 = vpop.f32.mrb[0].mxu0
      %v563 = vadd.f32 0.0, %v562
      %v564 = vpop.f32.mrb[0].mxu0
      %565 = vmatprep.mubr.f32.mxu0 0.0
      %566 = vmatmul.mubr.f32.gmra.mrb[0].mxu0 %v489
      %v567 = vpop.f32.mrb[0].mxu0
      %v568 = vadd.f32 0.0, %v567
      %v569 = vpop.f32.mrb[0].mxu0
      %570 = vdwg.mxu0
      %v572 = vsel %vm481, %v370, 0
      %v575 = vsel %vm481, %v375, 0
      %v578 = vsel %vm481, %v380, 0
      %580 = vmatprep.subr.mxu0 0.0
      %581 = vmatpush1.msra.mxu0 %v261
      %582 = vmatprep.subr.mxu0 0.0
      %583 = vmatpush1.msra.mxu0 %v262
      %584 = vmatprep.subr.mxu0 0.0
      %585 = vmatpush1.msra.mxu0 0.0
      %586 = vmatprep.subr.mxu0 0.0
      %587 = vmatpush1.msra.mxu0 0.0
      %588 = vmatprep.subr.mxu0 0.0
      %589 = vmatpush1.msra.mxu0 0.0
      %590 = vmatprep.subr.mxu0 0.0
      %591 = vmatpush1.msra.mxu0 0.0
      %592 = vmatprep.subr.mxu0 0.0
      %593 = vmatpush1.msra.mxu0 0.0
      %594 = vmatprep.subr.mxu0 0.0
      %595 = vmatpush1.msra.mxu0 0.0
      %596 = vmatprep.subr.mxu0 0.0
      %597 = vmatpush1.msra.mxu0 0.0
      %598 = vmatprep.subr.mxu0 0.0
      %599 = vmatpush1.msra.mxu0 0.0
      %600 = vmatprep.subr.mxu0 0.0
      %601 = vmatpush1.msra.mxu0 0.0
      %602 = vmatprep.subr.mxu0 0.0
      %603 = vmatpush1.msra.mxu0 0.0
      %604 = vmatprep.subr.mxu0 0.0
      %605 = vmatpush1.msra.mxu0 0.0
      %606 = vmatprep.subr.mxu0 0.0
      %607 = vmatpush1.msra.mxu0 0.0
      %608 = vmatprep.subr.mxu0 0.0
      %609 = vmatpush1.msra.mxu0 0.0
      %610 = vmatprep.subr.mxu0 0.0
      %611 = vmatpush1.msra.mxu0 0.0
      %612 = vmatprep.subr.mxu0 0.0
      %613 = vmatpush1.msra.mxu0 0.0
      %614 = vmatprep.subr.mxu0 0.0
      %615 = vmatpush1.msra.mxu0 0.0
      %616 = vmatprep.subr.mxu0 0.0
      %617 = vmatpush1.msra.mxu0 0.0
      %618 = vmatprep.subr.mxu0 0.0
      %619 = vmatpush1.msra.mxu0 0.0
      %620 = vmatprep.subr.mxu0 0.0
      %621 = vmatpush1.msra.mxu0 0.0
      %622 = vmatprep.subr.mxu0 0.0
      %623 = vmatpush1.msra.mxu0 0.0
      %624 = vmatprep.subr.mxu0 0.0
      %625 = vmatpush1.msra.mxu0 0.0
      %626 = vmatprep.subr.mxu0 0.0
      %627 = vmatpush1.msra.mxu0 0.0
      %628 = vmatprep.subr.mxu0 0.0
      %629 = vmatpush1.msra.mxu0 0.0
      %630 = vmatprep.subr.mxu0 0.0
      %631 = vmatpush1.msra.mxu0 0.0
      %632 = vmatprep.subr.mxu0 0.0
      %633 = vmatpush1.msra.mxu0 0.0
      %634 = vmatprep.subr.mxu0 0.0
      %635 = vmatpush1.msra.mxu0 0.0
      %636 = vmatprep.subr.mxu0 0.0
      %637 = vmatpush1.msra.mxu0 0.0
      %638 = vmatprep.subr.mxu0 0.0
      %639 = vmatpush1.msra.mxu0 0.0
      %640 = vmatprep.subr.mxu0 0.0
      %641 = vmatpush1.msra.mxu0 0.0
      %642 = vmatprep.subr.mxu0 0.0
      %643 = vmatpush1.msra.mxu0 0.0
      %644 = vmatprep.mubr.f32.mxu0 0.0
      %645 = vmatmul.mubr.f32.gmra.mrb[0].mxu0 %v572
      %v646 = vpop.f32.mrb[0].mxu0
      %v647 = vadd.f32 %v558, %v646
      %v648 = vpop.f32.mrb[0].mxu0
      %649 = vmatprep.mubr.f32.mxu0 0.0
      %650 = vmatmul.mubr.f32.gmra.mrb[0].mxu0 %v575
      %v651 = vpop.f32.mrb[0].mxu0
      %v652 = vadd.f32 %v563, %v651
      %v653 = vpop.f32.mrb[0].mxu0
      %654 = vmatprep.mubr.f32.mxu0 0.0
      %655 = vmatmul.mubr.f32.gmra.mrb[0].mxu0 %v578
      %v656 = vpop.f32.mrb[0].mxu0
      %v657 = vadd.f32 %v568, %v656
      %v658 = vpop.f32.mrb[0].mxu0
      %659 = vdwg.mxu0
      %v660 = vadd.s32 %v278, 2
      %v661 = vadd.s32 %v279, 2
      %v662 = vadd.s32 %v280, 2
      %vm663 = vcmp.eq.s32.totalorder %v282, %v660
      %vm664 = vcmp.eq.s32.totalorder %v282, %v661
      %vm665 = vcmp.eq.s32.totalorder %v282, %v662
      %v666 = vsel %vm663, 1.0, 0.0
      %v667 = vsel %vm664, 1.0, 0.0
      %v668 = vsel %vm665, 1.0, 0.0
      %v670 = vsel %vm289, %v666, 0
      %v673 = vsel %vm289, %v667, 0
      %v676 = vsel %vm289, %v668, 0
      %678 = vmatprep.subr.mxu0 0.0
      %679 = vmatpush1.msra.mxu0 %v258
      %680 = vmatprep.subr.mxu0 0.0
      %681 = vmatpush1.msra.mxu0 %v259
      %682 = vmatprep.subr.mxu0 0.0
      %683 = vmatpush1.msra.mxu0 %v301
      %684 = vmatprep.subr.mxu0 0.0
      %685 = vmatpush1.msra.mxu0 0.0
      %686 = vmatprep.subr.mxu0 0.0
      %687 = vmatpush1.msra.mxu0 0.0
      %688 = vmatprep.subr.mxu0 0.0
      %689 = vmatpush1.msra.mxu0 0.0
      %690 = vmatprep.subr.mxu0 0.0
      %691 = vmatpush1.msra.mxu0 0.0
      %692 = vmatprep.subr.mxu0 0.0
      %693 = vmatpush1.msra.mxu0 0.0
      %694 = vmatprep.subr.mxu0 0.0
      %695 = vmatpush1.msra.mxu0 0.0
      %696 = vmatprep.subr.mxu0 0.0
      %697 = vmatpush1.msra.mxu0 0.0
      %698 = vmatprep.subr.mxu0 0.0
      %699 = vmatpush1.msra.mxu0 0.0
      %700 = vmatprep.subr.mxu0 0.0
      %701 = vmatpush1.msra.mxu0 0.0
      %702 = vmatprep.subr.mxu0 0.0
      %703 = vmatpush1.msra.mxu0 0.0
      %704 = vmatprep.subr.mxu0 0.0
      %705 = vmatpush1.msra.mxu0 0.0
      %706 = vmatprep.subr.mxu0 0.0
      %707 = vmatpush1.msra.mxu0 0.0
      %708 = vmatprep.subr.mxu0 0.0
      %709 = vmatpush1.msra.mxu0 0.0
      %710 = vmatprep.subr.mxu0 0.0
      %711 = vmatpush1.msra.mxu0 0.0
      %712 = vmatprep.subr.mxu0 0.0
      %713 = vmatpush1.msra.mxu0 0.0
      %714 = vmatprep.subr.mxu0 0.0
      %715 = vmatpush1.msra.mxu0 0.0
      %716 = vmatprep.subr.mxu0 0.0
      %717 = vmatpush1.msra.mxu0 0.0
      %718 = vmatprep.subr.mxu0 0.0
      %719 = vmatpush1.msra.mxu0 0.0
      %720 = vmatprep.subr.mxu0 0.0
      %721 = vmatpush1.msra.mxu0 0.0
      %722 = vmatprep.subr.mxu0 0.0
      %723 = vmatpush1.msra.mxu0 0.0
      %724 = vmatprep.subr.mxu0 0.0
      %725 = vmatpush1.msra.mxu0 0.0
      %726 = vmatprep.subr.mxu0 0.0
      %727 = vmatpush1.msra.mxu0 0.0
      %728 = vmatprep.subr.mxu0 0.0
      %729 = vmatpush1.msra.mxu0 0.0
      %730 = vmatprep.subr.mxu0 0.0
      %731 = vmatpush1.msra.mxu0 0.0
      %732 = vmatprep.subr.mxu0 0.0
      %733 = vmatpush1.msra.mxu0 0.0
      %734 = vmatprep.subr.mxu0 0.0
      %735 = vmatpush1.msra.mxu0 0.0
      %736 = vmatprep.subr.mxu0 0.0
      %737 = vmatpush1.msra.mxu0 0.0
      %738 = vmatprep.subr.mxu0 0.0
      %739 = vmatpush1.msra.mxu0 0.0
      %740 = vmatprep.subr.mxu0 0.0
      %741 = vmatpush1.msra.mxu0 0.0
      %742 = vmatprep.mubr.f32.mxu0 0.0
      %743 = vmatmul.mubr.f32.gmra.mrb[0].mxu0 %v670
      %v744 = vpop.f32.mrb[0].mxu0
      %v745 = vadd.f32 0.0, %v744
      %v746 = vpop.f32.mrb[0].mxu0
      %747 = vmatprep.mubr.f32.mxu0 0.0
      %748 = vmatmul.mubr.f32.gmra.mrb[0].mxu0 %v673
      %v749 = vpop.f32.mrb[0].mxu0
      %v750 = vadd.f32 0.0, %v749
      %v751 = vpop.f32.mrb[0].mxu0
      %752 = vmatprep.mubr.f32.mxu0 0.0
      %753 = vmatmul.mubr.f32.gmra.mrb[0].mxu0 %v676
      %v754 = vpop.f32.mrb[0].mxu0
      %v755 = vadd.f32 0.0, %v754
      %v756 = vpop.f32.mrb[0].mxu0
      %757 = vdwg.mxu0
      %v759 = vsel %vm481, %v745, 0
      %v762 = vsel %vm481, %v750, 0
      %v765 = vsel %vm481, %v755, 0
      %767 = vmatprep.subr.mxu0 0.0
      %768 = vmatpush1.msra.mxu0 %v265
      %769 = vmatprep.subr.mxu0 0.0
      %770 = vmatpush1.msra.mxu0 %v266
      %771 = vmatprep.subr.mxu0 0.0
      %772 = vmatpush1.msra.mxu0 0.0
      %773 = vmatprep.subr.mxu0 0.0
      %774 = vmatpush1.msra.mxu0 0.0
      %775 = vmatprep.subr.mxu0 0.0
      %776 = vmatpush1.msra.mxu0 0.0
      %777 = vmatprep.subr.mxu0 0.0
      %778 = vmatpush1.msra.mxu0 0.0
      %779 = vmatprep.subr.mxu0 0.0
      %780 = vmatpush1.msra.mxu0 0.0
      %781 = vmatprep.subr.mxu0 0.0
      %782 = vmatpush1.msra.mxu0 0.0
      %783 = vmatprep.subr.mxu0 0.0
      %784 = vmatpush1.msra.mxu0 0.0
      %785 = vmatprep.subr.mxu0 0.0
      %786 = vmatpush1.msra.mxu0 0.0
      %787 = vmatprep.subr.mxu0 0.0
      %788 = vmatpush1.msra.mxu0 0.0
      %789 = vmatprep.subr.mxu0 0.0
      %790 = vmatpush1.msra.mxu0 0.0
      %791 = vmatprep.subr.mxu0 0.0
      %792 = vmatpush1.msra.mxu0 0.0
      %793 = vmatprep.subr.mxu0 0.0
      %794 = vmatpush1.msra.mxu0 0.0
      %795 = vmatprep.subr.mxu0 0.0
      %796 = vmatpush1.msra.mxu0 0.0
      %797 = vmatprep.subr.mxu0 0.0
      %798 = vmatpush1.msra.mxu0 0.0
      %799 = vmatprep.subr.mxu0 0.0
      %800 = vmatpush1.msra.mxu0 0.0
      %801 = vmatprep.subr.mxu0 0.0
      %802 = vmatpush1.msra.mxu0 0.0
      %803 = vmatprep.subr.mxu0 0.0
      %804 = vmatpush1.msra.mxu0 0.0
      %805 = vmatprep.subr.mxu0 0.0
      %806 = vmatpush1.msra.mxu0 0.0
      %807 = vmatprep.subr.mxu0 0.0
      %808 = vmatpush1.msra.mxu0 0.0
      %809 = vmatprep.subr.mxu0 0.0
      %810 = vmatpush1.msra.mxu0 0.0
      %811 = vmatprep.subr.mxu0 0.0
      %812 = vmatpush1.msra.mxu0 0.0
      %813 = vmatprep.subr.mxu0 0.0
      %814 = vmatpush1.msra.mxu0 0.0
      %815 = vmatprep.subr.mxu0 0.0
      %816 = vmatpush1.msra.mxu0 0.0
      %817 = vmatprep.subr.mxu0 0.0
      %818 = vmatpush1.msra.mxu0 0.0
      %819 = vmatprep.subr.mxu0 0.0
      %820 = vmatpush1.msra.mxu0 0.0
      %821 = vmatprep.subr.mxu0 0.0
      %822 = vmatpush1.msra.mxu0 0.0
      %823 = vmatprep.subr.mxu0 0.0
      %824 = vmatpush1.msra.mxu0 0.0
      %825 = vmatprep.subr.mxu0 0.0
      %826 = vmatpush1.msra.mxu0 0.0
      %827 = vmatprep.subr.mxu0 0.0
      %828 = vmatpush1.msra.mxu0 0.0
      %829 = vmatprep.subr.mxu0 0.0
      %830 = vmatpush1.msra.mxu0 0.0
      %831 = vmatprep.mubr.f32.mxu0 0.0
      %832 = vmatmul.mubr.f32.gmra.mrb[0].mxu0 %v759
      %v833 = vpop.f32.mrb[0].mxu0
      %v834 = vadd.f32 0.0, %v833
      %v835 = vpop.f32.mrb[0].mxu0
      %836 = vmatprep.mubr.f32.mxu0 0.0
      %837 = vmatmul.mubr.f32.gmra.mrb[0].mxu0 %v762
      %v838 = vpop.f32.mrb[0].mxu0
      %v839 = vadd.f32 0.0, %v838
      %v840 = vpop.f32.mrb[0].mxu0
      %841 = vmatprep.mubr.f32.mxu0 0.0
      %842 = vmatmul.mubr.f32.gmra.mrb[0].mxu0 %v765
      %v843 = vpop.f32.mrb[0].mxu0
      %v844 = vadd.f32 0.0, %v843
      %v845 = vpop.f32.mrb[0].mxu0
      %846 = vdwg.mxu0
      %v847 = vadd.f32 %v647, %v834
      %v848 = vadd.f32 %v652, %v839
      %v849 = vadd.f32 %v657, %v844
      %v850 = vadd.s32 %v278, 3
      %v851 = vadd.s32 %v279, 3
      %v852 = vadd.s32 %v280, 3
      %vm853 = vcmp.eq.s32.totalorder %v282, %v850
      %vm854 = vcmp.eq.s32.totalorder %v282, %v851
      %vm855 = vcmp.eq.s32.totalorder %v282, %v852
      %v856 = vsel %vm853, 1.0, 0.0
      %v857 = vsel %vm854, 1.0, 0.0
      %v858 = vsel %vm855, 1.0, 0.0
      %v860 = vsel %vm289, %v856, 0
      %v863 = vsel %vm289, %v857, 0
      %v866 = vsel %vm289, %v858, 0
      %868 = vmatprep.subr.mxu0 0.0
      %869 = vmatpush1.msra.mxu0 %v258
      %870 = vmatprep.subr.mxu0 0.0
      %871 = vmatpush1.msra.mxu0 %v259
      %872 = vmatprep.subr.mxu0 0.0
      %873 = vmatpush1.msra.mxu0 %v301
      %874 = vmatprep.subr.mxu0 0.0
      %875 = vmatpush1.msra.mxu0 0.0
      %876 = vmatprep.subr.mxu0 0.0
      %877 = vmatpush1.msra.mxu0 0.0
      %878 = vmatprep.subr.mxu0 0.0
      %879 = vmatpush1.msra.mxu0 0.0
      %880 = vmatprep.subr.mxu0 0.0
      %881 = vmatpush1.msra.mxu0 0.0
      %882 = vmatprep.subr.mxu0 0.0
      %883 = vmatpush1.msra.mxu0 0.0
      %884 = vmatprep.subr.mxu0 0.0
      %885 = vmatpush1.msra.mxu0 0.0
      %886 = vmatprep.subr.mxu0 0.0
      %887 = vmatpush1.msra.mxu0 0.0
      %888 = vmatprep.subr.mxu0 0.0
      %889 = vmatpush1.msra.mxu0 0.0
      %890 = vmatprep.subr.mxu0 0.0
      %891 = vmatpush1.msra.mxu0 0.0
      %892 = vmatprep.subr.mxu0 0.0
      %893 = vmatpush1.msra.mxu0 0.0
      %894 = vmatprep.subr.mxu0 0.0
      %895 = vmatpush1.msra.mxu0 0.0
      %896 = vmatprep.subr.mxu0 0.0
      %897 = vmatpush1.msra.mxu0 0.0
      %898 = vmatprep.subr.mxu0 0.0
      %899 = vmatpush1.msra.mxu0 0.0
      %900 = vmatprep.subr.mxu0 0.0
      %901 = vmatpush1.msra.mxu0 0.0
      %902 = vmatprep.subr.mxu0 0.0
      %903 = vmatpush1.msra.mxu0 0.0
      %904 = vmatprep.subr.mxu0 0.0
      %905 = vmatpush1.msra.mxu0 0.0
      %906 = vmatprep.subr.mxu0 0.0
      %907 = vmatpush1.msra.mxu0 0.0
      %908 = vmatprep.subr.mxu0 0.0
      %909 = vmatpush1.msra.mxu0 0.0
      %910 = vmatprep.subr.mxu0 0.0
      %911 = vmatpush1.msra.mxu0 0.0
      %912 = vmatprep.subr.mxu0 0.0
      %913 = vmatpush1.msra.mxu0 0.0
      %914 = vmatprep.subr.mxu0 0.0
      %915 = vmatpush1.msra.mxu0 0.0
      %916 = vmatprep.subr.mxu0 0.0
      %917 = vmatpush1.msra.mxu0 0.0
      %918 = vmatprep.subr.mxu0 0.0
      %919 = vmatpush1.msra.mxu0 0.0
      %920 = vmatprep.subr.mxu0 0.0
      %921 = vmatpush1.msra.mxu0 0.0
      %922 = vmatprep.subr.mxu0 0.0
      %923 = vmatpush1.msra.mxu0 0.0
      %924 = vmatprep.subr.mxu0 0.0
      %925 = vmatpush1.msra.mxu0 0.0
      %926 = vmatprep.subr.mxu0 0.0
      %927 = vmatpush1.msra.mxu0 0.0
      %928 = vmatprep.subr.mxu0 0.0
      %929 = vmatpush1.msra.mxu0 0.0
      %930 = vmatprep.subr.mxu0 0.0
      %931 = vmatpush1.msra.mxu0 0.0
      %932 = vmatprep.mubr.f32.mxu0 0.0
      %933 = vmatmul.mubr.f32.gmra.mrb[0].mxu0 %v860
      %v934 = vpop.f32.mrb[0].mxu0
      %v935 = vadd.f32 0.0, %v934
      %v936 = vpop.f32.mrb[0].mxu0
      %937 = vmatprep.mubr.f32.mxu0 0.0
      %938 = vmatmul.mubr.f32.gmra.mrb[0].mxu0 %v863
      %v939 = vpop.f32.mrb[0].mxu0
      %v940 = vadd.f32 0.0, %v939
      %v941 = vpop.f32.mrb[0].mxu0
      %942 = vmatprep.mubr.f32.mxu0 0.0
      %943 = vmatmul.mubr.f32.gmra.mrb[0].mxu0 %v866
      %v944 = vpop.f32.mrb[0].mxu0
      %v945 = vadd.f32 0.0, %v944
      %v946 = vpop.f32.mrb[0].mxu0
      %947 = vdwg.mxu0
      %v949 = vsel %vm481, %v935, 0
      %v952 = vsel %vm481, %v940, 0
      %v955 = vsel %vm481, %v945, 0
      %957 = vmatprep.subr.mxu0 0.0
      %958 = vmatpush1.msra.mxu0 %v267
      %959 = vmatprep.subr.mxu0 0.0
      %960 = vmatpush1.msra.mxu0 %v268
      %961 = vmatprep.subr.mxu0 0.0
      %962 = vmatpush1.msra.mxu0 0.0
      %963 = vmatprep.subr.mxu0 0.0
      %964 = vmatpush1.msra.mxu0 0.0
      %965 = vmatprep.subr.mxu0 0.0
      %966 = vmatpush1.msra.mxu0 0.0
      %967 = vmatprep.subr.mxu0 0.0
      %968 = vmatpush1.msra.mxu0 0.0
      %969 = vmatprep.subr.mxu0 0.0
      %970 = vmatpush1.msra.mxu0 0.0
      %971 = vmatprep.subr.mxu0 0.0
      %972 = vmatpush1.msra.mxu0 0.0
      %973 = vmatprep.subr.mxu0 0.0
      %974 = vmatpush1.msra.mxu0 0.0
      %975 = vmatprep.subr.mxu0 0.0
      %976 = vmatpush1.msra.mxu0 0.0
      %977 = vmatprep.subr.mxu0 0.0
      %978 = vmatpush1.msra.mxu0 0.0
      %979 = vmatprep.subr.mxu0 0.0
      %980 = vmatpush1.msra.mxu0 0.0
      %981 = vmatprep.subr.mxu0 0.0
      %982 = vmatpush1.msra.mxu0 0.0
      %983 = vmatprep.subr.mxu0 0.0
      %984 = vmatpush1.msra.mxu0 0.0
      %985 = vmatprep.subr.mxu0 0.0
      %986 = vmatpush1.msra.mxu0 0.0
      %987 = vmatprep.subr.mxu0 0.0
      %988 = vmatpush1.msra.mxu0 0.0
      %989 = vmatprep.subr.mxu0 0.0
      %990 = vmatpush1.msra.mxu0 0.0
      %991 = vmatprep.subr.mxu0 0.0
      %992 = vmatpush1.msra.mxu0 0.0
      %993 = vmatprep.subr.mxu0 0.0
      %994 = vmatpush1.msra.mxu0 0.0
      %995 = vmatprep.subr.mxu0 0.0
      %996 = vmatpush1.msra.mxu0 0.0
      %997 = vmatprep.subr.mxu0 0.0
      %998 = vmatpush1.msra.mxu0 0.0
      %999 = vmatprep.subr.mxu0 0.0
      %1000 = vmatpush1.msra.mxu0 0.0
      %1001 = vmatprep.subr.mxu0 0.0
      %1002 = vmatpush1.msra.mxu0 0.0
      %1003 = vmatprep.subr.mxu0 0.0
      %1004 = vmatpush1.msra.mxu0 0.0
      %1005 = vmatprep.subr.mxu0 0.0
      %1006 = vmatpush1.msra.mxu0 0.0
      %1007 = vmatprep.subr.mxu0 0.0
      %1008 = vmatpush1.msra.mxu0 0.0
      %1009 = vmatprep.subr.mxu0 0.0
      %1010 = vmatpush1.msra.mxu0 0.0
      %1011 = vmatprep.subr.mxu0 0.0
      %1012 = vmatpush1.msra.mxu0 0.0
      %1013 = vmatprep.subr.mxu0 0.0
      %1014 = vmatpush1.msra.mxu0 0.0
      %1015 = vmatprep.subr.mxu0 0.0
      %1016 = vmatpush1.msra.mxu0 0.0
      %1017 = vmatprep.subr.mxu0 0.0
      %1018 = vmatpush1.msra.mxu0 0.0
      %1019 = vmatprep.subr.mxu0 0.0
      %1020 = vmatpush1.msra.mxu0 0.0
      %1021 = vmatprep.mubr.f32.mxu0 0.0
      %1022 = vmatmul.mubr.f32.gmra.mrb[0].mxu0 %v949
      %v1023 = vpop.f32.mrb[0].mxu0
      %v1024 = vadd.f32 0.0, %v1023
      %v1025 = vpop.f32.mrb[0].mxu0
      %1026 = vmatprep.mubr.f32.mxu0 0.0
      %1027 = vmatmul.mubr.f32.gmra.mrb[0].mxu0 %v952
      %v1028 = vpop.f32.mrb[0].mxu0
      %v1029 = vadd.f32 0.0, %v1028
      %v1030 = vpop.f32.mrb[0].mxu0
      %1031 = vmatprep.mubr.f32.mxu0 0.0
      %1032 = vmatmul.mubr.f32.gmra.mrb[0].mxu0 %v955
      %v1033 = vpop.f32.mrb[0].mxu0
      %v1034 = vadd.f32 0.0, %v1033
      %v1035 = vpop.f32.mrb[0].mxu0
      %1036 = vdwg.mxu0
      %v1037 = vadd.f32 %v847, %v1024
      %v1038 = vadd.f32 %v848, %v1029
      %v1039 = vadd.f32 %v849, %v1034
      %v1040 = vmul.f32 %v1037, %v1037
      %v1041 = vmul.f32 %v1038, %v1038
      %v1042 = vmul.f32 %v1039, %v1039
      %1046 = vrot.lane.b32.xlu0 %v1040, 64
      %v1047 = vpop.permute.xlu0 %1046
      %1048 = vrot.lane.b32.xlu0 %v1041, 64
      %v1049 = vpop.permute.xlu0 %1048
      %1050 = vrot.lane.b32.xlu0 %v1042, 64
      %v1051 = vpop.permute.xlu0 %1050
      %v1055 = vadd.f32 %v1040, %v1047
      %v1056 = vadd.f32 %v1041, %v1049
      %v1057 = vadd.f32 %v1042, %v1051
      %v1058 = vadd.f32 %v1055, 1e-09
      %v1059 = vadd.f32 %v1056, 1e-09
      %v1060 = vadd.f32 %v1057, 1e-09
      %v1061 = vrsqrt.pop %v1058
      %v1062 = vmul.f32 %v1058, %v1061
      %vm1063 = vcmp.eq.f32.partialorder %v1058, inf
      %v1064 = vsel %vm1063, %v1058, %v1062
      %vm1065 = vcmp.eq.f32.partialorder %v1058, 0.0
      %v1066 = vand.u32 %v1058, 2147483648
      %v1067 = vsel %vm1065, %v1066, %v1064
      %v1068 = vrsqrt.pop %v1059
      %v1069 = vmul.f32 %v1059, %v1068
      %vm1070 = vcmp.eq.f32.partialorder %v1059, inf
      %v1071 = vsel %vm1070, %v1059, %v1069
      %vm1072 = vcmp.eq.f32.partialorder %v1059, 0.0
      %v1073 = vand.u32 %v1059, 2147483648
      %v1074 = vsel %vm1072, %v1073, %v1071
      %v1075 = vrsqrt.pop %v1060
      %v1076 = vmul.f32 %v1060, %v1075
      %vm1077 = vcmp.eq.f32.partialorder %v1060, inf
      %v1078 = vsel %vm1077, %v1060, %v1076
      %vm1079 = vcmp.eq.f32.partialorder %v1060, 0.0
      %v1080 = vand.u32 %v1060, 2147483648
      %v1081 = vsel %vm1079, %v1080, %v1078
      %vm1082 = vcmask 523264
      %v1084 = vsel %vm1082, %v1067, 0
      %v1087 = vsel %vm1082, %v1074, 0
      %v1090 = vsel %vm1082, %v1081, 0
      %1092 = vmatprep.subr.mxu0 0.0
      %1093 = vmatpush1.msra.mxu0 %v269
      %1094 = vmatprep.subr.mxu0 0.0
      %1095 = vmatpush1.msra.mxu0 %v270
      %1096 = vmatprep.subr.mxu0 0.0
      %1097 = vmatpush1.msra.mxu0 %v271
      %1098 = vmatprep.subr.mxu0 0.0
      %1099 = vmatpush1.msra.mxu0 %v272
      %1100 = vmatprep.subr.mxu0 0.0
      %1101 = vmatpush1.msra.mxu0 %v273
      %1102 = vmatprep.subr.mxu0 0.0
      %1103 = vmatpush1.msra.mxu0 %v274
      %1104 = vmatprep.subr.mxu0 0.0
      %1105 = vmatpush1.msra.mxu0 %v275
      %1106 = vmatprep.subr.mxu0 0.0
      %1107 = vmatpush1.msra.mxu0 %v276
      %1108 = vmatprep.subr.mxu0 0.0
      %1109 = vmatpush1.msra.mxu0 0.0
      %1110 = vmatprep.subr.mxu0 0.0
      %1111 = vmatpush1.msra.mxu0 0.0
      %1112 = vmatprep.subr.mxu0 0.0
      %1113 = vmatpush1.msra.mxu0 0.0
      %1114 = vmatprep.subr.mxu0 0.0
      %1115 = vmatpush1.msra.mxu0 0.0
      %1116 = vmatprep.subr.mxu0 0.0
      %1117 = vmatpush1.msra.mxu0 0.0
      %1118 = vmatprep.subr.mxu0 0.0
      %1119 = vmatpush1.msra.mxu0 0.0
      %1120 = vmatprep.subr.mxu0 0.0
      %1121 = vmatpush1.msra.mxu0 0.0
      %1122 = vmatprep.subr.mxu0 0.0
      %1123 = vmatpush1.msra.mxu0 0.0
      %1124 = vmatprep.subr.mxu0 0.0
      %1125 = vmatpush1.msra.mxu0 0.0
      %1126 = vmatprep.subr.mxu0 0.0
      %1127 = vmatpush1.msra.mxu0 0.0
      %1128 = vmatprep.subr.mxu0 0.0
      %1129 = vmatpush1.msra.mxu0 0.0
      %1130 = vmatprep.subr.mxu0 0.0
      %1131 = vmatpush1.msra.mxu0 0.0
      %1132 = vmatprep.subr.mxu0 0.0
      %1133 = vmatpush1.msra.mxu0 0.0
      %1134 = vmatprep.subr.mxu0 0.0
      %1135 = vmatpush1.msra.mxu0 0.0
      %1136 = vmatprep.subr.mxu0 0.0
      %1137 = vmatpush1.msra.mxu0 0.0
      %1138 = vmatprep.subr.mxu0 0.0
      %1139 = vmatpush1.msra.mxu0 0.0
      %1140 = vmatprep.subr.mxu0 0.0
      %1141 = vmatpush1.msra.mxu0 0.0
      %1142 = vmatprep.subr.mxu0 0.0
      %1143 = vmatpush1.msra.mxu0 0.0
      %1144 = vmatprep.subr.mxu0 0.0
      %1145 = vmatpush1.msra.mxu0 0.0
      %1146 = vmatprep.subr.mxu0 0.0
      %1147 = vmatpush1.msra.mxu0 0.0
      %1148 = vmatprep.subr.mxu0 0.0
      %1149 = vmatpush1.msra.mxu0 0.0
      %1150 = vmatprep.subr.mxu0 0.0
      %1151 = vmatpush1.msra.mxu0 0.0
      %1152 = vmatprep.subr.mxu0 0.0
      %1153 = vmatpush1.msra.mxu0 0.0
      %1154 = vmatprep.subr.mxu0 0.0
      %1155 = vmatpush1.msra.mxu0 0.0
      %1156 = vmatprep.mubr.f32.mxu0 0.0
      %1157 = vmatmul.mubr.f32.gmra.mrb[0].mxu0 %v1084
      %v1158 = vpop.f32.mrb[0].mxu0
      %v1159 = vadd.f32 0.0, %v1158
      %v1160 = vpop.f32.mrb[0].mxu0
      %1161 = vmatprep.mubr.f32.mxu0 0.0
      %1162 = vmatmul.mubr.f32.gmra.mrb[0].mxu0 %v1087
      %v1163 = vpop.f32.mrb[0].mxu0
      %v1164 = vadd.f32 0.0, %v1163
      %v1165 = vpop.f32.mrb[0].mxu0
      %1166 = vmatprep.mubr.f32.mxu0 0.0
      %1167 = vmatmul.mubr.f32.gmra.mrb[0].mxu0 %v1090
      %v1168 = vpop.f32.mrb[0].mxu0
      %v1169 = vadd.f32 0.0, %v1168
      %v1170 = vpop.f32.mrb[0].mxu0
      %1171 = vdwg.mxu0
      %v1172 = vmax.f32 %v1159, 1e-05
      %v1173 = vmax.f32 %v1164, 1e-05
      %v1174 = vmax.f32 %v1169, 1e-05
      %v1175 = vlog2.pop %v1172
      %v1176 = vmul.f32 %v1175, 0.6931472
      %v1177 = vlog2.pop %v1173
      %v1178 = vmul.f32 %v1177, 0.6931472
      %v1179 = vlog2.pop %v1174
      %v1180 = vmul.f32 %v1179, 0.6931472
      %v1181 = vsel %vm1082, %v1055, 0.0
      %1182 = vadd.xlane.f32.xlu0 %v1181
      %v1183 = vpop.xlane.xlu0 %1182
      %v1184 = vsel %vm1082, %v1056, 0.0
      %1185 = vadd.xlane.f32.xlu0 %v1184
      %v1186 = vpop.xlane.xlu0 %1185
      %vm1187 = vcmask 516096
      %v1188 = vsel %vm1187, %v1057, 0.0
      %1189 = vadd.xlane.f32.xlu0 %v1188
      %v1190 = vpop.xlane.xlu0 %1189
      %v1191 = vadd.f32 %v1183, 1e-09
      %v1192 = vadd.f32 %v1186, 1e-09
      %v1193 = vadd.f32 %v1190, 1e-09
      %v1194 = vrsqrt.pop %v1191
      %v1195 = vmul.f32 %v1191, %v1194
      %vm1196 = vcmp.eq.f32.partialorder %v1191, inf
      %v1197 = vsel %vm1196, %v1191, %v1195
      %vm1198 = vcmp.eq.f32.partialorder %v1191, 0.0
      %v1199 = vand.u32 %v1191, 2147483648
      %v1200 = vsel %vm1198, %v1199, %v1197
      %v1201 = vrsqrt.pop %v1192
      %v1202 = vmul.f32 %v1192, %v1201
      %vm1203 = vcmp.eq.f32.partialorder %v1192, inf
      %v1204 = vsel %vm1203, %v1192, %v1202
      %vm1205 = vcmp.eq.f32.partialorder %v1192, 0.0
      %v1206 = vand.u32 %v1192, 2147483648
      %v1207 = vsel %vm1205, %v1206, %v1204
      %v1208 = vrsqrt.pop %v1193
      %v1209 = vmul.f32 %v1193, %v1208
      %vm1210 = vcmp.eq.f32.partialorder %v1193, inf
      %v1211 = vsel %vm1210, %v1193, %v1209
      %vm1212 = vcmp.eq.f32.partialorder %v1193, 0.0
      %v1213 = vand.u32 %v1193, 2147483648
      %v1214 = vsel %vm1212, %v1213, %v1211
      %v1215 = vld [vmem:[%s247] sm:$0xff]
      %v1216 = vld [vmem:[%s247 + $0x8] sm:$0xff]
      %v1217 = vld [vmem:[%s247 + $0x10] sm:$0x1]
      %vm1218 = vcmask 64512
      %v1219 = vsel %vm1218, %v1176, 0.0
      %v1220 = vsel %vm1218, %v1178, 0.0
      %v1221 = vadd.f32 %v1219, %v1220
      %vm1222 = vcmask 57344
      %v1223 = vsel %vm1222, %v1180, 0.0
      %v1224 = vadd.f32 %v1221, %v1223
      %v1225 = vrot.slane %v1224, 4
      %v1226 = vadd.f32 %v1224, %v1225
      %v1227 = vrot.slane %v1226, 2
      %v1228 = vadd.f32 %v1226, %v1227
      %v1229 = vrot.slane %v1228, 1
      %v1230 = vadd.f32 %v1228, %v1229
      %v1231 = vrcp.pop 17.0
      %v1232 = vmul.f32 %v1230, %v1231
      %v1233 = vsub.f32 %v1176, %v1232
      %v1234 = vsub.f32 %v1178, %v1232
      %v1235 = vsub.f32 %v1180, %v1232
      %v1236 = vmul.f32 %v1233, %v1233
      %v1237 = vmul.f32 %v1234, %v1234
      %v1238 = vmul.f32 %v1235, %v1235
      %v1239 = vsel %vm1218, %v1236, 0.0
      %v1240 = vsel %vm1218, %v1237, 0.0
      %v1241 = vadd.f32 %v1239, %v1240
      %v1242 = vsel %vm1222, %v1238, 0.0
      %v1243 = vadd.f32 %v1241, %v1242
      %v1244 = vrot.slane %v1243, 4
      %v1245 = vadd.f32 %v1243, %v1244
      %v1246 = vrot.slane %v1245, 2
      %v1247 = vadd.f32 %v1245, %v1246
      %v1248 = vrot.slane %v1247, 1
      %v1249 = vadd.f32 %v1247, %v1248
      %v1250 = vrcp.pop 16.0
      %v1251 = vmul.f32 %v1249, %v1250
      %v1252 = vrsqrt.pop %v1251
      %v1253 = vmul.f32 %v1251, %v1252
      %vm1254 = vcmp.eq.f32.partialorder %v1251, inf
      %v1255 = vsel %vm1254, %v1251, %v1253
      %vm1256 = vcmp.eq.f32.partialorder %v1251, 0.0
      %v1257 = vand.u32 %v1251, 2147483648
      %v1258 = vsel %vm1256, %v1257, %v1255
      %v1259 = vadd.f32 %v1258, 1e-12
      %v1260 = vrcp.pop %v1259
      %v1261 = vmul.f32 %v1233, %v1260
      %v1262 = vmul.f32 %v1234, %v1260
      %v1263 = vmul.f32 %v1235, %v1260
      %1265 = vset.pattern.permute.xlu0 0
      %1266 = vperm.xlu0 %1265, %v1215
      %v1267 = vpop.permute.xlu0 %1266
      %1270 = vset.pattern.permute.xlu0 0
      %1271 = vperm.xlu0 %1270, %v1216
      %v1272 = vpop.permute.xlu0 %1271
      %1275 = vset.pattern.permute.xlu0 0
      %1276 = vperm.xlu0 %1275, %v1217
      %v1277 = vpop.permute.xlu0 %1276
      %v1279 = vmul.f32 %v1261, %v1267
      %v1280 = vmul.f32 %v1262, %v1272
      %v1281 = vmul.f32 %v1263, %v1277
      %1282 = vst.msk [vmem:[%s252] sm:$0xff] %vm1218, %v1279
      %1283 = vst.msk [vmem:[%s252 + $0x8] sm:$0xff] %vm1218, %v1280
      %1284 = vst.msk [vmem:[%s252 + $0x10] sm:$0x1] %vm1222, %v1281
      %v1285 = vadd.f32 %v1200, %v1207
      %vm1286 = vcmask 1040384
      %v1287 = vsel %vm1286, %v1214, 0.0
      %v1288 = vadd.f32 %v1285, %v1287
      %v1289 = vrot.slane %v1288, 4
      %v1290 = vadd.f32 %v1288, %v1289
      %v1291 = vrot.slane %v1290, 2
      %v1292 = vadd.f32 %v1290, %v1291
      %v1293 = vrot.slane %v1292, 1
      %v1294 = vadd.f32 %v1292, %v1293
      %v1295 = vmul.f32 %v1294, %v1231
      %v1296 = vsub.f32 %v1200, %v1295
      %v1297 = vsub.f32 %v1207, %v1295
      %v1298 = vsub.f32 %v1214, %v1295
      %v1299 = vmul.f32 %v1296, %v1296
      %v1300 = vmul.f32 %v1297, %v1297
      %v1301 = vmul.f32 %v1298, %v1298
      %v1302 = vadd.f32 %v1299, %v1300
      %v1303 = vsel %vm1286, %v1301, 0.0
      %v1304 = vadd.f32 %v1302, %v1303
      %v1305 = vrot.slane %v1304, 4
      %v1306 = vadd.f32 %v1304, %v1305
      %v1307 = vrot.slane %v1306, 2
      %v1308 = vadd.f32 %v1306, %v1307
      %v1309 = vrot.slane %v1308, 1
      %v1310 = vadd.f32 %v1308, %v1309
      %v1311 = vmul.f32 %v1310, %v1250
      %v1312 = vrsqrt.pop %v1311
      %v1313 = vmul.f32 %v1311, %v1312
      %vm1314 = vcmp.eq.f32.partialorder %v1311, inf
      %v1315 = vsel %vm1314, %v1311, %v1313
      %vm1316 = vcmp.eq.f32.partialorder %v1311, 0.0
      %v1317 = vand.u32 %v1311, 2147483648
      %v1318 = vsel %vm1316, %v1317, %v1315
      %v1319 = vadd.f32 %v1318, 1e-12
      %v1320 = vrcp.pop %v1319
      %v1321 = vmul.f32 %v1296, %v1320
      %v1322 = vmul.f32 %v1297, %v1320
      %v1323 = vmul.f32 %v1298, %v1320
      %v1324 = vmul.f32 %v1321, %v1215
      %v1325 = vmul.f32 %v1322, %v1216
      %v1326 = vmul.f32 %v1323, %v1217
      %vm1327 = vcmask 7168
      %1328 = vst.msk [vmem:[%s257] sm:$0xff] %vm1327, %v1324
      %1329 = vst.msk [vmem:[%s257 + $0x8] sm:$0xff] %vm1327, %v1325
      %vm1330 = vcmask 0
      %1331 = vst.msk [vmem:[%s257 + $0x10] sm:$0x1] %vm1330, %v1326
      %p1332 = scmp.lt.s32.totalorder %s17, 3
      %s1333 = scalar_select %p1332, %s17, 3
      %s1334 = smul.addr %s1333, 3
      %s1335 = smul.addr %s1334, 8
      %s1336 = scalar_lea.vmem %s4, %s1335
      %p1337 = scmp.lt.s32.totalorder %s17, 3
      %s1338 = scalar_select %p1337, %s17, 3
      %s1339 = smul.addr %s1338, 3
      %s1340 = smul.addr %s1339, 8
      %s1341 = scalar_lea.vmem %s5, %s1340
      // Predicated region
      $region37: #{forward.3} parent=35 // pred_check
        %p1342 = pneg %p129
      $region38: #{forward.3} parent=35 // pred_check_branch
        %1344 = sbr.rel (%p1342) target = $region40
      $region39: #{forward.3} parent=35 // pred_region
        _
      $region40: #{forward.3} parent=35 // pred_fallthru
        _
      // Predicated region
      $region41: #{forward.3} parent=35 // pred_check
        %p1345 = pneg %p155
      $region42: #{forward.3} parent=35 // pred_check_branch
        %1347 = sbr.rel (%p1345) target = $region44
      $region43: #{forward.3} parent=35 // pred_region
        _
      $region44: #{forward.3} parent=35 // pred_fallthru
        _
    $region36: #{forward.3} parent=5 // pred_fallthru
      _
    %p1348 = scmp.le.s32.totalorder 2, %s12
    // Predicated region
    $region45: #{forward.3} parent=5 // pred_check
      %p1349 = pneg %p1348
    $region46: #{forward.3} parent=5 // pred_check_branch
      %1351 = sbr.rel (%p1349) target = $region48
    $region47: #{forward.3} parent=5 // pred_region
      %s1352 = ssub.s32 %s12, 2
      // Predicated region
      $region49: #{forward.3} parent=47 // pred_check
        %p1353 = pneg %p135
      $region50: #{forward.3} parent=47 // pred_check_branch
        %1355 = sbr.rel (%p1353) target = $region52
      $region51: #{forward.3} parent=47 // pred_region
        %p1356 = scmp.lt.s32.totalorder %s18, 3
        %s1357 = scalar_select %p1356, %s18, 3
        %s1358 = smul.addr %s1357, 3
        %s1359 = smul.addr %s1358, 8
        %s1360 = scalar_lea.vmem %s4, %s1359
      $region52: #{forward.3} parent=47 // pred_fallthru
        _
      // Predicated region
      $region53: #{forward.3} parent=47 // pred_check
        %p1361 = pneg %p161
      $region54: #{forward.3} parent=47 // pred_check_branch
        %1363 = sbr.rel (%p1361) target = $region56
      $region55: #{forward.3} parent=47 // pred_region
        %p1364 = scmp.lt.s32.totalorder %s18, 3
        %s1365 = scalar_select %p1364, %s18, 3
        %s1366 = smul.addr %s1365, 3
        %s1367 = smul.addr %s1366, 8
        %s1368 = scalar_lea.vmem %s5, %s1367
      $region56: #{forward.3} parent=47 // pred_fallthru
        _
    $region48: #{forward.3} parent=5 // pred_fallthru
      _
  $region6: #{forward.3} parent=0 // loop_footer
    %s16 = sadd.s32 1, %s12
  $region7: #{forward.3} parent=0 // loop_footer_branch
    %11 = sbr.rel target = $region3
  $region8: #{forward.3} parent=0 // loop_exit
    _

// kernel: forward.4
$region0: #{forward.4}
  #allocation0 [shape = 'u32[]', space=smem, size = 0x4, offset = 0x4, fixed_abs, tag = 'smem constant byte address 0x4 - core index']
  #allocation1 [shape = 'u32[144,128]{1,0:T(1,128)}', space=vmem, size = 0x12000, scoped, tag = 'internal scratch']
  %s0 = inlined_call_operand.vmem [shape: f32[2,9,16], index: 0, kind: input, shape index: {}]
  %s1 = inlined_call_operand.vmem [shape: f32[2,16,8], index: 1, kind: input, shape index: {}]
  %s2 = inlined_call_operand.vmem [shape: f32[2,1,9], index: 2, kind: input, shape index: {}]
  %s3 = inlined_call_operand.vmem [shape: f32[2,16,1], index: 3, kind: input, shape index: {}]
  %s4 = inlined_call_operand.vmem [shape: f32[2,2,16], index: 4, kind: input, shape index: {}]
  %s5 = inlined_call_operand.vmem [shape: f32[2,8,16], index: 5, kind: input, shape index: {}]
  %s6 = inlined_call_operand.vmem [shape: f32[16,32], index: 6, kind: input, shape index: {}]
  %s7 = inlined_call_operand.vmem [shape: f32[1,32], index: 7, kind: input, shape index: {}]
  %s8 = inlined_call_operand.vmem [shape: f32[8,32], index: 8, kind: input, shape index: {}]
  %s9 = inlined_call_operand.vmem [shape: f32[3,32], index: 9, kind: input, shape index: {}]
  %s10 = inlined_call_operand.vmem [shape: f32[32,16], index: 10, kind: input, shape index: {}]
  %s11 = inlined_call_operand.vmem [shape: f32[64,128], index: 11, kind: input, shape index: {}]
  %s12 = inlined_call_operand.vmem [shape: f32[64,8], index: 12, kind: input, shape index: {}]
  %s13 = inlined_call_operand.vmem [shape: f32[2,4,16], index: 13, kind: output, shape index: {0}]
  %s14 = inlined_call_operand.vmem [shape: f32[2,1,8], index: 14, kind: output, shape index: {1}]
  %15 = xla_tuple %s13, %s14
  %s16 = sld [smem:[#allocation0]]
  $region93: #{forward.4} parent=0
    _
  %s18 = ssub.s32 1, %s16
  %s19 = scalar_select 0, %s18, %s16
  loop: start=0, step=1, limit=4
  $region2: #{forward.4} parent=0 // loop_pre_header
    _
  $region3: #{forward.4} parent=0 // loop_header
    %s21 = sphi 0, %s25
    %p22 = scmp.ge.s32.totalorder %s21, 4
    %s31 = sphi 0, %s33
    %s34 = sphi 0, %s31
    %s35 = sphi 0, %s34
    %s51 = sphi 0, %s35
    %s57 = sphi 0, %s59
    %s60 = sphi 0, %s57
    %s61 = sphi 0, %s60
    %s77 = sphi 0, %s61
    %s83 = sphi 0, %s85
    %s86 = sphi 0, %s83
    %s87 = sphi 0, %s86
    %s103 = sphi 0, %s87
    %s109 = sphi 0, %s111
    %s112 = sphi 0, %s109
    %s113 = sphi 0, %s112
    %s129 = sphi 0, %s113
    %s135 = sphi 0, %s137
    %s138 = sphi 0, %s135
    %s139 = sphi 0, %s138
    %s155 = sphi 0, %s139
    %s161 = sphi 0, %s163
    %s164 = sphi 0, %s161
    %s165 = sphi 0, %s164
    %s181 = sphi 0, %s165
    %s185 = sphi 0, %s185
    %s187 = sphi 0, %s185
    %s188 = sphi 0, %s187
    %s202 = sphi 0, %s188
    %s206 = sphi 0, %s206
    %s208 = sphi 0, %s206
    %s209 = sphi 0, %s208
    %s223 = sphi 0, %s209
    %s227 = sphi 0, %s227
    %s229 = sphi 0, %s227
    %s230 = sphi 0, %s229
    %s244 = sphi 0, %s230
    %s248 = sphi 0, %s248
    %s250 = sphi 0, %s248
    %s251 = sphi 0, %s250
    %s265 = sphi 0, %s251
    %s269 = sphi 0, %s269
    %s271 = sphi 0, %s269
    %s272 = sphi 0, %s271
    %s286 = sphi 0, %s272
    %s290 = sphi 0, %s290
    %s292 = sphi 0, %s290
    %s293 = sphi 0, %s292
    %s307 = sphi 0, %s293
    %s311 = sphi 0, %s311
    %s313 = sphi 0, %s311
    %s314 = sphi 0, %s313
    %s328 = sphi 0, %s314
    %s334 = sphi 0, %s336
    %s337 = sphi 0, %s334
    %s338 = sphi 0, %s337
    %s354 = sphi 0, %s338
    %s360 = sphi 0, %s362
    %s363 = sphi 0, %s360
    %s364 = sphi 0, %s363
    %s380 = sphi 0, %s364
  $region4: #{forward.4} parent=0 // loop_header_branch
    %24 = sbr.rel (%p22) target = $region8
  $region5: #{forward.4} parent=0 // loop_body
    %s26 = ssub.s32 %s21, 1
    %s27 = ssub.s32 %s21, 2
    %s28 = sadd.s32 %s21, 1
    %s29 = ssub.s32 %s21, %s28
    %p30 = scmp.eq.s32.totalorder %s29, 0
    %s32 = sadd.s32 %s31, 1
    %s33 = scalar_select %p30, %s31, %s32
    %p36 = pneg %p30
    %p37 = scmp.eq.s32.totalorder %s21, 1
    %p38 = por %p36, %p37
    %p39 = scmp.ne.s32.totalorder %s31, %s34
    %p40 = scmp.eq.s32.totalorder %s21, 0
    %p41 = por %p39, %p40
    %p42 = scmp.ne.s32.totalorder %s31, %s34
    %p43 = scmp.eq.s32.totalorder %s26, 1
    %p44 = por %p42, %p43
    %p45 = scmp.ne.s32.totalorder %s34, %s35
    %p46 = scmp.eq.s32.totalorder %s26, 0
    %p47 = por %p45, %p46
    %p48 = scmp.ne.s32.totalorder %s34, %s35
    %p49 = scmp.eq.s32.totalorder %s27, 1
    %p50 = por %p48, %p49
    %p52 = scmp.ne.s32.totalorder %s35, %s51
    %p53 = scmp.eq.s32.totalorder %s27, 0
    %p54 = por %p52, %p53
    %s55 = ssub.s32 %s21, %s28
    %p56 = scmp.eq.s32.totalorder %s55, 0
    %s58 = sadd.s32 %s57, 1
    %s59 = scalar_select %p56, %s57, %s58
    %p62 = pneg %p56
    %p63 = scmp.eq.s32.totalorder %s21, 1
    %p64 = por %p62, %p63
    %p65 = scmp.ne.s32.totalorder %s57, %s60
    %p66 = scmp.eq.s32.totalorder %s21, 0
    %p67 = por %p65, %p66
    %p68 = scmp.ne.s32.totalorder %s57, %s60
    %p69 = scmp.eq.s32.totalorder %s26, 1
    %p70 = por %p68, %p69
    %p71 = scmp.ne.s32.totalorder %s60, %s61
    %p72 = scmp.eq.s32.totalorder %s26, 0
    %p73 = por %p71, %p72
    %p74 = scmp.ne.s32.totalorder %s60, %s61
    %p75 = scmp.eq.s32.totalorder %s27, 1
    %p76 = por %p74, %p75
    %p78 = scmp.ne.s32.totalorder %s61, %s77
    %p79 = scmp.eq.s32.totalorder %s27, 0
    %p80 = por %p78, %p79
    %s81 = ssub.s32 %s21, %s28
    %p82 = scmp.eq.s32.totalorder %s81, 0
    %s84 = sadd.s32 %s83, 1
    %s85 = scalar_select %p82, %s83, %s84
    %p88 = pneg %p82
    %p89 = scmp.eq.s32.totalorder %s21, 1
    %p90 = por %p88, %p89
    %p91 = scmp.ne.s32.totalorder %s83, %s86
    %p92 = scmp.eq.s32.totalorder %s21, 0
    %p93 = por %p91, %p92
    %p94 = scmp.ne.s32.totalorder %s83, %s86
    %p95 = scmp.eq.s32.totalorder %s26, 1
    %p96 = por %p94, %p95
    %p97 = scmp.ne.s32.totalorder %s86, %s87
    %p98 = scmp.eq.s32.totalorder %s26, 0
    %p99 = por %p97, %p98
    %p100 = scmp.ne.s32.totalorder %s86, %s87
    %p101 = scmp.eq.s32.totalorder %s27, 1
    %p102 = por %p100, %p101
    %p104 = scmp.ne.s32.totalorder %s87, %s103
    %p105 = scmp.eq.s32.totalorder %s27, 0
    %p106 = por %p104, %p105
    %s107 = ssub.s32 %s21, %s28
    %p108 = scmp.eq.s32.totalorder %s107, 0
    %s110 = sadd.s32 %s109, 1
    %s111 = scalar_select %p108, %s109, %s110
    %p114 = pneg %p108
    %p115 = scmp.eq.s32.totalorder %s21, 1
    %p116 = por %p114, %p115
    %p117 = scmp.ne.s32.totalorder %s109, %s112
    %p118 = scmp.eq.s32.totalorder %s21, 0
    %p119 = por %p117, %p118
    %p120 = scmp.ne.s32.totalorder %s109, %s112
    %p121 = scmp.eq.s32.totalorder %s26, 1
    %p122 = por %p120, %p121
    %p123 = scmp.ne.s32.totalorder %s112, %s113
    %p124 = scmp.eq.s32.totalorder %s26, 0
    %p125 = por %p123, %p124
    %p126 = scmp.ne.s32.totalorder %s112, %s113
    %p127 = scmp.eq.s32.totalorder %s27, 1
    %p128 = por %p126, %p127
    %p130 = scmp.ne.s32.totalorder %s113, %s129
    %p131 = scmp.eq.s32.totalorder %s27, 0
    %p132 = por %p130, %p131
    %s133 = ssub.s32 %s21, %s28
    %p134 = scmp.eq.s32.totalorder %s133, 0
    %s136 = sadd.s32 %s135, 1
    %s137 = scalar_select %p134, %s135, %s136
    %p140 = pneg %p134
    %p141 = scmp.eq.s32.totalorder %s21, 1
    %p142 = por %p140, %p141
    %p143 = scmp.ne.s32.totalorder %s135, %s138
    %p144 = scmp.eq.s32.totalorder %s21, 0
    %p145 = por %p143, %p144
    %p146 = scmp.ne.s32.totalorder %s135, %s138
    %p147 = scmp.eq.s32.totalorder %s26, 1
    %p148 = por %p146, %p147
    %p149 = scmp.ne.s32.totalorder %s138, %s139
    %p150 = scmp.eq.s32.totalorder %s26, 0
    %p151 = por %p149, %p150
    %p152 = scmp.ne.s32.totalorder %s138, %s139
    %p153 = scmp.eq.s32.totalorder %s27, 1
    %p154 = por %p152, %p153
    %p156 = scmp.ne.s32.totalorder %s139, %s155
    %p157 = scmp.eq.s32.totalorder %s27, 0
    %p158 = por %p156, %p157
    %s159 = ssub.s32 %s21, %s28
    %p160 = scmp.eq.s32.totalorder %s159, 0
    %s162 = sadd.s32 %s161, 1
    %s163 = scalar_select %p160, %s161, %s162
    %p166 = pneg %p160
    %p167 = scmp.eq.s32.totalorder %s21, 1
    %p168 = por %p166, %p167
    %p169 = scmp.ne.s32.totalorder %s161, %s164
    %p170 = scmp.eq.s32.totalorder %s21, 0
    %p171 = por %p169, %p170
    %p172 = scmp.ne.s32.totalorder %s161, %s164
    %p173 = scmp.eq.s32.totalorder %s26, 1
    %p174 = por %p172, %p173
    %p175 = scmp.ne.s32.totalorder %s164, %s165
    %p176 = scmp.eq.s32.totalorder %s26, 0
    %p177 = por %p175, %p176
    %p178 = scmp.ne.s32.totalorder %s164, %s165
    %p179 = scmp.eq.s32.totalorder %s27, 1
    %p180 = por %p178, %p179
    %p182 = scmp.ne.s32.totalorder %s165, %s181
    %p183 = scmp.eq.s32.totalorder %s27, 0
    %p184 = por %p182, %p183
    %s186 = sadd.s32 %s185, 1
    %p189 = scmp.eq.s32.totalorder %s21, 1
    %p190 = scmp.ne.s32.totalorder %s185, %s187
    %p191 = scmp.eq.s32.totalorder %s21, 0
    %p192 = por %p190, %p191
    %p193 = scmp.ne.s32.totalorder %s185, %s187
    %p194 = scmp.eq.s32.totalorder %s26, 1
    %p195 = por %p193, %p194
    %p196 = scmp.ne.s32.totalorder %s187, %s188
    %p197 = scmp.eq.s32.totalorder %s26, 0
    %p198 = por %p196, %p197
    %p199 = scmp.ne.s32.totalorder %s187, %s188
    %p200 = scmp.eq.s32.totalorder %s27, 1
    %p201 = por %p199, %p200
    %p203 = scmp.ne.s32.totalorder %s188, %s202
    %p204 = scmp.eq.s32.totalorder %s27, 0
    %p205 = por %p203, %p204
    %s207 = sadd.s32 %s206, 1
    %p210 = scmp.eq.s32.totalorder %s21, 1
    %p211 = scmp.ne.s32.totalorder %s206, %s208
    %p212 = scmp.eq.s32.totalorder %s21, 0
    %p213 = por %p211, %p212
    %p214 = scmp.ne.s32.totalorder %s206, %s208
    %p215 = scmp.eq.s32.totalorder %s26, 1
    %p216 = por %p214, %p215
    %p217 = scmp.ne.s32.totalorder %s208, %s209
    %p218 = scmp.eq.s32.totalorder %s26, 0
    %p219 = por %p217, %p218
    %p220 = scmp.ne.s32.totalorder %s208, %s209
    %p221 = scmp.eq.s32.totalorder %s27, 1
    %p222 = por %p220, %p221
    %p224 = scmp.ne.s32.totalorder %s209, %s223
    %p225 = scmp.eq.s32.totalorder %s27, 0
    %p226 = por %p224, %p225
    %s228 = sadd.s32 %s227, 1
    %p231 = scmp.eq.s32.totalorder %s21, 1
    %p232 = scmp.ne.s32.totalorder %s227, %s229
    %p233 = scmp.eq.s32.totalorder %s21, 0
    %p234 = por %p232, %p233
    %p235 = scmp.ne.s32.totalorder %s227, %s229
    %p236 = scmp.eq.s32.totalorder %s26, 1
    %p237 = por %p235, %p236
    %p238 = scmp.ne.s32.totalorder %s229, %s230
    %p239 = scmp.eq.s32.totalorder %s26, 0
    %p240 = por %p238, %p239
    %p241 = scmp.ne.s32.totalorder %s229, %s230
    %p242 = scmp.eq.s32.totalorder %s27, 1
    %p243 = por %p241, %p242
    %p245 = scmp.ne.s32.totalorder %s230, %s244
    %p246 = scmp.eq.s32.totalorder %s27, 0
    %p247 = por %p245, %p246
    %s249 = sadd.s32 %s248, 1
    %p252 = scmp.eq.s32.totalorder %s21, 1
    %p253 = scmp.ne.s32.totalorder %s248, %s250
    %p254 = scmp.eq.s32.totalorder %s21, 0
    %p255 = por %p253, %p254
    %p256 = scmp.ne.s32.totalorder %s248, %s250
    %p257 = scmp.eq.s32.totalorder %s26, 1
    %p258 = por %p256, %p257
    %p259 = scmp.ne.s32.totalorder %s250, %s251
    %p260 = scmp.eq.s32.totalorder %s26, 0
    %p261 = por %p259, %p260
    %p262 = scmp.ne.s32.totalorder %s250, %s251
    %p263 = scmp.eq.s32.totalorder %s27, 1
    %p264 = por %p262, %p263
    %p266 = scmp.ne.s32.totalorder %s251, %s265
    %p267 = scmp.eq.s32.totalorder %s27, 0
    %p268 = por %p266, %p267
    %s270 = sadd.s32 %s269, 1
    %p273 = scmp.eq.s32.totalorder %s21, 1
    %p274 = scmp.ne.s32.totalorder %s269, %s271
    %p275 = scmp.eq.s32.totalorder %s21, 0
    %p276 = por %p274, %p275
    %p277 = scmp.ne.s32.totalorder %s269, %s271
    %p278 = scmp.eq.s32.totalorder %s26, 1
    %p279 = por %p277, %p278
    %p280 = scmp.ne.s32.totalorder %s271, %s272
    %p281 = scmp.eq.s32.totalorder %s26, 0
    %p282 = por %p280, %p281
    %p283 = scmp.ne.s32.totalorder %s271, %s272
    %p284 = scmp.eq.s32.totalorder %s27, 1
    %p285 = por %p283, %p284
    %p287 = scmp.ne.s32.totalorder %s272, %s286
    %p288 = scmp.eq.s32.totalorder %s27, 0
    %p289 = por %p287, %p288
    %s291 = sadd.s32 %s290, 1
    %p294 = scmp.eq.s32.totalorder %s21, 1
    %p295 = scmp.ne.s32.totalorder %s290, %s292
    %p296 = scmp.eq.s32.totalorder %s21, 0
    %p297 = por %p295, %p296
    %p298 = scmp.ne.s32.totalorder %s290, %s292
    %p299 = scmp.eq.s32.totalorder %s26, 1
    %p300 = por %p298, %p299
    %p301 = scmp.ne.s32.totalorder %s292, %s293
    %p302 = scmp.eq.s32.totalorder %s26, 0
    %p303 = por %p301, %p302
    %p304 = scmp.ne.s32.totalorder %s292, %s293
    %p305 = scmp.eq.s32.totalorder %s27, 1
    %p306 = por %p304, %p305
    %p308 = scmp.ne.s32.totalorder %s293, %s307
    %p309 = scmp.eq.s32.totalorder %s27, 0
    %p310 = por %p308, %p309
    %s312 = sadd.s32 %s311, 1
    %p315 = scmp.eq.s32.totalorder %s21, 1
    %p316 = scmp.ne.s32.totalorder %s311, %s313
    %p317 = scmp.eq.s32.totalorder %s21, 0
    %p318 = por %p316, %p317
    %p319 = scmp.ne.s32.totalorder %s311, %s313
    %p320 = scmp.eq.s32.totalorder %s26, 1
    %p321 = por %p319, %p320
    %p322 = scmp.ne.s32.totalorder %s313, %s314
    %p323 = scmp.eq.s32.totalorder %s26, 0
    %p324 = por %p322, %p323
    %p325 = scmp.ne.s32.totalorder %s313, %s314
    %p326 = scmp.eq.s32.totalorder %s27, 1
    %p327 = por %p325, %p326
    %p329 = scmp.ne.s32.totalorder %s314, %s328
    %p330 = scmp.eq.s32.totalorder %s27, 0
    %p331 = por %p329, %p330
    %s332 = ssub.s32 %s21, %s28
    %p333 = scmp.eq.s32.totalorder %s332, 0
    %s335 = sadd.s32 %s334, 1
    %s336 = scalar_select %p333, %s334, %s335
    %p339 = pneg %p333
    %p340 = scmp.eq.s32.totalorder %s21, 1
    %p341 = por %p339, %p340
    %p342 = scmp.ne.s32.totalorder %s334, %s337
    %p343 = scmp.eq.s32.totalorder %s21, 0
    %p344 = por %p342, %p343
    %p345 = scmp.ne.s32.totalorder %s334, %s337
    %p346 = scmp.eq.s32.totalorder %s26, 1
    %p347 = por %p345, %p346
    %p348 = scmp.ne.s32.totalorder %s337, %s338
    %p349 = scmp.eq.s32.totalorder %s26, 0
    %p350 = por %p348, %p349
    %p351 = scmp.ne.s32.totalorder %s337, %s338
    %p352 = scmp.eq.s32.totalorder %s27, 1
    %p353 = por %p351, %p352
    %p355 = scmp.ne.s32.totalorder %s338, %s354
    %p356 = scmp.eq.s32.totalorder %s27, 0
    %p357 = por %p355, %p356
    %s358 = ssub.s32 %s21, %s28
    %p359 = scmp.eq.s32.totalorder %s358, 0
    %s361 = sadd.s32 %s360, 1
    %s362 = scalar_select %p359, %s360, %s361
    %p365 = pneg %p359
    %p366 = scmp.eq.s32.totalorder %s21, 1
    %p367 = por %p365, %p366
    %p368 = scmp.ne.s32.totalorder %s360, %s363
    %p369 = scmp.eq.s32.totalorder %s21, 0
    %p370 = por %p368, %p369
    %p371 = scmp.ne.s32.totalorder %s360, %s363
    %p372 = scmp.eq.s32.totalorder %s26, 1
    %p373 = por %p371, %p372
    %p374 = scmp.ne.s32.totalorder %s363, %s364
    %p375 = scmp.eq.s32.totalorder %s26, 0
    %p376 = por %p374, %p375
    %p377 = scmp.ne.s32.totalorder %s363, %s364
    %p378 = scmp.eq.s32.totalorder %s27, 1
    %p379 = por %p377, %p378
    %p381 = scmp.ne.s32.totalorder %s364, %s380
    %p382 = scmp.eq.s32.totalorder %s27, 0
    %p383 = por %p381, %p382
    %p384 = scmp.le.s32.totalorder 1, %s21
    %p385 = scmp.lt.s32.totalorder %s21, 3
    %p386 = pnand %p384, %p385
    %p387 = pneg %p386
    // Predicated region
    $region9: #{forward.4} parent=5 // pred_check
      _
    $region10: #{forward.4} parent=5 // pred_check_branch
      %389 = sbr.rel (%p386) target = $region12
    $region11: #{forward.4} parent=5 // pred_region
      %s390 = ssub.s32 %s21, 1
      // Predicated region
      $region13: #{forward.4} parent=11 // pred_check
        %p391 = pneg %p198
      $region14: #{forward.4} parent=11 // pred_check_branch
        %393 = sbr.rel (%p391) target = $region16
      $region15: #{forward.4} parent=11 // pred_region
        _
      $region16: #{forward.4} parent=11 // pred_fallthru
        _
      // Predicated region
      $region17: #{forward.4} parent=11 // pred_check
        %p394 = pneg %p219
      $region18: #{forward.4} parent=11 // pred_check_branch
        %396 = sbr.rel (%p394) target = $region20
      $region19: #{forward.4} parent=11 // pred_region
        _
      $region20: #{forward.4} parent=11 // pred_fallthru
        _
      // Predicated region
      $region21: #{forward.4} parent=11 // pred_check
        %p397 = pneg %p240
      $region22: #{forward.4} parent=11 // pred_check_branch
        %399 = sbr.rel (%p397) target = $region24
      $region23: #{forward.4} parent=11 // pred_region
        _
      $region24: #{forward.4} parent=11 // pred_fallthru
        _
      // Predicated region
      $region25: #{forward.4} parent=11 // pred_check
        %p400 = pneg %p261
      $region26: #{forward.4} parent=11 // pred_check_branch
        %402 = sbr.rel (%p400) target = $region28
      $region27: #{forward.4} parent=11 // pred_region
        _
      $region28: #{forward.4} parent=11 // pred_fallthru
        _
      // Predicated region
      $region29: #{forward.4} parent=11 // pred_check
        %p403 = pneg %p282
      $region30: #{forward.4} parent=11 // pred_check_branch
        %405 = sbr.rel (%p403) target = $region32
      $region31: #{forward.4} parent=11 // pred_region
        _
      $region32: #{forward.4} parent=11 // pred_fallthru
        _
      // Predicated region
      $region33: #{forward.4} parent=11 // pred_check
        %p406 = pneg %p303
      $region34: #{forward.4} parent=11 // pred_check_branch
        %408 = sbr.rel (%p406) target = $region36
      $region35: #{forward.4} parent=11 // pred_region
        _
      $region36: #{forward.4} parent=11 // pred_fallthru
        _
      // Predicated region
      $region37: #{forward.4} parent=11 // pred_check
        %p409 = pneg %p324
      $region38: #{forward.4} parent=11 // pred_check_branch
        %411 = sbr.rel (%p409) target = $region40
      $region39: #{forward.4} parent=11 // pred_region
        _
      $region40: #{forward.4} parent=11 // pred_fallthru
        _
    $region12: #{forward.4} parent=5 // pred_fallthru
      _
    %p412 = scmp.lt.s32.totalorder %s21, 2
    // Predicated region
    $region41: #{forward.4} parent=5 // pred_check
      %p413 = pneg %p412
    $region42: #{forward.4} parent=5 // pred_check_branch
      %415 = sbr.rel (%p413) target = $region44
    $region43: #{forward.4} parent=5 // pred_region
      // Predicated region
      $region45: #{forward.4} parent=43 // pred_check
        %p416 = pneg %p41
      $region46: #{forward.4} parent=43 // pred_check_branch
        %418 = sbr.rel (%p416) target = $region48
      $region47: #{forward.4} parent=43 // pred_region
        %p419 = scmp.lt.s32.totalorder %s21, 1
        %s420 = scalar_select %p419, %s21, 1
        %s421 = smul.addr %s420, 2
        %s422 = smul.addr %s421, 8
        %s423 = scalar_lea.vmem %s0, %s422
      $region48: #{forward.4} parent=43 // pred_fallthru
        _
      // Predicated region
      $region49: #{forward.4} parent=43 // pred_check
        %p424 = pneg %p67
      $region50: #{forward.4} parent=43 // pred_check_branch
        %426 = sbr.rel (%p424) target = $region52
      $region51: #{forward.4} parent=43 // pred_region
        %p427 = scmp.lt.s32.totalorder %s21, 1
        %s428 = scalar_select %p427, %s21, 1
        %s429 = smul.addr %s428, 2
        %s430 = smul.addr %s429, 8
        %s431 = scalar_lea.vmem %s1, %s430
      $region52: #{forward.4} parent=43 // pred_fallthru
        _
      // Predicated region
      $region53: #{forward.4} parent=43 // pred_check
        %p432 = pneg %p93
      $region54: #{forward.4} parent=43 // pred_check_branch
        %434 = sbr.rel (%p432) target = $region56
      $region55: #{forward.4} parent=43 // pred_region
        %p435 = scmp.lt.s32.totalorder %s21, 1
        %s436 = scalar_select %p435, %s21, 1
        %s437 = scalar_lea.vmem %s2, %s436
      $region56: #{forward.4} parent=43 // pred_fallthru
        _
      // Predicated region
      $region57: #{forward.4} parent=43 // pred_check
        %p438 = pneg %p119
      $region58: #{forward.4} parent=43 // pred_check_branch
        %440 = sbr.rel (%p438) target = $region60
      $region59: #{forward.4} parent=43 // pred_region
        %p441 = scmp.lt.s32.totalorder %s21, 1
        %s442 = scalar_select %p441, %s21, 1
        %s443 = smul.addr %s442, 2
        %s444 = smul.addr %s443, 8
        %s445 = scalar_lea.vmem %s3, %s444
      $region60: #{forward.4} parent=43 // pred_fallthru
        _
      // Predicated region
      $region61: #{forward.4} parent=43 // pred_check
        %p446 = pneg %p145
      $region62: #{forward.4} parent=43 // pred_check_branch
        %448 = sbr.rel (%p446) target = $region64
      $region63: #{forward.4} parent=43 // pred_region
        %p449 = scmp.lt.s32.totalorder %s21, 1
        %s450 = scalar_select %p449, %s21, 1
        %s451 = smul.addr %s450, 2
        %s452 = scalar_lea.vmem %s4, %s451
      $region64: #{forward.4} parent=43 // pred_fallthru
        _
      // Predicated region
      $region65: #{forward.4} parent=43 // pred_check
        %p453 = pneg %p171
      $region66: #{forward.4} parent=43 // pred_check_branch
        %455 = sbr.rel (%p453) target = $region68
      $region67: #{forward.4} parent=43 // pred_region
        %p456 = scmp.lt.s32.totalorder %s21, 1
        %s457 = scalar_select %p456, %s21, 1
        %s458 = smul.addr %s457, 8
        %s459 = scalar_lea.vmem %s5, %s458
      $region68: #{forward.4} parent=43 // pred_fallthru
        _
    $region44: #{forward.4} parent=5 // pred_fallthru
      _
    %p460 = scmp.le.s32.totalorder 1, %s21
    %p461 = scmp.lt.s32.totalorder %s21, 3
    %p462 = pnand %p460, %p461
    %p463 = pneg %p462
    // Predicated region
    $region69: #{forward.4} parent=5 // pred_check
      _
    $region70: #{forward.4} parent=5 // pred_check_branch
      %465 = sbr.rel (%p462) target = $region72
    $region71: #{forward.4} parent=5 // pred_region
      %s466 = ssub.s32 %s21, 1
      %p467 = scmp.lt.s32.totalorder %s26, 1
      %s468 = scalar_select %p467, %s26, 1
      %s469 = smul.addr %s468, 2
      %s470 = smul.addr %s469, 8
      %s471 = scalar_lea.vmem %s0, %s470
      %p472 = pneg %p47
      %p473 = pneg %p44
      %p474 = scmp.lt.s32.totalorder %s26, 1
      %s475 = scalar_select %p474, %s26, 1
      %s476 = smul.addr %s475, 2
      %s477 = smul.addr %s476, 8
      %s478 = scalar_lea.vmem %s1, %s477
      %p479 = pneg %p73
      %p480 = pneg %p70
      %p481 = scmp.lt.s32.totalorder %s26, 1
      %s482 = scalar_select %p481, %s26, 1
      %s483 = scalar_lea.vmem %s2, %s482
      %p484 = pneg %p99
      %p485 = pneg %p96
      %p486 = scmp.lt.s32.totalorder %s26, 1
      %s487 = scalar_select %p486, %s26, 1
      %s488 = smul.addr %s487, 2
      %s489 = smul.addr %s488, 8
      %s490 = scalar_lea.vmem %s3, %s489
      %p491 = pneg %p125
      %p492 = pneg %p122
      %p493 = scmp.lt.s32.totalorder %s26, 1
      %s494 = scalar_select %p493, %s26, 1
      %s495 = smul.addr %s494, 2
      %s496 = scalar_lea.vmem %s4, %s495
      %p497 = pneg %p151
      %p498 = pneg %p148
      %p499 = scmp.lt.s32.totalorder %s26, 1
      %s500 = scalar_select %p499, %s26, 1
      %s501 = smul.addr %s500, 8
      %s502 = scalar_lea.vmem %s5, %s501
      %p503 = pneg %p177
      %p504 = pneg %p174
      %p505 = pneg %p198
      %p506 = pneg %p195
      %p507 = pneg %p219
      %p508 = pneg %p216
      %p509 = pneg %p240
      %p510 = pneg %p237
      %p511 = pneg %p261
      %p512 = pneg %p258
      %p513 = pneg %p282
      %p514 = pneg %p279
      %p515 = pneg %p303
      %p516 = pneg %p300
      %p517 = pneg %p324
      %p518 = pneg %p321
      %p519 = pneg %p350
      %p520 = pneg %p347
      %p521 = scmp.lt.s32.totalorder %s26, 1
      %s522 = scalar_select %p521, %s26, 1
      %s523 = smul.addr %s522, 4
      %s524 = scalar_lea.vmem %s13, %s523
      %p525 = pneg %p376
      %p526 = pneg %p373
      %p527 = scmp.lt.s32.totalorder %s26, 1
      %s528 = scalar_select %p527, %s26, 1
      %s529 = scalar_lea.vmem %s14, %s528
      %p530 = scmp.lt.s32.totalorder %s26, 1
      %s531 = scalar_select %p530, %s26, 1
      %s532 = smul.addr %s531, 2
      %s533 = smul.addr %s532, 8
      %s534 = scalar_lea.vmem %s0, %s533
      %p535 = scmp.lt.s32.totalorder %s26, 1
      %s536 = scalar_select %p535, %s26, 1
      %s537 = smul.addr %s536, 2
      %s538 = smul.addr %s537, 8
      %s539 = scalar_lea.vmem %s1, %s538
      %p540 = scmp.lt.s32.totalorder %s26, 1
      %s541 = scalar_select %p540, %s26, 1
      %s542 = scalar_lea.vmem %s2, %s541
      %p543 = scmp.lt.s32.totalorder %s26, 1
      %s544 = scalar_select %p543, %s26, 1
      %s545 = smul.addr %s544, 2
      %s546 = smul.addr %s545, 8
      %s547 = scalar_lea.vmem %s3, %s546
      %p548 = scmp.lt.s32.totalorder %s26, 1
      %s549 = scalar_select %p548, %s26, 1
      %s550 = smul.addr %s549, 2
      %s551 = scalar_lea.vmem %s4, %s550
      %p552 = scmp.lt.s32.totalorder %s26, 1
      %s553 = scalar_select %p552, %s26, 1
      %s554 = smul.addr %s553, 8
      %s555 = scalar_lea.vmem %s5, %s554
      %p556 = scmp.lt.s32.totalorder %s26, 1
      %s557 = scalar_select %p556, %s26, 1
      %s558 = smul.addr %s557, 4
      %s559 = scalar_lea.vmem %s13, %s558
      %p560 = scmp.lt.s32.totalorder %s26, 1
      %s561 = scalar_select %p560, %s26, 1
      %s562 = scalar_lea.vmem %s14, %s561
      %v563 = vld [vmem:[%s534] sm:$0xff]
      %v564 = vld [vmem:[%s534 + $0x8] sm:$0x1]
      %v565 = vld [vmem:[%s539] sm:$0xff]
      %v566 = vld [vmem:[%s539 + $0x8] sm:$0xff]
      %v567 = vld [vmem:[%s542] sm:$0x1]
      %v568 = vld [vmem:[%s547] sm:$0xff]
      %v569 = vld [vmem:[%s547 + $0x8] sm:$0xff]
      %v570 = vld [vmem:[%s551] sm:$0x3]
      %v571 = vld [vmem:[%s6] sm:$0xff]
      %v572 = vld [vmem:[%s6 + $0x8] sm:$0xff]
      %v573 = vld [vmem:[%s7] sm:$0x1]
      %v575 = vlaneseq
      %v576 = vshrl.u32 %v575, 7
      %v577 = vsub.s32 0, %v576
      %v578 = vrot.slane %v573, %v577
      %vm580 = vcmask 130048
      %v582 = vsel %vm580, %v563, 0
      %v585 = vsel %vm580, %v564, 0
      %587 = vmatprep.subr.mxu0 0.0
      %588 = vmatpush1.msra.mxu0 %v571
      %589 = vmatprep.subr.mxu0 0.0
      %590 = vmatpush1.msra.mxu0 %v572
      %591 = vmatprep.subr.mxu0 0.0
      %592 = vmatpush1.msra.mxu0 0.0
      %593 = vmatprep.subr.mxu0 0.0
      %594 = vmatpush1.msra.mxu0 0.0
      %595 = vmatprep.subr.mxu0 0.0
      %596 = vmatpush1.msra.mxu0 0.0
      %597 = vmatprep.subr.mxu0 0.0
      %598 = vmatpush1.msra.mxu0 0.0
      %599 = vmatprep.subr.mxu0 0.0
      %600 = vmatpush1.msra.mxu0 0.0
      %601 = vmatprep.subr.mxu0 0.0
      %602 = vmatpush1.msra.mxu0 0.0
      %603 = vmatprep.subr.mxu0 0.0
      %604 = vmatpush1.msra.mxu0 0.0
      %605 = vmatprep.subr.mxu0 0.0
      %606 = vmatpush1.msra.mxu0 0.0
      %607 = vmatprep.subr.mxu0 0.0
      %608 = vmatpush1.msra.mxu0 0.0
      %609 = vmatprep.subr.mxu0 0.0
      %610 = vmatpush1.msra.mxu0 0.0
      %611 = vmatprep.subr.mxu0 0.0
      %612 = vmatpush1.msra.mxu0 0.0
      %613 = vmatprep.subr.mxu0 0.0
      %614 = vmatpush1.msra.mxu0 0.0
      %615 = vmatprep.subr.mxu0 0.0
      %616 = vmatpush1.msra.mxu0 0.0
      %617 = vmatprep.subr.mxu0 0.0
      %618 = vmatpush1.msra.mxu0 0.0
      %619 = vmatprep.subr.mxu0 0.0
      %620 = vmatpush1.msra.mxu0 0.0
      %621 = vmatprep.subr.mxu0 0.0
      %622 = vmatpush1.msra.mxu0 0.0
      %623 = vmatprep.subr.mxu0 0.0
      %624 = vmatpush1.msra.mxu0 0.0
      %625 = vmatprep.subr.mxu0 0.0
      %626 = vmatpush1.msra.mxu0 0.0
      %627 = vmatprep.subr.mxu0 0.0
      %628 = vmatpush1.msra.mxu0 0.0
      %629 = vmatprep.subr.mxu0 0.0
      %630 = vmatpush1.msra.mxu0 0.0
      %631 = vmatprep.subr.mxu0 0.0
      %632 = vmatpush1.msra.mxu0 0.0
      %633 = vmatprep.subr.mxu0 0.0
      %634 = vmatpush1.msra.mxu0 0.0
      %635 = vmatprep.subr.mxu0 0.0
      %636 = vmatpush1.msra.mxu0 0.0
      %637 = vmatprep.subr.mxu0 0.0
      %638 = vmatpush1.msra.mxu0 0.0
      %639 = vmatprep.subr.mxu0 0.0
      %640 = vmatpush1.msra.mxu0 0.0
      %641 = vmatprep.subr.mxu0 0.0
      %642 = vmatpush1.msra.mxu0 0.0
      %643 = vmatprep.subr.mxu0 0.0
      %644 = vmatpush1.msra.mxu0 0.0
      %645 = vmatprep.subr.mxu0 0.0
      %646 = vmatpush1.msra.mxu0 0.0
      %647 = vmatprep.subr.mxu0 0.0
      %648 = vmatpush1.msra.mxu0 0.0
      %649 = vmatprep.subr.mxu0 0.0
      %650 = vmatpush1.msra.mxu0 0.0
      %651 = vmatprep.mubr.f32.mxu0 0.0
      %652 = vmatmul.mubr.f32.gmra.mrb[0].mxu0 %v582
      %v653 = vpop.f32.mrb[0].mxu0
      %v654 = vadd.f32 %v578, %v653
      %v655 = vpop.f32.mrb[0].mxu0
      %656 = vmatprep.mubr.f32.mxu0 0.0
      %657 = vmatmul.mubr.f32.gmra.mrb[0].mxu0 %v585
      %v658 = vpop.f32.mrb[0].mxu0
      %v659 = vadd.f32 %v578, %v658
      %v660 = vpop.f32.mrb[0].mxu0
      %661 = vdwg.mxu0
      %v662 = vmax.f32 %v654, 0.0
      %v663 = vmax.f32 %v659, 0.0
      %v664 = vld [vmem:[%s9] sm:$0x7]
      %vm665 = vcmask 261120
      %v667 = vsel %vm665, %v664, 0
      %v670 = vsel %vm665, %v662, 0
      %v673 = vsel %vm665, %v663, 0
      %675 = vmatprep.subr.mxu0 0.0
      %676 = vmatpush1.xpose.msra.mxu0 %v670
      %677 = vmatprep.subr.mxu0 0.0
      %678 = vmatpush1.xpose.msra.mxu0 %v673
      %679 = vmatprep.subr.mxu0 0.0
      %680 = vmatpush1.xpose.msra.mxu0 0.0
      %681 = vmatprep.subr.mxu0 0.0
      %682 = vmatpush1.xpose.msra.mxu0 0.0
      %683 = vmatprep.subr.mxu0 0.0
      %684 = vmatpush1.xpose.msra.mxu0 0.0
      %685 = vmatprep.subr.mxu0 0.0
      %686 = vmatpush1.xpose.msra.mxu0 0.0
      %687 = vmatprep.subr.mxu0 0.0
      %688 = vmatpush1.xpose.msra.mxu0 0.0
      %689 = vmatprep.subr.mxu0 0.0
      %690 = vmatpush1.xpose.msra.mxu0 0.0
      %691 = vmatprep.subr.mxu0 0.0
      %692 = vmatpush1.xpose.msra.mxu0 0.0
      %693 = vmatprep.subr.mxu0 0.0
      %694 = vmatpush1.xpose.msra.mxu0 0.0
      %695 = vmatprep.subr.mxu0 0.0
      %696 = vmatpush1.xpose.msra.mxu0 0.0
      %697 = vmatprep.subr.mxu0 0.0
      %698 = vmatpush1.xpose.msra.mxu0 0.0
      %699 = vmatprep.subr.mxu0 0.0
      %700 = vmatpush1.xpose.msra.mxu0 0.0
      %701 = vmatprep.subr.mxu0 0.0
      %702 = vmatpush1.xpose.msra.mxu0 0.0
      %703 = vmatprep.subr.mxu0 0.0
      %704 = vmatpush1.xpose.msra.mxu0 0.0
      %705 = vmatprep.subr.mxu0 0.0
      %706 = vmatpush1.xpose.msra.mxu0 0.0
      %707 = vmatprep.subr.mxu0 0.0
      %708 = vmatpush1.xpose.msra.mxu0 0.0
      %709 = vmatprep.subr.mxu0 0.0
      %710 = vmatpush1.xpose.msra.mxu0 0.0
      %711 = vmatprep.subr.mxu0 0.0
      %712 = vmatpush1.xpose.msra.mxu0 0.0
      %713 = vmatprep.subr.mxu0 0.0
      %714 = vmatpush1.xpose.msra.mxu0 0.0
      %715 = vmatprep.subr.mxu0 0.0
      %716 = vmatpush1.xpose.msra.mxu0 0.0
      %717 = vmatprep.subr.mxu0 0.0
      %718 = vmatpush1.xpose.msra.mxu0 0.0
      %719 = vmatprep.subr.mxu0 0.0
      %720 = vmatpush1.xpose.msra.mxu0 0.0
      %721 = vmatprep.subr.mxu0 0.0
      %722 = vmatpush1.xpose.msra.mxu0 0.0
      %723 = vmatprep.subr.mxu0 0.0
      %724 = vmatpush1.xpose.msra.mxu0 0.0
      %725 = vmatprep.subr.mxu0 0.0
      %726 = vmatpush1.xpose.msra.mxu0 0.0
      %727 = vmatprep.subr.mxu0 0.0
      %728 = vmatpush1.xpose.msra.mxu0 0.0
      %729 = vmatprep.subr.mxu0 0.0
      %730 = vmatpush1.xpose.msra.mxu0 0.0
      %731 = vmatprep.subr.mxu0 0.0
      %732 = vmatpush1.xpose.msra.mxu0 0.0
      %733 = vmatprep.subr.mxu0 0.0
      %734 = vmatpush1.xpose.msra.mxu0 0.0
      %735 = vmatprep.subr.mxu0 0.0
      %736 = vmatpush1.xpose.msra.mxu0 0.0
      %737 = vmatprep.subr.mxu0 0.0
      %738 = vmatpush1.xpose.msra.mxu0 0.0
      %739 = vmatprep.mubr.f32.mxu0 0.0
      %740 = vmatmul.mubr.f32.gmra.mrb[0].mxu0 %v667
      %v741 = vpop.f32.mrb[0].mxu0
      %v742 = vadd.f32 0.0, %v741
      %v743 = vpop.f32.mrb[0].mxu0
      %744 = vdwg.mxu0
      %v745 = vld [vmem:[%s8] sm:$0xff]
      %vm746 = vcmask 64512
      %v748 = vsel %vm746, %v565, 0
      %v751 = vsel %vm746, %v566, 0
      %753 = vmatprep.subr.mxu0 0.0
      %754 = vmatpush1.msra.mxu0 %v745
      %755 = vmatprep.subr.mxu0 0.0
      %756 = vmatpush1.msra.mxu0 0.0
      %757 = vmatprep.subr.mxu0 0.0
      %758 = vmatpush1.msra.mxu0 0.0
      %759 = vmatprep.subr.mxu0 0.0
      %760 = vmatpush1.msra.mxu0 0.0
      %761 = vmatprep.subr.mxu0 0.0
      %762 = vmatpush1.msra.mxu0 0.0
      %763 = vmatprep.subr.mxu0 0.0
      %764 = vmatpush1.msra.mxu0 0.0
      %765 = vmatprep.subr.mxu0 0.0
      %766 = vmatpush1.msra.mxu0 0.0
      %767 = vmatprep.subr.mxu0 0.0
      %768 = vmatpush1.msra.mxu0 0.0
      %769 = vmatprep.subr.mxu0 0.0
      %770 = vmatpush1.msra.mxu0 0.0
      %771 = vmatprep.subr.mxu0 0.0
      %772 = vmatpush1.msra.mxu0 0.0
      %773 = vmatprep.subr.mxu0 0.0
      %774 = vmatpush1.msra.mxu0 0.0
      %775 = vmatprep.subr.mxu0 0.0
      %776 = vmatpush1.msra.mxu0 0.0
      %777 = vmatprep.subr.mxu0 0.0
      %778 = vmatpush1.msra.mxu0 0.0
      %779 = vmatprep.subr.mxu0 0.0
      %780 = vmatpush1.msra.mxu0 0.0
      %781 = vmatprep.subr.mxu0 0.0
      %782 = vmatpush1.msra.mxu0 0.0
      %783 = vmatprep.subr.mxu0 0.0
      %784 = vmatpush1.msra.mxu0 0.0
      %785 = vmatprep.subr.mxu0 0.0
      %786 = vmatpush1.msra.mxu0 0.0
      %787 = vmatprep.subr.mxu0 0.0
      %788 = vmatpush1.msra.mxu0 0.0
      %789 = vmatprep.subr.mxu0 0.0
      %790 = vmatpush1.msra.mxu0 0.0
      %791 = vmatprep.subr.mxu0 0.0
      %792 = vmatpush1.msra.mxu0 0.0
      %793 = vmatprep.subr.mxu0 0.0
      %794 = vmatpush1.msra.mxu0 0.0
      %795 = vmatprep.subr.mxu0 0.0
      %796 = vmatpush1.msra.mxu0 0.0
      %797 = vmatprep.subr.mxu0 0.0
      %798 = vmatpush1.msra.mxu0 0.0
      %799 = vmatprep.subr.mxu0 0.0
      %800 = vmatpush1.msra.mxu0 0.0
      %801 = vmatprep.subr.mxu0 0.0
      %802 = vmatpush1.msra.mxu0 0.0
      %803 = vmatprep.subr.mxu0 0.0
      %804 = vmatpush1.msra.mxu0 0.0
      %805 = vmatprep.subr.mxu0 0.0
      %806 = vmatpush1.msra.mxu0 0.0
      %807 = vmatprep.subr.mxu0 0.0
      %808 = vmatpush1.msra.mxu0 0.0
      %809 = vmatprep.subr.mxu0 0.0
      %810 = vmatpush1.msra.mxu0 0.0
      %811 = vmatprep.subr.mxu0 0.0
      %812 = vmatpush1.msra.mxu0 0.0
      %813 = vmatprep.subr.mxu0 0.0
      %814 = vmatpush1.msra.mxu0 0.0
      %815 = vmatprep.subr.mxu0 0.0
      %816 = vmatpush1.msra.mxu0 0.0
      %817 = vmatprep.mubr.f32.mxu0 0.0
      %818 = vmatmul.mubr.f32.gmra.mrb[0].mxu0 %v748
      %v819 = vpop.f32.mrb[0].mxu0
      %v820 = vadd.f32 0.0, %v819
      %v821 = vpop.f32.mrb[0].mxu0
      %822 = vmatprep.mubr.f32.mxu0 0.0
      %823 = vmatmul.mubr.f32.gmra.mrb[0].mxu0 %v751
      %v824 = vpop.f32.mrb[0].mxu0
      %v825 = vadd.f32 0.0, %v824
      %v826 = vpop.f32.mrb[0].mxu0
      %827 = vdwg.mxu0
      %v829 = vsel %vm665, %v820, 0
      %v832 = vsel %vm665, %v825, 0
      %834 = vmatprep.subr.mxu0 0.0
      %835 = vmatpush1.xpose.msra.mxu0 %v670
      %836 = vmatprep.subr.mxu0 0.0
      %837 = vmatpush1.xpose.msra.mxu0 %v673
      %838 = vmatprep.subr.mxu0 0.0
      %839 = vmatpush1.xpose.msra.mxu0 0.0
      %840 = vmatprep.subr.mxu0 0.0
      %841 = vmatpush1.xpose.msra.mxu0 0.0
      %842 = vmatprep.subr.mxu0 0.0
      %843 = vmatpush1.xpose.msra.mxu0 0.0
      %844 = vmatprep.subr.mxu0 0.0
      %845 = vmatpush1.xpose.msra.mxu0 0.0
      %846 = vmatprep.subr.mxu0 0.0
      %847 = vmatpush1.xpose.msra.mxu0 0.0
      %848 = vmatprep.subr.mxu0 0.0
      %849 = vmatpush1.xpose.msra.mxu0 0.0
      %850 = vmatprep.subr.mxu0 0.0
      %851 = vmatpush1.xpose.msra.mxu0 0.0
      %852 = vmatprep.subr.mxu0 0.0
      %853 = vmatpush1.xpose.msra.mxu0 0.0
      %854 = vmatprep.subr.mxu0 0.0
      %855 = vmatpush1.xpose.msra.mxu0 0.0
      %856 = vmatprep.subr.mxu0 0.0
      %857 = vmatpush1.xpose.msra.mxu0 0.0
      %858 = vmatprep.subr.mxu0 0.0
      %859 = vmatpush1.xpose.msra.mxu0 0.0
      %860 = vmatprep.subr.mxu0 0.0
      %861 = vmatpush1.xpose.msra.mxu0 0.0
      %862 = vmatprep.subr.mxu0 0.0
      %863 = vmatpush1.xpose.msra.mxu0 0.0
      %864 = vmatprep.subr.mxu0 0.0
      %865 = vmatpush1.xpose.msra.mxu0 0.0
      %866 = vmatprep.subr.mxu0 0.0
      %867 = vmatpush1.xpose.msra.mxu0 0.0
      %868 = vmatprep.subr.mxu0 0.0
      %869 = vmatpush1.xpose.msra.mxu0 0.0
      %870 = vmatprep.subr.mxu0 0.0
      %871 = vmatpush1.xpose.msra.mxu0 0.0
      %872 = vmatprep.subr.mxu0 0.0
      %873 = vmatpush1.xpose.msra.mxu0 0.0
      %874 = vmatprep.subr.mxu0 0.0
      %875 = vmatpush1.xpose.msra.mxu0 0.0
      %876 = vmatprep.subr.mxu0 0.0
      %877 = vmatpush1.xpose.msra.mxu0 0.0
      %878 = vmatprep.subr.mxu0 0.0
      %879 = vmatpush1.xpose.msra.mxu0 0.0
      %880 = vmatprep.subr.mxu0 0.0
      %881 = vmatpush1.xpose.msra.mxu0 0.0
      %882 = vmatprep.subr.mxu0 0.0
      %883 = vmatpush1.xpose.msra.mxu0 0.0
      %884 = vmatprep.subr.mxu0 0.0
      %885 = vmatpush1.xpose.msra.mxu0 0.0
      %886 = vmatprep.subr.mxu0 0.0
      %887 = vmatpush1.xpose.msra.mxu0 0.0
      %888 = vmatprep.subr.mxu0 0.0
      %889 = vmatpush1.xpose.msra.mxu0 0.0
      %890 = vmatprep.subr.mxu0 0.0
      %891 = vmatpush1.xpose.msra.mxu0 0.0
      %892 = vmatprep.subr.mxu0 0.0
      %893 = vmatpush1.xpose.msra.mxu0 0.0
      %894 = vmatprep.subr.mxu0 0.0
      %895 = vmatpush1.xpose.msra.mxu0 0.0
      %896 = vmatprep.subr.mxu0 0.0
      %897 = vmatpush1.xpose.msra.mxu0 0.0
      %898 = vmatprep.mubr.f32.mxu0 0.0
      %899 = vmatmul.mubr.f32.gmra.mrb[0].mxu0 %v829
      %v900 = vpop.f32.mrb[0].mxu0
      %v901 = vadd.f32 0.0, %v900
      %v902 = vpop.f32.mrb[0].mxu0
      %903 = vmatprep.mubr.f32.mxu0 0.0
      %904 = vmatmul.mubr.f32.gmra.mrb[0].mxu0 %v832
      %v905 = vpop.f32.mrb[0].mxu0
      %v906 = vadd.f32 0.0, %v905
      %v907 = vpop.f32.mrb[0].mxu0
      %908 = vdwg.mxu0
      %v909 = vmul.f32 %v901, 0.17677669
      %v910 = vmul.f32 %v906, 0.17677669
      %vm911 = vcmp.gt.f32.partialorder %v567, 0.0
      %v912 = vsel %vm911, 1, 0
      %v913 = vlaneseq
      %v914 = vshrl.u32 %v913, 7
      %v915 = vsub.s32 0, %v914
      %v916 = vrot.slane %v912, %v915
      %vm917 = vcmp.eq.s32.totalorder %v916, 1
      %v918 = vsel %vm917, %v909, -1e+09
      %v919 = vsel %vm917, %v910, -1e+09
      %vm920 = vcmask 72704
      %v921 = vsel %vm920, %v918, -inf
      %922 = vmax.xlane.f32.xlu0 %v921
      %v923 = vpop.xlane.xlu0 %922
      %v924 = vsel %vm920, %v919, -inf
      %925 = vmax.xlane.f32.xlu0 %v924
      %v926 = vpop.xlane.xlu0 %925
      %v927 = vsub.f32 %v918, %v923
      %v928 = vsub.f32 %v919, %v926
      %v929 = vmul.f32 %v927, 1.442695
      %v930 = vpow.pop %v929
      %v931 = vmul.f32 %v928, 1.442695
      %v932 = vpow.pop %v931
      %v933 = vsel %vm920, %v930, 0.0
      %934 = vadd.xlane.f32.xlu0 %v933
      %v935 = vpop.xlane.xlu0 %934
      %v936 = vsel %vm920, %v932, 0.0
      %937 = vadd.xlane.f32.xlu0 %v936
      %v938 = vpop.xlane.xlu0 %937
      %v939 = vlog2.pop %v935
      %v940 = vmul.f32 %v939, 0.6931472
      %v941 = vlog2.pop %v938
      %v942 = vmul.f32 %v941, 0.6931472
      %v943 = vsub.f32 %v927, %v940
      %v944 = vsub.f32 %v928, %v942
      %v945 = vlaneseq
      %v946 = vand.u32 %v945, 127
      %vm947 = vcmp.ge.f32.partialorder %v918, %v923
      %vm948 = vcmp.ge.f32.partialorder %v919, %v926
      %v949 = vsel %vm947, %v946, 9
      %v950 = vsel %vm948, %v946, 9
      %v951 = vsel %vm920, %v949, 2147483647
      %v952 = vand.u32 %v951, 65535
      %v953 = vshra.s32 %v951, 16
      %v954 = vcvt.s32.f32 %v952
      %v955 = vcvt.s32.f32 %v953
      %956 = vmin.xlane.f32.xlu0 %v955
      %v957 = vpop.xlane.xlu0 %956
      %vm958 = vcmp.eq.f32.partialorder %v955, %v957
      %v959 = vsel %vm958, %v954, inf
      %960 = vmin.xlane.f32.xlu0 %v959
      %v961 = vpop.xlane.xlu0 %960
      %v962 = vcvt.f32.s32 %v961
      %v963 = vcvt.f32.s32 %v957
      %v964 = vshll.u32 %v963, 16
      %v965 = vadd.s32 %v964, %v962
      %v966 = vsel %vm920, %v950, 2147483647
      %v967 = vand.u32 %v966, 65535
      %v968 = vshra.s32 %v966, 16
      %v969 = vcvt.s32.f32 %v967
      %v970 = vcvt.s32.f32 %v968
      %971 = vmin.xlane.f32.xlu0 %v970
      %v972 = vpop.xlane.xlu0 %971
      %vm973 = vcmp.eq.f32.partialorder %v970, %v972
      %v974 = vsel %vm973, %v969, inf
      %975 = vmin.xlane.f32.xlu0 %v974
      %v976 = vpop.xlane.xlu0 %975
      %v977 = vcvt.f32.s32 %v976
      %v978 = vcvt.f32.s32 %v972
      %v979 = vshll.u32 %v978, 16
      %v980 = vadd.s32 %v979, %v977
      %vm981 = vcmp.eq.s32.totalorder %v946, %v965
      %vm982 = vcmp.eq.s32.totalorder %v946, %v980
      %v983 = vsel %vm981, 1.0, 0.0
      %v984 = vsel %vm982, 1.0, 0.0
      %986 = vset.pattern.permute.xlu0 0
      %987 = vperm.xlu0 %986, %v568
      %v988 = vpop.permute.xlu0 %987
      %991 = vset.pattern.permute.xlu0 0
      %992 = vperm.xlu0 %991, %v569
      %v993 = vpop.permute.xlu0 %992
      %v995 = vmul.f32 %v983, %v988
      %v996 = vmul.f32 %v984, %v993
      %v997 = vsel %vm920, %v995, 0.0
      %v998 = vsel %vm920, %v996, 0.0
      %v999 = vadd.f32 %v997, %v998
      %v1000 = vrot.slane %v999, 4
      %v1001 = vadd.f32 %v999, %v1000
      %v1002 = vrot.slane %v1001, 2
      %v1003 = vadd.f32 %v1001, %v1002
      %v1004 = vrot.slane %v1003, 1
      %v1005 = vadd.f32 %v1003, %v1004
      %v1006 = vmax.f32 %v1005, 1.0
      %v1008 = vsel %vm580, %v570, 0
      %1010 = vmatprep.subr.mxu0 0.0
      %1011 = vmatpush1.msra.mxu0 %v995
      %1012 = vmatprep.subr.mxu0 0.0
      %1013 = vmatpush1.msra.mxu0 %v996
      %1014 = vmatprep.subr.mxu0 0.0
      %1015 = vmatpush1.msra.mxu0 0.0
      %1016 = vmatprep.subr.mxu0 0.0
      %1017 = vmatpush1.msra.mxu0 0.0
      %1018 = vmatprep.subr.mxu0 0.0
      %1019 = vmatpush1.msra.mxu0 0.0
      %1020 = vmatprep.subr.mxu0 0.0
      %1021 = vmatpush1.msra.mxu0 0.0
      %1022 = vmatprep.subr.mxu0 0.0
      %1023 = vmatpush1.msra.mxu0 0.0
      %1024 = vmatprep.subr.mxu0 0.0
      %1025 = vmatpush1.msra.mxu0 0.0
      %1026 = vmatprep.subr.mxu0 0.0
      %1027 = vmatpush1.msra.mxu0 0.0
      %1028 = vmatprep.subr.mxu0 0.0
      %1029 = vmatpush1.msra.mxu0 0.0
      %1030 = vmatprep.subr.mxu0 0.0
      %1031 = vmatpush1.msra.mxu0 0.0
      %1032 = vmatprep.subr.mxu0 0.0
      %1033 = vmatpush1.msra.mxu0 0.0
      %1034 = vmatprep.subr.mxu0 0.0
      %1035 = vmatpush1.msra.mxu0 0.0
      %1036 = vmatprep.subr.mxu0 0.0
      %1037 = vmatpush1.msra.mxu0 0.0
      %1038 = vmatprep.subr.mxu0 0.0
      %1039 = vmatpush1.msra.mxu0 0.0
      %1040 = vmatprep.subr.mxu0 0.0
      %1041 = vmatpush1.msra.mxu0 0.0
      %1042 = vmatprep.subr.mxu0 0.0
      %1043 = vmatpush1.msra.mxu0 0.0
      %1044 = vmatprep.subr.mxu0 0.0
      %1045 = vmatpush1.msra.mxu0 0.0
      %1046 = vmatprep.subr.mxu0 0.0
      %1047 = vmatpush1.msra.mxu0 0.0
      %1048 = vmatprep.subr.mxu0 0.0
      %1049 = vmatpush1.msra.mxu0 0.0
      %1050 = vmatprep.subr.mxu0 0.0
      %1051 = vmatpush1.msra.mxu0 0.0
      %1052 = vmatprep.subr.mxu0 0.0
      %1053 = vmatpush1.msra.mxu0 0.0
      %1054 = vmatprep.subr.mxu0 0.0
      %1055 = vmatpush1.msra.mxu0 0.0
      %1056 = vmatprep.subr.mxu0 0.0
      %1057 = vmatpush1.msra.mxu0 0.0
      %1058 = vmatprep.subr.mxu0 0.0
      %1059 = vmatpush1.msra.mxu0 0.0
      %1060 = vmatprep.subr.mxu0 0.0
      %1061 = vmatpush1.msra.mxu0 0.0
      %1062 = vmatprep.subr.mxu0 0.0
      %1063 = vmatpush1.msra.mxu0 0.0
      %1064 = vmatprep.subr.mxu0 0.0
      %1065 = vmatpush1.msra.mxu0 0.0
      %1066 = vmatprep.subr.mxu0 0.0
      %1067 = vmatpush1.msra.mxu0 0.0
      %1068 = vmatprep.subr.mxu0 0.0
      %1069 = vmatpush1.msra.mxu0 0.0
      %1070 = vmatprep.subr.mxu0 0.0
      %1071 = vmatpush1.msra.mxu0 0.0
      %1072 = vmatprep.subr.mxu0 0.0
      %1073 = vmatpush1.msra.mxu0 0.0
      %1074 = vmatprep.mubr.f32.mxu0 0.0
      %1075 = vmatmul.mubr.f32.gmra.mrb[0].mxu0 %v1008
      %v1076 = vpop.f32.mrb[0].mxu0
      %v1077 = vadd.f32 0.0, %v1076
      %v1078 = vpop.f32.mrb[0].mxu0
      %1079 = vdwg.mxu0
      %v1080 = vrcp.pop %v1006
      %v1081 = vmul.f32 %v1077, %v1080
      %v1082 = vadd.f32 %v1005, 1.0
      %v1083 = vlog2.pop %v1082
      %v1084 = vmul.f32 %v1083, 0.6931472
      %v1085 = vsub.f32 %v742, %v1084
      %v1086 = vmul.f32 %v1085, %v1085
      %v1087 = vmul.f32 %v1086, %v567
      %vm1088 = vcmask 65536
      %v1089 = vsel %vm1088, %v1087, 0.0
      %1090 = vadd.xlane.f32.xlu0 %v1089
      %v1091 = vpop.xlane.xlu0 %1090
      %v1092 = vrot.slane %v1091, 4
      %v1093 = vadd.f32 %v1091, %v1092
      %v1094 = vrot.slane %v1093, 2
      %v1095 = vadd.f32 %v1093, %v1094
      %v1096 = vrot.slane %v1095, 1
      %v1097 = vadd.f32 %v1095, %v1096
      %s1098 = vtos %v1097
      %v1100 = vrot.slane %v1081, 7
      %v1102 = vsub.f32 %v742, %v1100
      %v1103 = vmul.f32 %v1102, %v1102
      %v1105 = vlaneseq
      %v1106 = vshrl.u32 %v1105, 7
      %v1107 = vsub.s32 0, %v1106
      %v1108 = vrot.slane %v567, %v1107
      %v1110 = vmul.f32 %v1103, %v1108
      %v1112 = vrot.slane %v1110, 1
      %v1114 = vsel %vm1088, %v1112, 0.0
      %1115 = vadd.xlane.f32.xlu0 %v1114
      %v1116 = vpop.xlane.xlu0 %1115
      %v1117 = vrot.slane %v1116, 4
      %v1118 = vadd.f32 %v1116, %v1117
      %v1119 = vrot.slane %v1118, 2
      %v1120 = vadd.f32 %v1118, %v1119
      %v1121 = vrot.slane %v1120, 1
      %v1122 = vadd.f32 %v1120, %v1121
      %s1123 = vtos %v1122
      %v1124 = vrot.slane %v1110, 2
      %v1126 = vsel %vm1088, %v1124, 0.0
      %1127 = vadd.xlane.f32.xlu0 %v1126
      %v1128 = vpop.xlane.xlu0 %1127
      %v1129 = vrot.slane %v1128, 4
      %v1130 = vadd.f32 %v1128, %v1129
      %v1131 = vrot.slane %v1130, 2
      %v1132 = vadd.f32 %v1130, %v1131
      %v1133 = vrot.slane %v1132, 1
      %v1134 = vadd.f32 %v1132, %v1133
      %s1135 = vtos %v1134
      %v1136 = vsel %vm1088, %v567, 0.0
      %1137 = vadd.xlane.f32.xlu0 %v1136
      %v1138 = vpop.xlane.xlu0 %1137
      %v1139 = vrot.slane %v1138, 4
      %v1140 = vadd.f32 %v1138, %v1139
      %v1141 = vrot.slane %v1140, 2
      %v1142 = vadd.f32 %v1140, %v1141
      %v1143 = vrot.slane %v1142, 1
      %v1144 = vadd.f32 %v1142, %v1143
      %s1145 = vtos %v1144
      %vm1146 = vcmp.gt.f32.partialorder %v995, 0.0
      %vm1147 = vcmp.gt.f32.partialorder %v996, 0.0
      %v1148 = vsel %vm1146, %v943, 0.0
      %v1149 = vsel %vm1147, %v944, 0.0
      %v1150 = vsel %vm920, %v1148, 0.0
      %v1151 = vsel %vm920, %v1149, 0.0
      %v1152 = vadd.f32 %v1150, %v1151
      %1153 = vadd.xlane.f32.xlu0 %v1152
      %v1154 = vpop.xlane.xlu0 %1153
      %v1155 = vrot.slane %v1154, 4
      %v1156 = vadd.f32 %v1154, %v1155
      %v1157 = vrot.slane %v1156, 2
      %v1158 = vadd.f32 %v1156, %v1157
      %v1159 = vrot.slane %v1158, 1
      %v1160 = vadd.f32 %v1158, %v1159
      %s1161 = vtos %v1160
      %1162 = vadd.xlane.f32.xlu0 %v999
      %v1163 = vpop.xlane.xlu0 %1162
      %v1164 = vrot.slane %v1163, 4
      %v1165 = vadd.f32 %v1163, %v1164
      %v1166 = vrot.slane %v1165, 2
      %v1167 = vadd.f32 %v1165, %v1166
      %v1168 = vrot.slane %v1167, 1
      %v1169 = vadd.f32 %v1167, %v1168
      %s1170 = vtos %v1169
      %v1172 = vsel %vm920, %v995, 0
      %vm1174 = vcmask 1040384
      %v1175 = vsel %vm1174, %v663, 0
      %1177 = vmatprep.subr.mxu0 0.0
      %1178 = vmatpush1.msra.mxu0 %v662
      %1179 = vmatprep.subr.mxu0 0.0
      %1180 = vmatpush1.msra.mxu0 %v1175
      %1181 = vmatprep.subr.mxu0 0.0
      %1182 = vmatpush1.msra.mxu0 0.0
      %1183 = vmatprep.subr.mxu0 0.0
      %1184 = vmatpush1.msra.mxu0 0.0
      %1185 = vmatprep.subr.mxu0 0.0
      %1186 = vmatpush1.msra.mxu0 0.0
      %1187 = vmatprep.subr.mxu0 0.0
      %1188 = vmatpush1.msra.mxu0 0.0
      %1189 = vmatprep.subr.mxu0 0.0
      %1190 = vmatpush1.msra.mxu0 0.0
      %1191 = vmatprep.subr.mxu0 0.0
      %1192 = vmatpush1.msra.mxu0 0.0
      %1193 = vmatprep.subr.mxu0 0.0
      %1194 = vmatpush1.msra.mxu0 0.0
      %1195 = vmatprep.subr.mxu0 0.0
      %1196 = vmatpush1.msra.mxu0 0.0
      %1197 = vmatprep.subr.mxu0 0.0
      %1198 = vmatpush1.msra.mxu0 0.0
      %1199 = vmatprep.subr.mxu0 0.0
      %1200 = vmatpush1.msra.mxu0 0.0
      %1201 = vmatprep.subr.mxu0 0.0
      %1202 = vmatpush1.msra.mxu0 0.0
      %1203 = vmatprep.subr.mxu0 0.0
      %1204 = vmatpush1.msra.mxu0 0.0
      %1205 = vmatprep.subr.mxu0 0.0
      %1206 = vmatpush1.msra.mxu0 0.0
      %1207 = vmatprep.subr.mxu0 0.0
      %1208 = vmatpush1.msra.mxu0 0.0
      %1209 = vmatprep.subr.mxu0 0.0
      %1210 = vmatpush1.msra.mxu0 0.0
      %1211 = vmatprep.subr.mxu0 0.0
      %1212 = vmatpush1.msra.mxu0 0.0
      %1213 = vmatprep.subr.mxu0 0.0
      %1214 = vmatpush1.msra.mxu0 0.0
      %1215 = vmatprep.subr.mxu0 0.0
      %1216 = vmatpush1.msra.mxu0 0.0
      %1217 = vmatprep.subr.mxu0 0.0
      %1218 = vmatpush1.msra.mxu0 0.0
      %1219 = vmatprep.subr.mxu0 0.0
      %1220 = vmatpush1.msra.mxu0 0.0
      %1221 = vmatprep.subr.mxu0 0.0
      %1222 = vmatpush1.msra.mxu0 0.0
      %1223 = vmatprep.subr.mxu0 0.0
      %1224 = vmatpush1.msra.mxu0 0.0
      %1225 = vmatprep.subr.mxu0 0.0
      %1226 = vmatpush1.msra.mxu0 0.0
      %1227 = vmatprep.subr.mxu0 0.0
      %1228 = vmatpush1.msra.mxu0 0.0
      %1229 = vmatprep.subr.mxu0 0.0
      %1230 = vmatpush1.msra.mxu0 0.0
      %1231 = vmatprep.subr.mxu0 0.0
      %1232 = vmatpush1.msra.mxu0 0.0
      %1233 = vmatprep.subr.mxu0 0.0
      %1234 = vmatpush1.msra.mxu0 0.0
      %1235 = vmatprep.subr.mxu0 0.0
      %1236 = vmatpush1.msra.mxu0 0.0
      %1237 = vmatprep.subr.mxu0 0.0
      %1238 = vmatpush1.msra.mxu0 0.0
      %1239 = vmatprep.subr.mxu0 0.0
      %1240 = vmatpush1.msra.mxu0 0.0
      %1241 = vmatprep.mubr.f32.mxu0 0.0
      %1242 = vmatmul.mubr.f32.gmra.mrb[0].mxu0 %v1172
      %v1243 = vpop.f32.mrb[0].mxu0
      %v1244 = vadd.f32 0.0, %v1243
      %v1245 = vpop.f32.mrb[0].mxu0
      %1246 = vdwg.mxu0
      %v1247 = vld [vmem:[%s10] sm:$0xff]
      %v1248 = vld [vmem:[%s10 + $0x8] sm:$0xff]
      %v1249 = vld [vmem:[%s10 + $0x10] sm:$0xff]
      %v1250 = vld [vmem:[%s10 + $0x18] sm:$0xff]
      %v1252 = vsel %vm665, %v1244, 0
      %1254 = vmatprep.subr.mxu0 0.0
      %1255 = vmatpush1.msra.mxu0 %v1247
      %1256 = vmatprep.subr.mxu0 0.0
      %1257 = vmatpush1.msra.mxu0 %v1248
      %1258 = vmatprep.subr.mxu0 0.0
      %1259 = vmatpush1.msra.mxu0 %v1249
      %1260 = vmatprep.subr.mxu0 0.0
      %1261 = vmatpush1.msra.mxu0 %v1250
      %1262 = vmatprep.subr.mxu0 0.0
      %1263 = vmatpush1.msra.mxu0 0.0
      %1264 = vmatprep.subr.mxu0 0.0
      %1265 = vmatpush1.msra.mxu0 0.0
      %1266 = vmatprep.subr.mxu0 0.0
      %1267 = vmatpush1.msra.mxu0 0.0
      %1268 = vmatprep.subr.mxu0 0.0
      %1269 = vmatpush1.msra.mxu0 0.0
      %1270 = vmatprep.subr.mxu0 0.0
      %1271 = vmatpush1.msra.mxu0 0.0
      %1272 = vmatprep.subr.mxu0 0.0
      %1273 = vmatpush1.msra.mxu0 0.0
      %1274 = vmatprep.subr.mxu0 0.0
      %1275 = vmatpush1.msra.mxu0 0.0
      %1276 = vmatprep.subr.mxu0 0.0
      %1277 = vmatpush1.msra.mxu0 0.0
      %1278 = vmatprep.subr.mxu0 0.0
      %1279 = vmatpush1.msra.mxu0 0.0
      %1280 = vmatprep.subr.mxu0 0.0
      %1281 = vmatpush1.msra.mxu0 0.0
      %1282 = vmatprep.subr.mxu0 0.0
      %1283 = vmatpush1.msra.mxu0 0.0
      %1284 = vmatprep.subr.mxu0 0.0
      %1285 = vmatpush1.msra.mxu0 0.0
      %1286 = vmatprep.subr.mxu0 0.0
      %1287 = vmatpush1.msra.mxu0 0.0
      %1288 = vmatprep.subr.mxu0 0.0
      %1289 = vmatpush1.msra.mxu0 0.0
      %1290 = vmatprep.subr.mxu0 0.0
      %1291 = vmatpush1.msra.mxu0 0.0
      %1292 = vmatprep.subr.mxu0 0.0
      %1293 = vmatpush1.msra.mxu0 0.0
      %1294 = vmatprep.subr.mxu0 0.0
      %1295 = vmatpush1.msra.mxu0 0.0
      %1296 = vmatprep.subr.mxu0 0.0
      %1297 = vmatpush1.msra.mxu0 0.0
      %1298 = vmatprep.subr.mxu0 0.0
      %1299 = vmatpush1.msra.mxu0 0.0
      %1300 = vmatprep.subr.mxu0 0.0
      %1301 = vmatpush1.msra.mxu0 0.0
      %1302 = vmatprep.subr.mxu0 0.0
      %1303 = vmatpush1.msra.mxu0 0.0
      %1304 = vmatprep.subr.mxu0 0.0
      %1305 = vmatpush1.msra.mxu0 0.0
      %1306 = vmatprep.subr.mxu0 0.0
      %1307 = vmatpush1.msra.mxu0 0.0
      %1308 = vmatprep.subr.mxu0 0.0
      %1309 = vmatpush1.msra.mxu0 0.0
      %1310 = vmatprep.subr.mxu0 0.0
      %1311 = vmatpush1.msra.mxu0 0.0
      %1312 = vmatprep.subr.mxu0 0.0
      %1313 = vmatpush1.msra.mxu0 0.0
      %1314 = vmatprep.subr.mxu0 0.0
      %1315 = vmatpush1.msra.mxu0 0.0
      %1316 = vmatprep.subr.mxu0 0.0
      %1317 = vmatpush1.msra.mxu0 0.0
      %1318 = vmatprep.mubr.f32.mxu0 0.0
      %1319 = vmatmul.mubr.f32.gmra.mrb[0].mxu0 %v1252
      %v1320 = vpop.f32.mrb[0].mxu0
      %v1321 = vadd.f32 0.0, %v1320
      %v1322 = vpop.f32.mrb[0].mxu0
      %1323 = vdwg.mxu0
      %v1324 = vtanh.pop %v1321
      %vm1325 = vcmask 125952
      %1326 = vst.msk [vmem:[%s559] sm:$0xf] %vm1325, %v1324
      %v1327 = vlaneseq
      %v1328 = vshrl.u32 %v1327, 7
      %v1329 = vadd.s32 %v946, 2
      %vm1330 = vcmp.eq.s32.totalorder %v1328, %v1329
      %v1331 = vsel %vm1330, 1.0, 0.0
      %vm1332 = vcmask 31744
      %v1334 = vsel %vm1332, %v1331, 0
      %vm1336 = vcmask 1043456
      %v1338 = vsel %vm1336, %v1324, 0
      %1340 = vmatprep.subr.mxu0 0.0
      %1341 = vmatpush1.msra.mxu0 %v1338
      %1342 = vmatprep.subr.mxu0 0.0
      %1343 = vmatpush1.msra.mxu0 0.0
      %1344 = vmatprep.subr.mxu0 0.0
      %1345 = vmatpush1.msra.mxu0 0.0
      %1346 = vmatprep.subr.mxu0 0.0
      %1347 = vmatpush1.msra.mxu0 0.0
      %1348 = vmatprep.subr.mxu0 0.0
      %1349 = vmatpush1.msra.mxu0 0.0
      %1350 = vmatprep.subr.mxu0 0.0
      %1351 = vmatpush1.msra.mxu0 0.0
      %1352 = vmatprep.subr.mxu0 0.0
      %1353 = vmatpush1.msra.mxu0 0.0
      %1354 = vmatprep.subr.mxu0 0.0
      %1355 = vmatpush1.msra.mxu0 0.0
      %1356 = vmatprep.subr.mxu0 0.0
      %1357 = vmatpush1.msra.mxu0 0.0
      %1358 = vmatprep.subr.mxu0 0.0
      %1359 = vmatpush1.msra.mxu0 0.0
      %1360 = vmatprep.subr.mxu0 0.0
      %1361 = vmatpush1.msra.mxu0 0.0
      %1362 = vmatprep.subr.mxu0 0.0
      %1363 = vmatpush1.msra.mxu0 0.0
      %1364 = vmatprep.subr.mxu0 0.0
      %1365 = vmatpush1.msra.mxu0 0.0
      %1366 = vmatprep.subr.mxu0 0.0
      %1367 = vmatpush1.msra.mxu0 0.0
      %1368 = vmatprep.subr.mxu0 0.0
      %1369 = vmatpush1.msra.mxu0 0.0
      %1370 = vmatprep.subr.mxu0 0.0
      %1371 = vmatpush1.msra.mxu0 0.0
      %1372 = vmatprep.subr.mxu0 0.0
      %1373 = vmatpush1.msra.mxu0 0.0
      %1374 = vmatprep.subr.mxu0 0.0
      %1375 = vmatpush1.msra.mxu0 0.0
      %1376 = vmatprep.subr.mxu0 0.0
      %1377 = vmatpush1.msra.mxu0 0.0
      %1378 = vmatprep.subr.mxu0 0.0
      %1379 = vmatpush1.msra.mxu0 0.0
      %1380 = vmatprep.subr.mxu0 0.0
      %1381 = vmatpush1.msra.mxu0 0.0
      %1382 = vmatprep.subr.mxu0 0.0
      %1383 = vmatpush1.msra.mxu0 0.0
      %1384 = vmatprep.subr.mxu0 0.0
      %1385 = vmatpush1.msra.mxu0 0.0
      %1386 = vmatprep.subr.mxu0 0.0
      %1387 = vmatpush1.msra.mxu0 0.0
      %1388 = vmatprep.subr.mxu0 0.0
      %1389 = vmatpush1.msra.mxu0 0.0
      %1390 = vmatprep.subr.mxu0 0.0
      %1391 = vmatpush1.msra.mxu0 0.0
      %1392 = vmatprep.subr.mxu0 0.0
      %1393 = vmatpush1.msra.mxu0 0.0
      %1394 = vmatprep.subr.mxu0 0.0
      %1395 = vmatpush1.msra.mxu0 0.0
      %1396 = vmatprep.subr.mxu0 0.0
      %1397 = vmatpush1.msra.mxu0 0.0
      %1398 = vmatprep.subr.mxu0 0.0
      %1399 = vmatpush1.msra.mxu0 0.0
      %1400 = vmatprep.subr.mxu0 0.0
      %1401 = vmatpush1.msra.mxu0 0.0
      %1402 = vmatprep.subr.mxu0 0.0
      %1403 = vmatpush1.msra.mxu0 0.0
      %1404 = vmatprep.mubr.f32.mxu0 0.0
      %1405 = vmatmul.mubr.f32.gmra.mrb[0].mxu0 %v1334
      %v1406 = vpop.f32.mrb[0].mxu0
      %v1407 = vadd.f32 0.0, %v1406
      %v1408 = vpop.f32.mrb[0].mxu0
      %1409 = vdwg.mxu0
      %v1410 = vld [vmem:[%s11] sm:$0xff]
      %v1411 = vld [vmem:[%s11 + $0x8] sm:$0xff]
      %v1412 = vld [vmem:[%s11 + $0x10] sm:$0xff]
      %v1413 = vld [vmem:[%s11 + $0x18] sm:$0xff]
      %v1414 = vld [vmem:[%s11 + $0x20] sm:$0xff]
      %v1415 = vld [vmem:[%s11 + $0x28] sm:$0xff]
      %v1416 = vld [vmem:[%s11 + $0x30] sm:$0xff]
      %v1417 = vld [vmem:[%s11 + $0x38] sm:$0xff]
      %v1418 = vld [vmem:[%s12] sm:$0xff]
      %v1419 = vld [vmem:[%s12 + $0x8] sm:$0xff]
      %v1420 = vld [vmem:[%s12 + $0x10] sm:$0xff]
      %v1421 = vld [vmem:[%s12 + $0x18] sm:$0xff]
      %v1422 = vld [vmem:[%s12 + $0x20] sm:$0xff]
      %v1423 = vld [vmem:[%s12 + $0x28] sm:$0xff]
      %v1424 = vld [vmem:[%s12 + $0x30] sm:$0xff]
      %v1425 = vld [vmem:[%s12 + $0x38] sm:$0xff]
      %vm1426 = vcmp.eq.s32.totalorder %v946, %v1328
      %v1427 = vsel %vm1426, 1.0, 0.0
      %v1429 = vsel %vm746, %v1427, 0
      %1431 = vmatprep.subr.mxu0 0.0
      %1432 = vmatpush1.msra.mxu0 %v1407
      %1433 = vmatprep.subr.mxu0 0.0
      %1434 = vmatpush1.msra.mxu0 0.0
      %1435 = vmatprep.subr.mxu0 0.0
      %1436 = vmatpush1.msra.mxu0 0.0
      %1437 = vmatprep.subr.mxu0 0.0
      %1438 = vmatpush1.msra.mxu0 0.0
      %1439 = vmatprep.subr.mxu0 0.0
      %1440 = vmatpush1.msra.mxu0 0.0
      %1441 = vmatprep.subr.mxu0 0.0
      %1442 = vmatpush1.msra.mxu0 0.0
      %1443 = vmatprep.subr.mxu0 0.0
      %1444 = vmatpush1.msra.mxu0 0.0
      %1445 = vmatprep.subr.mxu0 0.0
      %1446 = vmatpush1.msra.mxu0 0.0
      %1447 = vmatprep.subr.mxu0 0.0
      %1448 = vmatpush1.msra.mxu0 0.0
      %1449 = vmatprep.subr.mxu0 0.0
      %1450 = vmatpush1.msra.mxu0 0.0
      %1451 = vmatprep.subr.mxu0 0.0
      %1452 = vmatpush1.msra.mxu0 0.0
      %1453 = vmatprep.subr.mxu0 0.0
      %1454 = vmatpush1.msra.mxu0 0.0
      %1455 = vmatprep.subr.mxu0 0.0
      %1456 = vmatpush1.msra.mxu0 0.0
      %1457 = vmatprep.subr.mxu0 0.0
      %1458 = vmatpush1.msra.mxu0 0.0
      %1459 = vmatprep.subr.mxu0 0.0
      %1460 = vmatpush1.msra.mxu0 0.0
      %1461 = vmatprep.subr.mxu0 0.0
      %1462 = vmatpush1.msra.mxu0 0.0
      %1463 = vmatprep.subr.mxu0 0.0
      %1464 = vmatpush1.msra.mxu0 0.0
      %1465 = vmatprep.subr.mxu0 0.0
      %1466 = vmatpush1.msra.mxu0 0.0
      %1467 = vmatprep.subr.mxu0 0.0
      %1468 = vmatpush1.msra.mxu0 0.0
      %1469 = vmatprep.subr.mxu0 0.0
      %1470 = vmatpush1.msra.mxu0 0.0
      %1471 = vmatprep.subr.mxu0 0.0
      %1472 = vmatpush1.msra.mxu0 0.0
      %1473 = vmatprep.subr.mxu0 0.0
      %1474 = vmatpush1.msra.mxu0 0.0
      %1475 = vmatprep.subr.mxu0 0.0
      %1476 = vmatpush1.msra.mxu0 0.0
      %1477 = vmatprep.subr.mxu0 0.0
      %1478 = vmatpush1.msra.mxu0 0.0
      %1479 = vmatprep.subr.mxu0 0.0
      %1480 = vmatpush1.msra.mxu0 0.0
      %1481 = vmatprep.subr.mxu0 0.0
      %1482 = vmatpush1.msra.mxu0 0.0
      %1483 = vmatprep.subr.mxu0 0.0
      %1484 = vmatpush1.msra.mxu0 0.0
      %1485 = vmatprep.subr.mxu0 0.0
      %1486 = vmatpush1.msra.mxu0 0.0
      %1487 = vmatprep.subr.mxu0 0.0
      %1488 = vmatpush1.msra.mxu0 0.0
      %1489 = vmatprep.subr.mxu0 0.0
      %1490 = vmatpush1.msra.mxu0 0.0
      %1491 = vmatprep.subr.mxu0 0.0
      %1492 = vmatpush1.msra.mxu0 0.0
      %1493 = vmatprep.subr.mxu0 0.0
      %1494 = vmatpush1.msra.mxu0 0.0
      %1495 = vmatprep.mubr.f32.mxu0 0.0
      %1496 = vmatmul.mubr.f32.gmra.mrb[0].mxu0 %v1429
      %v1497 = vpop.f32.mrb[0].mxu0
      %v1498 = vadd.f32 0.0, %v1497
      %v1499 = vpop.f32.mrb[0].mxu0
      %1500 = vdwg.mxu0
      %v1501 = vadd.s32 %v1328, 1
      %vm1502 = vcmp.eq.s32.totalorder %v946, %v1501
      %v1503 = vsel %vm1502, 1.0, 0.0
      %v1505 = vsel %vm746, %v1503, 0
      %1507 = vmatprep.subr.mxu0 0.0
      %1508 = vmatpush1.msra.mxu0 %v1407
      %1509 = vmatprep.subr.mxu0 0.0
      %1510 = vmatpush1.msra.mxu0 0.0
      %1511 = vmatprep.subr.mxu0 0.0
      %1512 = vmatpush1.msra.mxu0 0.0
      %1513 = vmatprep.subr.mxu0 0.0
      %1514 = vmatpush1.msra.mxu0 0.0
      %1515 = vmatprep.subr.mxu0 0.0
      %1516 = vmatpush1.msra.mxu0 0.0
      %1517 = vmatprep.subr.mxu0 0.0
      %1518 = vmatpush1.msra.mxu0 0.0
      %1519 = vmatprep.subr.mxu0 0.0
      %1520 = vmatpush1.msra.mxu0 0.0
      %1521 = vmatprep.subr.mxu0 0.0
      %1522 = vmatpush1.msra.mxu0 0.0
      %1523 = vmatprep.subr.mxu0 0.0
      %1524 = vmatpush1.msra.mxu0 0.0
      %1525 = vmatprep.subr.mxu0 0.0
      %1526 = vmatpush1.msra.mxu0 0.0
      %1527 = vmatprep.subr.mxu0 0.0
      %1528 = vmatpush1.msra.mxu0 0.0
      %1529 = vmatprep.subr.mxu0 0.0
      %1530 = vmatpush1.msra.mxu0 0.0
      %1531 = vmatprep.subr.mxu0 0.0
      %1532 = vmatpush1.msra.mxu0 0.0
      %1533 = vmatprep.subr.mxu0 0.0
      %1534 = vmatpush1.msra.mxu0 0.0
      %1535 = vmatprep.subr.mxu0 0.0
      %1536 = vmatpush1.msra.mxu0 0.0
      %1537 = vmatprep.subr.mxu0 0.0
      %1538 = vmatpush1.msra.mxu0 0.0
      %1539 = vmatprep.subr.mxu0 0.0
      %1540 = vmatpush1.msra.mxu0 0.0
      %1541 = vmatprep.subr.mxu0 0.0
      %1542 = vmatpush1.msra.mxu0 0.0
      %1543 = vmatprep.subr.mxu0 0.0
      %1544 = vmatpush1.msra.mxu0 0.0
      %1545 = vmatprep.subr.mxu0 0.0
      %1546 = vmatpush1.msra.mxu0 0.0
      %1547 = vmatprep.subr.mxu0 0.0
      %1548 = vmatpush1.msra.mxu0 0.0
      %1549 = vmatprep.subr.mxu0 0.0
      %1550 = vmatpush1.msra.mxu0 0.0
      %1551 = vmatprep.subr.mxu0 0.0
      %1552 = vmatpush1.msra.mxu0 0.0
      %1553 = vmatprep.subr.mxu0 0.0
      %1554 = vmatpush1.msra.mxu0 0.0
      %1555 = vmatprep.subr.mxu0 0.0
      %1556 = vmatpush1.msra.mxu0 0.0
      %1557 = vmatprep.subr.mxu0 0.0
      %1558 = vmatpush1.msra.mxu0 0.0
      %1559 = vmatprep.subr.mxu0 0.0
      %1560 = vmatpush1.msra.mxu0 0.0
      %1561 = vmatprep.subr.mxu0 0.0
      %1562 = vmatpush1.msra.mxu0 0.0
      %1563 = vmatprep.subr.mxu0 0.0
      %1564 = vmatpush1.msra.mxu0 0.0
      %1565 = vmatprep.subr.mxu0 0.0
      %1566 = vmatpush1.msra.mxu0 0.0
      %1567 = vmatprep.subr.mxu0 0.0
      %1568 = vmatpush1.msra.mxu0 0.0
      %1569 = vmatprep.subr.mxu0 0.0
      %1570 = vmatpush1.msra.mxu0 0.0
      %1571 = vmatprep.mubr.f32.mxu0 0.0
      %1572 = vmatmul.mubr.f32.gmra.mrb[0].mxu0 %v1505
      %v1573 = vpop.f32.mrb[0].mxu0
      %v1574 = vadd.f32 0.0, %v1573
      %v1575 = vpop.f32.mrb[0].mxu0
      %1576 = vdwg.mxu0
      %v1578 = vsel %vm580, %v1574, 0
      %1580 = vmatprep.subr.mxu0 0.0
      %1581 = vmatpush1.msra.mxu0 %v1412
      %1582 = vmatprep.subr.mxu0 0.0
      %1583 = vmatpush1.msra.mxu0 %v1413
      %1584 = vmatprep.subr.mxu0 0.0
      %1585 = vmatpush1.msra.mxu0 0.0
      %1586 = vmatprep.subr.mxu0 0.0
      %1587 = vmatpush1.msra.mxu0 0.0
      %1588 = vmatprep.subr.mxu0 0.0
      %1589 = vmatpush1.msra.mxu0 0.0
      %1590 = vmatprep.subr.mxu0 0.0
      %1591 = vmatpush1.msra.mxu0 0.0
      %1592 = vmatprep.subr.mxu0 0.0
      %1593 = vmatpush1.msra.mxu0 0.0
      %1594 = vmatprep.subr.mxu0 0.0
      %1595 = vmatpush1.msra.mxu0 0.0
      %1596 = vmatprep.subr.mxu0 0.0
      %1597 = vmatpush1.msra.mxu0 0.0
      %1598 = vmatprep.subr.mxu0 0.0
      %1599 = vmatpush1.msra.mxu0 0.0
      %1600 = vmatprep.subr.mxu0 0.0
      %1601 = vmatpush1.msra.mxu0 0.0
      %1602 = vmatprep.subr.mxu0 0.0
      %1603 = vmatpush1.msra.mxu0 0.0
      %1604 = vmatprep.subr.mxu0 0.0
      %1605 = vmatpush1.msra.mxu0 0.0
      %1606 = vmatprep.subr.mxu0 0.0
      %1607 = vmatpush1.msra.mxu0 0.0
      %1608 = vmatprep.subr.mxu0 0.0
      %1609 = vmatpush1.msra.mxu0 0.0
      %1610 = vmatprep.subr.mxu0 0.0
      %1611 = vmatpush1.msra.mxu0 0.0
      %1612 = vmatprep.subr.mxu0 0.0
      %1613 = vmatpush1.msra.mxu0 0.0
      %1614 = vmatprep.subr.mxu0 0.0
      %1615 = vmatpush1.msra.mxu0 0.0
      %1616 = vmatprep.subr.mxu0 0.0
      %1617 = vmatpush1.msra.mxu0 0.0
      %1618 = vmatprep.subr.mxu0 0.0
      %1619 = vmatpush1.msra.mxu0 0.0
      %1620 = vmatprep.subr.mxu0 0.0
      %1621 = vmatpush1.msra.mxu0 0.0
      %1622 = vmatprep.subr.mxu0 0.0
      %1623 = vmatpush1.msra.mxu0 0.0
      %1624 = vmatprep.subr.mxu0 0.0
      %1625 = vmatpush1.msra.mxu0 0.0
      %1626 = vmatprep.subr.mxu0 0.0
      %1627 = vmatpush1.msra.mxu0 0.0
      %1628 = vmatprep.subr.mxu0 0.0
      %1629 = vmatpush1.msra.mxu0 0.0
      %1630 = vmatprep.subr.mxu0 0.0
      %1631 = vmatpush1.msra.mxu0 0.0
      %1632 = vmatprep.subr.mxu0 0.0
      %1633 = vmatpush1.msra.mxu0 0.0
      %1634 = vmatprep.subr.mxu0 0.0
      %1635 = vmatpush1.msra.mxu0 0.0
      %1636 = vmatprep.subr.mxu0 0.0
      %1637 = vmatpush1.msra.mxu0 0.0
      %1638 = vmatprep.subr.mxu0 0.0
      %1639 = vmatpush1.msra.mxu0 0.0
      %1640 = vmatprep.subr.mxu0 0.0
      %1641 = vmatpush1.msra.mxu0 0.0
      %1642 = vmatprep.subr.mxu0 0.0
      %1643 = vmatpush1.msra.mxu0 0.0
      %1644 = vmatprep.mubr.f32.mxu0 0.0
      %1645 = vmatmul.mubr.f32.gmra.mrb[0].mxu0 %v1578
      %v1646 = vpop.f32.mrb[0].mxu0
      %v1647 = vadd.f32 0.0, %v1646
      %v1648 = vpop.f32.mrb[0].mxu0
      %1649 = vdwg.mxu0
      %v1651 = vsel %vm580, %v1498, 0
      %1653 = vmatprep.subr.mxu0 0.0
      %1654 = vmatpush1.msra.mxu0 %v1410
      %1655 = vmatprep.subr.mxu0 0.0
      %1656 = vmatpush1.msra.mxu0 %v1411
      %1657 = vmatprep.subr.mxu0 0.0
      %1658 = vmatpush1.msra.mxu0 0.0
      %1659 = vmatprep.subr.mxu0 0.0
      %1660 = vmatpush1.msra.mxu0 0.0
      %1661 = vmatprep.subr.mxu0 0.0
      %1662 = vmatpush1.msra.mxu0 0.0
      %1663 = vmatprep.subr.mxu0 0.0
      %1664 = vmatpush1.msra.mxu0 0.0
      %1665 = vmatprep.subr.mxu0 0.0
      %1666 = vmatpush1.msra.mxu0 0.0
      %1667 = vmatprep.subr.mxu0 0.0
      %1668 = vmatpush1.msra.mxu0 0.0
      %1669 = vmatprep.subr.mxu0 0.0
      %1670 = vmatpush1.msra.mxu0 0.0
      %1671 = vmatprep.subr.mxu0 0.0
      %1672 = vmatpush1.msra.mxu0 0.0
      %1673 = vmatprep.subr.mxu0 0.0
      %1674 = vmatpush1.msra.mxu0 0.0
      %1675 = vmatprep.subr.mxu0 0.0
      %1676 = vmatpush1.msra.mxu0 0.0
      %1677 = vmatprep.subr.mxu0 0.0
      %1678 = vmatpush1.msra.mxu0 0.0
      %1679 = vmatprep.subr.mxu0 0.0
      %1680 = vmatpush1.msra.mxu0 0.0
      %1681 = vmatprep.subr.mxu0 0.0
      %1682 = vmatpush1.msra.mxu0 0.0
      %1683 = vmatprep.subr.mxu0 0.0
      %1684 = vmatpush1.msra.mxu0 0.0
      %1685 = vmatprep.subr.mxu0 0.0
      %1686 = vmatpush1.msra.mxu0 0.0
      %1687 = vmatprep.subr.mxu0 0.0
      %1688 = vmatpush1.msra.mxu0 0.0
      %1689 = vmatprep.subr.mxu0 0.0
      %1690 = vmatpush1.msra.mxu0 0.0
      %1691 = vmatprep.subr.mxu0 0.0
      %1692 = vmatpush1.msra.mxu0 0.0
      %1693 = vmatprep.subr.mxu0 0.0
      %1694 = vmatpush1.msra.mxu0 0.0
      %1695 = vmatprep.subr.mxu0 0.0
      %1696 = vmatpush1.msra.mxu0 0.0
      %1697 = vmatprep.subr.mxu0 0.0
      %1698 = vmatpush1.msra.mxu0 0.0
      %1699 = vmatprep.subr.mxu0 0.0
      %1700 = vmatpush1.msra.mxu0 0.0
      %1701 = vmatprep.subr.mxu0 0.0
      %1702 = vmatpush1.msra.mxu0 0.0
      %1703 = vmatprep.subr.mxu0 0.0
      %1704 = vmatpush1.msra.mxu0 0.0
      %1705 = vmatprep.subr.mxu0 0.0
      %1706 = vmatpush1.msra.mxu0 0.0
      %1707 = vmatprep.subr.mxu0 0.0
      %1708 = vmatpush1.msra.mxu0 0.0
      %1709 = vmatprep.subr.mxu0 0.0
      %1710 = vmatpush1.msra.mxu0 0.0
      %1711 = vmatprep.subr.mxu0 0.0
      %1712 = vmatpush1.msra.mxu0 0.0
      %1713 = vmatprep.subr.mxu0 0.0
      %1714 = vmatpush1.msra.mxu0 0.0
      %1715 = vmatprep.subr.mxu0 0.0
      %1716 = vmatpush1.msra.mxu0 0.0
      %1717 = vmatprep.mubr.f32.mxu0 0.0
      %1718 = vmatmul.mubr.f32.gmra.mrb[0].mxu0 %v1651
      %v1719 = vpop.f32.mrb[0].mxu0
      %v1720 = vadd.f32 %v1647, %v1719
      %v1721 = vpop.f32.mrb[0].mxu0
      %1722 = vdwg.mxu0
      %v1723 = vadd.s32 %v1328, 2
      %vm1724 = vcmp.eq.s32.totalorder %v946, %v1723
      %v1725 = vsel %vm1724, 1.0, 0.0
      %v1727 = vsel %vm746, %v1725, 0
      %1729 = vmatprep.subr.mxu0 0.0
      %1730 = vmatpush1.msra.mxu0 %v1407
      %1731 = vmatprep.subr.mxu0 0.0
      %1732 = vmatpush1.msra.mxu0 0.0
      %1733 = vmatprep.subr.mxu0 0.0
      %1734 = vmatpush1.msra.mxu0 0.0
      %1735 = vmatprep.subr.mxu0 0.0
      %1736 = vmatpush1.msra.mxu0 0.0
      %1737 = vmatprep.subr.mxu0 0.0
      %1738 = vmatpush1.msra.mxu0 0.0
      %1739 = vmatprep.subr.mxu0 0.0
      %1740 = vmatpush1.msra.mxu0 0.0
      %1741 = vmatprep.subr.mxu0 0.0
      %1742 = vmatpush1.msra.mxu0 0.0
      %1743 = vmatprep.subr.mxu0 0.0
      %1744 = vmatpush1.msra.mxu0 0.0
      %1745 = vmatprep.subr.mxu0 0.0
      %1746 = vmatpush1.msra.mxu0 0.0
      %1747 = vmatprep.subr.mxu0 0.0
      %1748 = vmatpush1.msra.mxu0 0.0
      %1749 = vmatprep.subr.mxu0 0.0
      %1750 = vmatpush1.msra.mxu0 0.0
      %1751 = vmatprep.subr.mxu0 0.0
      %1752 = vmatpush1.msra.mxu0 0.0
      %1753 = vmatprep.subr.mxu0 0.0
      %1754 = vmatpush1.msra.mxu0 0.0
      %1755 = vmatprep.subr.mxu0 0.0
      %1756 = vmatpush1.msra.mxu0 0.0
      %1757 = vmatprep.subr.mxu0 0.0
      %1758 = vmatpush1.msra.mxu0 0.0
      %1759 = vmatprep.subr.mxu0 0.0
      %1760 = vmatpush1.msra.mxu0 0.0
      %1761 = vmatprep.subr.mxu0 0.0
      %1762 = vmatpush1.msra.mxu0 0.0
      %1763 = vmatprep.subr.mxu0 0.0
      %1764 = vmatpush1.msra.mxu0 0.0
      %1765 = vmatprep.subr.mxu0 0.0
      %1766 = vmatpush1.msra.mxu0 0.0
      %1767 = vmatprep.subr.mxu0 0.0
      %1768 = vmatpush1.msra.mxu0 0.0
      %1769 = vmatprep.subr.mxu0 0.0
      %1770 = vmatpush1.msra.mxu0 0.0
      %1771 = vmatprep.subr.mxu0 0.0
      %1772 = vmatpush1.msra.mxu0 0.0
      %1773 = vmatprep.subr.mxu0 0.0
      %1774 = vmatpush1.msra.mxu0 0.0
      %1775 = vmatprep.subr.mxu0 0.0
      %1776 = vmatpush1.msra.mxu0 0.0
      %1777 = vmatprep.subr.mxu0 0.0
      %1778 = vmatpush1.msra.mxu0 0.0
      %1779 = vmatprep.subr.mxu0 0.0
      %1780 = vmatpush1.msra.mxu0 0.0
      %1781 = vmatprep.subr.mxu0 0.0
      %1782 = vmatpush1.msra.mxu0 0.0
      %1783 = vmatprep.subr.mxu0 0.0
      %1784 = vmatpush1.msra.mxu0 0.0
      %1785 = vmatprep.subr.mxu0 0.0
      %1786 = vmatpush1.msra.mxu0 0.0
      %1787 = vmatprep.subr.mxu0 0.0
      %1788 = vmatpush1.msra.mxu0 0.0
      %1789 = vmatprep.subr.mxu0 0.0
      %1790 = vmatpush1.msra.mxu0 0.0
      %1791 = vmatprep.subr.mxu0 0.0
      %1792 = vmatpush1.msra.mxu0 0.0
      %1793 = vmatprep.mubr.f32.mxu0 0.0
      %1794 = vmatmul.mubr.f32.gmra.mrb[0].mxu0 %v1727
      %v1795 = vpop.f32.mrb[0].mxu0
      %v1796 = vadd.f32 0.0, %v1795
      %v1797 = vpop.f32.mrb[0].mxu0
      %1798 = vdwg.mxu0
      %v1800 = vsel %vm580, %v1796, 0
      %1802 = vmatprep.subr.mxu0 0.0
      %1803 = vmatpush1.msra.mxu0 %v1414
      %1804 = vmatprep.subr.mxu0 0.0
      %1805 = vmatpush1.msra.mxu0 %v1415
      %1806 = vmatprep.subr.mxu0 0.0
      %1807 = vmatpush1.msra.mxu0 0.0
      %1808 = vmatprep.subr.mxu0 0.0
      %1809 = vmatpush1.msra.mxu0 0.0
      %1810 = vmatprep.subr.mxu0 0.0
      %1811 = vmatpush1.msra.mxu0 0.0
      %1812 = vmatprep.subr.mxu0 0.0
      %1813 = vmatpush1.msra.mxu0 0.0
      %1814 = vmatprep.subr.mxu0 0.0
      %1815 = vmatpush1.msra.mxu0 0.0
      %1816 = vmatprep.subr.mxu0 0.0
      %1817 = vmatpush1.msra.mxu0 0.0
      %1818 = vmatprep.subr.mxu0 0.0
      %1819 = vmatpush1.msra.mxu0 0.0
      %1820 = vmatprep.subr.mxu0 0.0
      %1821 = vmatpush1.msra.mxu0 0.0
      %1822 = vmatprep.subr.mxu0 0.0
      %1823 = vmatpush1.msra.mxu0 0.0
      %1824 = vmatprep.subr.mxu0 0.0
      %1825 = vmatpush1.msra.mxu0 0.0
      %1826 = vmatprep.subr.mxu0 0.0
      %1827 = vmatpush1.msra.mxu0 0.0
      %1828 = vmatprep.subr.mxu0 0.0
      %1829 = vmatpush1.msra.mxu0 0.0
      %1830 = vmatprep.subr.mxu0 0.0
      %1831 = vmatpush1.msra.mxu0 0.0
      %1832 = vmatprep.subr.mxu0 0.0
      %1833 = vmatpush1.msra.mxu0 0.0
      %1834 = vmatprep.subr.mxu0 0.0
      %1835 = vmatpush1.msra.mxu0 0.0
      %1836 = vmatprep.subr.mxu0 0.0
      %1837 = vmatpush1.msra.mxu0 0.0
      %1838 = vmatprep.subr.mxu0 0.0
      %1839 = vmatpush1.msra.mxu0 0.0
      %1840 = vmatprep.subr.mxu0 0.0
      %1841 = vmatpush1.msra.mxu0 0.0
      %1842 = vmatprep.subr.mxu0 0.0
      %1843 = vmatpush1.msra.mxu0 0.0
      %1844 = vmatprep.subr.mxu0 0.0
      %1845 = vmatpush1.msra.mxu0 0.0
      %1846 = vmatprep.subr.mxu0 0.0
      %1847 = vmatpush1.msra.mxu0 0.0
      %1848 = vmatprep.subr.mxu0 0.0
      %1849 = vmatpush1.msra.mxu0 0.0
      %1850 = vmatprep.subr.mxu0 0.0
      %1851 = vmatpush1.msra.mxu0 0.0
      %1852 = vmatprep.subr.mxu0 0.0
      %1853 = vmatpush1.msra.mxu0 0.0
      %1854 = vmatprep.subr.mxu0 0.0
      %1855 = vmatpush1.msra.mxu0 0.0
      %1856 = vmatprep.subr.mxu0 0.0
      %1857 = vmatpush1.msra.mxu0 0.0
      %1858 = vmatprep.subr.mxu0 0.0
      %1859 = vmatpush1.msra.mxu0 0.0
      %1860 = vmatprep.subr.mxu0 0.0
      %1861 = vmatpush1.msra.mxu0 0.0
      %1862 = vmatprep.subr.mxu0 0.0
      %1863 = vmatpush1.msra.mxu0 0.0
      %1864 = vmatprep.subr.mxu0 0.0
      %1865 = vmatpush1.msra.mxu0 0.0
      %1866 = vmatprep.mubr.f32.mxu0 0.0
      %1867 = vmatmul.mubr.f32.gmra.mrb[0].mxu0 %v1800
      %v1868 = vpop.f32.mrb[0].mxu0
      %v1869 = vadd.f32 0.0, %v1868
      %v1870 = vpop.f32.mrb[0].mxu0
      %1871 = vdwg.mxu0
      %v1872 = vadd.f32 %v1720, %v1869
      %v1873 = vadd.s32 %v1328, 3
      %vm1874 = vcmp.eq.s32.totalorder %v946, %v1873
      %v1875 = vsel %vm1874, 1.0, 0.0
      %v1877 = vsel %vm746, %v1875, 0
      %1879 = vmatprep.subr.mxu0 0.0
      %1880 = vmatpush1.msra.mxu0 %v1407
      %1881 = vmatprep.subr.mxu0 0.0
      %1882 = vmatpush1.msra.mxu0 0.0
      %1883 = vmatprep.subr.mxu0 0.0
      %1884 = vmatpush1.msra.mxu0 0.0
      %1885 = vmatprep.subr.mxu0 0.0
      %1886 = vmatpush1.msra.mxu0 0.0
      %1887 = vmatprep.subr.mxu0 0.0
      %1888 = vmatpush1.msra.mxu0 0.0
      %1889 = vmatprep.subr.mxu0 0.0
      %1890 = vmatpush1.msra.mxu0 0.0
      %1891 = vmatprep.subr.mxu0 0.0
      %1892 = vmatpush1.msra.mxu0 0.0
      %1893 = vmatprep.subr.mxu0 0.0
      %1894 = vmatpush1.msra.mxu0 0.0
      %1895 = vmatprep.subr.mxu0 0.0
      %1896 = vmatpush1.msra.mxu0 0.0
      %1897 = vmatprep.subr.mxu0 0.0
      %1898 = vmatpush1.msra.mxu0 0.0
      %1899 = vmatprep.subr.mxu0 0.0
      %1900 = vmatpush1.msra.mxu0 0.0
      %1901 = vmatprep.subr.mxu0 0.0
      %1902 = vmatpush1.msra.mxu0 0.0
      %1903 = vmatprep.subr.mxu0 0.0
      %1904 = vmatpush1.msra.mxu0 0.0
      %1905 = vmatprep.subr.mxu0 0.0
      %1906 = vmatpush1.msra.mxu0 0.0
      %1907 = vmatprep.subr.mxu0 0.0
      %1908 = vmatpush1.msra.mxu0 0.0
      %1909 = vmatprep.subr.mxu0 0.0
      %1910 = vmatpush1.msra.mxu0 0.0
      %1911 = vmatprep.subr.mxu0 0.0
      %1912 = vmatpush1.msra.mxu0 0.0
      %1913 = vmatprep.subr.mxu0 0.0
      %1914 = vmatpush1.msra.mxu0 0.0
      %1915 = vmatprep.subr.mxu0 0.0
      %1916 = vmatpush1.msra.mxu0 0.0
      %1917 = vmatprep.subr.mxu0 0.0
      %1918 = vmatpush1.msra.mxu0 0.0
      %1919 = vmatprep.subr.mxu0 0.0
      %1920 = vmatpush1.msra.mxu0 0.0
      %1921 = vmatprep.subr.mxu0 0.0
      %1922 = vmatpush1.msra.mxu0 0.0
      %1923 = vmatprep.subr.mxu0 0.0
      %1924 = vmatpush1.msra.mxu0 0.0
      %1925 = vmatprep.subr.mxu0 0.0
      %1926 = vmatpush1.msra.mxu0 0.0
      %1927 = vmatprep.subr.mxu0 0.0
      %1928 = vmatpush1.msra.mxu0 0.0
      %1929 = vmatprep.subr.mxu0 0.0
      %1930 = vmatpush1.msra.mxu0 0.0
      %1931 = vmatprep.subr.mxu0 0.0
      %1932 = vmatpush1.msra.mxu0 0.0
      %1933 = vmatprep.subr.mxu0 0.0
      %1934 = vmatpush1.msra.mxu0 0.0
      %1935 = vmatprep.subr.mxu0 0.0
      %1936 = vmatpush1.msra.mxu0 0.0
      %1937 = vmatprep.subr.mxu0 0.0
      %1938 = vmatpush1.msra.mxu0 0.0
      %1939 = vmatprep.subr.mxu0 0.0
      %1940 = vmatpush1.msra.mxu0 0.0
      %1941 = vmatprep.subr.mxu0 0.0
      %1942 = vmatpush1.msra.mxu0 0.0
      %1943 = vmatprep.mubr.f32.mxu0 0.0
      %1944 = vmatmul.mubr.f32.gmra.mrb[0].mxu0 %v1877
      %v1945 = vpop.f32.mrb[0].mxu0
      %v1946 = vadd.f32 0.0, %v1945
      %v1947 = vpop.f32.mrb[0].mxu0
      %1948 = vdwg.mxu0
      %v1950 = vsel %vm580, %v1946, 0
      %1952 = vmatprep.subr.mxu0 0.0
      %1953 = vmatpush1.msra.mxu0 %v1416
      %1954 = vmatprep.subr.mxu0 0.0
      %1955 = vmatpush1.msra.mxu0 %v1417
      %1956 = vmatprep.subr.mxu0 0.0
      %1957 = vmatpush1.msra.mxu0 0.0
      %1958 = vmatprep.subr.mxu0 0.0
      %1959 = vmatpush1.msra.mxu0 0.0
      %1960 = vmatprep.subr.mxu0 0.0
      %1961 = vmatpush1.msra.mxu0 0.0
      %1962 = vmatprep.subr.mxu0 0.0
      %1963 = vmatpush1.msra.mxu0 0.0
      %1964 = vmatprep.subr.mxu0 0.0
      %1965 = vmatpush1.msra.mxu0 0.0
      %1966 = vmatprep.subr.mxu0 0.0
      %1967 = vmatpush1.msra.mxu0 0.0
      %1968 = vmatprep.subr.mxu0 0.0
      %1969 = vmatpush1.msra.mxu0 0.0
      %1970 = vmatprep.subr.mxu0 0.0
      %1971 = vmatpush1.msra.mxu0 0.0
      %1972 = vmatprep.subr.mxu0 0.0
      %1973 = vmatpush1.msra.mxu0 0.0
      %1974 = vmatprep.subr.mxu0 0.0
      %1975 = vmatpush1.msra.mxu0 0.0
      %1976 = vmatprep.subr.mxu0 0.0
      %1977 = vmatpush1.msra.mxu0 0.0
      %1978 = vmatprep.subr.mxu0 0.0
      %1979 = vmatpush1.msra.mxu0 0.0
      %1980 = vmatprep.subr.mxu0 0.0
      %1981 = vmatpush1.msra.mxu0 0.0
      %1982 = vmatprep.subr.mxu0 0.0
      %1983 = vmatpush1.msra.mxu0 0.0
      %1984 = vmatprep.subr.mxu0 0.0
      %1985 = vmatpush1.msra.mxu0 0.0
      %1986 = vmatprep.subr.mxu0 0.0
      %1987 = vmatpush1.msra.mxu0 0.0
      %1988 = vmatprep.subr.mxu0 0.0
      %1989 = vmatpush1.msra.mxu0 0.0
      %1990 = vmatprep.subr.mxu0 0.0
      %1991 = vmatpush1.msra.mxu0 0.0
      %1992 = vmatprep.subr.mxu0 0.0
      %1993 = vmatpush1.msra.mxu0 0.0
      %1994 = vmatprep.subr.mxu0 0.0
      %1995 = vmatpush1.msra.mxu0 0.0
      %1996 = vmatprep.subr.mxu0 0.0
      %1997 = vmatpush1.msra.mxu0 0.0
      %1998 = vmatprep.subr.mxu0 0.0
      %1999 = vmatpush1.msra.mxu0 0.0
      %2000 = vmatprep.subr.mxu0 0.0
      %2001 = vmatpush1.msra.mxu0 0.0
      %2002 = vmatprep.subr.mxu0 0.0
      %2003 = vmatpush1.msra.mxu0 0.0
      %2004 = vmatprep.subr.mxu0 0.0
      %2005 = vmatpush1.msra.mxu0 0.0
      %2006 = vmatprep.subr.mxu0 0.0
      %2007 = vmatpush1.msra.mxu0 0.0
      %2008 = vmatprep.subr.mxu0 0.0
      %2009 = vmatpush1.msra.mxu0 0.0
      %2010 = vmatprep.subr.mxu0 0.0
      %2011 = vmatpush1.msra.mxu0 0.0
      %2012 = vmatprep.subr.mxu0 0.0
      %2013 = vmatpush1.msra.mxu0 0.0
      %2014 = vmatprep.subr.mxu0 0.0
      %2015 = vmatpush1.msra.mxu0 0.0
      %2016 = vmatprep.mubr.f32.mxu0 0.0
      %2017 = vmatmul.mubr.f32.gmra.mrb[0].mxu0 %v1950
      %v2018 = vpop.f32.mrb[0].mxu0
      %v2019 = vadd.f32 0.0, %v2018
      %v2020 = vpop.f32.mrb[0].mxu0
      %2021 = vdwg.mxu0
      %v2022 = vadd.f32 %v1872, %v2019
      %v2023 = vmul.f32 %v2022, %v2022
      %2025 = vrot.lane.b32.xlu0 %v2023, 64
      %v2026 = vpop.permute.xlu0 %2025
      %v2028 = vadd.f32 %v2023, %v2026
      %v2029 = vadd.f32 %v2028, 1e-09
      %v2030 = vrsqrt.pop %v2029
      %v2031 = vmul.f32 %v2029, %v2030
      %vm2032 = vcmp.eq.f32.partialorder %v2029, inf
      %v2033 = vsel %vm2032, %v2029, %v2031
      %vm2034 = vcmp.eq.f32.partialorder %v2029, 0.0
      %v2035 = vand.u32 %v2029, 2147483648
      %v2036 = vsel %vm2034, %v2035, %v2033
      %vm2037 = vcmask 523264
      %v2039 = vsel %vm2037, %v2036, 0
      %2041 = vmatprep.subr.mxu0 0.0
      %2042 = vmatpush1.msra.mxu0 %v1418
      %2043 = vmatprep.subr.mxu0 0.0
      %2044 = vmatpush1.msra.mxu0 %v1419
      %2045 = vmatprep.subr.mxu0 0.0
      %2046 = vmatpush1.msra.mxu0 %v1420
      %2047 = vmatprep.subr.mxu0 0.0
      %2048 = vmatpush1.msra.mxu0 %v1421
      %2049 = vmatprep.subr.mxu0 0.0
      %2050 = vmatpush1.msra.mxu0 %v1422
      %2051 = vmatprep.subr.mxu0 0.0
      %2052 = vmatpush1.msra.mxu0 %v1423
      %2053 = vmatprep.subr.mxu0 0.0
      %2054 = vmatpush1.msra.mxu0 %v1424
      %2055 = vmatprep.subr.mxu0 0.0
      %2056 = vmatpush1.msra.mxu0 %v1425
      %2057 = vmatprep.subr.mxu0 0.0
      %2058 = vmatpush1.msra.mxu0 0.0
      %2059 = vmatprep.subr.mxu0 0.0
      %2060 = vmatpush1.msra.mxu0 0.0
      %2061 = vmatprep.subr.mxu0 0.0
      %2062 = vmatpush1.msra.mxu0 0.0
      %2063 = vmatprep.subr.mxu0 0.0
      %2064 = vmatpush1.msra.mxu0 0.0
      %2065 = vmatprep.subr.mxu0 0.0
      %2066 = vmatpush1.msra.mxu0 0.0
      %2067 = vmatprep.subr.mxu0 0.0
      %2068 = vmatpush1.msra.mxu0 0.0
      %2069 = vmatprep.subr.mxu0 0.0
      %2070 = vmatpush1.msra.mxu0 0.0
      %2071 = vmatprep.subr.mxu0 0.0
      %2072 = vmatpush1.msra.mxu0 0.0
      %2073 = vmatprep.subr.mxu0 0.0
      %2074 = vmatpush1.msra.mxu0 0.0
      %2075 = vmatprep.subr.mxu0 0.0
      %2076 = vmatpush1.msra.mxu0 0.0
      %2077 = vmatprep.subr.mxu0 0.0
      %2078 = vmatpush1.msra.mxu0 0.0
      %2079 = vmatprep.subr.mxu0 0.0
      %2080 = vmatpush1.msra.mxu0 0.0
      %2081 = vmatprep.subr.mxu0 0.0
      %2082 = vmatpush1.msra.mxu0 0.0
      %2083 = vmatprep.subr.mxu0 0.0
      %2084 = vmatpush1.msra.mxu0 0.0
      %2085 = vmatprep.subr.mxu0 0.0
      %2086 = vmatpush1.msra.mxu0 0.0
      %2087 = vmatprep.subr.mxu0 0.0
      %2088 = vmatpush1.msra.mxu0 0.0
      %2089 = vmatprep.subr.mxu0 0.0
      %2090 = vmatpush1.msra.mxu0 0.0
      %2091 = vmatprep.subr.mxu0 0.0
      %2092 = vmatpush1.msra.mxu0 0.0
      %2093 = vmatprep.subr.mxu0 0.0
      %2094 = vmatpush1.msra.mxu0 0.0
      %2095 = vmatprep.subr.mxu0 0.0
      %2096 = vmatpush1.msra.mxu0 0.0
      %2097 = vmatprep.subr.mxu0 0.0
      %2098 = vmatpush1.msra.mxu0 0.0
      %2099 = vmatprep.subr.mxu0 0.0
      %2100 = vmatpush1.msra.mxu0 0.0
      %2101 = vmatprep.subr.mxu0 0.0
      %2102 = vmatpush1.msra.mxu0 0.0
      %2103 = vmatprep.subr.mxu0 0.0
      %2104 = vmatpush1.msra.mxu0 0.0
      %2105 = vmatprep.mubr.f32.mxu0 0.0
      %2106 = vmatmul.mubr.f32.gmra.mrb[0].mxu0 %v2039
      %v2107 = vpop.f32.mrb[0].mxu0
      %v2108 = vadd.f32 0.0, %v2107
      %v2109 = vpop.f32.mrb[0].mxu0
      %2110 = vdwg.mxu0
      %v2111 = vmax.f32 %v2108, 1e-05
      %v2112 = vlog2.pop %v2111
      %v2113 = vmul.f32 %v2112, 0.6931472
      %v2114 = vld [vmem:[%s555] sm:$0xff]
      %2115 = vmatprep.subr.mxu0 0.0
      %2116 = vmatpush1.msra.mxu0 %v2114
      %2117 = vmatprep.subr.mxu0 0.0
      %2118 = vmatpush1.msra.mxu0 0.0
      %2119 = vmatprep.subr.mxu0 0.0
      %2120 = vmatpush1.msra.mxu0 0.0
      %2121 = vmatprep.subr.mxu0 0.0
      %2122 = vmatpush1.msra.mxu0 0.0
      %2123 = vmatprep.subr.mxu0 0.0
      %2124 = vmatpush1.msra.mxu0 0.0
      %2125 = vmatprep.subr.mxu0 0.0
      %2126 = vmatpush1.msra.mxu0 0.0
      %2127 = vmatprep.subr.mxu0 0.0
      %2128 = vmatpush1.msra.mxu0 0.0
      %2129 = vmatprep.subr.mxu0 0.0
      %2130 = vmatpush1.msra.mxu0 0.0
      %2131 = vmatprep.subr.mxu0 0.0
      %2132 = vmatpush1.msra.mxu0 0.0
      %2133 = vmatprep.subr.mxu0 0.0
      %2134 = vmatpush1.msra.mxu0 0.0
      %2135 = vmatprep.subr.mxu0 0.0
      %2136 = vmatpush1.msra.mxu0 0.0
      %2137 = vmatprep.subr.mxu0 0.0
      %2138 = vmatpush1.msra.mxu0 0.0
      %2139 = vmatprep.subr.mxu0 0.0
      %2140 = vmatpush1.msra.mxu0 0.0
      %2141 = vmatprep.subr.mxu0 0.0
      %2142 = vmatpush1.msra.mxu0 0.0
      %2143 = vmatprep.subr.mxu0 0.0
      %2144 = vmatpush1.msra.mxu0 0.0
      %2145 = vmatprep.subr.mxu0 0.0
      %2146 = vmatpush1.msra.mxu0 0.0
      %2147 = vmatprep.subr.mxu0 0.0
      %2148 = vmatpush1.msra.mxu0 0.0
      %2149 = vmatprep.subr.mxu0 0.0
      %2150 = vmatpush1.msra.mxu0 0.0
      %2151 = vmatprep.subr.mxu0 0.0
      %2152 = vmatpush1.msra.mxu0 0.0
      %2153 = vmatprep.subr.mxu0 0.0
      %2154 = vmatpush1.msra.mxu0 0.0
      %2155 = vmatprep.subr.mxu0 0.0
      %2156 = vmatpush1.msra.mxu0 0.0
      %2157 = vmatprep.subr.mxu0 0.0
      %2158 = vmatpush1.msra.mxu0 0.0
      %2159 = vmatprep.subr.mxu0 0.0
      %2160 = vmatpush1.msra.mxu0 0.0
      %2161 = vmatprep.subr.mxu0 0.0
      %2162 = vmatpush1.msra.mxu0 0.0
      %2163 = vmatprep.subr.mxu0 0.0
      %2164 = vmatpush1.msra.mxu0 0.0
      %2165 = vmatprep.subr.mxu0 0.0
      %2166 = vmatpush1.msra.mxu0 0.0
      %2167 = vmatprep.subr.mxu0 0.0
      %2168 = vmatpush1.msra.mxu0 0.0
      %2169 = vmatprep.subr.mxu0 0.0
      %2170 = vmatpush1.msra.mxu0 0.0
      %2171 = vmatprep.subr.mxu0 0.0
      %2172 = vmatpush1.msra.mxu0 0.0
      %2173 = vmatprep.subr.mxu0 0.0
      %2174 = vmatpush1.msra.mxu0 0.0
      %2175 = vmatprep.subr.mxu0 0.0
      %2176 = vmatpush1.msra.mxu0 0.0
      %2177 = vmatprep.subr.mxu0 0.0
      %2178 = vmatpush1.msra.mxu0 0.0
      %2179 = vmatprep.mubr.f32.mxu0 0.0
      %2180 = vmatmul.mubr.f32.gmra.mrb[0].mxu0 %v1429
      %v2181 = vpop.f32.mrb[0].mxu0
      %v2182 = vadd.f32 0.0, %v2181
      %v2183 = vpop.f32.mrb[0].mxu0
      %2184 = vdwg.mxu0
      %2185 = vmatprep.subr.mxu0 0.0
      %2186 = vmatpush1.msra.mxu0 %v2114
      %2187 = vmatprep.subr.mxu0 0.0
      %2188 = vmatpush1.msra.mxu0 0.0
      %2189 = vmatprep.subr.mxu0 0.0
      %2190 = vmatpush1.msra.mxu0 0.0
      %2191 = vmatprep.subr.mxu0 0.0
      %2192 = vmatpush1.msra.mxu0 0.0
      %2193 = vmatprep.subr.mxu0 0.0
      %2194 = vmatpush1.msra.mxu0 0.0
      %2195 = vmatprep.subr.mxu0 0.0
      %2196 = vmatpush1.msra.mxu0 0.0
      %2197 = vmatprep.subr.mxu0 0.0
      %2198 = vmatpush1.msra.mxu0 0.0
      %2199 = vmatprep.subr.mxu0 0.0
      %2200 = vmatpush1.msra.mxu0 0.0
      %2201 = vmatprep.subr.mxu0 0.0
      %2202 = vmatpush1.msra.mxu0 0.0
      %2203 = vmatprep.subr.mxu0 0.0
      %2204 = vmatpush1.msra.mxu0 0.0
      %2205 = vmatprep.subr.mxu0 0.0
      %2206 = vmatpush1.msra.mxu0 0.0
      %2207 = vmatprep.subr.mxu0 0.0
      %2208 = vmatpush1.msra.mxu0 0.0
      %2209 = vmatprep.subr.mxu0 0.0
      %2210 = vmatpush1.msra.mxu0 0.0
      %2211 = vmatprep.subr.mxu0 0.0
      %2212 = vmatpush1.msra.mxu0 0.0
      %2213 = vmatprep.subr.mxu0 0.0
      %2214 = vmatpush1.msra.mxu0 0.0
      %2215 = vmatprep.subr.mxu0 0.0
      %2216 = vmatpush1.msra.mxu0 0.0
      %2217 = vmatprep.subr.mxu0 0.0
      %2218 = vmatpush1.msra.mxu0 0.0
      %2219 = vmatprep.subr.mxu0 0.0
      %2220 = vmatpush1.msra.mxu0 0.0
      %2221 = vmatprep.subr.mxu0 0.0
      %2222 = vmatpush1.msra.mxu0 0.0
      %2223 = vmatprep.subr.mxu0 0.0
      %2224 = vmatpush1.msra.mxu0 0.0
      %2225 = vmatprep.subr.mxu0 0.0
      %2226 = vmatpush1.msra.mxu0 0.0
      %2227 = vmatprep.subr.mxu0 0.0
      %2228 = vmatpush1.msra.mxu0 0.0
      %2229 = vmatprep.subr.mxu0 0.0
      %2230 = vmatpush1.msra.mxu0 0.0
      %2231 = vmatprep.subr.mxu0 0.0
      %2232 = vmatpush1.msra.mxu0 0.0
      %2233 = vmatprep.subr.mxu0 0.0
      %2234 = vmatpush1.msra.mxu0 0.0
      %2235 = vmatprep.subr.mxu0 0.0
      %2236 = vmatpush1.msra.mxu0 0.0
      %2237 = vmatprep.subr.mxu0 0.0
      %2238 = vmatpush1.msra.mxu0 0.0
      %2239 = vmatprep.subr.mxu0 0.0
      %2240 = vmatpush1.msra.mxu0 0.0
      %2241 = vmatprep.subr.mxu0 0.0
      %2242 = vmatpush1.msra.mxu0 0.0
      %2243 = vmatprep.subr.mxu0 0.0
      %2244 = vmatpush1.msra.mxu0 0.0
      %2245 = vmatprep.subr.mxu0 0.0
      %2246 = vmatpush1.msra.mxu0 0.0
      %2247 = vmatprep.subr.mxu0 0.0
      %2248 = vmatpush1.msra.mxu0 0.0
      %2249 = vmatprep.mubr.f32.mxu0 0.0
      %2250 = vmatmul.mubr.f32.gmra.mrb[0].mxu0 %v1505
      %v2251 = vpop.f32.mrb[0].mxu0
      %v2252 = vadd.f32 0.0, %v2251
      %v2253 = vpop.f32.mrb[0].mxu0
      %2254 = vdwg.mxu0
      %v2256 = vsel %vm580, %v2252, 0
      %2258 = vmatprep.subr.mxu0 0.0
      %2259 = vmatpush1.msra.mxu0 %v1412
      %2260 = vmatprep.subr.mxu0 0.0
      %2261 = vmatpush1.msra.mxu0 %v1413
      %2262 = vmatprep.subr.mxu0 0.0
      %2263 = vmatpush1.msra.mxu0 0.0
      %2264 = vmatprep.subr.mxu0 0.0
      %2265 = vmatpush1.msra.mxu0 0.0
      %2266 = vmatprep.subr.mxu0 0.0
      %2267 = vmatpush1.msra.mxu0 0.0
      %2268 = vmatprep.subr.mxu0 0.0
      %2269 = vmatpush1.msra.mxu0 0.0
      %2270 = vmatprep.subr.mxu0 0.0
      %2271 = vmatpush1.msra.mxu0 0.0
      %2272 = vmatprep.subr.mxu0 0.0
      %2273 = vmatpush1.msra.mxu0 0.0
      %2274 = vmatprep.subr.mxu0 0.0
      %2275 = vmatpush1.msra.mxu0 0.0
      %2276 = vmatprep.subr.mxu0 0.0
      %2277 = vmatpush1.msra.mxu0 0.0
      %2278 = vmatprep.subr.mxu0 0.0
      %2279 = vmatpush1.msra.mxu0 0.0
      %2280 = vmatprep.subr.mxu0 0.0
      %2281 = vmatpush1.msra.mxu0 0.0
      %2282 = vmatprep.subr.mxu0 0.0
      %2283 = vmatpush1.msra.mxu0 0.0
      %2284 = vmatprep.subr.mxu0 0.0
      %2285 = vmatpush1.msra.mxu0 0.0
      %2286 = vmatprep.subr.mxu0 0.0
      %2287 = vmatpush1.msra.mxu0 0.0
      %2288 = vmatprep.subr.mxu0 0.0
      %2289 = vmatpush1.msra.mxu0 0.0
      %2290 = vmatprep.subr.mxu0 0.0
      %2291 = vmatpush1.msra.mxu0 0.0
      %2292 = vmatprep.subr.mxu0 0.0
      %2293 = vmatpush1.msra.mxu0 0.0
      %2294 = vmatprep.subr.mxu0 0.0
      %2295 = vmatpush1.msra.mxu0 0.0
      %2296 = vmatprep.subr.mxu0 0.0
      %2297 = vmatpush1.msra.mxu0 0.0
      %2298 = vmatprep.subr.mxu0 0.0
      %2299 = vmatpush1.msra.mxu0 0.0
      %2300 = vmatprep.subr.mxu0 0.0
      %2301 = vmatpush1.msra.mxu0 0.0
      %2302 = vmatprep.subr.mxu0 0.0
      %2303 = vmatpush1.msra.mxu0 0.0
      %2304 = vmatprep.subr.mxu0 0.0
      %2305 = vmatpush1.msra.mxu0 0.0
      %2306 = vmatprep.subr.mxu0 0.0
      %2307 = vmatpush1.msra.mxu0 0.0
      %2308 = vmatprep.subr.mxu0 0.0
      %2309 = vmatpush1.msra.mxu0 0.0
      %2310 = vmatprep.subr.mxu0 0.0
      %2311 = vmatpush1.msra.mxu0 0.0
      %2312 = vmatprep.subr.mxu0 0.0
      %2313 = vmatpush1.msra.mxu0 0.0
      %2314 = vmatprep.subr.mxu0 0.0
      %2315 = vmatpush1.msra.mxu0 0.0
      %2316 = vmatprep.subr.mxu0 0.0
      %2317 = vmatpush1.msra.mxu0 0.0
      %2318 = vmatprep.subr.mxu0 0.0
      %2319 = vmatpush1.msra.mxu0 0.0
      %2320 = vmatprep.subr.mxu0 0.0
      %2321 = vmatpush1.msra.mxu0 0.0
      %2322 = vmatprep.mubr.f32.mxu0 0.0
      %2323 = vmatmul.mubr.f32.gmra.mrb[0].mxu0 %v2256
      %v2324 = vpop.f32.mrb[0].mxu0
      %v2325 = vadd.f32 0.0, %v2324
      %v2326 = vpop.f32.mrb[0].mxu0
      %2327 = vdwg.mxu0
      %v2329 = vsel %vm580, %v2182, 0
      %2331 = vmatprep.subr.mxu0 0.0
      %2332 = vmatpush1.msra.mxu0 %v1410
      %2333 = vmatprep.subr.mxu0 0.0
      %2334 = vmatpush1.msra.mxu0 %v1411
      %2335 = vmatprep.subr.mxu0 0.0
      %2336 = vmatpush1.msra.mxu0 0.0
      %2337 = vmatprep.subr.mxu0 0.0
      %2338 = vmatpush1.msra.mxu0 0.0
      %2339 = vmatprep.subr.mxu0 0.0
      %2340 = vmatpush1.msra.mxu0 0.0
      %2341 = vmatprep.subr.mxu0 0.0
      %2342 = vmatpush1.msra.mxu0 0.0
      %2343 = vmatprep.subr.mxu0 0.0
      %2344 = vmatpush1.msra.mxu0 0.0
      %2345 = vmatprep.subr.mxu0 0.0
      %2346 = vmatpush1.msra.mxu0 0.0
      %2347 = vmatprep.subr.mxu0 0.0
      %2348 = vmatpush1.msra.mxu0 0.0
      %2349 = vmatprep.subr.mxu0 0.0
      %2350 = vmatpush1.msra.mxu0 0.0
      %2351 = vmatprep.subr.mxu0 0.0
      %2352 = vmatpush1.msra.mxu0 0.0
      %2353 = vmatprep.subr.mxu0 0.0
      %2354 = vmatpush1.msra.mxu0 0.0
      %2355 = vmatprep.subr.mxu0 0.0
      %2356 = vmatpush1.msra.mxu0 0.0
      %2357 = vmatprep.subr.mxu0 0.0
      %2358 = vmatpush1.msra.mxu0 0.0
      %2359 = vmatprep.subr.mxu0 0.0
      %2360 = vmatpush1.msra.mxu0 0.0
      %2361 = vmatprep.subr.mxu0 0.0
      %2362 = vmatpush1.msra.mxu0 0.0
      %2363 = vmatprep.subr.mxu0 0.0
      %2364 = vmatpush1.msra.mxu0 0.0
      %2365 = vmatprep.subr.mxu0 0.0
      %2366 = vmatpush1.msra.mxu0 0.0
      %2367 = vmatprep.subr.mxu0 0.0
      %2368 = vmatpush1.msra.mxu0 0.0
      %2369 = vmatprep.subr.mxu0 0.0
      %2370 = vmatpush1.msra.mxu0 0.0
      %2371 = vmatprep.subr.mxu0 0.0
      %2372 = vmatpush1.msra.mxu0 0.0
      %2373 = vmatprep.subr.mxu0 0.0
      %2374 = vmatpush1.msra.mxu0 0.0
      %2375 = vmatprep.subr.mxu0 0.0
      %2376 = vmatpush1.msra.mxu0 0.0
      %2377 = vmatprep.subr.mxu0 0.0
      %2378 = vmatpush1.msra.mxu0 0.0
      %2379 = vmatprep.subr.mxu0 0.0
      %2380 = vmatpush1.msra.mxu0 0.0
      %2381 = vmatprep.subr.mxu0 0.0
      %2382 = vmatpush1.msra.mxu0 0.0
      %2383 = vmatprep.subr.mxu0 0.0
      %2384 = vmatpush1.msra.mxu0 0.0
      %2385 = vmatprep.subr.mxu0 0.0
      %2386 = vmatpush1.msra.mxu0 0.0
      %2387 = vmatprep.subr.mxu0 0.0
      %2388 = vmatpush1.msra.mxu0 0.0
      %2389 = vmatprep.subr.mxu0 0.0
      %2390 = vmatpush1.msra.mxu0 0.0
      %2391 = vmatprep.subr.mxu0 0.0
      %2392 = vmatpush1.msra.mxu0 0.0
      %2393 = vmatprep.subr.mxu0 0.0
      %2394 = vmatpush1.msra.mxu0 0.0
      %2395 = vmatprep.mubr.f32.mxu0 0.0
      %2396 = vmatmul.mubr.f32.gmra.mrb[0].mxu0 %v2329
      %v2397 = vpop.f32.mrb[0].mxu0
      %v2398 = vadd.f32 %v2325, %v2397
      %v2399 = vpop.f32.mrb[0].mxu0
      %2400 = vdwg.mxu0
      %2401 = vmatprep.subr.mxu0 0.0
      %2402 = vmatpush1.msra.mxu0 %v2114
      %2403 = vmatprep.subr.mxu0 0.0
      %2404 = vmatpush1.msra.mxu0 0.0
      %2405 = vmatprep.subr.mxu0 0.0
      %2406 = vmatpush1.msra.mxu0 0.0
      %2407 = vmatprep.subr.mxu0 0.0
      %2408 = vmatpush1.msra.mxu0 0.0
      %2409 = vmatprep.subr.mxu0 0.0
      %2410 = vmatpush1.msra.mxu0 0.0
      %2411 = vmatprep.subr.mxu0 0.0
      %2412 = vmatpush1.msra.mxu0 0.0
      %2413 = vmatprep.subr.mxu0 0.0
      %2414 = vmatpush1.msra.mxu0 0.0
      %2415 = vmatprep.subr.mxu0 0.0
      %2416 = vmatpush1.msra.mxu0 0.0
      %2417 = vmatprep.subr.mxu0 0.0
      %2418 = vmatpush1.msra.mxu0 0.0
      %2419 = vmatprep.subr.mxu0 0.0
      %2420 = vmatpush1.msra.mxu0 0.0
      %2421 = vmatprep.subr.mxu0 0.0
      %2422 = vmatpush1.msra.mxu0 0.0
      %2423 = vmatprep.subr.mxu0 0.0
      %2424 = vmatpush1.msra.mxu0 0.0
      %2425 = vmatprep.subr.mxu0 0.0
      %2426 = vmatpush1.msra.mxu0 0.0
      %2427 = vmatprep.subr.mxu0 0.0
      %2428 = vmatpush1.msra.mxu0 0.0
      %2429 = vmatprep.subr.mxu0 0.0
      %2430 = vmatpush1.msra.mxu0 0.0
      %2431 = vmatprep.subr.mxu0 0.0
      %2432 = vmatpush1.msra.mxu0 0.0
      %2433 = vmatprep.subr.mxu0 0.0
      %2434 = vmatpush1.msra.mxu0 0.0
      %2435 = vmatprep.subr.mxu0 0.0
      %2436 = vmatpush1.msra.mxu0 0.0
      %2437 = vmatprep.subr.mxu0 0.0
      %2438 = vmatpush1.msra.mxu0 0.0
      %2439 = vmatprep.subr.mxu0 0.0
      %2440 = vmatpush1.msra.mxu0 0.0
      %2441 = vmatprep.subr.mxu0 0.0
      %2442 = vmatpush1.msra.mxu0 0.0
      %2443 = vmatprep.subr.mxu0 0.0
      %2444 = vmatpush1.msra.mxu0 0.0
      %2445 = vmatprep.subr.mxu0 0.0
      %2446 = vmatpush1.msra.mxu0 0.0
      %2447 = vmatprep.subr.mxu0 0.0
      %2448 = vmatpush1.msra.mxu0 0.0
      %2449 = vmatprep.subr.mxu0 0.0
      %2450 = vmatpush1.msra.mxu0 0.0
      %2451 = vmatprep.subr.mxu0 0.0
      %2452 = vmatpush1.msra.mxu0 0.0
      %2453 = vmatprep.subr.mxu0 0.0
      %2454 = vmatpush1.msra.mxu0 0.0
      %2455 = vmatprep.subr.mxu0 0.0
      %2456 = vmatpush1.msra.mxu0 0.0
      %2457 = vmatprep.subr.mxu0 0.0
      %2458 = vmatpush1.msra.mxu0 0.0
      %2459 = vmatprep.subr.mxu0 0.0
      %2460 = vmatpush1.msra.mxu0 0.0
      %2461 = vmatprep.subr.mxu0 0.0
      %2462 = vmatpush1.msra.mxu0 0.0
      %2463 = vmatprep.subr.mxu0 0.0
      %2464 = vmatpush1.msra.mxu0 0.0
      %2465 = vmatprep.mubr.f32.mxu0 0.0
      %2466 = vmatmul.mubr.f32.gmra.mrb[0].mxu0 %v1727
      %v2467 = vpop.f32.mrb[0].mxu0
      %v2468 = vadd.f32 0.0, %v2467
      %v2469 = vpop.f32.mrb[0].mxu0
      %2470 = vdwg.mxu0
      %v2472 = vsel %vm580, %v2468, 0
      %2474 = vmatprep.subr.mxu0 0.0
      %2475 = vmatpush1.msra.mxu0 %v1414
      %2476 = vmatprep.subr.mxu0 0.0
      %2477 = vmatpush1.msra.mxu0 %v1415
      %2478 = vmatprep.subr.mxu0 0.0
      %2479 = vmatpush1.msra.mxu0 0.0
      %2480 = vmatprep.subr.mxu0 0.0
      %2481 = vmatpush1.msra.mxu0 0.0
      %2482 = vmatprep.subr.mxu0 0.0
      %2483 = vmatpush1.msra.mxu0 0.0
      %2484 = vmatprep.subr.mxu0 0.0
      %2485 = vmatpush1.msra.mxu0 0.0
      %2486 = vmatprep.subr.mxu0 0.0
      %2487 = vmatpush1.msra.mxu0 0.0
      %2488 = vmatprep.subr.mxu0 0.0
      %2489 = vmatpush1.msra.mxu0 0.0
      %2490 = vmatprep.subr.mxu0 0.0
      %2491 = vmatpush1.msra.mxu0 0.0
      %2492 = vmatprep.subr.mxu0 0.0
      %2493 = vmatpush1.msra.mxu0 0.0
      %2494 = vmatprep.subr.mxu0 0.0
      %2495 = vmatpush1.msra.mxu0 0.0
      %2496 = vmatprep.subr.mxu0 0.0
      %2497 = vmatpush1.msra.mxu0 0.0
      %2498 = vmatprep.subr.mxu0 0.0
      %2499 = vmatpush1.msra.mxu0 0.0
      %2500 = vmatprep.subr.mxu0 0.0
      %2501 = vmatpush1.msra.mxu0 0.0
      %2502 = vmatprep.subr.mxu0 0.0
      %2503 = vmatpush1.msra.mxu0 0.0
      %2504 = vmatprep.subr.mxu0 0.0
      %2505 = vmatpush1.msra.mxu0 0.0
      %2506 = vmatprep.subr.mxu0 0.0
      %2507 = vmatpush1.msra.mxu0 0.0
      %2508 = vmatprep.subr.mxu0 0.0
      %2509 = vmatpush1.msra.mxu0 0.0
      %2510 = vmatprep.subr.mxu0 0.0
      %2511 = vmatpush1.msra.mxu0 0.0
      %2512 = vmatprep.subr.mxu0 0.0
      %2513 = vmatpush1.msra.mxu0 0.0
      %2514 = vmatprep.subr.mxu0 0.0
      %2515 = vmatpush1.msra.mxu0 0.0
      %2516 = vmatprep.subr.mxu0 0.0
      %2517 = vmatpush1.msra.mxu0 0.0
      %2518 = vmatprep.subr.mxu0 0.0
      %2519 = vmatpush1.msra.mxu0 0.0
      %2520 = vmatprep.subr.mxu0 0.0
      %2521 = vmatpush1.msra.mxu0 0.0
      %2522 = vmatprep.subr.mxu0 0.0
      %2523 = vmatpush1.msra.mxu0 0.0
      %2524 = vmatprep.subr.mxu0 0.0
      %2525 = vmatpush1.msra.mxu0 0.0
      %2526 = vmatprep.subr.mxu0 0.0
      %2527 = vmatpush1.msra.mxu0 0.0
      %2528 = vmatprep.subr.mxu0 0.0
      %2529 = vmatpush1.msra.mxu0 0.0
      %2530 = vmatprep.subr.mxu0 0.0
      %2531 = vmatpush1.msra.mxu0 0.0
      %2532 = vmatprep.subr.mxu0 0.0
      %2533 = vmatpush1.msra.mxu0 0.0
      %2534 = vmatprep.subr.mxu0 0.0
      %2535 = vmatpush1.msra.mxu0 0.0
      %2536 = vmatprep.subr.mxu0 0.0
      %2537 = vmatpush1.msra.mxu0 0.0
      %2538 = vmatprep.mubr.f32.mxu0 0.0
      %2539 = vmatmul.mubr.f32.gmra.mrb[0].mxu0 %v2472
      %v2540 = vpop.f32.mrb[0].mxu0
      %v2541 = vadd.f32 0.0, %v2540
      %v2542 = vpop.f32.mrb[0].mxu0
      %2543 = vdwg.mxu0
      %v2544 = vadd.f32 %v2398, %v2541
      %2545 = vmatprep.subr.mxu0 0.0
      %2546 = vmatpush1.msra.mxu0 %v2114
      %2547 = vmatprep.subr.mxu0 0.0
      %2548 = vmatpush1.msra.mxu0 0.0
      %2549 = vmatprep.subr.mxu0 0.0
      %2550 = vmatpush1.msra.mxu0 0.0
      %2551 = vmatprep.subr.mxu0 0.0
      %2552 = vmatpush1.msra.mxu0 0.0
      %2553 = vmatprep.subr.mxu0 0.0
      %2554 = vmatpush1.msra.mxu0 0.0
      %2555 = vmatprep.subr.mxu0 0.0
      %2556 = vmatpush1.msra.mxu0 0.0
      %2557 = vmatprep.subr.mxu0 0.0
      %2558 = vmatpush1.msra.mxu0 0.0
      %2559 = vmatprep.subr.mxu0 0.0
      %2560 = vmatpush1.msra.mxu0 0.0
      %2561 = vmatprep.subr.mxu0 0.0
      %2562 = vmatpush1.msra.mxu0 0.0
      %2563 = vmatprep.subr.mxu0 0.0
      %2564 = vmatpush1.msra.mxu0 0.0
      %2565 = vmatprep.subr.mxu0 0.0
      %2566 = vmatpush1.msra.mxu0 0.0
      %2567 = vmatprep.subr.mxu0 0.0
      %2568 = vmatpush1.msra.mxu0 0.0
      %2569 = vmatprep.subr.mxu0 0.0
      %2570 = vmatpush1.msra.mxu0 0.0
      %2571 = vmatprep.subr.mxu0 0.0
      %2572 = vmatpush1.msra.mxu0 0.0
      %2573 = vmatprep.subr.mxu0 0.0
      %2574 = vmatpush1.msra.mxu0 0.0
      %2575 = vmatprep.subr.mxu0 0.0
      %2576 = vmatpush1.msra.mxu0 0.0
      %2577 = vmatprep.subr.mxu0 0.0
      %2578 = vmatpush1.msra.mxu0 0.0
      %2579 = vmatprep.subr.mxu0 0.0
      %2580 = vmatpush1.msra.mxu0 0.0
      %2581 = vmatprep.subr.mxu0 0.0
      %2582 = vmatpush1.msra.mxu0 0.0
      %2583 = vmatprep.subr.mxu0 0.0
      %2584 = vmatpush1.msra.mxu0 0.0
      %2585 = vmatprep.subr.mxu0 0.0
      %2586 = vmatpush1.msra.mxu0 0.0
      %2587 = vmatprep.subr.mxu0 0.0
      %2588 = vmatpush1.msra.mxu0 0.0
      %2589 = vmatprep.subr.mxu0 0.0
      %2590 = vmatpush1.msra.mxu0 0.0
      %2591 = vmatprep.subr.mxu0 0.0
      %2592 = vmatpush1.msra.mxu0 0.0
      %2593 = vmatprep.subr.mxu0 0.0
      %2594 = vmatpush1.msra.mxu0 0.0
      %2595 = vmatprep.subr.mxu0 0.0
      %2596 = vmatpush1.msra.mxu0 0.0
      %2597 = vmatprep.subr.mxu0 0.0
      %2598 = vmatpush1.msra.mxu0 0.0
      %2599 = vmatprep.subr.mxu0 0.0
      %2600 = vmatpush1.msra.mxu0 0.0
      %2601 = vmatprep.subr.mxu0 0.0
      %2602 = vmatpush1.msra.mxu0 0.0
      %2603 = vmatprep.subr.mxu0 0.0
      %2604 = vmatpush1.msra.mxu0 0.0
      %2605 = vmatprep.subr.mxu0 0.0
      %2606 = vmatpush1.msra.mxu0 0.0
      %2607 = vmatprep.subr.mxu0 0.0
      %2608 = vmatpush1.msra.mxu0 0.0
      %2609 = vmatprep.mubr.f32.mxu0 0.0
      %2610 = vmatmul.mubr.f32.gmra.mrb[0].mxu0 %v1877
      %v2611 = vpop.f32.mrb[0].mxu0
      %v2612 = vadd.f32 0.0, %v2611
      %v2613 = vpop.f32.mrb[0].mxu0
      %2614 = vdwg.mxu0
      %v2616 = vsel %vm580, %v2612, 0
      %2618 = vmatprep.subr.mxu0 0.0
      %2619 = vmatpush1.msra.mxu0 %v1416
      %2620 = vmatprep.subr.mxu0 0.0
      %2621 = vmatpush1.msra.mxu0 %v1417
      %2622 = vmatprep.subr.mxu0 0.0
      %2623 = vmatpush1.msra.mxu0 0.0
      %2624 = vmatprep.subr.mxu0 0.0
      %2625 = vmatpush1.msra.mxu0 0.0
      %2626 = vmatprep.subr.mxu0 0.0
      %2627 = vmatpush1.msra.mxu0 0.0
      %2628 = vmatprep.subr.mxu0 0.0
      %2629 = vmatpush1.msra.mxu0 0.0
      %2630 = vmatprep.subr.mxu0 0.0
      %2631 = vmatpush1.msra.mxu0 0.0
      %2632 = vmatprep.subr.mxu0 0.0
      %2633 = vmatpush1.msra.mxu0 0.0
      %2634 = vmatprep.subr.mxu0 0.0
      %2635 = vmatpush1.msra.mxu0 0.0
      %2636 = vmatprep.subr.mxu0 0.0
      %2637 = vmatpush1.msra.mxu0 0.0
      %2638 = vmatprep.subr.mxu0 0.0
      %2639 = vmatpush1.msra.mxu0 0.0
      %2640 = vmatprep.subr.mxu0 0.0
      %2641 = vmatpush1.msra.mxu0 0.0
      %2642 = vmatprep.subr.mxu0 0.0
      %2643 = vmatpush1.msra.mxu0 0.0
      %2644 = vmatprep.subr.mxu0 0.0
      %2645 = vmatpush1.msra.mxu0 0.0
      %2646 = vmatprep.subr.mxu0 0.0
      %2647 = vmatpush1.msra.mxu0 0.0
      %2648 = vmatprep.subr.mxu0 0.0
      %2649 = vmatpush1.msra.mxu0 0.0
      %2650 = vmatprep.subr.mxu0 0.0
      %2651 = vmatpush1.msra.mxu0 0.0
      %2652 = vmatprep.subr.mxu0 0.0
      %2653 = vmatpush1.msra.mxu0 0.0
      %2654 = vmatprep.subr.mxu0 0.0
      %2655 = vmatpush1.msra.mxu0 0.0
      %2656 = vmatprep.subr.mxu0 0.0
      %2657 = vmatpush1.msra.mxu0 0.0
      %2658 = vmatprep.subr.mxu0 0.0
      %2659 = vmatpush1.msra.mxu0 0.0
      %2660 = vmatprep.subr.mxu0 0.0
      %2661 = vmatpush1.msra.mxu0 0.0
      %2662 = vmatprep.subr.mxu0 0.0
      %2663 = vmatpush1.msra.mxu0 0.0
      %2664 = vmatprep.subr.mxu0 0.0
      %2665 = vmatpush1.msra.mxu0 0.0
      %2666 = vmatprep.subr.mxu0 0.0
      %2667 = vmatpush1.msra.mxu0 0.0
      %2668 = vmatprep.subr.mxu0 0.0
      %2669 = vmatpush1.msra.mxu0 0.0
      %2670 = vmatprep.subr.mxu0 0.0
      %2671 = vmatpush1.msra.mxu0 0.0
      %2672 = vmatprep.subr.mxu0 0.0
      %2673 = vmatpush1.msra.mxu0 0.0
      %2674 = vmatprep.subr.mxu0 0.0
      %2675 = vmatpush1.msra.mxu0 0.0
      %2676 = vmatprep.subr.mxu0 0.0
      %2677 = vmatpush1.msra.mxu0 0.0
      %2678 = vmatprep.subr.mxu0 0.0
      %2679 = vmatpush1.msra.mxu0 0.0
      %2680 = vmatprep.subr.mxu0 0.0
      %2681 = vmatpush1.msra.mxu0 0.0
      %2682 = vmatprep.mubr.f32.mxu0 0.0
      %2683 = vmatmul.mubr.f32.gmra.mrb[0].mxu0 %v2616
      %v2684 = vpop.f32.mrb[0].mxu0
      %v2685 = vadd.f32 0.0, %v2684
      %v2686 = vpop.f32.mrb[0].mxu0
      %2687 = vdwg.mxu0
      %v2688 = vadd.f32 %v2544, %v2685
      %v2689 = vmul.f32 %v2688, %v2688
      %2691 = vrot.lane.b32.xlu0 %v2689, 64
      %v2692 = vpop.permute.xlu0 %2691
      %v2694 = vadd.f32 %v2689, %v2692
      %v2695 = vadd.f32 %v2694, 1e-09
      %v2696 = vrsqrt.pop %v2695
      %v2697 = vmul.f32 %v2695, %v2696
      %vm2698 = vcmp.eq.f32.partialorder %v2695, inf
      %v2699 = vsel %vm2698, %v2695, %v2697
      %vm2700 = vcmp.eq.f32.partialorder %v2695, 0.0
      %v2701 = vand.u32 %v2695, 2147483648
      %v2702 = vsel %vm2700, %v2701, %v2699
      %v2704 = vsel %vm2037, %v2702, 0
      %2706 = vmatprep.subr.mxu0 0.0
      %2707 = vmatpush1.msra.mxu0 %v1418
      %2708 = vmatprep.subr.mxu0 0.0
      %2709 = vmatpush1.msra.mxu0 %v1419
      %2710 = vmatprep.subr.mxu0 0.0
      %2711 = vmatpush1.msra.mxu0 %v1420
      %2712 = vmatprep.subr.mxu0 0.0
      %2713 = vmatpush1.msra.mxu0 %v1421
      %2714 = vmatprep.subr.mxu0 0.0
      %2715 = vmatpush1.msra.mxu0 %v1422
      %2716 = vmatprep.subr.mxu0 0.0
      %2717 = vmatpush1.msra.mxu0 %v1423
      %2718 = vmatprep.subr.mxu0 0.0
      %2719 = vmatpush1.msra.mxu0 %v1424
      %2720 = vmatprep.subr.mxu0 0.0
      %2721 = vmatpush1.msra.mxu0 %v1425
      %2722 = vmatprep.subr.mxu0 0.0
      %2723 = vmatpush1.msra.mxu0 0.0
      %2724 = vmatprep.subr.mxu0 0.0
      %2725 = vmatpush1.msra.mxu0 0.0
      %2726 = vmatprep.subr.mxu0 0.0
      %2727 = vmatpush1.msra.mxu0 0.0
      %2728 = vmatprep.subr.mxu0 0.0
      %2729 = vmatpush1.msra.mxu0 0.0
      %2730 = vmatprep.subr.mxu0 0.0
      %2731 = vmatpush1.msra.mxu0 0.0
      %2732 = vmatprep.subr.mxu0 0.0
      %2733 = vmatpush1.msra.mxu0 0.0
      %2734 = vmatprep.subr.mxu0 0.0
      %2735 = vmatpush1.msra.mxu0 0.0
      %2736 = vmatprep.subr.mxu0 0.0
      %2737 = vmatpush1.msra.mxu0 0.0
      %2738 = vmatprep.subr.mxu0 0.0
      %2739 = vmatpush1.msra.mxu0 0.0
      %2740 = vmatprep.subr.mxu0 0.0
      %2741 = vmatpush1.msra.mxu0 0.0
      %2742 = vmatprep.subr.mxu0 0.0
      %2743 = vmatpush1.msra.mxu0 0.0
      %2744 = vmatprep.subr.mxu0 0.0
      %2745 = vmatpush1.msra.mxu0 0.0
      %2746 = vmatprep.subr.mxu0 0.0
      %2747 = vmatpush1.msra.mxu0 0.0
      %2748 = vmatprep.subr.mxu0 0.0
      %2749 = vmatpush1.msra.mxu0 0.0
      %2750 = vmatprep.subr.mxu0 0.0
      %2751 = vmatpush1.msra.mxu0 0.0
      %2752 = vmatprep.subr.mxu0 0.0
      %2753 = vmatpush1.msra.mxu0 0.0
      %2754 = vmatprep.subr.mxu0 0.0
      %2755 = vmatpush1.msra.mxu0 0.0
      %2756 = vmatprep.subr.mxu0 0.0
      %2757 = vmatpush1.msra.mxu0 0.0
      %2758 = vmatprep.subr.mxu0 0.0
      %2759 = vmatpush1.msra.mxu0 0.0
      %2760 = vmatprep.subr.mxu0 0.0
      %2761 = vmatpush1.msra.mxu0 0.0
      %2762 = vmatprep.subr.mxu0 0.0
      %2763 = vmatpush1.msra.mxu0 0.0
      %2764 = vmatprep.subr.mxu0 0.0
      %2765 = vmatpush1.msra.mxu0 0.0
      %2766 = vmatprep.subr.mxu0 0.0
      %2767 = vmatpush1.msra.mxu0 0.0
      %2768 = vmatprep.subr.mxu0 0.0
      %2769 = vmatpush1.msra.mxu0 0.0
      %2770 = vmatprep.mubr.f32.mxu0 0.0
      %2771 = vmatmul.mubr.f32.gmra.mrb[0].mxu0 %v2704
      %v2772 = vpop.f32.mrb[0].mxu0
      %v2773 = vadd.f32 0.0, %v2772
      %v2774 = vpop.f32.mrb[0].mxu0
      %2775 = vdwg.mxu0
      %v2776 = vmax.f32 %v2773, 1e-05
      %v2777 = vlog2.pop %v2776
      %v2778 = vmul.f32 %v2777, 0.6931472
      %v2779 = vsub.f32 %v2113, %v2778
      %v2780 = vand.u32 2147483647, %v2779
      %vm2781 = vcmask 61440
      %v2782 = vsel %vm2781, %v2780, 0.0
      %2783 = vadd.xlane.f32.xlu0 %v2782
      %v2784 = vpop.xlane.xlu0 %2783
      %v2785 = vrot.slane %v2784, 4
      %v2786 = vadd.f32 %v2784, %v2785
      %v2787 = vrot.slane %v2786, 2
      %v2788 = vadd.f32 %v2786, %v2787
      %v2789 = vrot.slane %v2788, 1
      %v2790 = vadd.f32 %v2788, %v2789
      %s2791 = vtos %v2790
      %vm2792 = vcmp.eq.s32.totalorder %v946, 0
      %v2793 = vstv %s1098
      %v2794 = vsel %vm2792, %v2793, 0.0
      %vm2795 = vcmp.eq.s32.totalorder %v946, 1
      %v2796 = vstv %s1123
      %v2797 = vsel %vm2795, %v2796, 0.0
      %v2798 = vadd.f32 %v2794, %v2797
      %vm2799 = vcmp.eq.s32.totalorder %v946, 2
      %v2800 = vstv %s1135
      %v2801 = vsel %vm2799, %v2800, 0.0
      %v2802 = vadd.f32 %v2798, %v2801
      %vm2803 = vcmp.eq.s32.totalorder %v946, 3
      %v2804 = vstv %s1145
      %v2805 = vsel %vm2803, %v2804, 0.0
      %v2806 = vadd.f32 %v2802, %v2805
      %vm2807 = vcmp.eq.s32.totalorder %v946, 4
      %v2808 = vstv %s1161
      %v2809 = vsel %vm2807, %v2808, 0.0
      %v2810 = vadd.f32 %v2806, %v2809
      %vm2811 = vcmp.eq.s32.totalorder %v946, 5
      %v2812 = vstv %s1170
      %v2813 = vsel %vm2811, %v2812, 0.0
      %v2814 = vadd.f32 %v2810, %v2813
      %vm2815 = vcmp.eq.s32.totalorder %v946, 6
      %v2816 = vstv %s2791
      %v2817 = vsel %vm2815, %v2816, 0.0
      %v2818 = vadd.f32 %v2814, %v2817
      %vm2819 = vcmask 57344
      %2820 = vst.msk [vmem:[%s562] sm:$0x1] %vm2819, %v2818
      %p2821 = scmp.lt.s32.totalorder %s26, 1
      %s2822 = scalar_select %p2821, %s26, 1
      %s2823 = smul.addr %s2822, 4
      %s2824 = scalar_lea.vmem %s13, %s2823
      %p2825 = scmp.lt.s32.totalorder %s26, 1
      %s2826 = scalar_select %p2825, %s26, 1
      %s2827 = scalar_lea.vmem %s14, %s2826
      // Predicated region
      $region73: #{forward.4} parent=71 // pred_check
        %p2828 = pneg %p347
      $region74: #{forward.4} parent=71 // pred_check_branch
        %2830 = sbr.rel (%p2828) target = $region76
      $region75: #{forward.4} parent=71 // pred_region
        _
      $region76: #{forward.4} parent=71 // pred_fallthru
        _
      // Predicated region
      $region77: #{forward.4} parent=71 // pred_check
        %p2831 = pneg %p373
      $region78: #{forward.4} parent=71 // pred_check_branch
        %2833 = sbr.rel (%p2831) target = $region80
      $region79: #{forward.4} parent=71 // pred_region
        _
      $region80: #{forward.4} parent=71 // pred_fallthru
        _
    $region72: #{forward.4} parent=5 // pred_fallthru
      _
    %p2834 = scmp.le.s32.totalorder 2, %s21
    // Predicated region
    $region81: #{forward.4} parent=5 // pred_check
      %p2835 = pneg %p2834
    $region82: #{forward.4} parent=5 // pred_check_branch
      %2837 = sbr.rel (%p2835) target = $region84
    $region83: #{forward.4} parent=5 // pred_region
      %s2838 = ssub.s32 %s21, 2
      // Predicated region
      $region85: #{forward.4} parent=83 // pred_check
        %p2839 = pneg %p353
      $region86: #{forward.4} parent=83 // pred_check_branch
        %2841 = sbr.rel (%p2839) target = $region88
      $region87: #{forward.4} parent=83 // pred_region
        %p2842 = scmp.lt.s32.totalorder %s27, 1
        %s2843 = scalar_select %p2842, %s27, 1
        %s2844 = smul.addr %s2843, 4
        %s2845 = scalar_lea.vmem %s13, %s2844
      $region88: #{forward.4} parent=83 // pred_fallthru
        _
      // Predicated region
      $region89: #{forward.4} parent=83 // pred_check
        %p2846 = pneg %p379
      $region90: #{forward.4} parent=83 // pred_check_branch
        %2848 = sbr.rel (%p2846) target = $region92
      $region91: #{forward.4} parent=83 // pred_region
        %p2849 = scmp.lt.s32.totalorder %s27, 1
        %s2850 = scalar_select %p2849, %s27, 1
        %s2851 = scalar_lea.vmem %s14, %s2850
      $region92: #{forward.4} parent=83 // pred_fallthru
        _
    $region84: #{forward.4} parent=5 // pred_fallthru
      _
  $region6: #{forward.4} parent=0 // loop_footer
    %s25 = sadd.s32 1, %s21
  $region7: #{forward.4} parent=0 // loop_footer_branch
    %20 = sbr.rel target = $region3
  $region8: #{forward.4} parent=0 // loop_exit
    _

// kernel: forward.5
$region0: #{forward.5}
  #allocation0 [shape = 'u32[]', space=smem, size = 0x4, offset = 0x4, fixed_abs, tag = 'smem constant byte address 0x4 - core index']
  #allocation1 [shape = 'u32[144,128]{1,0:T(1,128)}', space=vmem, size = 0x12000, scoped, tag = 'internal scratch']
  #allocation2 [shape = 'f32[1,1]{1,0:T(1,128)S(1)}', space=vmem, size = 0x200, scoped, tag = 'scoped memory for forward.5']
  %s0 = inlined_call_operand.vmem [shape: f32[2,64,1], index: 0, kind: input, shape index: {}]
  %s1 = inlined_call_operand.vmem [shape: f32[2,64,1], index: 1, kind: input, shape index: {}]
  %s2 = inlined_call_operand.vmem [shape: f32[5,32,64], index: 2, kind: input, shape index: {}]
  %s3 = inlined_call_operand.vmem [shape: f32[5,16,32], index: 3, kind: input, shape index: {}]
  %s4 = inlined_call_operand.vmem [shape: f32[3,16,16], index: 4, kind: input, shape index: {}]
  %s5 = inlined_call_operand.vmem [shape: f32[5,8], index: 5, kind: input, shape index: {}]
  %s6 = inlined_call_operand.vmem [shape: f32[1,8], index: 6, kind: input, shape index: {}]
  %s7 = inlined_call_operand.vmem [shape: f32[40,16], index: 7, kind: input, shape index: {}]
  %s8 = inlined_call_operand.vmem [shape: f32[1,16], index: 8, kind: input, shape index: {}]
  %s9 = inlined_call_operand.vmem [shape: f32[48,1], index: 9, kind: input, shape index: {}]
  %s10 = inlined_call_operand.<no memory space> [shape: f32[1,1], index: 10, kind: input, shape index: {}]
  %s11 = inlined_call_operand.vmem [shape: f32[2,1,4], index: 11, kind: output, shape index: {}]
  %s12 = sld [smem:[#allocation0]]
  $region77: #{forward.5} parent=0
    _
  %s14 = ssub.s32 1, %s12
  %s15 = scalar_select 0, %s14, %s12
  %v16 = vstv %s10
  %17 = vst [vmem:[#allocation2] sm:$0x1] %v16
  loop: start=0, step=1, limit=4
  $region2: #{forward.5} parent=0 // loop_pre_header
    _
  $region3: #{forward.5} parent=0 // loop_header
    %s19 = sphi 0, %s23
    %p20 = scmp.ge.s32.totalorder %s19, 4
    %s29 = sphi 0, %s31
    %s32 = sphi 0, %s29
    %s33 = sphi 0, %s32
    %s49 = sphi 0, %s33
    %s55 = sphi 0, %s57
    %s58 = sphi 0, %s55
    %s59 = sphi 0, %s58
    %s75 = sphi 0, %s59
    %s79 = sphi 0, %s79
    %s81 = sphi 0, %s79
    %s82 = sphi 0, %s81
    %s96 = sphi 0, %s82
    %s100 = sphi 0, %s100
    %s102 = sphi 0, %s100
    %s103 = sphi 0, %s102
    %s117 = sphi 0, %s103
    %s121 = sphi 0, %s121
    %s123 = sphi 0, %s121
    %s124 = sphi 0, %s123
    %s138 = sphi 0, %s124
    %s142 = sphi 0, %s142
    %s144 = sphi 0, %s142
    %s145 = sphi 0, %s144
    %s159 = sphi 0, %s145
    %s163 = sphi 0, %s163
    %s165 = sphi 0, %s163
    %s166 = sphi 0, %s165
    %s180 = sphi 0, %s166
    %s184 = sphi 0, %s184
    %s186 = sphi 0, %s184
    %s187 = sphi 0, %s186
    %s201 = sphi 0, %s187
    %s205 = sphi 0, %s205
    %s207 = sphi 0, %s205
    %s208 = sphi 0, %s207
    %s222 = sphi 0, %s208
    %s226 = sphi 0, %s226
    %s228 = sphi 0, %s226
    %s229 = sphi 0, %s228
    %s243 = sphi 0, %s229
    %s247 = sphi 0, %s247
    %s249 = sphi 0, %s247
    %s250 = sphi 0, %s249
    %s264 = sphi 0, %s250
    %s270 = sphi 0, %s272
    %s273 = sphi 0, %s270
    %s274 = sphi 0, %s273
    %s290 = sphi 0, %s274
  $region4: #{forward.5} parent=0 // loop_header_branch
    %22 = sbr.rel (%p20) target = $region8
  $region5: #{forward.5} parent=0 // loop_body
    %s24 = ssub.s32 %s19, 1
    %s25 = ssub.s32 %s19, 2
    %s26 = sadd.s32 %s19, 1
    %s27 = ssub.s32 %s19, %s26
    %p28 = scmp.eq.s32.totalorder %s27, 0
    %s30 = sadd.s32 %s29, 1
    %s31 = scalar_select %p28, %s29, %s30
    %p34 = pneg %p28
    %p35 = scmp.eq.s32.totalorder %s19, 1
    %p36 = por %p34, %p35
    %p37 = scmp.ne.s32.totalorder %s29, %s32
    %p38 = scmp.eq.s32.totalorder %s19, 0
    %p39 = por %p37, %p38
    %p40 = scmp.ne.s32.totalorder %s29, %s32
    %p41 = scmp.eq.s32.totalorder %s24, 1
    %p42 = por %p40, %p41
    %p43 = scmp.ne.s32.totalorder %s32, %s33
    %p44 = scmp.eq.s32.totalorder %s24, 0
    %p45 = por %p43, %p44
    %p46 = scmp.ne.s32.totalorder %s32, %s33
    %p47 = scmp.eq.s32.totalorder %s25, 1
    %p48 = por %p46, %p47
    %p50 = scmp.ne.s32.totalorder %s33, %s49
    %p51 = scmp.eq.s32.totalorder %s25, 0
    %p52 = por %p50, %p51
    %s53 = ssub.s32 %s19, %s26
    %p54 = scmp.eq.s32.totalorder %s53, 0
    %s56 = sadd.s32 %s55, 1
    %s57 = scalar_select %p54, %s55, %s56
    %p60 = pneg %p54
    %p61 = scmp.eq.s32.totalorder %s19, 1
    %p62 = por %p60, %p61
    %p63 = scmp.ne.s32.totalorder %s55, %s58
    %p64 = scmp.eq.s32.totalorder %s19, 0
    %p65 = por %p63, %p64
    %p66 = scmp.ne.s32.totalorder %s55, %s58
    %p67 = scmp.eq.s32.totalorder %s24, 1
    %p68 = por %p66, %p67
    %p69 = scmp.ne.s32.totalorder %s58, %s59
    %p70 = scmp.eq.s32.totalorder %s24, 0
    %p71 = por %p69, %p70
    %p72 = scmp.ne.s32.totalorder %s58, %s59
    %p73 = scmp.eq.s32.totalorder %s25, 1
    %p74 = por %p72, %p73
    %p76 = scmp.ne.s32.totalorder %s59, %s75
    %p77 = scmp.eq.s32.totalorder %s25, 0
    %p78 = por %p76, %p77
    %s80 = sadd.s32 %s79, 1
    %p83 = scmp.eq.s32.totalorder %s19, 1
    %p84 = scmp.ne.s32.totalorder %s79, %s81
    %p85 = scmp.eq.s32.totalorder %s19, 0
    %p86 = por %p84, %p85
    %p87 = scmp.ne.s32.totalorder %s79, %s81
    %p88 = scmp.eq.s32.totalorder %s24, 1
    %p89 = por %p87, %p88
    %p90 = scmp.ne.s32.totalorder %s81, %s82
    %p91 = scmp.eq.s32.totalorder %s24, 0
    %p92 = por %p90, %p91
    %p93 = scmp.ne.s32.totalorder %s81, %s82
    %p94 = scmp.eq.s32.totalorder %s25, 1
    %p95 = por %p93, %p94
    %p97 = scmp.ne.s32.totalorder %s82, %s96
    %p98 = scmp.eq.s32.totalorder %s25, 0
    %p99 = por %p97, %p98
    %s101 = sadd.s32 %s100, 1
    %p104 = scmp.eq.s32.totalorder %s19, 1
    %p105 = scmp.ne.s32.totalorder %s100, %s102
    %p106 = scmp.eq.s32.totalorder %s19, 0
    %p107 = por %p105, %p106
    %p108 = scmp.ne.s32.totalorder %s100, %s102
    %p109 = scmp.eq.s32.totalorder %s24, 1
    %p110 = por %p108, %p109
    %p111 = scmp.ne.s32.totalorder %s102, %s103
    %p112 = scmp.eq.s32.totalorder %s24, 0
    %p113 = por %p111, %p112
    %p114 = scmp.ne.s32.totalorder %s102, %s103
    %p115 = scmp.eq.s32.totalorder %s25, 1
    %p116 = por %p114, %p115
    %p118 = scmp.ne.s32.totalorder %s103, %s117
    %p119 = scmp.eq.s32.totalorder %s25, 0
    %p120 = por %p118, %p119
    %s122 = sadd.s32 %s121, 1
    %p125 = scmp.eq.s32.totalorder %s19, 1
    %p126 = scmp.ne.s32.totalorder %s121, %s123
    %p127 = scmp.eq.s32.totalorder %s19, 0
    %p128 = por %p126, %p127
    %p129 = scmp.ne.s32.totalorder %s121, %s123
    %p130 = scmp.eq.s32.totalorder %s24, 1
    %p131 = por %p129, %p130
    %p132 = scmp.ne.s32.totalorder %s123, %s124
    %p133 = scmp.eq.s32.totalorder %s24, 0
    %p134 = por %p132, %p133
    %p135 = scmp.ne.s32.totalorder %s123, %s124
    %p136 = scmp.eq.s32.totalorder %s25, 1
    %p137 = por %p135, %p136
    %p139 = scmp.ne.s32.totalorder %s124, %s138
    %p140 = scmp.eq.s32.totalorder %s25, 0
    %p141 = por %p139, %p140
    %s143 = sadd.s32 %s142, 1
    %p146 = scmp.eq.s32.totalorder %s19, 1
    %p147 = scmp.ne.s32.totalorder %s142, %s144
    %p148 = scmp.eq.s32.totalorder %s19, 0
    %p149 = por %p147, %p148
    %p150 = scmp.ne.s32.totalorder %s142, %s144
    %p151 = scmp.eq.s32.totalorder %s24, 1
    %p152 = por %p150, %p151
    %p153 = scmp.ne.s32.totalorder %s144, %s145
    %p154 = scmp.eq.s32.totalorder %s24, 0
    %p155 = por %p153, %p154
    %p156 = scmp.ne.s32.totalorder %s144, %s145
    %p157 = scmp.eq.s32.totalorder %s25, 1
    %p158 = por %p156, %p157
    %p160 = scmp.ne.s32.totalorder %s145, %s159
    %p161 = scmp.eq.s32.totalorder %s25, 0
    %p162 = por %p160, %p161
    %s164 = sadd.s32 %s163, 1
    %p167 = scmp.eq.s32.totalorder %s19, 1
    %p168 = scmp.ne.s32.totalorder %s163, %s165
    %p169 = scmp.eq.s32.totalorder %s19, 0
    %p170 = por %p168, %p169
    %p171 = scmp.ne.s32.totalorder %s163, %s165
    %p172 = scmp.eq.s32.totalorder %s24, 1
    %p173 = por %p171, %p172
    %p174 = scmp.ne.s32.totalorder %s165, %s166
    %p175 = scmp.eq.s32.totalorder %s24, 0
    %p176 = por %p174, %p175
    %p177 = scmp.ne.s32.totalorder %s165, %s166
    %p178 = scmp.eq.s32.totalorder %s25, 1
    %p179 = por %p177, %p178
    %p181 = scmp.ne.s32.totalorder %s166, %s180
    %p182 = scmp.eq.s32.totalorder %s25, 0
    %p183 = por %p181, %p182
    %s185 = sadd.s32 %s184, 1
    %p188 = scmp.eq.s32.totalorder %s19, 1
    %p189 = scmp.ne.s32.totalorder %s184, %s186
    %p190 = scmp.eq.s32.totalorder %s19, 0
    %p191 = por %p189, %p190
    %p192 = scmp.ne.s32.totalorder %s184, %s186
    %p193 = scmp.eq.s32.totalorder %s24, 1
    %p194 = por %p192, %p193
    %p195 = scmp.ne.s32.totalorder %s186, %s187
    %p196 = scmp.eq.s32.totalorder %s24, 0
    %p197 = por %p195, %p196
    %p198 = scmp.ne.s32.totalorder %s186, %s187
    %p199 = scmp.eq.s32.totalorder %s25, 1
    %p200 = por %p198, %p199
    %p202 = scmp.ne.s32.totalorder %s187, %s201
    %p203 = scmp.eq.s32.totalorder %s25, 0
    %p204 = por %p202, %p203
    %s206 = sadd.s32 %s205, 1
    %p209 = scmp.eq.s32.totalorder %s19, 1
    %p210 = scmp.ne.s32.totalorder %s205, %s207
    %p211 = scmp.eq.s32.totalorder %s19, 0
    %p212 = por %p210, %p211
    %p213 = scmp.ne.s32.totalorder %s205, %s207
    %p214 = scmp.eq.s32.totalorder %s24, 1
    %p215 = por %p213, %p214
    %p216 = scmp.ne.s32.totalorder %s207, %s208
    %p217 = scmp.eq.s32.totalorder %s24, 0
    %p218 = por %p216, %p217
    %p219 = scmp.ne.s32.totalorder %s207, %s208
    %p220 = scmp.eq.s32.totalorder %s25, 1
    %p221 = por %p219, %p220
    %p223 = scmp.ne.s32.totalorder %s208, %s222
    %p224 = scmp.eq.s32.totalorder %s25, 0
    %p225 = por %p223, %p224
    %s227 = sadd.s32 %s226, 1
    %p230 = scmp.eq.s32.totalorder %s19, 1
    %p231 = scmp.ne.s32.totalorder %s226, %s228
    %p232 = scmp.eq.s32.totalorder %s19, 0
    %p233 = por %p231, %p232
    %p234 = scmp.ne.s32.totalorder %s226, %s228
    %p235 = scmp.eq.s32.totalorder %s24, 1
    %p236 = por %p234, %p235
    %p237 = scmp.ne.s32.totalorder %s228, %s229
    %p238 = scmp.eq.s32.totalorder %s24, 0
    %p239 = por %p237, %p238
    %p240 = scmp.ne.s32.totalorder %s228, %s229
    %p241 = scmp.eq.s32.totalorder %s25, 1
    %p242 = por %p240, %p241
    %p244 = scmp.ne.s32.totalorder %s229, %s243
    %p245 = scmp.eq.s32.totalorder %s25, 0
    %p246 = por %p244, %p245
    %s248 = sadd.s32 %s247, 1
    %p251 = scmp.eq.s32.totalorder %s19, 1
    %p252 = scmp.ne.s32.totalorder %s247, %s249
    %p253 = scmp.eq.s32.totalorder %s19, 0
    %p254 = por %p252, %p253
    %p255 = scmp.ne.s32.totalorder %s247, %s249
    %p256 = scmp.eq.s32.totalorder %s24, 1
    %p257 = por %p255, %p256
    %p258 = scmp.ne.s32.totalorder %s249, %s250
    %p259 = scmp.eq.s32.totalorder %s24, 0
    %p260 = por %p258, %p259
    %p261 = scmp.ne.s32.totalorder %s249, %s250
    %p262 = scmp.eq.s32.totalorder %s25, 1
    %p263 = por %p261, %p262
    %p265 = scmp.ne.s32.totalorder %s250, %s264
    %p266 = scmp.eq.s32.totalorder %s25, 0
    %p267 = por %p265, %p266
    %s268 = ssub.s32 %s19, %s26
    %p269 = scmp.eq.s32.totalorder %s268, 0
    %s271 = sadd.s32 %s270, 1
    %s272 = scalar_select %p269, %s270, %s271
    %p275 = pneg %p269
    %p276 = scmp.eq.s32.totalorder %s19, 1
    %p277 = por %p275, %p276
    %p278 = scmp.ne.s32.totalorder %s270, %s273
    %p279 = scmp.eq.s32.totalorder %s19, 0
    %p280 = por %p278, %p279
    %p281 = scmp.ne.s32.totalorder %s270, %s273
    %p282 = scmp.eq.s32.totalorder %s24, 1
    %p283 = por %p281, %p282
    %p284 = scmp.ne.s32.totalorder %s273, %s274
    %p285 = scmp.eq.s32.totalorder %s24, 0
    %p286 = por %p284, %p285
    %p287 = scmp.ne.s32.totalorder %s273, %s274
    %p288 = scmp.eq.s32.totalorder %s25, 1
    %p289 = por %p287, %p288
    %p291 = scmp.ne.s32.totalorder %s274, %s290
    %p292 = scmp.eq.s32.totalorder %s25, 0
    %p293 = por %p291, %p292
    %p294 = scmp.le.s32.totalorder 1, %s19
    %p295 = scmp.lt.s32.totalorder %s19, 3
    %p296 = pnand %p294, %p295
    %p297 = pneg %p296
    // Predicated region
    $region9: #{forward.5} parent=5 // pred_check
      _
    $region10: #{forward.5} parent=5 // pred_check_branch
      %299 = sbr.rel (%p296) target = $region12
    $region11: #{forward.5} parent=5 // pred_region
      %s300 = ssub.s32 %s19, 1
      // Predicated region
      $region13: #{forward.5} parent=11 // pred_check
        %p301 = pneg %p92
      $region14: #{forward.5} parent=11 // pred_check_branch
        %303 = sbr.rel (%p301) target = $region16
      $region15: #{forward.5} parent=11 // pred_region
        _
      $region16: #{forward.5} parent=11 // pred_fallthru
        _
      // Predicated region
      $region17: #{forward.5} parent=11 // pred_check
        %p304 = pneg %p113
      $region18: #{forward.5} parent=11 // pred_check_branch
        %306 = sbr.rel (%p304) target = $region20
      $region19: #{forward.5} parent=11 // pred_region
        _
      $region20: #{forward.5} parent=11 // pred_fallthru
        _
      // Predicated region
      $region21: #{forward.5} parent=11 // pred_check
        %p307 = pneg %p134
      $region22: #{forward.5} parent=11 // pred_check_branch
        %309 = sbr.rel (%p307) target = $region24
      $region23: #{forward.5} parent=11 // pred_region
        _
      $region24: #{forward.5} parent=11 // pred_fallthru
        _
      // Predicated region
      $region25: #{forward.5} parent=11 // pred_check
        %p310 = pneg %p155
      $region26: #{forward.5} parent=11 // pred_check_branch
        %312 = sbr.rel (%p310) target = $region28
      $region27: #{forward.5} parent=11 // pred_region
        _
      $region28: #{forward.5} parent=11 // pred_fallthru
        _
      // Predicated region
      $region29: #{forward.5} parent=11 // pred_check
        %p313 = pneg %p176
      $region30: #{forward.5} parent=11 // pred_check_branch
        %315 = sbr.rel (%p313) target = $region32
      $region31: #{forward.5} parent=11 // pred_region
        _
      $region32: #{forward.5} parent=11 // pred_fallthru
        _
      // Predicated region
      $region33: #{forward.5} parent=11 // pred_check
        %p316 = pneg %p197
      $region34: #{forward.5} parent=11 // pred_check_branch
        %318 = sbr.rel (%p316) target = $region36
      $region35: #{forward.5} parent=11 // pred_region
        _
      $region36: #{forward.5} parent=11 // pred_fallthru
        _
      // Predicated region
      $region37: #{forward.5} parent=11 // pred_check
        %p319 = pneg %p218
      $region38: #{forward.5} parent=11 // pred_check_branch
        %321 = sbr.rel (%p319) target = $region40
      $region39: #{forward.5} parent=11 // pred_region
        _
      $region40: #{forward.5} parent=11 // pred_fallthru
        _
      // Predicated region
      $region41: #{forward.5} parent=11 // pred_check
        %p322 = pneg %p239
      $region42: #{forward.5} parent=11 // pred_check_branch
        %324 = sbr.rel (%p322) target = $region44
      $region43: #{forward.5} parent=11 // pred_region
        _
      $region44: #{forward.5} parent=11 // pred_fallthru
        _
      // Predicated region
      $region45: #{forward.5} parent=11 // pred_check
        %p325 = pneg %p260
      $region46: #{forward.5} parent=11 // pred_check_branch
        %327 = sbr.rel (%p325) target = $region48
      $region47: #{forward.5} parent=11 // pred_region
        _
      $region48: #{forward.5} parent=11 // pred_fallthru
        _
    $region12: #{forward.5} parent=5 // pred_fallthru
      _
    %p328 = scmp.lt.s32.totalorder %s19, 2
    // Predicated region
    $region49: #{forward.5} parent=5 // pred_check
      %p329 = pneg %p328
    $region50: #{forward.5} parent=5 // pred_check_branch
      %331 = sbr.rel (%p329) target = $region52
    $region51: #{forward.5} parent=5 // pred_region
      // Predicated region
      $region53: #{forward.5} parent=51 // pred_check
        %p332 = pneg %p39
      $region54: #{forward.5} parent=51 // pred_check_branch
        %334 = sbr.rel (%p332) target = $region56
      $region55: #{forward.5} parent=51 // pred_region
        %p335 = scmp.lt.s32.totalorder %s19, 1
        %s336 = scalar_select %p335, %s19, 1
        %s337 = smul.addr %s336, 8
        %s338 = smul.addr %s337, 8
        %s339 = scalar_lea.vmem %s0, %s338
      $region56: #{forward.5} parent=51 // pred_fallthru
        _
      // Predicated region
      $region57: #{forward.5} parent=51 // pred_check
        %p340 = pneg %p65
      $region58: #{forward.5} parent=51 // pred_check_branch
        %342 = sbr.rel (%p340) target = $region60
      $region59: #{forward.5} parent=51 // pred_region
        %p343 = scmp.lt.s32.totalorder %s19, 1
        %s344 = scalar_select %p343, %s19, 1
        %s345 = smul.addr %s344, 8
        %s346 = smul.addr %s345, 8
        %s347 = scalar_lea.vmem %s1, %s346
      $region60: #{forward.5} parent=51 // pred_fallthru
        _
    $region52: #{forward.5} parent=5 // pred_fallthru
      _
    %p348 = scmp.le.s32.totalorder 1, %s19
    %p349 = scmp.lt.s32.totalorder %s19, 3
    %p350 = pnand %p348, %p349
    %p351 = pneg %p350
    // Predicated region
    $region61: #{forward.5} parent=5 // pred_check
      _
    $region62: #{forward.5} parent=5 // pred_check_branch
      %353 = sbr.rel (%p350) target = $region64
    $region63: #{forward.5} parent=5 // pred_region
      %s354 = ssub.s32 %s19, 1
      %p355 = scmp.lt.s32.totalorder %s24, 1
      %s356 = scalar_select %p355, %s24, 1
      %s357 = smul.addr %s356, 8
      %s358 = smul.addr %s357, 8
      %s359 = scalar_lea.vmem %s0, %s358
      %p360 = pneg %p45
      %p361 = pneg %p42
      %p362 = scmp.lt.s32.totalorder %s24, 1
      %s363 = scalar_select %p362, %s24, 1
      %s364 = smul.addr %s363, 8
      %s365 = smul.addr %s364, 8
      %s366 = scalar_lea.vmem %s1, %s365
      %p367 = pneg %p71
      %p368 = pneg %p68
      %p369 = pneg %p92
      %p370 = pneg %p89
      %p371 = pneg %p113
      %p372 = pneg %p110
      %p373 = pneg %p134
      %p374 = pneg %p131
      %p375 = pneg %p155
      %p376 = pneg %p152
      %p377 = pneg %p176
      %p378 = pneg %p173
      %p379 = pneg %p197
      %p380 = pneg %p194
      %p381 = pneg %p218
      %p382 = pneg %p215
      %p383 = pneg %p239
      %p384 = pneg %p236
      %p385 = pneg %p260
      %p386 = pneg %p257
      %p387 = pneg %p286
      %p388 = pneg %p283
      %p389 = scmp.lt.s32.totalorder %s24, 1
      %s390 = scalar_select %p389, %s24, 1
      %s391 = scalar_lea.vmem %s11, %s390
      %p392 = scmp.lt.s32.totalorder %s24, 1
      %s393 = scalar_select %p392, %s24, 1
      %s394 = smul.addr %s393, 8
      %s395 = smul.addr %s394, 8
      %s396 = scalar_lea.vmem %s0, %s395
      %p397 = scmp.lt.s32.totalorder %s24, 1
      %s398 = scalar_select %p397, %s24, 1
      %s399 = smul.addr %s398, 8
      %s400 = smul.addr %s399, 8
      %s401 = scalar_lea.vmem %s1, %s400
      %p402 = scmp.lt.s32.totalorder %s24, 1
      %s403 = scalar_select %p402, %s24, 1
      %s404 = scalar_lea.vmem %s11, %s403
      %v405 = vld [vmem:[%s396] sm:$0xff]
      %v406 = vld [vmem:[%s396 + $0x8] sm:$0xff]
      %v407 = vld [vmem:[%s396 + $0x10] sm:$0xff]
      %v408 = vld [vmem:[%s396 + $0x18] sm:$0xff]
      %v409 = vld [vmem:[%s396 + $0x20] sm:$0xff]
      %v410 = vld [vmem:[%s396 + $0x28] sm:$0xff]
      %v411 = vld [vmem:[%s396 + $0x30] sm:$0xff]
      %v412 = vld [vmem:[%s396 + $0x38] sm:$0xff]
      %v413 = vld [vmem:[%s2] sm:$0xff]
      %v414 = vld [vmem:[%s2 + $0x8] sm:$0xff]
      %v415 = vld [vmem:[%s2 + $0x10] sm:$0xff]
      %v416 = vld [vmem:[%s2 + $0x18] sm:$0xff]
      %vm417 = vcmask 523264
      %v419 = vsel %vm417, %v413, 0
      %v422 = vsel %vm417, %v414, 0
      %v425 = vsel %vm417, %v415, 0
      %v428 = vsel %vm417, %v416, 0
      %430 = vmatprep.subr.mxu0 0.0
      %431 = vmatpush1.msra.mxu0 %v405
      %432 = vmatprep.subr.mxu0 0.0
      %433 = vmatpush1.msra.mxu0 %v406
      %434 = vmatprep.subr.mxu0 0.0
      %435 = vmatpush1.msra.mxu0 %v407
      %436 = vmatprep.subr.mxu0 0.0
      %437 = vmatpush1.msra.mxu0 %v408
      %438 = vmatprep.subr.mxu0 0.0
      %439 = vmatpush1.msra.mxu0 %v409
      %440 = vmatprep.subr.mxu0 0.0
      %441 = vmatpush1.msra.mxu0 %v410
      %442 = vmatprep.subr.mxu0 0.0
      %443 = vmatpush1.msra.mxu0 %v411
      %444 = vmatprep.subr.mxu0 0.0
      %445 = vmatpush1.msra.mxu0 %v412
      %446 = vmatprep.subr.mxu0 0.0
      %447 = vmatpush1.msra.mxu0 0.0
      %448 = vmatprep.subr.mxu0 0.0
      %449 = vmatpush1.msra.mxu0 0.0
      %450 = vmatprep.subr.mxu0 0.0
      %451 = vmatpush1.msra.mxu0 0.0
      %452 = vmatprep.subr.mxu0 0.0
      %453 = vmatpush1.msra.mxu0 0.0
      %454 = vmatprep.subr.mxu0 0.0
      %455 = vmatpush1.msra.mxu0 0.0
      %456 = vmatprep.subr.mxu0 0.0
      %457 = vmatpush1.msra.mxu0 0.0
      %458 = vmatprep.subr.mxu0 0.0
      %459 = vmatpush1.msra.mxu0 0.0
      %460 = vmatprep.subr.mxu0 0.0
      %461 = vmatpush1.msra.mxu0 0.0
      %462 = vmatprep.subr.mxu0 0.0
      %463 = vmatpush1.msra.mxu0 0.0
      %464 = vmatprep.subr.mxu0 0.0
      %465 = vmatpush1.msra.mxu0 0.0
      %466 = vmatprep.subr.mxu0 0.0
      %467 = vmatpush1.msra.mxu0 0.0
      %468 = vmatprep.subr.mxu0 0.0
      %469 = vmatpush1.msra.mxu0 0.0
      %470 = vmatprep.subr.mxu0 0.0
      %471 = vmatpush1.msra.mxu0 0.0
      %472 = vmatprep.subr.mxu0 0.0
      %473 = vmatpush1.msra.mxu0 0.0
      %474 = vmatprep.subr.mxu0 0.0
      %475 = vmatpush1.msra.mxu0 0.0
      %476 = vmatprep.subr.mxu0 0.0
      %477 = vmatpush1.msra.mxu0 0.0
      %478 = vmatprep.subr.mxu0 0.0
      %479 = vmatpush1.msra.mxu0 0.0
      %480 = vmatprep.subr.mxu0 0.0
      %481 = vmatpush1.msra.mxu0 0.0
      %482 = vmatprep.subr.mxu0 0.0
      %483 = vmatpush1.msra.mxu0 0.0
      %484 = vmatprep.subr.mxu0 0.0
      %485 = vmatpush1.msra.mxu0 0.0
      %486 = vmatprep.subr.mxu0 0.0
      %487 = vmatpush1.msra.mxu0 0.0
      %488 = vmatprep.subr.mxu0 0.0
      %489 = vmatpush1.msra.mxu0 0.0
      %490 = vmatprep.subr.mxu0 0.0
      %491 = vmatpush1.msra.mxu0 0.0
      %492 = vmatprep.subr.mxu0 0.0
      %493 = vmatpush1.msra.mxu0 0.0
      %494 = vmatprep.mubr.f32.mxu0 0.0
      %495 = vmatmul.mubr.f32.gmra.mrb[0].mxu0 %v419
      %v496 = vpop.f32.mrb[0].mxu0
      %v497 = vadd.f32 0.0, %v496
      %v498 = vpop.f32.mrb[0].mxu0
      %499 = vmatprep.mubr.f32.mxu0 0.0
      %500 = vmatmul.mubr.f32.gmra.mrb[0].mxu0 %v422
      %v501 = vpop.f32.mrb[0].mxu0
      %v502 = vadd.f32 0.0, %v501
      %v503 = vpop.f32.mrb[0].mxu0
      %504 = vmatprep.mubr.f32.mxu0 0.0
      %505 = vmatmul.mubr.f32.gmra.mrb[0].mxu0 %v425
      %v506 = vpop.f32.mrb[0].mxu0
      %v507 = vadd.f32 0.0, %v506
      %v508 = vpop.f32.mrb[0].mxu0
      %509 = vmatprep.mubr.f32.mxu0 0.0
      %510 = vmatmul.mubr.f32.gmra.mrb[0].mxu0 %v428
      %v511 = vpop.f32.mrb[0].mxu0
      %v512 = vadd.f32 0.0, %v511
      %v513 = vpop.f32.mrb[0].mxu0
      %514 = vdwg.mxu0
      %v515 = vld [vmem:[%s5] sm:$0x1]
      %517 = vset.pattern.permute.xlu0 0
      %518 = vperm.xlu0 %517, %v497
      %v519 = vpop.permute.xlu0 %518
      %522 = vset.pattern.permute.xlu0 0
      %523 = vperm.xlu0 %522, %v502
      %v524 = vpop.permute.xlu0 %523
      %527 = vset.pattern.permute.xlu0 0
      %528 = vperm.xlu0 %527, %v507
      %v529 = vpop.permute.xlu0 %528
      %532 = vset.pattern.permute.xlu0 0
      %533 = vperm.xlu0 %532, %v512
      %v534 = vpop.permute.xlu0 %533
      %v536 = vlaneseq
      %v537 = vshrl.u32 %v536, 7
      %v538 = vsub.s32 0, %v537
      %v539 = vrot.slane %v515, %v538
      %v540 = vmul.f32 %v519, %v539
      %v541 = vmul.f32 %v524, %v539
      %v542 = vmul.f32 %v529, %v539
      %v543 = vmul.f32 %v534, %v539
      %v544 = vadd.f32 %v540, 0.0
      %v545 = vadd.f32 %v541, 0.0
      %v546 = vadd.f32 %v542, 0.0
      %v547 = vadd.f32 %v543, 0.0
      %s548 = scalar_lea.vmem %s2, 32
      %v549 = vld [vmem:[%s548] sm:$0xff]
      %v550 = vld [vmem:[%s548 + $0x8] sm:$0xff]
      %v551 = vld [vmem:[%s548 + $0x10] sm:$0xff]
      %v552 = vld [vmem:[%s548 + $0x18] sm:$0xff]
      %v554 = vsel %vm417, %v549, 0
      %v557 = vsel %vm417, %v550, 0
      %v560 = vsel %vm417, %v551, 0
      %v563 = vsel %vm417, %v552, 0
      %565 = vmatprep.subr.mxu0 0.0
      %566 = vmatpush1.msra.mxu0 %v405
      %567 = vmatprep.subr.mxu0 0.0
      %568 = vmatpush1.msra.mxu0 %v406
      %569 = vmatprep.subr.mxu0 0.0
      %570 = vmatpush1.msra.mxu0 %v407
      %571 = vmatprep.subr.mxu0 0.0
      %572 = vmatpush1.msra.mxu0 %v408
      %573 = vmatprep.subr.mxu0 0.0
      %574 = vmatpush1.msra.mxu0 %v409
      %575 = vmatprep.subr.mxu0 0.0
      %576 = vmatpush1.msra.mxu0 %v410
      %577 = vmatprep.subr.mxu0 0.0
      %578 = vmatpush1.msra.mxu0 %v411
      %579 = vmatprep.subr.mxu0 0.0
      %580 = vmatpush1.msra.mxu0 %v412
      %581 = vmatprep.subr.mxu0 0.0
      %582 = vmatpush1.msra.mxu0 0.0
      %583 = vmatprep.subr.mxu0 0.0
      %584 = vmatpush1.msra.mxu0 0.0
      %585 = vmatprep.subr.mxu0 0.0
      %586 = vmatpush1.msra.mxu0 0.0
      %587 = vmatprep.subr.mxu0 0.0
      %588 = vmatpush1.msra.mxu0 0.0
      %589 = vmatprep.subr.mxu0 0.0
      %590 = vmatpush1.msra.mxu0 0.0
      %591 = vmatprep.subr.mxu0 0.0
      %592 = vmatpush1.msra.mxu0 0.0
      %593 = vmatprep.subr.mxu0 0.0
      %594 = vmatpush1.msra.mxu0 0.0
      %595 = vmatprep.subr.mxu0 0.0
      %596 = vmatpush1.msra.mxu0 0.0
      %597 = vmatprep.subr.mxu0 0.0
      %598 = vmatpush1.msra.mxu0 0.0
      %599 = vmatprep.subr.mxu0 0.0
      %600 = vmatpush1.msra.mxu0 0.0
      %601 = vmatprep.subr.mxu0 0.0
      %602 = vmatpush1.msra.mxu0 0.0
      %603 = vmatprep.subr.mxu0 0.0
      %604 = vmatpush1.msra.mxu0 0.0
      %605 = vmatprep.subr.mxu0 0.0
      %606 = vmatpush1.msra.mxu0 0.0
      %607 = vmatprep.subr.mxu0 0.0
      %608 = vmatpush1.msra.mxu0 0.0
      %609 = vmatprep.subr.mxu0 0.0
      %610 = vmatpush1.msra.mxu0 0.0
      %611 = vmatprep.subr.mxu0 0.0
      %612 = vmatpush1.msra.mxu0 0.0
      %613 = vmatprep.subr.mxu0 0.0
      %614 = vmatpush1.msra.mxu0 0.0
      %615 = vmatprep.subr.mxu0 0.0
      %616 = vmatpush1.msra.mxu0 0.0
      %617 = vmatprep.subr.mxu0 0.0
      %618 = vmatpush1.msra.mxu0 0.0
      %619 = vmatprep.subr.mxu0 0.0
      %620 = vmatpush1.msra.mxu0 0.0
      %621 = vmatprep.subr.mxu0 0.0
      %622 = vmatpush1.msra.mxu0 0.0
      %623 = vmatprep.subr.mxu0 0.0
      %624 = vmatpush1.msra.mxu0 0.0
      %625 = vmatprep.subr.mxu0 0.0
      %626 = vmatpush1.msra.mxu0 0.0
      %627 = vmatprep.subr.mxu0 0.0
      %628 = vmatpush1.msra.mxu0 0.0
      %629 = vmatprep.mubr.f32.mxu0 0.0
      %630 = vmatmul.mubr.f32.gmra.mrb[0].mxu0 %v554
      %v631 = vpop.f32.mrb[0].mxu0
      %v632 = vadd.f32 0.0, %v631
      %v633 = vpop.f32.mrb[0].mxu0
      %634 = vmatprep.mubr.f32.mxu0 0.0
      %635 = vmatmul.mubr.f32.gmra.mrb[0].mxu0 %v557
      %v636 = vpop.f32.mrb[0].mxu0
      %v637 = vadd.f32 0.0, %v636
      %v638 = vpop.f32.mrb[0].mxu0
      %639 = vmatprep.mubr.f32.mxu0 0.0
      %640 = vmatmul.mubr.f32.gmra.mrb[0].mxu0 %v560
      %v641 = vpop.f32.mrb[0].mxu0
      %v642 = vadd.f32 0.0, %v641
      %v643 = vpop.f32.mrb[0].mxu0
      %644 = vmatprep.mubr.f32.mxu0 0.0
      %645 = vmatmul.mubr.f32.gmra.mrb[0].mxu0 %v563
      %v646 = vpop.f32.mrb[0].mxu0
      %v647 = vadd.f32 0.0, %v646
      %v648 = vpop.f32.mrb[0].mxu0
      %649 = vdwg.mxu0
      %v650 = vld [vmem:[%s5 + $0x1] sm:$0x1]
      %652 = vset.pattern.permute.xlu0 0
      %653 = vperm.xlu0 %652, %v632
      %v654 = vpop.permute.xlu0 %653
      %657 = vset.pattern.permute.xlu0 0
      %658 = vperm.xlu0 %657, %v637
      %v659 = vpop.permute.xlu0 %658
      %662 = vset.pattern.permute.xlu0 0
      %663 = vperm.xlu0 %662, %v642
      %v664 = vpop.permute.xlu0 %663
      %667 = vset.pattern.permute.xlu0 0
      %668 = vperm.xlu0 %667, %v647
      %v669 = vpop.permute.xlu0 %668
      %v671 = vlaneseq
      %v672 = vshrl.u32 %v671, 7
      %v673 = vsub.s32 0, %v672
      %v674 = vrot.slane %v650, %v673
      %v675 = vmul.f32 %v654, %v674
      %v676 = vmul.f32 %v659, %v674
      %v677 = vmul.f32 %v664, %v674
      %v678 = vmul.f32 %v669, %v674
      %v679 = vadd.f32 %v544, %v675
      %v680 = vadd.f32 %v545, %v676
      %v681 = vadd.f32 %v546, %v677
      %v682 = vadd.f32 %v547, %v678
      %s683 = scalar_lea.vmem %s2, 64
      %v684 = vld [vmem:[%s683] sm:$0xff]
      %v685 = vld [vmem:[%s683 + $0x8] sm:$0xff]
      %v686 = vld [vmem:[%s683 + $0x10] sm:$0xff]
      %v687 = vld [vmem:[%s683 + $0x18] sm:$0xff]
      %v689 = vsel %vm417, %v684, 0
      %v692 = vsel %vm417, %v685, 0
      %v695 = vsel %vm417, %v686, 0
      %v698 = vsel %vm417, %v687, 0
      %700 = vmatprep.subr.mxu0 0.0
      %701 = vmatpush1.msra.mxu0 %v405
      %702 = vmatprep.subr.mxu0 0.0
      %703 = vmatpush1.msra.mxu0 %v406
      %704 = vmatprep.subr.mxu0 0.0
      %705 = vmatpush1.msra.mxu0 %v407
      %706 = vmatprep.subr.mxu0 0.0
      %707 = vmatpush1.msra.mxu0 %v408
      %708 = vmatprep.subr.mxu0 0.0
      %709 = vmatpush1.msra.mxu0 %v409
      %710 = vmatprep.subr.mxu0 0.0
      %711 = vmatpush1.msra.mxu0 %v410
      %712 = vmatprep.subr.mxu0 0.0
      %713 = vmatpush1.msra.mxu0 %v411
      %714 = vmatprep.subr.mxu0 0.0
      %715 = vmatpush1.msra.mxu0 %v412
      %716 = vmatprep.subr.mxu0 0.0
      %717 = vmatpush1.msra.mxu0 0.0
      %718 = vmatprep.subr.mxu0 0.0
      %719 = vmatpush1.msra.mxu0 0.0
      %720 = vmatprep.subr.mxu0 0.0
      %721 = vmatpush1.msra.mxu0 0.0
      %722 = vmatprep.subr.mxu0 0.0
      %723 = vmatpush1.msra.mxu0 0.0
      %724 = vmatprep.subr.mxu0 0.0
      %725 = vmatpush1.msra.mxu0 0.0
      %726 = vmatprep.subr.mxu0 0.0
      %727 = vmatpush1.msra.mxu0 0.0
      %728 = vmatprep.subr.mxu0 0.0
      %729 = vmatpush1.msra.mxu0 0.0
      %730 = vmatprep.subr.mxu0 0.0
      %731 = vmatpush1.msra.mxu0 0.0
      %732 = vmatprep.subr.mxu0 0.0
      %733 = vmatpush1.msra.mxu0 0.0
      %734 = vmatprep.subr.mxu0 0.0
      %735 = vmatpush1.msra.mxu0 0.0
      %736 = vmatprep.subr.mxu0 0.0
      %737 = vmatpush1.msra.mxu0 0.0
      %738 = vmatprep.subr.mxu0 0.0
      %739 = vmatpush1.msra.mxu0 0.0
      %740 = vmatprep.subr.mxu0 0.0
      %741 = vmatpush1.msra.mxu0 0.0
      %742 = vmatprep.subr.mxu0 0.0
      %743 = vmatpush1.msra.mxu0 0.0
      %744 = vmatprep.subr.mxu0 0.0
      %745 = vmatpush1.msra.mxu0 0.0
      %746 = vmatprep.subr.mxu0 0.0
      %747 = vmatpush1.msra.mxu0 0.0
      %748 = vmatprep.subr.mxu0 0.0
      %749 = vmatpush1.msra.mxu0 0.0
      %750 = vmatprep.subr.mxu0 0.0
      %751 = vmatpush1.msra.mxu0 0.0
      %752 = vmatprep.subr.mxu0 0.0
      %753 = vmatpush1.msra.mxu0 0.0
      %754 = vmatprep.subr.mxu0 0.0
      %755 = vmatpush1.msra.mxu0 0.0
      %756 = vmatprep.subr.mxu0 0.0
      %757 = vmatpush1.msra.mxu0 0.0
      %758 = vmatprep.subr.mxu0 0.0
      %759 = vmatpush1.msra.mxu0 0.0
      %760 = vmatprep.subr.mxu0 0.0
      %761 = vmatpush1.msra.mxu0 0.0
      %762 = vmatprep.subr.mxu0 0.0
      %763 = vmatpush1.msra.mxu0 0.0
      %764 = vmatprep.mubr.f32.mxu0 0.0
      %765 = vmatmul.mubr.f32.gmra.mrb[0].mxu0 %v689
      %v766 = vpop.f32.mrb[0].mxu0
      %v767 = vadd.f32 0.0, %v766
      %v768 = vpop.f32.mrb[0].mxu0
      %769 = vmatprep.mubr.f32.mxu0 0.0
      %770 = vmatmul.mubr.f32.gmra.mrb[0].mxu0 %v692
      %v771 = vpop.f32.mrb[0].mxu0
      %v772 = vadd.f32 0.0, %v771
      %v773 = vpop.f32.mrb[0].mxu0
      %774 = vmatprep.mubr.f32.mxu0 0.0
      %775 = vmatmul.mubr.f32.gmra.mrb[0].mxu0 %v695
      %v776 = vpop.f32.mrb[0].mxu0
      %v777 = vadd.f32 0.0, %v776
      %v778 = vpop.f32.mrb[0].mxu0
      %779 = vmatprep.mubr.f32.mxu0 0.0
      %780 = vmatmul.mubr.f32.gmra.mrb[0].mxu0 %v698
      %v781 = vpop.f32.mrb[0].mxu0
      %v782 = vadd.f32 0.0, %v781
      %v783 = vpop.f32.mrb[0].mxu0
      %784 = vdwg.mxu0
      %v785 = vld [vmem:[%s5 + $0x2] sm:$0x1]
      %787 = vset.pattern.permute.xlu0 0
      %788 = vperm.xlu0 %787, %v767
      %v789 = vpop.permute.xlu0 %788
      %792 = vset.pattern.permute.xlu0 0
      %793 = vperm.xlu0 %792, %v772
      %v794 = vpop.permute.xlu0 %793
      %797 = vset.pattern.permute.xlu0 0
      %798 = vperm.xlu0 %797, %v777
      %v799 = vpop.permute.xlu0 %798
      %802 = vset.pattern.permute.xlu0 0
      %803 = vperm.xlu0 %802, %v782
      %v804 = vpop.permute.xlu0 %803
      %v806 = vlaneseq
      %v807 = vshrl.u32 %v806, 7
      %v808 = vsub.s32 0, %v807
      %v809 = vrot.slane %v785, %v808
      %v810 = vmul.f32 %v789, %v809
      %v811 = vmul.f32 %v794, %v809
      %v812 = vmul.f32 %v799, %v809
      %v813 = vmul.f32 %v804, %v809
      %v814 = vadd.f32 %v679, %v810
      %v815 = vadd.f32 %v680, %v811
      %v816 = vadd.f32 %v681, %v812
      %v817 = vadd.f32 %v682, %v813
      %s818 = scalar_lea.vmem %s2, 96
      %v819 = vld [vmem:[%s818] sm:$0xff]
      %v820 = vld [vmem:[%s818 + $0x8] sm:$0xff]
      %v821 = vld [vmem:[%s818 + $0x10] sm:$0xff]
      %v822 = vld [vmem:[%s818 + $0x18] sm:$0xff]
      %v824 = vsel %vm417, %v819, 0
      %v827 = vsel %vm417, %v820, 0
      %v830 = vsel %vm417, %v821, 0
      %v833 = vsel %vm417, %v822, 0
      %835 = vmatprep.subr.mxu0 0.0
      %836 = vmatpush1.msra.mxu0 %v405
      %837 = vmatprep.subr.mxu0 0.0
      %838 = vmatpush1.msra.mxu0 %v406
      %839 = vmatprep.subr.mxu0 0.0
      %840 = vmatpush1.msra.mxu0 %v407
      %841 = vmatprep.subr.mxu0 0.0
      %842 = vmatpush1.msra.mxu0 %v408
      %843 = vmatprep.subr.mxu0 0.0
      %844 = vmatpush1.msra.mxu0 %v409
      %845 = vmatprep.subr.mxu0 0.0
      %846 = vmatpush1.msra.mxu0 %v410
      %847 = vmatprep.subr.mxu0 0.0
      %848 = vmatpush1.msra.mxu0 %v411
      %849 = vmatprep.subr.mxu0 0.0
      %850 = vmatpush1.msra.mxu0 %v412
      %851 = vmatprep.subr.mxu0 0.0
      %852 = vmatpush1.msra.mxu0 0.0
      %853 = vmatprep.subr.mxu0 0.0
      %854 = vmatpush1.msra.mxu0 0.0
      %855 = vmatprep.subr.mxu0 0.0
      %856 = vmatpush1.msra.mxu0 0.0
      %857 = vmatprep.subr.mxu0 0.0
      %858 = vmatpush1.msra.mxu0 0.0
      %859 = vmatprep.subr.mxu0 0.0
      %860 = vmatpush1.msra.mxu0 0.0
      %861 = vmatprep.subr.mxu0 0.0
      %862 = vmatpush1.msra.mxu0 0.0
      %863 = vmatprep.subr.mxu0 0.0
      %864 = vmatpush1.msra.mxu0 0.0
      %865 = vmatprep.subr.mxu0 0.0
      %866 = vmatpush1.msra.mxu0 0.0
      %867 = vmatprep.subr.mxu0 0.0
      %868 = vmatpush1.msra.mxu0 0.0
      %869 = vmatprep.subr.mxu0 0.0
      %870 = vmatpush1.msra.mxu0 0.0
      %871 = vmatprep.subr.mxu0 0.0
      %872 = vmatpush1.msra.mxu0 0.0
      %873 = vmatprep.subr.mxu0 0.0
      %874 = vmatpush1.msra.mxu0 0.0
      %875 = vmatprep.subr.mxu0 0.0
      %876 = vmatpush1.msra.mxu0 0.0
      %877 = vmatprep.subr.mxu0 0.0
      %878 = vmatpush1.msra.mxu0 0.0
      %879 = vmatprep.subr.mxu0 0.0
      %880 = vmatpush1.msra.mxu0 0.0
      %881 = vmatprep.subr.mxu0 0.0
      %882 = vmatpush1.msra.mxu0 0.0
      %883 = vmatprep.subr.mxu0 0.0
      %884 = vmatpush1.msra.mxu0 0.0
      %885 = vmatprep.subr.mxu0 0.0
      %886 = vmatpush1.msra.mxu0 0.0
      %887 = vmatprep.subr.mxu0 0.0
      %888 = vmatpush1.msra.mxu0 0.0
      %889 = vmatprep.subr.mxu0 0.0
      %890 = vmatpush1.msra.mxu0 0.0
      %891 = vmatprep.subr.mxu0 0.0
      %892 = vmatpush1.msra.mxu0 0.0
      %893 = vmatprep.subr.mxu0 0.0
      %894 = vmatpush1.msra.mxu0 0.0
      %895 = vmatprep.subr.mxu0 0.0
      %896 = vmatpush1.msra.mxu0 0.0
      %897 = vmatprep.subr.mxu0 0.0
      %898 = vmatpush1.msra.mxu0 0.0
      %899 = vmatprep.mubr.f32.mxu0 0.0
      %900 = vmatmul.mubr.f32.gmra.mrb[0].mxu0 %v824
      %v901 = vpop.f32.mrb[0].mxu0
      %v902 = vadd.f32 0.0, %v901
      %v903 = vpop.f32.mrb[0].mxu0
      %904 = vmatprep.mubr.f32.mxu0 0.0
      %905 = vmatmul.mubr.f32.gmra.mrb[0].mxu0 %v827
      %v906 = vpop.f32.mrb[0].mxu0
      %v907 = vadd.f32 0.0, %v906
      %v908 = vpop.f32.mrb[0].mxu0
      %909 = vmatprep.mubr.f32.mxu0 0.0
      %910 = vmatmul.mubr.f32.gmra.mrb[0].mxu0 %v830
      %v911 = vpop.f32.mrb[0].mxu0
      %v912 = vadd.f32 0.0, %v911
      %v913 = vpop.f32.mrb[0].mxu0
      %914 = vmatprep.mubr.f32.mxu0 0.0
      %915 = vmatmul.mubr.f32.gmra.mrb[0].mxu0 %v833
      %v916 = vpop.f32.mrb[0].mxu0
      %v917 = vadd.f32 0.0, %v916
      %v918 = vpop.f32.mrb[0].mxu0
      %919 = vdwg.mxu0
      %v920 = vld [vmem:[%s5 + $0x3] sm:$0x1]
      %922 = vset.pattern.permute.xlu0 0
      %923 = vperm.xlu0 %922, %v902
      %v924 = vpop.permute.xlu0 %923
      %927 = vset.pattern.permute.xlu0 0
      %928 = vperm.xlu0 %927, %v907
      %v929 = vpop.permute.xlu0 %928
      %932 = vset.pattern.permute.xlu0 0
      %933 = vperm.xlu0 %932, %v912
      %v934 = vpop.permute.xlu0 %933
      %937 = vset.pattern.permute.xlu0 0
      %938 = vperm.xlu0 %937, %v917
      %v939 = vpop.permute.xlu0 %938
      %v941 = vlaneseq
      %v942 = vshrl.u32 %v941, 7
      %v943 = vsub.s32 0, %v942
      %v944 = vrot.slane %v920, %v943
      %v945 = vmul.f32 %v924, %v944
      %v946 = vmul.f32 %v929, %v944
      %v947 = vmul.f32 %v934, %v944
      %v948 = vmul.f32 %v939, %v944
      %v949 = vadd.f32 %v814, %v945
      %v950 = vadd.f32 %v815, %v946
      %v951 = vadd.f32 %v816, %v947
      %v952 = vadd.f32 %v817, %v948
      %s953 = scalar_lea.vmem %s2, 128
      %v954 = vld [vmem:[%s953] sm:$0xff]
      %v955 = vld [vmem:[%s953 + $0x8] sm:$0xff]
      %v956 = vld [vmem:[%s953 + $0x10] sm:$0xff]
      %v957 = vld [vmem:[%s953 + $0x18] sm:$0xff]
      %v959 = vsel %vm417, %v954, 0
      %v962 = vsel %vm417, %v955, 0
      %v965 = vsel %vm417, %v956, 0
      %v968 = vsel %vm417, %v957, 0
      %970 = vmatprep.subr.mxu0 0.0
      %971 = vmatpush1.msra.mxu0 %v405
      %972 = vmatprep.subr.mxu0 0.0
      %973 = vmatpush1.msra.mxu0 %v406
      %974 = vmatprep.subr.mxu0 0.0
      %975 = vmatpush1.msra.mxu0 %v407
      %976 = vmatprep.subr.mxu0 0.0
      %977 = vmatpush1.msra.mxu0 %v408
      %978 = vmatprep.subr.mxu0 0.0
      %979 = vmatpush1.msra.mxu0 %v409
      %980 = vmatprep.subr.mxu0 0.0
      %981 = vmatpush1.msra.mxu0 %v410
      %982 = vmatprep.subr.mxu0 0.0
      %983 = vmatpush1.msra.mxu0 %v411
      %984 = vmatprep.subr.mxu0 0.0
      %985 = vmatpush1.msra.mxu0 %v412
      %986 = vmatprep.subr.mxu0 0.0
      %987 = vmatpush1.msra.mxu0 0.0
      %988 = vmatprep.subr.mxu0 0.0
      %989 = vmatpush1.msra.mxu0 0.0
      %990 = vmatprep.subr.mxu0 0.0
      %991 = vmatpush1.msra.mxu0 0.0
      %992 = vmatprep.subr.mxu0 0.0
      %993 = vmatpush1.msra.mxu0 0.0
      %994 = vmatprep.subr.mxu0 0.0
      %995 = vmatpush1.msra.mxu0 0.0
      %996 = vmatprep.subr.mxu0 0.0
      %997 = vmatpush1.msra.mxu0 0.0
      %998 = vmatprep.subr.mxu0 0.0
      %999 = vmatpush1.msra.mxu0 0.0
      %1000 = vmatprep.subr.mxu0 0.0
      %1001 = vmatpush1.msra.mxu0 0.0
      %1002 = vmatprep.subr.mxu0 0.0
      %1003 = vmatpush1.msra.mxu0 0.0
      %1004 = vmatprep.subr.mxu0 0.0
      %1005 = vmatpush1.msra.mxu0 0.0
      %1006 = vmatprep.subr.mxu0 0.0
      %1007 = vmatpush1.msra.mxu0 0.0
      %1008 = vmatprep.subr.mxu0 0.0
      %1009 = vmatpush1.msra.mxu0 0.0
      %1010 = vmatprep.subr.mxu0 0.0
      %1011 = vmatpush1.msra.mxu0 0.0
      %1012 = vmatprep.subr.mxu0 0.0
      %1013 = vmatpush1.msra.mxu0 0.0
      %1014 = vmatprep.subr.mxu0 0.0
      %1015 = vmatpush1.msra.mxu0 0.0
      %1016 = vmatprep.subr.mxu0 0.0
      %1017 = vmatpush1.msra.mxu0 0.0
      %1018 = vmatprep.subr.mxu0 0.0
      %1019 = vmatpush1.msra.mxu0 0.0
      %1020 = vmatprep.subr.mxu0 0.0
      %1021 = vmatpush1.msra.mxu0 0.0
      %1022 = vmatprep.subr.mxu0 0.0
      %1023 = vmatpush1.msra.mxu0 0.0
      %1024 = vmatprep.subr.mxu0 0.0
      %1025 = vmatpush1.msra.mxu0 0.0
      %1026 = vmatprep.subr.mxu0 0.0
      %1027 = vmatpush1.msra.mxu0 0.0
      %1028 = vmatprep.subr.mxu0 0.0
      %1029 = vmatpush1.msra.mxu0 0.0
      %1030 = vmatprep.subr.mxu0 0.0
      %1031 = vmatpush1.msra.mxu0 0.0
      %1032 = vmatprep.subr.mxu0 0.0
      %1033 = vmatpush1.msra.mxu0 0.0
      %1034 = vmatprep.mubr.f32.mxu0 0.0
      %1035 = vmatmul.mubr.f32.gmra.mrb[0].mxu0 %v959
      %v1036 = vpop.f32.mrb[0].mxu0
      %v1037 = vadd.f32 0.0, %v1036
      %v1038 = vpop.f32.mrb[0].mxu0
      %1039 = vmatprep.mubr.f32.mxu0 0.0
      %1040 = vmatmul.mubr.f32.gmra.mrb[0].mxu0 %v962
      %v1041 = vpop.f32.mrb[0].mxu0
      %v1042 = vadd.f32 0.0, %v1041
      %v1043 = vpop.f32.mrb[0].mxu0
      %1044 = vmatprep.mubr.f32.mxu0 0.0
      %1045 = vmatmul.mubr.f32.gmra.mrb[0].mxu0 %v965
      %v1046 = vpop.f32.mrb[0].mxu0
      %v1047 = vadd.f32 0.0, %v1046
      %v1048 = vpop.f32.mrb[0].mxu0
      %1049 = vmatprep.mubr.f32.mxu0 0.0
      %1050 = vmatmul.mubr.f32.gmra.mrb[0].mxu0 %v968
      %v1051 = vpop.f32.mrb[0].mxu0
      %v1052 = vadd.f32 0.0, %v1051
      %v1053 = vpop.f32.mrb[0].mxu0
      %1054 = vdwg.mxu0
      %v1055 = vld [vmem:[%s5 + $0x4] sm:$0x1]
      %1057 = vset.pattern.permute.xlu0 0
      %1058 = vperm.xlu0 %1057, %v1037
      %v1059 = vpop.permute.xlu0 %1058
      %1062 = vset.pattern.permute.xlu0 0
      %1063 = vperm.xlu0 %1062, %v1042
      %v1064 = vpop.permute.xlu0 %1063
      %1067 = vset.pattern.permute.xlu0 0
      %1068 = vperm.xlu0 %1067, %v1047
      %v1069 = vpop.permute.xlu0 %1068
      %1072 = vset.pattern.permute.xlu0 0
      %1073 = vperm.xlu0 %1072, %v1052
      %v1074 = vpop.permute.xlu0 %1073
      %v1076 = vlaneseq
      %v1077 = vshrl.u32 %v1076, 7
      %v1078 = vsub.s32 0, %v1077
      %v1079 = vrot.slane %v1055, %v1078
      %v1080 = vmul.f32 %v1059, %v1079
      %v1081 = vmul.f32 %v1064, %v1079
      %v1082 = vmul.f32 %v1069, %v1079
      %v1083 = vmul.f32 %v1074, %v1079
      %v1084 = vadd.f32 %v949, %v1080
      %v1085 = vadd.f32 %v950, %v1081
      %v1086 = vadd.f32 %v951, %v1082
      %v1087 = vadd.f32 %v952, %v1083
      %v1088 = vld [vmem:[%s6] sm:$0x1]
      %v1090 = vlaneseq
      %v1091 = vshrl.u32 %v1090, 7
      %v1092 = vsub.s32 0, %v1091
      %v1093 = vrot.slane %v1088, %v1092
      %v1095 = vadd.f32 %v1084, %v1093
      %v1096 = vadd.f32 %v1085, %v1093
      %v1097 = vadd.f32 %v1086, %v1093
      %v1098 = vadd.f32 %v1087, %v1093
      %vm1099 = vcmp.ge.f32.partialorder %v1095, 0.0
      %vm1100 = vcmp.ge.f32.partialorder %v1096, 0.0
      %vm1101 = vcmp.ge.f32.partialorder %v1097, 0.0
      %vm1102 = vcmp.ge.f32.partialorder %v1098, 0.0
      %v1103 = vmul.f32 %v1095, 0.1
      %v1104 = vmul.f32 %v1096, 0.1
      %v1105 = vmul.f32 %v1097, 0.1
      %v1106 = vmul.f32 %v1098, 0.1
      %v1107 = vsel %vm1099, %v1095, %v1103
      %v1108 = vsel %vm1100, %v1096, %v1104
      %v1109 = vsel %vm1101, %v1097, %v1105
      %v1110 = vsel %vm1102, %v1098, %v1106
      %v1111 = vld [vmem:[%s3] sm:$0xff]
      %v1112 = vld [vmem:[%s3 + $0x8] sm:$0xff]
      %vm1113 = vcmask 261120
      %v1115 = vsel %vm1113, %v1111, 0
      %v1118 = vsel %vm1113, %v1112, 0
      %1120 = vmatprep.subr.mxu0 0.0
      %1121 = vmatpush1.msra.mxu0 %v1107
      %1122 = vmatprep.subr.mxu0 0.0
      %1123 = vmatpush1.msra.mxu0 %v1108
      %1124 = vmatprep.subr.mxu0 0.0
      %1125 = vmatpush1.msra.mxu0 %v1109
      %1126 = vmatprep.subr.mxu0 0.0
      %1127 = vmatpush1.msra.mxu0 %v1110
      %1128 = vmatprep.subr.mxu0 0.0
      %1129 = vmatpush1.msra.mxu0 0.0
      %1130 = vmatprep.subr.mxu0 0.0
      %1131 = vmatpush1.msra.mxu0 0.0
      %1132 = vmatprep.subr.mxu0 0.0
      %1133 = vmatpush1.msra.mxu0 0.0
      %1134 = vmatprep.subr.mxu0 0.0
      %1135 = vmatpush1.msra.mxu0 0.0
      %1136 = vmatprep.subr.mxu0 0.0
      %1137 = vmatpush1.msra.mxu0 0.0
      %1138 = vmatprep.subr.mxu0 0.0
      %1139 = vmatpush1.msra.mxu0 0.0
      %1140 = vmatprep.subr.mxu0 0.0
      %1141 = vmatpush1.msra.mxu0 0.0
      %1142 = vmatprep.subr.mxu0 0.0
      %1143 = vmatpush1.msra.mxu0 0.0
      %1144 = vmatprep.subr.mxu0 0.0
      %1145 = vmatpush1.msra.mxu0 0.0
      %1146 = vmatprep.subr.mxu0 0.0
      %1147 = vmatpush1.msra.mxu0 0.0
      %1148 = vmatprep.subr.mxu0 0.0
      %1149 = vmatpush1.msra.mxu0 0.0
      %1150 = vmatprep.subr.mxu0 0.0
      %1151 = vmatpush1.msra.mxu0 0.0
      %1152 = vmatprep.subr.mxu0 0.0
      %1153 = vmatpush1.msra.mxu0 0.0
      %1154 = vmatprep.subr.mxu0 0.0
      %1155 = vmatpush1.msra.mxu0 0.0
      %1156 = vmatprep.subr.mxu0 0.0
      %1157 = vmatpush1.msra.mxu0 0.0
      %1158 = vmatprep.subr.mxu0 0.0
      %1159 = vmatpush1.msra.mxu0 0.0
      %1160 = vmatprep.subr.mxu0 0.0
      %1161 = vmatpush1.msra.mxu0 0.0
      %1162 = vmatprep.subr.mxu0 0.0
      %1163 = vmatpush1.msra.mxu0 0.0
      %1164 = vmatprep.subr.mxu0 0.0
      %1165 = vmatpush1.msra.mxu0 0.0
      %1166 = vmatprep.subr.mxu0 0.0
      %1167 = vmatpush1.msra.mxu0 0.0
      %1168 = vmatprep.subr.mxu0 0.0
      %1169 = vmatpush1.msra.mxu0 0.0
      %1170 = vmatprep.subr.mxu0 0.0
      %1171 = vmatpush1.msra.mxu0 0.0
      %1172 = vmatprep.subr.mxu0 0.0
      %1173 = vmatpush1.msra.mxu0 0.0
      %1174 = vmatprep.subr.mxu0 0.0
      %1175 = vmatpush1.msra.mxu0 0.0
      %1176 = vmatprep.subr.mxu0 0.0
      %1177 = vmatpush1.msra.mxu0 0.0
      %1178 = vmatprep.subr.mxu0 0.0
      %1179 = vmatpush1.msra.mxu0 0.0
      %1180 = vmatprep.subr.mxu0 0.0
      %1181 = vmatpush1.msra.mxu0 0.0
      %1182 = vmatprep.subr.mxu0 0.0
      %1183 = vmatpush1.msra.mxu0 0.0
      %1184 = vmatprep.mubr.f32.mxu0 0.0
      %1185 = vmatmul.mubr.f32.gmra.mrb[0].mxu0 %v1115
      %v1186 = vpop.f32.mrb[0].mxu0
      %v1187 = vadd.f32 0.0, %v1186
      %v1188 = vpop.f32.mrb[0].mxu0
      %1189 = vmatprep.mubr.f32.mxu0 0.0
      %1190 = vmatmul.mubr.f32.gmra.mrb[0].mxu0 %v1118
      %v1191 = vpop.f32.mrb[0].mxu0
      %v1192 = vadd.f32 0.0, %v1191
      %v1193 = vpop.f32.mrb[0].mxu0
      %1194 = vdwg.mxu0
      %v1195 = vld [vmem:[%s7] sm:$0xff]
      %s1196 = scalar_lea.vmem %s3, 16
      %v1197 = vld [vmem:[%s1196] sm:$0xff]
      %v1198 = vld [vmem:[%s1196 + $0x8] sm:$0xff]
      %v1200 = vsel %vm1113, %v1197, 0
      %v1203 = vsel %vm1113, %v1198, 0
      %1205 = vmatprep.subr.mxu0 0.0
      %1206 = vmatpush1.msra.mxu0 %v1107
      %1207 = vmatprep.subr.mxu0 0.0
      %1208 = vmatpush1.msra.mxu0 %v1108
      %1209 = vmatprep.subr.mxu0 0.0
      %1210 = vmatpush1.msra.mxu0 %v1109
      %1211 = vmatprep.subr.mxu0 0.0
      %1212 = vmatpush1.msra.mxu0 %v1110
      %1213 = vmatprep.subr.mxu0 0.0
      %1214 = vmatpush1.msra.mxu0 0.0
      %1215 = vmatprep.subr.mxu0 0.0
      %1216 = vmatpush1.msra.mxu0 0.0
      %1217 = vmatprep.subr.mxu0 0.0
      %1218 = vmatpush1.msra.mxu0 0.0
      %1219 = vmatprep.subr.mxu0 0.0
      %1220 = vmatpush1.msra.mxu0 0.0
      %1221 = vmatprep.subr.mxu0 0.0
      %1222 = vmatpush1.msra.mxu0 0.0
      %1223 = vmatprep.subr.mxu0 0.0
      %1224 = vmatpush1.msra.mxu0 0.0
      %1225 = vmatprep.subr.mxu0 0.0
      %1226 = vmatpush1.msra.mxu0 0.0
      %1227 = vmatprep.subr.mxu0 0.0
      %1228 = vmatpush1.msra.mxu0 0.0
      %1229 = vmatprep.subr.mxu0 0.0
      %1230 = vmatpush1.msra.mxu0 0.0
      %1231 = vmatprep.subr.mxu0 0.0
      %1232 = vmatpush1.msra.mxu0 0.0
      %1233 = vmatprep.subr.mxu0 0.0
      %1234 = vmatpush1.msra.mxu0 0.0
      %1235 = vmatprep.subr.mxu0 0.0
      %1236 = vmatpush1.msra.mxu0 0.0
      %1237 = vmatprep.subr.mxu0 0.0
      %1238 = vmatpush1.msra.mxu0 0.0
      %1239 = vmatprep.subr.mxu0 0.0
      %1240 = vmatpush1.msra.mxu0 0.0
      %1241 = vmatprep.subr.mxu0 0.0
      %1242 = vmatpush1.msra.mxu0 0.0
      %1243 = vmatprep.subr.mxu0 0.0
      %1244 = vmatpush1.msra.mxu0 0.0
      %1245 = vmatprep.subr.mxu0 0.0
      %1246 = vmatpush1.msra.mxu0 0.0
      %1247 = vmatprep.subr.mxu0 0.0
      %1248 = vmatpush1.msra.mxu0 0.0
      %1249 = vmatprep.subr.mxu0 0.0
      %1250 = vmatpush1.msra.mxu0 0.0
      %1251 = vmatprep.subr.mxu0 0.0
      %1252 = vmatpush1.msra.mxu0 0.0
      %1253 = vmatprep.subr.mxu0 0.0
      %1254 = vmatpush1.msra.mxu0 0.0
      %1255 = vmatprep.subr.mxu0 0.0
      %1256 = vmatpush1.msra.mxu0 0.0
      %1257 = vmatprep.subr.mxu0 0.0
      %1258 = vmatpush1.msra.mxu0 0.0
      %1259 = vmatprep.subr.mxu0 0.0
      %1260 = vmatpush1.msra.mxu0 0.0
      %1261 = vmatprep.subr.mxu0 0.0
      %1262 = vmatpush1.msra.mxu0 0.0
      %1263 = vmatprep.subr.mxu0 0.0
      %1264 = vmatpush1.msra.mxu0 0.0
      %1265 = vmatprep.subr.mxu0 0.0
      %1266 = vmatpush1.msra.mxu0 0.0
      %1267 = vmatprep.subr.mxu0 0.0
      %1268 = vmatpush1.msra.mxu0 0.0
      %1269 = vmatprep.mubr.f32.mxu0 0.0
      %1270 = vmatmul.mubr.f32.gmra.mrb[0].mxu0 %v1200
      %v1271 = vpop.f32.mrb[0].mxu0
      %v1272 = vadd.f32 0.0, %v1271
      %v1273 = vpop.f32.mrb[0].mxu0
      %1274 = vmatprep.mubr.f32.mxu0 0.0
      %1275 = vmatmul.mubr.f32.gmra.mrb[0].mxu0 %v1203
      %v1276 = vpop.f32.mrb[0].mxu0
      %v1277 = vadd.f32 0.0, %v1276
      %v1278 = vpop.f32.mrb[0].mxu0
      %1279 = vdwg.mxu0
      %v1280 = vld [vmem:[%s7 + $0x8] sm:$0xff]
      %vm1281 = vcmask 64512
      %v1283 = vsel %vm1281, %v1272, 0
      %v1286 = vsel %vm1281, %v1277, 0
      %1288 = vmatprep.subr.mxu0 0.0
      %1289 = vmatpush1.msra.mxu0 %v1280
      %1290 = vmatprep.subr.mxu0 0.0
      %1291 = vmatpush1.msra.mxu0 0.0
      %1292 = vmatprep.subr.mxu0 0.0
      %1293 = vmatpush1.msra.mxu0 0.0
      %1294 = vmatprep.subr.mxu0 0.0
      %1295 = vmatpush1.msra.mxu0 0.0
      %1296 = vmatprep.subr.mxu0 0.0
      %1297 = vmatpush1.msra.mxu0 0.0
      %1298 = vmatprep.subr.mxu0 0.0
      %1299 = vmatpush1.msra.mxu0 0.0
      %1300 = vmatprep.subr.mxu0 0.0
      %1301 = vmatpush1.msra.mxu0 0.0
      %1302 = vmatprep.subr.mxu0 0.0
      %1303 = vmatpush1.msra.mxu0 0.0
      %1304 = vmatprep.subr.mxu0 0.0
      %1305 = vmatpush1.msra.mxu0 0.0
      %1306 = vmatprep.subr.mxu0 0.0
      %1307 = vmatpush1.msra.mxu0 0.0
      %1308 = vmatprep.subr.mxu0 0.0
      %1309 = vmatpush1.msra.mxu0 0.0
      %1310 = vmatprep.subr.mxu0 0.0
      %1311 = vmatpush1.msra.mxu0 0.0
      %1312 = vmatprep.subr.mxu0 0.0
      %1313 = vmatpush1.msra.mxu0 0.0
      %1314 = vmatprep.subr.mxu0 0.0
      %1315 = vmatpush1.msra.mxu0 0.0
      %1316 = vmatprep.subr.mxu0 0.0
      %1317 = vmatpush1.msra.mxu0 0.0
      %1318 = vmatprep.subr.mxu0 0.0
      %1319 = vmatpush1.msra.mxu0 0.0
      %1320 = vmatprep.subr.mxu0 0.0
      %1321 = vmatpush1.msra.mxu0 0.0
      %1322 = vmatprep.subr.mxu0 0.0
      %1323 = vmatpush1.msra.mxu0 0.0
      %1324 = vmatprep.subr.mxu0 0.0
      %1325 = vmatpush1.msra.mxu0 0.0
      %1326 = vmatprep.subr.mxu0 0.0
      %1327 = vmatpush1.msra.mxu0 0.0
      %1328 = vmatprep.subr.mxu0 0.0
      %1329 = vmatpush1.msra.mxu0 0.0
      %1330 = vmatprep.subr.mxu0 0.0
      %1331 = vmatpush1.msra.mxu0 0.0
      %1332 = vmatprep.subr.mxu0 0.0
      %1333 = vmatpush1.msra.mxu0 0.0
      %1334 = vmatprep.subr.mxu0 0.0
      %1335 = vmatpush1.msra.mxu0 0.0
      %1336 = vmatprep.subr.mxu0 0.0
      %1337 = vmatpush1.msra.mxu0 0.0
      %1338 = vmatprep.subr.mxu0 0.0
      %1339 = vmatpush1.msra.mxu0 0.0
      %1340 = vmatprep.subr.mxu0 0.0
      %1341 = vmatpush1.msra.mxu0 0.0
      %1342 = vmatprep.subr.mxu0 0.0
      %1343 = vmatpush1.msra.mxu0 0.0
      %1344 = vmatprep.subr.mxu0 0.0
      %1345 = vmatpush1.msra.mxu0 0.0
      %1346 = vmatprep.subr.mxu0 0.0
      %1347 = vmatpush1.msra.mxu0 0.0
      %1348 = vmatprep.subr.mxu0 0.0
      %1349 = vmatpush1.msra.mxu0 0.0
      %1350 = vmatprep.subr.mxu0 0.0
      %1351 = vmatpush1.msra.mxu0 0.0
      %1352 = vmatprep.mubr.f32.mxu0 0.0
      %1353 = vmatmul.mubr.f32.gmra.mrb[0].mxu0 %v1283
      %v1354 = vpop.f32.mrb[0].mxu0
      %v1355 = vadd.f32 0.0, %v1354
      %v1356 = vpop.f32.mrb[0].mxu0
      %1357 = vmatprep.mubr.f32.mxu0 0.0
      %1358 = vmatmul.mubr.f32.gmra.mrb[0].mxu0 %v1286
      %v1359 = vpop.f32.mrb[0].mxu0
      %v1360 = vadd.f32 0.0, %v1359
      %v1361 = vpop.f32.mrb[0].mxu0
      %1362 = vdwg.mxu0
      %v1364 = vsel %vm1281, %v1187, 0
      %v1367 = vsel %vm1281, %v1192, 0
      %1369 = vmatprep.subr.mxu0 0.0
      %1370 = vmatpush1.msra.mxu0 %v1195
      %1371 = vmatprep.subr.mxu0 0.0
      %1372 = vmatpush1.msra.mxu0 0.0
      %1373 = vmatprep.subr.mxu0 0.0
      %1374 = vmatpush1.msra.mxu0 0.0
      %1375 = vmatprep.subr.mxu0 0.0
      %1376 = vmatpush1.msra.mxu0 0.0
      %1377 = vmatprep.subr.mxu0 0.0
      %1378 = vmatpush1.msra.mxu0 0.0
      %1379 = vmatprep.subr.mxu0 0.0
      %1380 = vmatpush1.msra.mxu0 0.0
      %1381 = vmatprep.subr.mxu0 0.0
      %1382 = vmatpush1.msra.mxu0 0.0
      %1383 = vmatprep.subr.mxu0 0.0
      %1384 = vmatpush1.msra.mxu0 0.0
      %1385 = vmatprep.subr.mxu0 0.0
      %1386 = vmatpush1.msra.mxu0 0.0
      %1387 = vmatprep.subr.mxu0 0.0
      %1388 = vmatpush1.msra.mxu0 0.0
      %1389 = vmatprep.subr.mxu0 0.0
      %1390 = vmatpush1.msra.mxu0 0.0
      %1391 = vmatprep.subr.mxu0 0.0
      %1392 = vmatpush1.msra.mxu0 0.0
      %1393 = vmatprep.subr.mxu0 0.0
      %1394 = vmatpush1.msra.mxu0 0.0
      %1395 = vmatprep.subr.mxu0 0.0
      %1396 = vmatpush1.msra.mxu0 0.0
      %1397 = vmatprep.subr.mxu0 0.0
      %1398 = vmatpush1.msra.mxu0 0.0
      %1399 = vmatprep.subr.mxu0 0.0
      %1400 = vmatpush1.msra.mxu0 0.0
      %1401 = vmatprep.subr.mxu0 0.0
      %1402 = vmatpush1.msra.mxu0 0.0
      %1403 = vmatprep.subr.mxu0 0.0
      %1404 = vmatpush1.msra.mxu0 0.0
      %1405 = vmatprep.subr.mxu0 0.0
      %1406 = vmatpush1.msra.mxu0 0.0
      %1407 = vmatprep.subr.mxu0 0.0
      %1408 = vmatpush1.msra.mxu0 0.0
      %1409 = vmatprep.subr.mxu0 0.0
      %1410 = vmatpush1.msra.mxu0 0.0
      %1411 = vmatprep.subr.mxu0 0.0
      %1412 = vmatpush1.msra.mxu0 0.0
      %1413 = vmatprep.subr.mxu0 0.0
      %1414 = vmatpush1.msra.mxu0 0.0
      %1415 = vmatprep.subr.mxu0 0.0
      %1416 = vmatpush1.msra.mxu0 0.0
      %1417 = vmatprep.subr.mxu0 0.0
      %1418 = vmatpush1.msra.mxu0 0.0
      %1419 = vmatprep.subr.mxu0 0.0
      %1420 = vmatpush1.msra.mxu0 0.0
      %1421 = vmatprep.subr.mxu0 0.0
      %1422 = vmatpush1.msra.mxu0 0.0
      %1423 = vmatprep.subr.mxu0 0.0
      %1424 = vmatpush1.msra.mxu0 0.0
      %1425 = vmatprep.subr.mxu0 0.0
      %1426 = vmatpush1.msra.mxu0 0.0
      %1427 = vmatprep.subr.mxu0 0.0
      %1428 = vmatpush1.msra.mxu0 0.0
      %1429 = vmatprep.subr.mxu0 0.0
      %1430 = vmatpush1.msra.mxu0 0.0
      %1431 = vmatprep.subr.mxu0 0.0
      %1432 = vmatpush1.msra.mxu0 0.0
      %1433 = vmatprep.mubr.f32.mxu0 0.0
      %1434 = vmatmul.mubr.f32.gmra.mrb[0].mxu0 %v1364
      %v1435 = vpop.f32.mrb[0].mxu0
      %v1436 = vadd.f32 %v1355, %v1435
      %v1437 = vpop.f32.mrb[0].mxu0
      %1438 = vmatprep.mubr.f32.mxu0 0.0
      %1439 = vmatmul.mubr.f32.gmra.mrb[0].mxu0 %v1367
      %v1440 = vpop.f32.mrb[0].mxu0
      %v1441 = vadd.f32 %v1360, %v1440
      %v1442 = vpop.f32.mrb[0].mxu0
      %1443 = vdwg.mxu0
      %s1444 = scalar_lea.vmem %s3, 32
      %v1445 = vld [vmem:[%s1444] sm:$0xff]
      %v1446 = vld [vmem:[%s1444 + $0x8] sm:$0xff]
      %v1448 = vsel %vm1113, %v1445, 0
      %v1451 = vsel %vm1113, %v1446, 0
      %1453 = vmatprep.subr.mxu0 0.0
      %1454 = vmatpush1.msra.mxu0 %v1107
      %1455 = vmatprep.subr.mxu0 0.0
      %1456 = vmatpush1.msra.mxu0 %v1108
      %1457 = vmatprep.subr.mxu0 0.0
      %1458 = vmatpush1.msra.mxu0 %v1109
      %1459 = vmatprep.subr.mxu0 0.0
      %1460 = vmatpush1.msra.mxu0 %v1110
      %1461 = vmatprep.subr.mxu0 0.0
      %1462 = vmatpush1.msra.mxu0 0.0
      %1463 = vmatprep.subr.mxu0 0.0
      %1464 = vmatpush1.msra.mxu0 0.0
      %1465 = vmatprep.subr.mxu0 0.0
      %1466 = vmatpush1.msra.mxu0 0.0
      %1467 = vmatprep.subr.mxu0 0.0
      %1468 = vmatpush1.msra.mxu0 0.0
      %1469 = vmatprep.subr.mxu0 0.0
      %1470 = vmatpush1.msra.mxu0 0.0
      %1471 = vmatprep.subr.mxu0 0.0
      %1472 = vmatpush1.msra.mxu0 0.0
      %1473 = vmatprep.subr.mxu0 0.0
      %1474 = vmatpush1.msra.mxu0 0.0
      %1475 = vmatprep.subr.mxu0 0.0
      %1476 = vmatpush1.msra.mxu0 0.0
      %1477 = vmatprep.subr.mxu0 0.0
      %1478 = vmatpush1.msra.mxu0 0.0
      %1479 = vmatprep.subr.mxu0 0.0
      %1480 = vmatpush1.msra.mxu0 0.0
      %1481 = vmatprep.subr.mxu0 0.0
      %1482 = vmatpush1.msra.mxu0 0.0
      %1483 = vmatprep.subr.mxu0 0.0
      %1484 = vmatpush1.msra.mxu0 0.0
      %1485 = vmatprep.subr.mxu0 0.0
      %1486 = vmatpush1.msra.mxu0 0.0
      %1487 = vmatprep.subr.mxu0 0.0
      %1488 = vmatpush1.msra.mxu0 0.0
      %1489 = vmatprep.subr.mxu0 0.0
      %1490 = vmatpush1.msra.mxu0 0.0
      %1491 = vmatprep.subr.mxu0 0.0
      %1492 = vmatpush1.msra.mxu0 0.0
      %1493 = vmatprep.subr.mxu0 0.0
      %1494 = vmatpush1.msra.mxu0 0.0
      %1495 = vmatprep.subr.mxu0 0.0
      %1496 = vmatpush1.msra.mxu0 0.0
      %1497 = vmatprep.subr.mxu0 0.0
      %1498 = vmatpush1.msra.mxu0 0.0
      %1499 = vmatprep.subr.mxu0 0.0
      %1500 = vmatpush1.msra.mxu0 0.0
      %1501 = vmatprep.subr.mxu0 0.0
      %1502 = vmatpush1.msra.mxu0 0.0
      %1503 = vmatprep.subr.mxu0 0.0
      %1504 = vmatpush1.msra.mxu0 0.0
      %1505 = vmatprep.subr.mxu0 0.0
      %1506 = vmatpush1.msra.mxu0 0.0
      %1507 = vmatprep.subr.mxu0 0.0
      %1508 = vmatpush1.msra.mxu0 0.0
      %1509 = vmatprep.subr.mxu0 0.0
      %1510 = vmatpush1.msra.mxu0 0.0
      %1511 = vmatprep.subr.mxu0 0.0
      %1512 = vmatpush1.msra.mxu0 0.0
      %1513 = vmatprep.subr.mxu0 0.0
      %1514 = vmatpush1.msra.mxu0 0.0
      %1515 = vmatprep.subr.mxu0 0.0
      %1516 = vmatpush1.msra.mxu0 0.0
      %1517 = vmatprep.mubr.f32.mxu0 0.0
      %1518 = vmatmul.mubr.f32.gmra.mrb[0].mxu0 %v1448
      %v1519 = vpop.f32.mrb[0].mxu0
      %v1520 = vadd.f32 0.0, %v1519
      %v1521 = vpop.f32.mrb[0].mxu0
      %1522 = vmatprep.mubr.f32.mxu0 0.0
      %1523 = vmatmul.mubr.f32.gmra.mrb[0].mxu0 %v1451
      %v1524 = vpop.f32.mrb[0].mxu0
      %v1525 = vadd.f32 0.0, %v1524
      %v1526 = vpop.f32.mrb[0].mxu0
      %1527 = vdwg.mxu0
      %v1528 = vld [vmem:[%s7 + $0x10] sm:$0xff]
      %v1530 = vsel %vm1281, %v1520, 0
      %v1533 = vsel %vm1281, %v1525, 0
      %1535 = vmatprep.subr.mxu0 0.0
      %1536 = vmatpush1.msra.mxu0 %v1528
      %1537 = vmatprep.subr.mxu0 0.0
      %1538 = vmatpush1.msra.mxu0 0.0
      %1539 = vmatprep.subr.mxu0 0.0
      %1540 = vmatpush1.msra.mxu0 0.0
      %1541 = vmatprep.subr.mxu0 0.0
      %1542 = vmatpush1.msra.mxu0 0.0
      %1543 = vmatprep.subr.mxu0 0.0
      %1544 = vmatpush1.msra.mxu0 0.0
      %1545 = vmatprep.subr.mxu0 0.0
      %1546 = vmatpush1.msra.mxu0 0.0
      %1547 = vmatprep.subr.mxu0 0.0
      %1548 = vmatpush1.msra.mxu0 0.0
      %1549 = vmatprep.subr.mxu0 0.0
      %1550 = vmatpush1.msra.mxu0 0.0
      %1551 = vmatprep.subr.mxu0 0.0
      %1552 = vmatpush1.msra.mxu0 0.0
      %1553 = vmatprep.subr.mxu0 0.0
      %1554 = vmatpush1.msra.mxu0 0.0
      %1555 = vmatprep.subr.mxu0 0.0
      %1556 = vmatpush1.msra.mxu0 0.0
      %1557 = vmatprep.subr.mxu0 0.0
      %1558 = vmatpush1.msra.mxu0 0.0
      %1559 = vmatprep.subr.mxu0 0.0
      %1560 = vmatpush1.msra.mxu0 0.0
      %1561 = vmatprep.subr.mxu0 0.0
      %1562 = vmatpush1.msra.mxu0 0.0
      %1563 = vmatprep.subr.mxu0 0.0
      %1564 = vmatpush1.msra.mxu0 0.0
      %1565 = vmatprep.subr.mxu0 0.0
      %1566 = vmatpush1.msra.mxu0 0.0
      %1567 = vmatprep.subr.mxu0 0.0
      %1568 = vmatpush1.msra.mxu0 0.0
      %1569 = vmatprep.subr.mxu0 0.0
      %1570 = vmatpush1.msra.mxu0 0.0
      %1571 = vmatprep.subr.mxu0 0.0
      %1572 = vmatpush1.msra.mxu0 0.0
      %1573 = vmatprep.subr.mxu0 0.0
      %1574 = vmatpush1.msra.mxu0 0.0
      %1575 = vmatprep.subr.mxu0 0.0
      %1576 = vmatpush1.msra.mxu0 0.0
      %1577 = vmatprep.subr.mxu0 0.0
      %1578 = vmatpush1.msra.mxu0 0.0
      %1579 = vmatprep.subr.mxu0 0.0
      %1580 = vmatpush1.msra.mxu0 0.0
      %1581 = vmatprep.subr.mxu0 0.0
      %1582 = vmatpush1.msra.mxu0 0.0
      %1583 = vmatprep.subr.mxu0 0.0
      %1584 = vmatpush1.msra.mxu0 0.0
      %1585 = vmatprep.subr.mxu0 0.0
      %1586 = vmatpush1.msra.mxu0 0.0
      %1587 = vmatprep.subr.mxu0 0.0
      %1588 = vmatpush1.msra.mxu0 0.0
      %1589 = vmatprep.subr.mxu0 0.0
      %1590 = vmatpush1.msra.mxu0 0.0
      %1591 = vmatprep.subr.mxu0 0.0
      %1592 = vmatpush1.msra.mxu0 0.0
      %1593 = vmatprep.subr.mxu0 0.0
      %1594 = vmatpush1.msra.mxu0 0.0
      %1595 = vmatprep.subr.mxu0 0.0
      %1596 = vmatpush1.msra.mxu0 0.0
      %1597 = vmatprep.subr.mxu0 0.0
      %1598 = vmatpush1.msra.mxu0 0.0
      %1599 = vmatprep.mubr.f32.mxu0 0.0
      %1600 = vmatmul.mubr.f32.gmra.mrb[0].mxu0 %v1530
      %v1601 = vpop.f32.mrb[0].mxu0
      %v1602 = vadd.f32 0.0, %v1601
      %v1603 = vpop.f32.mrb[0].mxu0
      %1604 = vmatprep.mubr.f32.mxu0 0.0
      %1605 = vmatmul.mubr.f32.gmra.mrb[0].mxu0 %v1533
      %v1606 = vpop.f32.mrb[0].mxu0
      %v1607 = vadd.f32 0.0, %v1606
      %v1608 = vpop.f32.mrb[0].mxu0
      %1609 = vdwg.mxu0
      %v1610 = vadd.f32 %v1436, %v1602
      %v1611 = vadd.f32 %v1441, %v1607
      %s1612 = scalar_lea.vmem %s3, 48
      %v1613 = vld [vmem:[%s1612] sm:$0xff]
      %v1614 = vld [vmem:[%s1612 + $0x8] sm:$0xff]
      %v1616 = vsel %vm1113, %v1613, 0
      %v1619 = vsel %vm1113, %v1614, 0
      %1621 = vmatprep.subr.mxu0 0.0
      %1622 = vmatpush1.msra.mxu0 %v1107
      %1623 = vmatprep.subr.mxu0 0.0
      %1624 = vmatpush1.msra.mxu0 %v1108
      %1625 = vmatprep.subr.mxu0 0.0
      %1626 = vmatpush1.msra.mxu0 %v1109
      %1627 = vmatprep.subr.mxu0 0.0
      %1628 = vmatpush1.msra.mxu0 %v1110
      %1629 = vmatprep.subr.mxu0 0.0
      %1630 = vmatpush1.msra.mxu0 0.0
      %1631 = vmatprep.subr.mxu0 0.0
      %1632 = vmatpush1.msra.mxu0 0.0
      %1633 = vmatprep.subr.mxu0 0.0
      %1634 = vmatpush1.msra.mxu0 0.0
      %1635 = vmatprep.subr.mxu0 0.0
      %1636 = vmatpush1.msra.mxu0 0.0
      %1637 = vmatprep.subr.mxu0 0.0
      %1638 = vmatpush1.msra.mxu0 0.0
      %1639 = vmatprep.subr.mxu0 0.0
      %1640 = vmatpush1.msra.mxu0 0.0
      %1641 = vmatprep.subr.mxu0 0.0
      %1642 = vmatpush1.msra.mxu0 0.0
      %1643 = vmatprep.subr.mxu0 0.0
      %1644 = vmatpush1.msra.mxu0 0.0
      %1645 = vmatprep.subr.mxu0 0.0
      %1646 = vmatpush1.msra.mxu0 0.0
      %1647 = vmatprep.subr.mxu0 0.0
      %1648 = vmatpush1.msra.mxu0 0.0
      %1649 = vmatprep.subr.mxu0 0.0
      %1650 = vmatpush1.msra.mxu0 0.0
      %1651 = vmatprep.subr.mxu0 0.0
      %1652 = vmatpush1.msra.mxu0 0.0
      %1653 = vmatprep.subr.mxu0 0.0
      %1654 = vmatpush1.msra.mxu0 0.0
      %1655 = vmatprep.subr.mxu0 0.0
      %1656 = vmatpush1.msra.mxu0 0.0
      %1657 = vmatprep.subr.mxu0 0.0
      %1658 = vmatpush1.msra.mxu0 0.0
      %1659 = vmatprep.subr.mxu0 0.0
      %1660 = vmatpush1.msra.mxu0 0.0
      %1661 = vmatprep.subr.mxu0 0.0
      %1662 = vmatpush1.msra.mxu0 0.0
      %1663 = vmatprep.subr.mxu0 0.0
      %1664 = vmatpush1.msra.mxu0 0.0
      %1665 = vmatprep.subr.mxu0 0.0
      %1666 = vmatpush1.msra.mxu0 0.0
      %1667 = vmatprep.subr.mxu0 0.0
      %1668 = vmatpush1.msra.mxu0 0.0
      %1669 = vmatprep.subr.mxu0 0.0
      %1670 = vmatpush1.msra.mxu0 0.0
      %1671 = vmatprep.subr.mxu0 0.0
      %1672 = vmatpush1.msra.mxu0 0.0
      %1673 = vmatprep.subr.mxu0 0.0
      %1674 = vmatpush1.msra.mxu0 0.0
      %1675 = vmatprep.subr.mxu0 0.0
      %1676 = vmatpush1.msra.mxu0 0.0
      %1677 = vmatprep.subr.mxu0 0.0
      %1678 = vmatpush1.msra.mxu0 0.0
      %1679 = vmatprep.subr.mxu0 0.0
      %1680 = vmatpush1.msra.mxu0 0.0
      %1681 = vmatprep.subr.mxu0 0.0
      %1682 = vmatpush1.msra.mxu0 0.0
      %1683 = vmatprep.subr.mxu0 0.0
      %1684 = vmatpush1.msra.mxu0 0.0
      %1685 = vmatprep.mubr.f32.mxu0 0.0
      %1686 = vmatmul.mubr.f32.gmra.mrb[0].mxu0 %v1616
      %v1687 = vpop.f32.mrb[0].mxu0
      %v1688 = vadd.f32 0.0, %v1687
      %v1689 = vpop.f32.mrb[0].mxu0
      %1690 = vmatprep.mubr.f32.mxu0 0.0
      %1691 = vmatmul.mubr.f32.gmra.mrb[0].mxu0 %v1619
      %v1692 = vpop.f32.mrb[0].mxu0
      %v1693 = vadd.f32 0.0, %v1692
      %v1694 = vpop.f32.mrb[0].mxu0
      %1695 = vdwg.mxu0
      %v1696 = vld [vmem:[%s7 + $0x18] sm:$0xff]
      %v1698 = vsel %vm1281, %v1688, 0
      %v1701 = vsel %vm1281, %v1693, 0
      %1703 = vmatprep.subr.mxu0 0.0
      %1704 = vmatpush1.msra.mxu0 %v1696
      %1705 = vmatprep.subr.mxu0 0.0
      %1706 = vmatpush1.msra.mxu0 0.0
      %1707 = vmatprep.subr.mxu0 0.0
      %1708 = vmatpush1.msra.mxu0 0.0
      %1709 = vmatprep.subr.mxu0 0.0
      %1710 = vmatpush1.msra.mxu0 0.0
      %1711 = vmatprep.subr.mxu0 0.0
      %1712 = vmatpush1.msra.mxu0 0.0
      %1713 = vmatprep.subr.mxu0 0.0
      %1714 = vmatpush1.msra.mxu0 0.0
      %1715 = vmatprep.subr.mxu0 0.0
      %1716 = vmatpush1.msra.mxu0 0.0
      %1717 = vmatprep.subr.mxu0 0.0
      %1718 = vmatpush1.msra.mxu0 0.0
      %1719 = vmatprep.subr.mxu0 0.0
      %1720 = vmatpush1.msra.mxu0 0.0
      %1721 = vmatprep.subr.mxu0 0.0
      %1722 = vmatpush1.msra.mxu0 0.0
      %1723 = vmatprep.subr.mxu0 0.0
      %1724 = vmatpush1.msra.mxu0 0.0
      %1725 = vmatprep.subr.mxu0 0.0
      %1726 = vmatpush1.msra.mxu0 0.0
      %1727 = vmatprep.subr.mxu0 0.0
      %1728 = vmatpush1.msra.mxu0 0.0
      %1729 = vmatprep.subr.mxu0 0.0
      %1730 = vmatpush1.msra.mxu0 0.0
      %1731 = vmatprep.subr.mxu0 0.0
      %1732 = vmatpush1.msra.mxu0 0.0
      %1733 = vmatprep.subr.mxu0 0.0
      %1734 = vmatpush1.msra.mxu0 0.0
      %1735 = vmatprep.subr.mxu0 0.0
      %1736 = vmatpush1.msra.mxu0 0.0
      %1737 = vmatprep.subr.mxu0 0.0
      %1738 = vmatpush1.msra.mxu0 0.0
      %1739 = vmatprep.subr.mxu0 0.0
      %1740 = vmatpush1.msra.mxu0 0.0
      %1741 = vmatprep.subr.mxu0 0.0
      %1742 = vmatpush1.msra.mxu0 0.0
      %1743 = vmatprep.subr.mxu0 0.0
      %1744 = vmatpush1.msra.mxu0 0.0
      %1745 = vmatprep.subr.mxu0 0.0
      %1746 = vmatpush1.msra.mxu0 0.0
      %1747 = vmatprep.subr.mxu0 0.0
      %1748 = vmatpush1.msra.mxu0 0.0
      %1749 = vmatprep.subr.mxu0 0.0
      %1750 = vmatpush1.msra.mxu0 0.0
      %1751 = vmatprep.subr.mxu0 0.0
      %1752 = vmatpush1.msra.mxu0 0.0
      %1753 = vmatprep.subr.mxu0 0.0
      %1754 = vmatpush1.msra.mxu0 0.0
      %1755 = vmatprep.subr.mxu0 0.0
      %1756 = vmatpush1.msra.mxu0 0.0
      %1757 = vmatprep.subr.mxu0 0.0
      %1758 = vmatpush1.msra.mxu0 0.0
      %1759 = vmatprep.subr.mxu0 0.0
      %1760 = vmatpush1.msra.mxu0 0.0
      %1761 = vmatprep.subr.mxu0 0.0
      %1762 = vmatpush1.msra.mxu0 0.0
      %1763 = vmatprep.subr.mxu0 0.0
      %1764 = vmatpush1.msra.mxu0 0.0
      %1765 = vmatprep.subr.mxu0 0.0
      %1766 = vmatpush1.msra.mxu0 0.0
      %1767 = vmatprep.mubr.f32.mxu0 0.0
      %1768 = vmatmul.mubr.f32.gmra.mrb[0].mxu0 %v1698
      %v1769 = vpop.f32.mrb[0].mxu0
      %v1770 = vadd.f32 0.0, %v1769
      %v1771 = vpop.f32.mrb[0].mxu0
      %1772 = vmatprep.mubr.f32.mxu0 0.0
      %1773 = vmatmul.mubr.f32.gmra.mrb[0].mxu0 %v1701
      %v1774 = vpop.f32.mrb[0].mxu0
      %v1775 = vadd.f32 0.0, %v1774
      %v1776 = vpop.f32.mrb[0].mxu0
      %1777 = vdwg.mxu0
      %v1778 = vadd.f32 %v1610, %v1770
      %v1779 = vadd.f32 %v1611, %v1775
      %s1780 = scalar_lea.vmem %s3, 64
      %v1781 = vld [vmem:[%s1780] sm:$0xff]
      %v1782 = vld [vmem:[%s1780 + $0x8] sm:$0xff]
      %v1784 = vsel %vm1113, %v1781, 0
      %v1787 = vsel %vm1113, %v1782, 0
      %1789 = vmatprep.subr.mxu0 0.0
      %1790 = vmatpush1.msra.mxu0 %v1107
      %1791 = vmatprep.subr.mxu0 0.0
      %1792 = vmatpush1.msra.mxu0 %v1108
      %1793 = vmatprep.subr.mxu0 0.0
      %1794 = vmatpush1.msra.mxu0 %v1109
      %1795 = vmatprep.subr.mxu0 0.0
      %1796 = vmatpush1.msra.mxu0 %v1110
      %1797 = vmatprep.subr.mxu0 0.0
      %1798 = vmatpush1.msra.mxu0 0.0
      %1799 = vmatprep.subr.mxu0 0.0
      %1800 = vmatpush1.msra.mxu0 0.0
      %1801 = vmatprep.subr.mxu0 0.0
      %1802 = vmatpush1.msra.mxu0 0.0
      %1803 = vmatprep.subr.mxu0 0.0
      %1804 = vmatpush1.msra.mxu0 0.0
      %1805 = vmatprep.subr.mxu0 0.0
      %1806 = vmatpush1.msra.mxu0 0.0
      %1807 = vmatprep.subr.mxu0 0.0
      %1808 = vmatpush1.msra.mxu0 0.0
      %1809 = vmatprep.subr.mxu0 0.0
      %1810 = vmatpush1.msra.mxu0 0.0
      %1811 = vmatprep.subr.mxu0 0.0
      %1812 = vmatpush1.msra.mxu0 0.0
      %1813 = vmatprep.subr.mxu0 0.0
      %1814 = vmatpush1.msra.mxu0 0.0
      %1815 = vmatprep.subr.mxu0 0.0
      %1816 = vmatpush1.msra.mxu0 0.0
      %1817 = vmatprep.subr.mxu0 0.0
      %1818 = vmatpush1.msra.mxu0 0.0
      %1819 = vmatprep.subr.mxu0 0.0
      %1820 = vmatpush1.msra.mxu0 0.0
      %1821 = vmatprep.subr.mxu0 0.0
      %1822 = vmatpush1.msra.mxu0 0.0
      %1823 = vmatprep.subr.mxu0 0.0
      %1824 = vmatpush1.msra.mxu0 0.0
      %1825 = vmatprep.subr.mxu0 0.0
      %1826 = vmatpush1.msra.mxu0 0.0
      %1827 = vmatprep.subr.mxu0 0.0
      %1828 = vmatpush1.msra.mxu0 0.0
      %1829 = vmatprep.subr.mxu0 0.0
      %1830 = vmatpush1.msra.mxu0 0.0
      %1831 = vmatprep.subr.mxu0 0.0
      %1832 = vmatpush1.msra.mxu0 0.0
      %1833 = vmatprep.subr.mxu0 0.0
      %1834 = vmatpush1.msra.mxu0 0.0
      %1835 = vmatprep.subr.mxu0 0.0
      %1836 = vmatpush1.msra.mxu0 0.0
      %1837 = vmatprep.subr.mxu0 0.0
      %1838 = vmatpush1.msra.mxu0 0.0
      %1839 = vmatprep.subr.mxu0 0.0
      %1840 = vmatpush1.msra.mxu0 0.0
      %1841 = vmatprep.subr.mxu0 0.0
      %1842 = vmatpush1.msra.mxu0 0.0
      %1843 = vmatprep.subr.mxu0 0.0
      %1844 = vmatpush1.msra.mxu0 0.0
      %1845 = vmatprep.subr.mxu0 0.0
      %1846 = vmatpush1.msra.mxu0 0.0
      %1847 = vmatprep.subr.mxu0 0.0
      %1848 = vmatpush1.msra.mxu0 0.0
      %1849 = vmatprep.subr.mxu0 0.0
      %1850 = vmatpush1.msra.mxu0 0.0
      %1851 = vmatprep.subr.mxu0 0.0
      %1852 = vmatpush1.msra.mxu0 0.0
      %1853 = vmatprep.mubr.f32.mxu0 0.0
      %1854 = vmatmul.mubr.f32.gmra.mrb[0].mxu0 %v1784
      %v1855 = vpop.f32.mrb[0].mxu0
      %v1856 = vadd.f32 0.0, %v1855
      %v1857 = vpop.f32.mrb[0].mxu0
      %1858 = vmatprep.mubr.f32.mxu0 0.0
      %1859 = vmatmul.mubr.f32.gmra.mrb[0].mxu0 %v1787
      %v1860 = vpop.f32.mrb[0].mxu0
      %v1861 = vadd.f32 0.0, %v1860
      %v1862 = vpop.f32.mrb[0].mxu0
      %1863 = vdwg.mxu0
      %v1864 = vld [vmem:[%s7 + $0x20] sm:$0xff]
      %v1866 = vsel %vm1281, %v1856, 0
      %v1869 = vsel %vm1281, %v1861, 0
      %1871 = vmatprep.subr.mxu0 0.0
      %1872 = vmatpush1.msra.mxu0 %v1864
      %1873 = vmatprep.subr.mxu0 0.0
      %1874 = vmatpush1.msra.mxu0 0.0
      %1875 = vmatprep.subr.mxu0 0.0
      %1876 = vmatpush1.msra.mxu0 0.0
      %1877 = vmatprep.subr.mxu0 0.0
      %1878 = vmatpush1.msra.mxu0 0.0
      %1879 = vmatprep.subr.mxu0 0.0
      %1880 = vmatpush1.msra.mxu0 0.0
      %1881 = vmatprep.subr.mxu0 0.0
      %1882 = vmatpush1.msra.mxu0 0.0
      %1883 = vmatprep.subr.mxu0 0.0
      %1884 = vmatpush1.msra.mxu0 0.0
      %1885 = vmatprep.subr.mxu0 0.0
      %1886 = vmatpush1.msra.mxu0 0.0
      %1887 = vmatprep.subr.mxu0 0.0
      %1888 = vmatpush1.msra.mxu0 0.0
      %1889 = vmatprep.subr.mxu0 0.0
      %1890 = vmatpush1.msra.mxu0 0.0
      %1891 = vmatprep.subr.mxu0 0.0
      %1892 = vmatpush1.msra.mxu0 0.0
      %1893 = vmatprep.subr.mxu0 0.0
      %1894 = vmatpush1.msra.mxu0 0.0
      %1895 = vmatprep.subr.mxu0 0.0
      %1896 = vmatpush1.msra.mxu0 0.0
      %1897 = vmatprep.subr.mxu0 0.0
      %1898 = vmatpush1.msra.mxu0 0.0
      %1899 = vmatprep.subr.mxu0 0.0
      %1900 = vmatpush1.msra.mxu0 0.0
      %1901 = vmatprep.subr.mxu0 0.0
      %1902 = vmatpush1.msra.mxu0 0.0
      %1903 = vmatprep.subr.mxu0 0.0
      %1904 = vmatpush1.msra.mxu0 0.0
      %1905 = vmatprep.subr.mxu0 0.0
      %1906 = vmatpush1.msra.mxu0 0.0
      %1907 = vmatprep.subr.mxu0 0.0
      %1908 = vmatpush1.msra.mxu0 0.0
      %1909 = vmatprep.subr.mxu0 0.0
      %1910 = vmatpush1.msra.mxu0 0.0
      %1911 = vmatprep.subr.mxu0 0.0
      %1912 = vmatpush1.msra.mxu0 0.0
      %1913 = vmatprep.subr.mxu0 0.0
      %1914 = vmatpush1.msra.mxu0 0.0
      %1915 = vmatprep.subr.mxu0 0.0
      %1916 = vmatpush1.msra.mxu0 0.0
      %1917 = vmatprep.subr.mxu0 0.0
      %1918 = vmatpush1.msra.mxu0 0.0
      %1919 = vmatprep.subr.mxu0 0.0
      %1920 = vmatpush1.msra.mxu0 0.0
      %1921 = vmatprep.subr.mxu0 0.0
      %1922 = vmatpush1.msra.mxu0 0.0
      %1923 = vmatprep.subr.mxu0 0.0
      %1924 = vmatpush1.msra.mxu0 0.0
      %1925 = vmatprep.subr.mxu0 0.0
      %1926 = vmatpush1.msra.mxu0 0.0
      %1927 = vmatprep.subr.mxu0 0.0
      %1928 = vmatpush1.msra.mxu0 0.0
      %1929 = vmatprep.subr.mxu0 0.0
      %1930 = vmatpush1.msra.mxu0 0.0
      %1931 = vmatprep.subr.mxu0 0.0
      %1932 = vmatpush1.msra.mxu0 0.0
      %1933 = vmatprep.subr.mxu0 0.0
      %1934 = vmatpush1.msra.mxu0 0.0
      %1935 = vmatprep.mubr.f32.mxu0 0.0
      %1936 = vmatmul.mubr.f32.gmra.mrb[0].mxu0 %v1866
      %v1937 = vpop.f32.mrb[0].mxu0
      %v1938 = vadd.f32 0.0, %v1937
      %v1939 = vpop.f32.mrb[0].mxu0
      %1940 = vmatprep.mubr.f32.mxu0 0.0
      %1941 = vmatmul.mubr.f32.gmra.mrb[0].mxu0 %v1869
      %v1942 = vpop.f32.mrb[0].mxu0
      %v1943 = vadd.f32 0.0, %v1942
      %v1944 = vpop.f32.mrb[0].mxu0
      %1945 = vdwg.mxu0
      %v1946 = vadd.f32 %v1778, %v1938
      %v1947 = vadd.f32 %v1779, %v1943
      %v1948 = vld [vmem:[%s8] sm:$0x1]
      %v1950 = vlaneseq
      %v1951 = vshrl.u32 %v1950, 7
      %v1952 = vsub.s32 0, %v1951
      %v1953 = vrot.slane %v1948, %v1952
      %v1955 = vadd.f32 %v1946, %v1953
      %v1956 = vadd.f32 %v1947, %v1953
      %vm1957 = vcmp.ge.f32.partialorder %v1955, 0.0
      %vm1958 = vcmp.ge.f32.partialorder %v1956, 0.0
      %v1959 = vmul.f32 %v1955, 0.1
      %v1960 = vmul.f32 %v1956, 0.1
      %v1961 = vsel %vm1957, %v1955, %v1959
      %v1962 = vsel %vm1958, %v1956, %v1960
      %v1963 = vld [vmem:[%s4] sm:$0xff]
      %v1964 = vld [vmem:[%s4 + $0x8] sm:$0xff]
      %vm1965 = vcmask 130048
      %v1967 = vsel %vm1965, %v1963, 0
      %v1970 = vsel %vm1965, %v1964, 0
      %1972 = vmatprep.subr.mxu0 0.0
      %1973 = vmatpush1.msra.mxu0 %v1961
      %1974 = vmatprep.subr.mxu0 0.0
      %1975 = vmatpush1.msra.mxu0 %v1962
      %1976 = vmatprep.subr.mxu0 0.0
      %1977 = vmatpush1.msra.mxu0 0.0
      %1978 = vmatprep.subr.mxu0 0.0
      %1979 = vmatpush1.msra.mxu0 0.0
      %1980 = vmatprep.subr.mxu0 0.0
      %1981 = vmatpush1.msra.mxu0 0.0
      %1982 = vmatprep.subr.mxu0 0.0
      %1983 = vmatpush1.msra.mxu0 0.0
      %1984 = vmatprep.subr.mxu0 0.0
      %1985 = vmatpush1.msra.mxu0 0.0
      %1986 = vmatprep.subr.mxu0 0.0
      %1987 = vmatpush1.msra.mxu0 0.0
      %1988 = vmatprep.subr.mxu0 0.0
      %1989 = vmatpush1.msra.mxu0 0.0
      %1990 = vmatprep.subr.mxu0 0.0
      %1991 = vmatpush1.msra.mxu0 0.0
      %1992 = vmatprep.subr.mxu0 0.0
      %1993 = vmatpush1.msra.mxu0 0.0
      %1994 = vmatprep.subr.mxu0 0.0
      %1995 = vmatpush1.msra.mxu0 0.0
      %1996 = vmatprep.subr.mxu0 0.0
      %1997 = vmatpush1.msra.mxu0 0.0
      %1998 = vmatprep.subr.mxu0 0.0
      %1999 = vmatpush1.msra.mxu0 0.0
      %2000 = vmatprep.subr.mxu0 0.0
      %2001 = vmatpush1.msra.mxu0 0.0
      %2002 = vmatprep.subr.mxu0 0.0
      %2003 = vmatpush1.msra.mxu0 0.0
      %2004 = vmatprep.subr.mxu0 0.0
      %2005 = vmatpush1.msra.mxu0 0.0
      %2006 = vmatprep.subr.mxu0 0.0
      %2007 = vmatpush1.msra.mxu0 0.0
      %2008 = vmatprep.subr.mxu0 0.0
      %2009 = vmatpush1.msra.mxu0 0.0
      %2010 = vmatprep.subr.mxu0 0.0
      %2011 = vmatpush1.msra.mxu0 0.0
      %2012 = vmatprep.subr.mxu0 0.0
      %2013 = vmatpush1.msra.mxu0 0.0
      %2014 = vmatprep.subr.mxu0 0.0
      %2015 = vmatpush1.msra.mxu0 0.0
      %2016 = vmatprep.subr.mxu0 0.0
      %2017 = vmatpush1.msra.mxu0 0.0
      %2018 = vmatprep.subr.mxu0 0.0
      %2019 = vmatpush1.msra.mxu0 0.0
      %2020 = vmatprep.subr.mxu0 0.0
      %2021 = vmatpush1.msra.mxu0 0.0
      %2022 = vmatprep.subr.mxu0 0.0
      %2023 = vmatpush1.msra.mxu0 0.0
      %2024 = vmatprep.subr.mxu0 0.0
      %2025 = vmatpush1.msra.mxu0 0.0
      %2026 = vmatprep.subr.mxu0 0.0
      %2027 = vmatpush1.msra.mxu0 0.0
      %2028 = vmatprep.subr.mxu0 0.0
      %2029 = vmatpush1.msra.mxu0 0.0
      %2030 = vmatprep.subr.mxu0 0.0
      %2031 = vmatpush1.msra.mxu0 0.0
      %2032 = vmatprep.subr.mxu0 0.0
      %2033 = vmatpush1.msra.mxu0 0.0
      %2034 = vmatprep.subr.mxu0 0.0
      %2035 = vmatpush1.msra.mxu0 0.0
      %2036 = vmatprep.mubr.f32.mxu0 0.0
      %2037 = vmatmul.mubr.f32.gmra.mrb[0].mxu0 %v1967
      %v2038 = vpop.f32.mrb[0].mxu0
      %v2039 = vadd.f32 0.0, %v2038
      %v2040 = vpop.f32.mrb[0].mxu0
      %2041 = vmatprep.mubr.f32.mxu0 0.0
      %2042 = vmatmul.mubr.f32.gmra.mrb[0].mxu0 %v1970
      %v2043 = vpop.f32.mrb[0].mxu0
      %v2044 = vadd.f32 0.0, %v2043
      %v2045 = vpop.f32.mrb[0].mxu0
      %2046 = vdwg.mxu0
      %v2047 = vld [vmem:[%s9] sm:$0xff]
      %v2048 = vld [vmem:[%s9 + $0x8] sm:$0xff]
      %s2049 = scalar_lea.vmem %s4, 16
      %v2050 = vld [vmem:[%s2049] sm:$0xff]
      %v2051 = vld [vmem:[%s2049 + $0x8] sm:$0xff]
      %v2053 = vsel %vm1965, %v2050, 0
      %v2056 = vsel %vm1965, %v2051, 0
      %2058 = vmatprep.subr.mxu0 0.0
      %2059 = vmatpush1.msra.mxu0 %v1961
      %2060 = vmatprep.subr.mxu0 0.0
      %2061 = vmatpush1.msra.mxu0 %v1962
      %2062 = vmatprep.subr.mxu0 0.0
      %2063 = vmatpush1.msra.mxu0 0.0
      %2064 = vmatprep.subr.mxu0 0.0
      %2065 = vmatpush1.msra.mxu0 0.0
      %2066 = vmatprep.subr.mxu0 0.0
      %2067 = vmatpush1.msra.mxu0 0.0
      %2068 = vmatprep.subr.mxu0 0.0
      %2069 = vmatpush1.msra.mxu0 0.0
      %2070 = vmatprep.subr.mxu0 0.0
      %2071 = vmatpush1.msra.mxu0 0.0
      %2072 = vmatprep.subr.mxu0 0.0
      %2073 = vmatpush1.msra.mxu0 0.0
      %2074 = vmatprep.subr.mxu0 0.0
      %2075 = vmatpush1.msra.mxu0 0.0
      %2076 = vmatprep.subr.mxu0 0.0
      %2077 = vmatpush1.msra.mxu0 0.0
      %2078 = vmatprep.subr.mxu0 0.0
      %2079 = vmatpush1.msra.mxu0 0.0
      %2080 = vmatprep.subr.mxu0 0.0
      %2081 = vmatpush1.msra.mxu0 0.0
      %2082 = vmatprep.subr.mxu0 0.0
      %2083 = vmatpush1.msra.mxu0 0.0
      %2084 = vmatprep.subr.mxu0 0.0
      %2085 = vmatpush1.msra.mxu0 0.0
      %2086 = vmatprep.subr.mxu0 0.0
      %2087 = vmatpush1.msra.mxu0 0.0
      %2088 = vmatprep.subr.mxu0 0.0
      %2089 = vmatpush1.msra.mxu0 0.0
      %2090 = vmatprep.subr.mxu0 0.0
      %2091 = vmatpush1.msra.mxu0 0.0
      %2092 = vmatprep.subr.mxu0 0.0
      %2093 = vmatpush1.msra.mxu0 0.0
      %2094 = vmatprep.subr.mxu0 0.0
      %2095 = vmatpush1.msra.mxu0 0.0
      %2096 = vmatprep.subr.mxu0 0.0
      %2097 = vmatpush1.msra.mxu0 0.0
      %2098 = vmatprep.subr.mxu0 0.0
      %2099 = vmatpush1.msra.mxu0 0.0
      %2100 = vmatprep.subr.mxu0 0.0
      %2101 = vmatpush1.msra.mxu0 0.0
      %2102 = vmatprep.subr.mxu0 0.0
      %2103 = vmatpush1.msra.mxu0 0.0
      %2104 = vmatprep.subr.mxu0 0.0
      %2105 = vmatpush1.msra.mxu0 0.0
      %2106 = vmatprep.subr.mxu0 0.0
      %2107 = vmatpush1.msra.mxu0 0.0
      %2108 = vmatprep.subr.mxu0 0.0
      %2109 = vmatpush1.msra.mxu0 0.0
      %2110 = vmatprep.subr.mxu0 0.0
      %2111 = vmatpush1.msra.mxu0 0.0
      %2112 = vmatprep.subr.mxu0 0.0
      %2113 = vmatpush1.msra.mxu0 0.0
      %2114 = vmatprep.subr.mxu0 0.0
      %2115 = vmatpush1.msra.mxu0 0.0
      %2116 = vmatprep.subr.mxu0 0.0
      %2117 = vmatpush1.msra.mxu0 0.0
      %2118 = vmatprep.subr.mxu0 0.0
      %2119 = vmatpush1.msra.mxu0 0.0
      %2120 = vmatprep.subr.mxu0 0.0
      %2121 = vmatpush1.msra.mxu0 0.0
      %2122 = vmatprep.mubr.f32.mxu0 0.0
      %2123 = vmatmul.mubr.f32.gmra.mrb[0].mxu0 %v2053
      %v2124 = vpop.f32.mrb[0].mxu0
      %v2125 = vadd.f32 0.0, %v2124
      %v2126 = vpop.f32.mrb[0].mxu0
      %2127 = vmatprep.mubr.f32.mxu0 0.0
      %2128 = vmatmul.mubr.f32.gmra.mrb[0].mxu0 %v2056
      %v2129 = vpop.f32.mrb[0].mxu0
      %v2130 = vadd.f32 0.0, %v2129
      %v2131 = vpop.f32.mrb[0].mxu0
      %2132 = vdwg.mxu0
      %v2133 = vld [vmem:[%s9 + $0x10] sm:$0xff]
      %v2134 = vld [vmem:[%s9 + $0x18] sm:$0xff]
      %v2136 = vsel %vm1965, %v2125, 0
      %v2139 = vsel %vm1965, %v2130, 0
      %2141 = vmatprep.subr.mxu0 0.0
      %2142 = vmatpush1.msra.mxu0 %v2133
      %2143 = vmatprep.subr.mxu0 0.0
      %2144 = vmatpush1.msra.mxu0 %v2134
      %2145 = vmatprep.subr.mxu0 0.0
      %2146 = vmatpush1.msra.mxu0 0.0
      %2147 = vmatprep.subr.mxu0 0.0
      %2148 = vmatpush1.msra.mxu0 0.0
      %2149 = vmatprep.subr.mxu0 0.0
      %2150 = vmatpush1.msra.mxu0 0.0
      %2151 = vmatprep.subr.mxu0 0.0
      %2152 = vmatpush1.msra.mxu0 0.0
      %2153 = vmatprep.subr.mxu0 0.0
      %2154 = vmatpush1.msra.mxu0 0.0
      %2155 = vmatprep.subr.mxu0 0.0
      %2156 = vmatpush1.msra.mxu0 0.0
      %2157 = vmatprep.subr.mxu0 0.0
      %2158 = vmatpush1.msra.mxu0 0.0
      %2159 = vmatprep.subr.mxu0 0.0
      %2160 = vmatpush1.msra.mxu0 0.0
      %2161 = vmatprep.subr.mxu0 0.0
      %2162 = vmatpush1.msra.mxu0 0.0
      %2163 = vmatprep.subr.mxu0 0.0
      %2164 = vmatpush1.msra.mxu0 0.0
      %2165 = vmatprep.subr.mxu0 0.0
      %2166 = vmatpush1.msra.mxu0 0.0
      %2167 = vmatprep.subr.mxu0 0.0
      %2168 = vmatpush1.msra.mxu0 0.0
      %2169 = vmatprep.subr.mxu0 0.0
      %2170 = vmatpush1.msra.mxu0 0.0
      %2171 = vmatprep.subr.mxu0 0.0
      %2172 = vmatpush1.msra.mxu0 0.0
      %2173 = vmatprep.subr.mxu0 0.0
      %2174 = vmatpush1.msra.mxu0 0.0
      %2175 = vmatprep.subr.mxu0 0.0
      %2176 = vmatpush1.msra.mxu0 0.0
      %2177 = vmatprep.subr.mxu0 0.0
      %2178 = vmatpush1.msra.mxu0 0.0
      %2179 = vmatprep.subr.mxu0 0.0
      %2180 = vmatpush1.msra.mxu0 0.0
      %2181 = vmatprep.subr.mxu0 0.0
      %2182 = vmatpush1.msra.mxu0 0.0
      %2183 = vmatprep.subr.mxu0 0.0
      %2184 = vmatpush1.msra.mxu0 0.0
      %2185 = vmatprep.subr.mxu0 0.0
      %2186 = vmatpush1.msra.mxu0 0.0
      %2187 = vmatprep.subr.mxu0 0.0
      %2188 = vmatpush1.msra.mxu0 0.0
      %2189 = vmatprep.subr.mxu0 0.0
      %2190 = vmatpush1.msra.mxu0 0.0
      %2191 = vmatprep.subr.mxu0 0.0
      %2192 = vmatpush1.msra.mxu0 0.0
      %2193 = vmatprep.subr.mxu0 0.0
      %2194 = vmatpush1.msra.mxu0 0.0
      %2195 = vmatprep.subr.mxu0 0.0
      %2196 = vmatpush1.msra.mxu0 0.0
      %2197 = vmatprep.subr.mxu0 0.0
      %2198 = vmatpush1.msra.mxu0 0.0
      %2199 = vmatprep.subr.mxu0 0.0
      %2200 = vmatpush1.msra.mxu0 0.0
      %2201 = vmatprep.subr.mxu0 0.0
      %2202 = vmatpush1.msra.mxu0 0.0
      %2203 = vmatprep.subr.mxu0 0.0
      %2204 = vmatpush1.msra.mxu0 0.0
      %2205 = vmatprep.mubr.f32.mxu0 0.0
      %2206 = vmatmul.mubr.f32.gmra.mrb[0].mxu0 %v2136
      %v2207 = vpop.f32.mrb[0].mxu0
      %v2208 = vadd.f32 0.0, %v2207
      %v2209 = vpop.f32.mrb[0].mxu0
      %2210 = vmatprep.mubr.f32.mxu0 0.0
      %2211 = vmatmul.mubr.f32.gmra.mrb[0].mxu0 %v2139
      %v2212 = vpop.f32.mrb[0].mxu0
      %v2213 = vadd.f32 0.0, %v2212
      %v2214 = vpop.f32.mrb[0].mxu0
      %2215 = vdwg.mxu0
      %v2217 = vsel %vm1965, %v2039, 0
      %v2220 = vsel %vm1965, %v2044, 0
      %2222 = vmatprep.subr.mxu0 0.0
      %2223 = vmatpush1.msra.mxu0 %v2047
      %2224 = vmatprep.subr.mxu0 0.0
      %2225 = vmatpush1.msra.mxu0 %v2048
      %2226 = vmatprep.subr.mxu0 0.0
      %2227 = vmatpush1.msra.mxu0 0.0
      %2228 = vmatprep.subr.mxu0 0.0
      %2229 = vmatpush1.msra.mxu0 0.0
      %2230 = vmatprep.subr.mxu0 0.0
      %2231 = vmatpush1.msra.mxu0 0.0
      %2232 = vmatprep.subr.mxu0 0.0
      %2233 = vmatpush1.msra.mxu0 0.0
      %2234 = vmatprep.subr.mxu0 0.0
      %2235 = vmatpush1.msra.mxu0 0.0
      %2236 = vmatprep.subr.mxu0 0.0
      %2237 = vmatpush1.msra.mxu0 0.0
      %2238 = vmatprep.subr.mxu0 0.0
      %2239 = vmatpush1.msra.mxu0 0.0
      %2240 = vmatprep.subr.mxu0 0.0
      %2241 = vmatpush1.msra.mxu0 0.0
      %2242 = vmatprep.subr.mxu0 0.0
      %2243 = vmatpush1.msra.mxu0 0.0
      %2244 = vmatprep.subr.mxu0 0.0
      %2245 = vmatpush1.msra.mxu0 0.0
      %2246 = vmatprep.subr.mxu0 0.0
      %2247 = vmatpush1.msra.mxu0 0.0
      %2248 = vmatprep.subr.mxu0 0.0
      %2249 = vmatpush1.msra.mxu0 0.0
      %2250 = vmatprep.subr.mxu0 0.0
      %2251 = vmatpush1.msra.mxu0 0.0
      %2252 = vmatprep.subr.mxu0 0.0
      %2253 = vmatpush1.msra.mxu0 0.0
      %2254 = vmatprep.subr.mxu0 0.0
      %2255 = vmatpush1.msra.mxu0 0.0
      %2256 = vmatprep.subr.mxu0 0.0
      %2257 = vmatpush1.msra.mxu0 0.0
      %2258 = vmatprep.subr.mxu0 0.0
      %2259 = vmatpush1.msra.mxu0 0.0
      %2260 = vmatprep.subr.mxu0 0.0
      %2261 = vmatpush1.msra.mxu0 0.0
      %2262 = vmatprep.subr.mxu0 0.0
      %2263 = vmatpush1.msra.mxu0 0.0
      %2264 = vmatprep.subr.mxu0 0.0
      %2265 = vmatpush1.msra.mxu0 0.0
      %2266 = vmatprep.subr.mxu0 0.0
      %2267 = vmatpush1.msra.mxu0 0.0
      %2268 = vmatprep.subr.mxu0 0.0
      %2269 = vmatpush1.msra.mxu0 0.0
      %2270 = vmatprep.subr.mxu0 0.0
      %2271 = vmatpush1.msra.mxu0 0.0
      %2272 = vmatprep.subr.mxu0 0.0
      %2273 = vmatpush1.msra.mxu0 0.0
      %2274 = vmatprep.subr.mxu0 0.0
      %2275 = vmatpush1.msra.mxu0 0.0
      %2276 = vmatprep.subr.mxu0 0.0
      %2277 = vmatpush1.msra.mxu0 0.0
      %2278 = vmatprep.subr.mxu0 0.0
      %2279 = vmatpush1.msra.mxu0 0.0
      %2280 = vmatprep.subr.mxu0 0.0
      %2281 = vmatpush1.msra.mxu0 0.0
      %2282 = vmatprep.subr.mxu0 0.0
      %2283 = vmatpush1.msra.mxu0 0.0
      %2284 = vmatprep.subr.mxu0 0.0
      %2285 = vmatpush1.msra.mxu0 0.0
      %2286 = vmatprep.mubr.f32.mxu0 0.0
      %2287 = vmatmul.mubr.f32.gmra.mrb[0].mxu0 %v2217
      %v2288 = vpop.f32.mrb[0].mxu0
      %v2289 = vadd.f32 %v2208, %v2288
      %v2290 = vpop.f32.mrb[0].mxu0
      %2291 = vmatprep.mubr.f32.mxu0 0.0
      %2292 = vmatmul.mubr.f32.gmra.mrb[0].mxu0 %v2220
      %v2293 = vpop.f32.mrb[0].mxu0
      %v2294 = vadd.f32 %v2213, %v2293
      %v2295 = vpop.f32.mrb[0].mxu0
      %2296 = vdwg.mxu0
      %s2297 = scalar_lea.vmem %s4, 32
      %v2298 = vld [vmem:[%s2297] sm:$0xff]
      %v2299 = vld [vmem:[%s2297 + $0x8] sm:$0xff]
      %v2301 = vsel %vm1965, %v2298, 0
      %v2304 = vsel %vm1965, %v2299, 0
      %2306 = vmatprep.subr.mxu0 0.0
      %2307 = vmatpush1.msra.mxu0 %v1961
      %2308 = vmatprep.subr.mxu0 0.0
      %2309 = vmatpush1.msra.mxu0 %v1962
      %2310 = vmatprep.subr.mxu0 0.0
      %2311 = vmatpush1.msra.mxu0 0.0
      %2312 = vmatprep.subr.mxu0 0.0
      %2313 = vmatpush1.msra.mxu0 0.0
      %2314 = vmatprep.subr.mxu0 0.0
      %2315 = vmatpush1.msra.mxu0 0.0
      %2316 = vmatprep.subr.mxu0 0.0
      %2317 = vmatpush1.msra.mxu0 0.0
      %2318 = vmatprep.subr.mxu0 0.0
      %2319 = vmatpush1.msra.mxu0 0.0
      %2320 = vmatprep.subr.mxu0 0.0
      %2321 = vmatpush1.msra.mxu0 0.0
      %2322 = vmatprep.subr.mxu0 0.0
      %2323 = vmatpush1.msra.mxu0 0.0
      %2324 = vmatprep.subr.mxu0 0.0
      %2325 = vmatpush1.msra.mxu0 0.0
      %2326 = vmatprep.subr.mxu0 0.0
      %2327 = vmatpush1.msra.mxu0 0.0
      %2328 = vmatprep.subr.mxu0 0.0
      %2329 = vmatpush1.msra.mxu0 0.0
      %2330 = vmatprep.subr.mxu0 0.0
      %2331 = vmatpush1.msra.mxu0 0.0
      %2332 = vmatprep.subr.mxu0 0.0
      %2333 = vmatpush1.msra.mxu0 0.0
      %2334 = vmatprep.subr.mxu0 0.0
      %2335 = vmatpush1.msra.mxu0 0.0
      %2336 = vmatprep.subr.mxu0 0.0
      %2337 = vmatpush1.msra.mxu0 0.0
      %2338 = vmatprep.subr.mxu0 0.0
      %2339 = vmatpush1.msra.mxu0 0.0
      %2340 = vmatprep.subr.mxu0 0.0
      %2341 = vmatpush1.msra.mxu0 0.0
      %2342 = vmatprep.subr.mxu0 0.0
      %2343 = vmatpush1.msra.mxu0 0.0
      %2344 = vmatprep.subr.mxu0 0.0
      %2345 = vmatpush1.msra.mxu0 0.0
      %2346 = vmatprep.subr.mxu0 0.0
      %2347 = vmatpush1.msra.mxu0 0.0
      %2348 = vmatprep.subr.mxu0 0.0
      %2349 = vmatpush1.msra.mxu0 0.0
      %2350 = vmatprep.subr.mxu0 0.0
      %2351 = vmatpush1.msra.mxu0 0.0
      %2352 = vmatprep.subr.mxu0 0.0
      %2353 = vmatpush1.msra.mxu0 0.0
      %2354 = vmatprep.subr.mxu0 0.0
      %2355 = vmatpush1.msra.mxu0 0.0
      %2356 = vmatprep.subr.mxu0 0.0
      %2357 = vmatpush1.msra.mxu0 0.0
      %2358 = vmatprep.subr.mxu0 0.0
      %2359 = vmatpush1.msra.mxu0 0.0
      %2360 = vmatprep.subr.mxu0 0.0
      %2361 = vmatpush1.msra.mxu0 0.0
      %2362 = vmatprep.subr.mxu0 0.0
      %2363 = vmatpush1.msra.mxu0 0.0
      %2364 = vmatprep.subr.mxu0 0.0
      %2365 = vmatpush1.msra.mxu0 0.0
      %2366 = vmatprep.subr.mxu0 0.0
      %2367 = vmatpush1.msra.mxu0 0.0
      %2368 = vmatprep.subr.mxu0 0.0
      %2369 = vmatpush1.msra.mxu0 0.0
      %2370 = vmatprep.mubr.f32.mxu0 0.0
      %2371 = vmatmul.mubr.f32.gmra.mrb[0].mxu0 %v2301
      %v2372 = vpop.f32.mrb[0].mxu0
      %v2373 = vadd.f32 0.0, %v2372
      %v2374 = vpop.f32.mrb[0].mxu0
      %2375 = vmatprep.mubr.f32.mxu0 0.0
      %2376 = vmatmul.mubr.f32.gmra.mrb[0].mxu0 %v2304
      %v2377 = vpop.f32.mrb[0].mxu0
      %v2378 = vadd.f32 0.0, %v2377
      %v2379 = vpop.f32.mrb[0].mxu0
      %2380 = vdwg.mxu0
      %v2381 = vld [vmem:[%s9 + $0x20] sm:$0xff]
      %v2382 = vld [vmem:[%s9 + $0x28] sm:$0xff]
      %v2384 = vsel %vm1965, %v2373, 0
      %v2387 = vsel %vm1965, %v2378, 0
      %2389 = vmatprep.subr.mxu0 0.0
      %2390 = vmatpush1.msra.mxu0 %v2381
      %2391 = vmatprep.subr.mxu0 0.0
      %2392 = vmatpush1.msra.mxu0 %v2382
      %2393 = vmatprep.subr.mxu0 0.0
      %2394 = vmatpush1.msra.mxu0 0.0
      %2395 = vmatprep.subr.mxu0 0.0
      %2396 = vmatpush1.msra.mxu0 0.0
      %2397 = vmatprep.subr.mxu0 0.0
      %2398 = vmatpush1.msra.mxu0 0.0
      %2399 = vmatprep.subr.mxu0 0.0
      %2400 = vmatpush1.msra.mxu0 0.0
      %2401 = vmatprep.subr.mxu0 0.0
      %2402 = vmatpush1.msra.mxu0 0.0
      %2403 = vmatprep.subr.mxu0 0.0
      %2404 = vmatpush1.msra.mxu0 0.0
      %2405 = vmatprep.subr.mxu0 0.0
      %2406 = vmatpush1.msra.mxu0 0.0
      %2407 = vmatprep.subr.mxu0 0.0
      %2408 = vmatpush1.msra.mxu0 0.0
      %2409 = vmatprep.subr.mxu0 0.0
      %2410 = vmatpush1.msra.mxu0 0.0
      %2411 = vmatprep.subr.mxu0 0.0
      %2412 = vmatpush1.msra.mxu0 0.0
      %2413 = vmatprep.subr.mxu0 0.0
      %2414 = vmatpush1.msra.mxu0 0.0
      %2415 = vmatprep.subr.mxu0 0.0
      %2416 = vmatpush1.msra.mxu0 0.0
      %2417 = vmatprep.subr.mxu0 0.0
      %2418 = vmatpush1.msra.mxu0 0.0
      %2419 = vmatprep.subr.mxu0 0.0
      %2420 = vmatpush1.msra.mxu0 0.0
      %2421 = vmatprep.subr.mxu0 0.0
      %2422 = vmatpush1.msra.mxu0 0.0
      %2423 = vmatprep.subr.mxu0 0.0
      %2424 = vmatpush1.msra.mxu0 0.0
      %2425 = vmatprep.subr.mxu0 0.0
      %2426 = vmatpush1.msra.mxu0 0.0
      %2427 = vmatprep.subr.mxu0 0.0
      %2428 = vmatpush1.msra.mxu0 0.0
      %2429 = vmatprep.subr.mxu0 0.0
      %2430 = vmatpush1.msra.mxu0 0.0
      %2431 = vmatprep.subr.mxu0 0.0
      %2432 = vmatpush1.msra.mxu0 0.0
      %2433 = vmatprep.subr.mxu0 0.0
      %2434 = vmatpush1.msra.mxu0 0.0
      %2435 = vmatprep.subr.mxu0 0.0
      %2436 = vmatpush1.msra.mxu0 0.0
      %2437 = vmatprep.subr.mxu0 0.0
      %2438 = vmatpush1.msra.mxu0 0.0
      %2439 = vmatprep.subr.mxu0 0.0
      %2440 = vmatpush1.msra.mxu0 0.0
      %2441 = vmatprep.subr.mxu0 0.0
      %2442 = vmatpush1.msra.mxu0 0.0
      %2443 = vmatprep.subr.mxu0 0.0
      %2444 = vmatpush1.msra.mxu0 0.0
      %2445 = vmatprep.subr.mxu0 0.0
      %2446 = vmatpush1.msra.mxu0 0.0
      %2447 = vmatprep.subr.mxu0 0.0
      %2448 = vmatpush1.msra.mxu0 0.0
      %2449 = vmatprep.subr.mxu0 0.0
      %2450 = vmatpush1.msra.mxu0 0.0
      %2451 = vmatprep.subr.mxu0 0.0
      %2452 = vmatpush1.msra.mxu0 0.0
      %2453 = vmatprep.mubr.f32.mxu0 0.0
      %2454 = vmatmul.mubr.f32.gmra.mrb[0].mxu0 %v2384
      %v2455 = vpop.f32.mrb[0].mxu0
      %v2456 = vadd.f32 0.0, %v2455
      %v2457 = vpop.f32.mrb[0].mxu0
      %2458 = vmatprep.mubr.f32.mxu0 0.0
      %2459 = vmatmul.mubr.f32.gmra.mrb[0].mxu0 %v2387
      %v2460 = vpop.f32.mrb[0].mxu0
      %v2461 = vadd.f32 0.0, %v2460
      %v2462 = vpop.f32.mrb[0].mxu0
      %2463 = vdwg.mxu0
      %v2464 = vadd.f32 %v2289, %v2456
      %v2465 = vadd.f32 %v2294, %v2461
      %v2466 = vld [vmem:[#allocation2] sm:$0x1]
      %v2468 = vlaneseq
      %v2469 = vshrl.u32 %v2468, 7
      %v2470 = vsub.s32 0, %v2469
      %v2471 = vrot.slane %v2466, %v2470
      %v2473 = vadd.f32 %v2464, %v2471
      %v2474 = vadd.f32 %v2465, %v2471
      %v2475 = vld [vmem:[%s401] sm:$0xff]
      %v2476 = vld [vmem:[%s401 + $0x8] sm:$0xff]
      %v2477 = vld [vmem:[%s401 + $0x10] sm:$0xff]
      %v2478 = vld [vmem:[%s401 + $0x18] sm:$0xff]
      %v2479 = vld [vmem:[%s401 + $0x20] sm:$0xff]
      %v2480 = vld [vmem:[%s401 + $0x28] sm:$0xff]
      %v2481 = vld [vmem:[%s401 + $0x30] sm:$0xff]
      %v2482 = vld [vmem:[%s401 + $0x38] sm:$0xff]
      %2483 = vmatprep.subr.mxu0 0.0
      %2484 = vmatpush1.msra.mxu0 %v2475
      %2485 = vmatprep.subr.mxu0 0.0
      %2486 = vmatpush1.msra.mxu0 %v2476
      %2487 = vmatprep.subr.mxu0 0.0
      %2488 = vmatpush1.msra.mxu0 %v2477
      %2489 = vmatprep.subr.mxu0 0.0
      %2490 = vmatpush1.msra.mxu0 %v2478
      %2491 = vmatprep.subr.mxu0 0.0
      %2492 = vmatpush1.msra.mxu0 %v2479
      %2493 = vmatprep.subr.mxu0 0.0
      %2494 = vmatpush1.msra.mxu0 %v2480
      %2495 = vmatprep.subr.mxu0 0.0
      %2496 = vmatpush1.msra.mxu0 %v2481
      %2497 = vmatprep.subr.mxu0 0.0
      %2498 = vmatpush1.msra.mxu0 %v2482
      %2499 = vmatprep.subr.mxu0 0.0
      %2500 = vmatpush1.msra.mxu0 0.0
      %2501 = vmatprep.subr.mxu0 0.0
      %2502 = vmatpush1.msra.mxu0 0.0
      %2503 = vmatprep.subr.mxu0 0.0
      %2504 = vmatpush1.msra.mxu0 0.0
      %2505 = vmatprep.subr.mxu0 0.0
      %2506 = vmatpush1.msra.mxu0 0.0
      %2507 = vmatprep.subr.mxu0 0.0
      %2508 = vmatpush1.msra.mxu0 0.0
      %2509 = vmatprep.subr.mxu0 0.0
      %2510 = vmatpush1.msra.mxu0 0.0
      %2511 = vmatprep.subr.mxu0 0.0
      %2512 = vmatpush1.msra.mxu0 0.0
      %2513 = vmatprep.subr.mxu0 0.0
      %2514 = vmatpush1.msra.mxu0 0.0
      %2515 = vmatprep.subr.mxu0 0.0
      %2516 = vmatpush1.msra.mxu0 0.0
      %2517 = vmatprep.subr.mxu0 0.0
      %2518 = vmatpush1.msra.mxu0 0.0
      %2519 = vmatprep.subr.mxu0 0.0
      %2520 = vmatpush1.msra.mxu0 0.0
      %2521 = vmatprep.subr.mxu0 0.0
      %2522 = vmatpush1.msra.mxu0 0.0
      %2523 = vmatprep.subr.mxu0 0.0
      %2524 = vmatpush1.msra.mxu0 0.0
      %2525 = vmatprep.subr.mxu0 0.0
      %2526 = vmatpush1.msra.mxu0 0.0
      %2527 = vmatprep.subr.mxu0 0.0
      %2528 = vmatpush1.msra.mxu0 0.0
      %2529 = vmatprep.subr.mxu0 0.0
      %2530 = vmatpush1.msra.mxu0 0.0
      %2531 = vmatprep.subr.mxu0 0.0
      %2532 = vmatpush1.msra.mxu0 0.0
      %2533 = vmatprep.subr.mxu0 0.0
      %2534 = vmatpush1.msra.mxu0 0.0
      %2535 = vmatprep.subr.mxu0 0.0
      %2536 = vmatpush1.msra.mxu0 0.0
      %2537 = vmatprep.subr.mxu0 0.0
      %2538 = vmatpush1.msra.mxu0 0.0
      %2539 = vmatprep.subr.mxu0 0.0
      %2540 = vmatpush1.msra.mxu0 0.0
      %2541 = vmatprep.subr.mxu0 0.0
      %2542 = vmatpush1.msra.mxu0 0.0
      %2543 = vmatprep.subr.mxu0 0.0
      %2544 = vmatpush1.msra.mxu0 0.0
      %2545 = vmatprep.subr.mxu0 0.0
      %2546 = vmatpush1.msra.mxu0 0.0
      %2547 = vmatprep.mubr.f32.mxu0 0.0
      %2548 = vmatmul.mubr.f32.gmra.mrb[0].mxu0 %v419
      %v2549 = vpop.f32.mrb[0].mxu0
      %v2550 = vadd.f32 0.0, %v2549
      %v2551 = vpop.f32.mrb[0].mxu0
      %2552 = vmatprep.mubr.f32.mxu0 0.0
      %2553 = vmatmul.mubr.f32.gmra.mrb[0].mxu0 %v422
      %v2554 = vpop.f32.mrb[0].mxu0
      %v2555 = vadd.f32 0.0, %v2554
      %v2556 = vpop.f32.mrb[0].mxu0
      %2557 = vmatprep.mubr.f32.mxu0 0.0
      %2558 = vmatmul.mubr.f32.gmra.mrb[0].mxu0 %v425
      %v2559 = vpop.f32.mrb[0].mxu0
      %v2560 = vadd.f32 0.0, %v2559
      %v2561 = vpop.f32.mrb[0].mxu0
      %2562 = vmatprep.mubr.f32.mxu0 0.0
      %2563 = vmatmul.mubr.f32.gmra.mrb[0].mxu0 %v428
      %v2564 = vpop.f32.mrb[0].mxu0
      %v2565 = vadd.f32 0.0, %v2564
      %v2566 = vpop.f32.mrb[0].mxu0
      %2567 = vdwg.mxu0
      %2569 = vset.pattern.permute.xlu0 0
      %2570 = vperm.xlu0 %2569, %v2550
      %v2571 = vpop.permute.xlu0 %2570
      %2574 = vset.pattern.permute.xlu0 0
      %2575 = vperm.xlu0 %2574, %v2555
      %v2576 = vpop.permute.xlu0 %2575
      %2579 = vset.pattern.permute.xlu0 0
      %2580 = vperm.xlu0 %2579, %v2560
      %v2581 = vpop.permute.xlu0 %2580
      %2584 = vset.pattern.permute.xlu0 0
      %2585 = vperm.xlu0 %2584, %v2565
      %v2586 = vpop.permute.xlu0 %2585
      %v2588 = vmul.f32 %v2571, %v539
      %v2589 = vmul.f32 %v2576, %v539
      %v2590 = vmul.f32 %v2581, %v539
      %v2591 = vmul.f32 %v2586, %v539
      %v2592 = vadd.f32 %v2588, 0.0
      %v2593 = vadd.f32 %v2589, 0.0
      %v2594 = vadd.f32 %v2590, 0.0
      %v2595 = vadd.f32 %v2591, 0.0
      %2596 = vmatprep.subr.mxu0 0.0
      %2597 = vmatpush1.msra.mxu0 %v2475
      %2598 = vmatprep.subr.mxu0 0.0
      %2599 = vmatpush1.msra.mxu0 %v2476
      %2600 = vmatprep.subr.mxu0 0.0
      %2601 = vmatpush1.msra.mxu0 %v2477
      %2602 = vmatprep.subr.mxu0 0.0
      %2603 = vmatpush1.msra.mxu0 %v2478
      %2604 = vmatprep.subr.mxu0 0.0
      %2605 = vmatpush1.msra.mxu0 %v2479
      %2606 = vmatprep.subr.mxu0 0.0
      %2607 = vmatpush1.msra.mxu0 %v2480
      %2608 = vmatprep.subr.mxu0 0.0
      %2609 = vmatpush1.msra.mxu0 %v2481
      %2610 = vmatprep.subr.mxu0 0.0
      %2611 = vmatpush1.msra.mxu0 %v2482
      %2612 = vmatprep.subr.mxu0 0.0
      %2613 = vmatpush1.msra.mxu0 0.0
      %2614 = vmatprep.subr.mxu0 0.0
      %2615 = vmatpush1.msra.mxu0 0.0
      %2616 = vmatprep.subr.mxu0 0.0
      %2617 = vmatpush1.msra.mxu0 0.0
      %2618 = vmatprep.subr.mxu0 0.0
      %2619 = vmatpush1.msra.mxu0 0.0
      %2620 = vmatprep.subr.mxu0 0.0
      %2621 = vmatpush1.msra.mxu0 0.0
      %2622 = vmatprep.subr.mxu0 0.0
      %2623 = vmatpush1.msra.mxu0 0.0
      %2624 = vmatprep.subr.mxu0 0.0
      %2625 = vmatpush1.msra.mxu0 0.0
      %2626 = vmatprep.subr.mxu0 0.0
      %2627 = vmatpush1.msra.mxu0 0.0
      %2628 = vmatprep.subr.mxu0 0.0
      %2629 = vmatpush1.msra.mxu0 0.0
      %2630 = vmatprep.subr.mxu0 0.0
      %2631 = vmatpush1.msra.mxu0 0.0
      %2632 = vmatprep.subr.mxu0 0.0
      %2633 = vmatpush1.msra.mxu0 0.0
      %2634 = vmatprep.subr.mxu0 0.0
      %2635 = vmatpush1.msra.mxu0 0.0
      %2636 = vmatprep.subr.mxu0 0.0
      %2637 = vmatpush1.msra.mxu0 0.0
      %2638 = vmatprep.subr.mxu0 0.0
      %2639 = vmatpush1.msra.mxu0 0.0
      %2640 = vmatprep.subr.mxu0 0.0
      %2641 = vmatpush1.msra.mxu0 0.0
      %2642 = vmatprep.subr.mxu0 0.0
      %2643 = vmatpush1.msra.mxu0 0.0
      %2644 = vmatprep.subr.mxu0 0.0
      %2645 = vmatpush1.msra.mxu0 0.0
      %2646 = vmatprep.subr.mxu0 0.0
      %2647 = vmatpush1.msra.mxu0 0.0
      %2648 = vmatprep.subr.mxu0 0.0
      %2649 = vmatpush1.msra.mxu0 0.0
      %2650 = vmatprep.subr.mxu0 0.0
      %2651 = vmatpush1.msra.mxu0 0.0
      %2652 = vmatprep.subr.mxu0 0.0
      %2653 = vmatpush1.msra.mxu0 0.0
      %2654 = vmatprep.subr.mxu0 0.0
      %2655 = vmatpush1.msra.mxu0 0.0
      %2656 = vmatprep.subr.mxu0 0.0
      %2657 = vmatpush1.msra.mxu0 0.0
      %2658 = vmatprep.subr.mxu0 0.0
      %2659 = vmatpush1.msra.mxu0 0.0
      %2660 = vmatprep.mubr.f32.mxu0 0.0
      %2661 = vmatmul.mubr.f32.gmra.mrb[0].mxu0 %v554
      %v2662 = vpop.f32.mrb[0].mxu0
      %v2663 = vadd.f32 0.0, %v2662
      %v2664 = vpop.f32.mrb[0].mxu0
      %2665 = vmatprep.mubr.f32.mxu0 0.0
      %2666 = vmatmul.mubr.f32.gmra.mrb[0].mxu0 %v557
      %v2667 = vpop.f32.mrb[0].mxu0
      %v2668 = vadd.f32 0.0, %v2667
      %v2669 = vpop.f32.mrb[0].mxu0
      %2670 = vmatprep.mubr.f32.mxu0 0.0
      %2671 = vmatmul.mubr.f32.gmra.mrb[0].mxu0 %v560
      %v2672 = vpop.f32.mrb[0].mxu0
      %v2673 = vadd.f32 0.0, %v2672
      %v2674 = vpop.f32.mrb[0].mxu0
      %2675 = vmatprep.mubr.f32.mxu0 0.0
      %2676 = vmatmul.mubr.f32.gmra.mrb[0].mxu0 %v563
      %v2677 = vpop.f32.mrb[0].mxu0
      %v2678 = vadd.f32 0.0, %v2677
      %v2679 = vpop.f32.mrb[0].mxu0
      %2680 = vdwg.mxu0
      %2682 = vset.pattern.permute.xlu0 0
      %2683 = vperm.xlu0 %2682, %v2663
      %v2684 = vpop.permute.xlu0 %2683
      %2687 = vset.pattern.permute.xlu0 0
      %2688 = vperm.xlu0 %2687, %v2668
      %v2689 = vpop.permute.xlu0 %2688
      %2692 = vset.pattern.permute.xlu0 0
      %2693 = vperm.xlu0 %2692, %v2673
      %v2694 = vpop.permute.xlu0 %2693
      %2697 = vset.pattern.permute.xlu0 0
      %2698 = vperm.xlu0 %2697, %v2678
      %v2699 = vpop.permute.xlu0 %2698
      %v2701 = vmul.f32 %v2684, %v674
      %v2702 = vmul.f32 %v2689, %v674
      %v2703 = vmul.f32 %v2694, %v674
      %v2704 = vmul.f32 %v2699, %v674
      %v2705 = vadd.f32 %v2592, %v2701
      %v2706 = vadd.f32 %v2593, %v2702
      %v2707 = vadd.f32 %v2594, %v2703
      %v2708 = vadd.f32 %v2595, %v2704
      %2709 = vmatprep.subr.mxu0 0.0
      %2710 = vmatpush1.msra.mxu0 %v2475
      %2711 = vmatprep.subr.mxu0 0.0
      %2712 = vmatpush1.msra.mxu0 %v2476
      %2713 = vmatprep.subr.mxu0 0.0
      %2714 = vmatpush1.msra.mxu0 %v2477
      %2715 = vmatprep.subr.mxu0 0.0
      %2716 = vmatpush1.msra.mxu0 %v2478
      %2717 = vmatprep.subr.mxu0 0.0
      %2718 = vmatpush1.msra.mxu0 %v2479
      %2719 = vmatprep.subr.mxu0 0.0
      %2720 = vmatpush1.msra.mxu0 %v2480
      %2721 = vmatprep.subr.mxu0 0.0
      %2722 = vmatpush1.msra.mxu0 %v2481
      %2723 = vmatprep.subr.mxu0 0.0
      %2724 = vmatpush1.msra.mxu0 %v2482
      %2725 = vmatprep.subr.mxu0 0.0
      %2726 = vmatpush1.msra.mxu0 0.0
      %2727 = vmatprep.subr.mxu0 0.0
      %2728 = vmatpush1.msra.mxu0 0.0
      %2729 = vmatprep.subr.mxu0 0.0
      %2730 = vmatpush1.msra.mxu0 0.0
      %2731 = vmatprep.subr.mxu0 0.0
      %2732 = vmatpush1.msra.mxu0 0.0
      %2733 = vmatprep.subr.mxu0 0.0
      %2734 = vmatpush1.msra.mxu0 0.0
      %2735 = vmatprep.subr.mxu0 0.0
      %2736 = vmatpush1.msra.mxu0 0.0
      %2737 = vmatprep.subr.mxu0 0.0
      %2738 = vmatpush1.msra.mxu0 0.0
      %2739 = vmatprep.subr.mxu0 0.0
      %2740 = vmatpush1.msra.mxu0 0.0
      %2741 = vmatprep.subr.mxu0 0.0
      %2742 = vmatpush1.msra.mxu0 0.0
      %2743 = vmatprep.subr.mxu0 0.0
      %2744 = vmatpush1.msra.mxu0 0.0
      %2745 = vmatprep.subr.mxu0 0.0
      %2746 = vmatpush1.msra.mxu0 0.0
      %2747 = vmatprep.subr.mxu0 0.0
      %2748 = vmatpush1.msra.mxu0 0.0
      %2749 = vmatprep.subr.mxu0 0.0
      %2750 = vmatpush1.msra.mxu0 0.0
      %2751 = vmatprep.subr.mxu0 0.0
      %2752 = vmatpush1.msra.mxu0 0.0
      %2753 = vmatprep.subr.mxu0 0.0
      %2754 = vmatpush1.msra.mxu0 0.0
      %2755 = vmatprep.subr.mxu0 0.0
      %2756 = vmatpush1.msra.mxu0 0.0
      %2757 = vmatprep.subr.mxu0 0.0
      %2758 = vmatpush1.msra.mxu0 0.0
      %2759 = vmatprep.subr.mxu0 0.0
      %2760 = vmatpush1.msra.mxu0 0.0
      %2761 = vmatprep.subr.mxu0 0.0
      %2762 = vmatpush1.msra.mxu0 0.0
      %2763 = vmatprep.subr.mxu0 0.0
      %2764 = vmatpush1.msra.mxu0 0.0
      %2765 = vmatprep.subr.mxu0 0.0
      %2766 = vmatpush1.msra.mxu0 0.0
      %2767 = vmatprep.subr.mxu0 0.0
      %2768 = vmatpush1.msra.mxu0 0.0
      %2769 = vmatprep.subr.mxu0 0.0
      %2770 = vmatpush1.msra.mxu0 0.0
      %2771 = vmatprep.subr.mxu0 0.0
      %2772 = vmatpush1.msra.mxu0 0.0
      %2773 = vmatprep.mubr.f32.mxu0 0.0
      %2774 = vmatmul.mubr.f32.gmra.mrb[0].mxu0 %v689
      %v2775 = vpop.f32.mrb[0].mxu0
      %v2776 = vadd.f32 0.0, %v2775
      %v2777 = vpop.f32.mrb[0].mxu0
      %2778 = vmatprep.mubr.f32.mxu0 0.0
      %2779 = vmatmul.mubr.f32.gmra.mrb[0].mxu0 %v692
      %v2780 = vpop.f32.mrb[0].mxu0
      %v2781 = vadd.f32 0.0, %v2780
      %v2782 = vpop.f32.mrb[0].mxu0
      %2783 = vmatprep.mubr.f32.mxu0 0.0
      %2784 = vmatmul.mubr.f32.gmra.mrb[0].mxu0 %v695
      %v2785 = vpop.f32.mrb[0].mxu0
      %v2786 = vadd.f32 0.0, %v2785
      %v2787 = vpop.f32.mrb[0].mxu0
      %2788 = vmatprep.mubr.f32.mxu0 0.0
      %2789 = vmatmul.mubr.f32.gmra.mrb[0].mxu0 %v698
      %v2790 = vpop.f32.mrb[0].mxu0
      %v2791 = vadd.f32 0.0, %v2790
      %v2792 = vpop.f32.mrb[0].mxu0
      %2793 = vdwg.mxu0
      %2795 = vset.pattern.permute.xlu0 0
      %2796 = vperm.xlu0 %2795, %v2776
      %v2797 = vpop.permute.xlu0 %2796
      %2800 = vset.pattern.permute.xlu0 0
      %2801 = vperm.xlu0 %2800, %v2781
      %v2802 = vpop.permute.xlu0 %2801
      %2805 = vset.pattern.permute.xlu0 0
      %2806 = vperm.xlu0 %2805, %v2786
      %v2807 = vpop.permute.xlu0 %2806
      %2810 = vset.pattern.permute.xlu0 0
      %2811 = vperm.xlu0 %2810, %v2791
      %v2812 = vpop.permute.xlu0 %2811
      %v2814 = vmul.f32 %v2797, %v809
      %v2815 = vmul.f32 %v2802, %v809
      %v2816 = vmul.f32 %v2807, %v809
      %v2817 = vmul.f32 %v2812, %v809
      %v2818 = vadd.f32 %v2705, %v2814
      %v2819 = vadd.f32 %v2706, %v2815
      %v2820 = vadd.f32 %v2707, %v2816
      %v2821 = vadd.f32 %v2708, %v2817
      %2822 = vmatprep.subr.mxu0 0.0
      %2823 = vmatpush1.msra.mxu0 %v2475
      %2824 = vmatprep.subr.mxu0 0.0
      %2825 = vmatpush1.msra.mxu0 %v2476
      %2826 = vmatprep.subr.mxu0 0.0
      %2827 = vmatpush1.msra.mxu0 %v2477
      %2828 = vmatprep.subr.mxu0 0.0
      %2829 = vmatpush1.msra.mxu0 %v2478
      %2830 = vmatprep.subr.mxu0 0.0
      %2831 = vmatpush1.msra.mxu0 %v2479
      %2832 = vmatprep.subr.mxu0 0.0
      %2833 = vmatpush1.msra.mxu0 %v2480
      %2834 = vmatprep.subr.mxu0 0.0
      %2835 = vmatpush1.msra.mxu0 %v2481
      %2836 = vmatprep.subr.mxu0 0.0
      %2837 = vmatpush1.msra.mxu0 %v2482
      %2838 = vmatprep.subr.mxu0 0.0
      %2839 = vmatpush1.msra.mxu0 0.0
      %2840 = vmatprep.subr.mxu0 0.0
      %2841 = vmatpush1.msra.mxu0 0.0
      %2842 = vmatprep.subr.mxu0 0.0
      %2843 = vmatpush1.msra.mxu0 0.0
      %2844 = vmatprep.subr.mxu0 0.0
      %2845 = vmatpush1.msra.mxu0 0.0
      %2846 = vmatprep.subr.mxu0 0.0
      %2847 = vmatpush1.msra.mxu0 0.0
      %2848 = vmatprep.subr.mxu0 0.0
      %2849 = vmatpush1.msra.mxu0 0.0
      %2850 = vmatprep.subr.mxu0 0.0
      %2851 = vmatpush1.msra.mxu0 0.0
      %2852 = vmatprep.subr.mxu0 0.0
      %2853 = vmatpush1.msra.mxu0 0.0
      %2854 = vmatprep.subr.mxu0 0.0
      %2855 = vmatpush1.msra.mxu0 0.0
      %2856 = vmatprep.subr.mxu0 0.0
      %2857 = vmatpush1.msra.mxu0 0.0
      %2858 = vmatprep.subr.mxu0 0.0
      %2859 = vmatpush1.msra.mxu0 0.0
      %2860 = vmatprep.subr.mxu0 0.0
      %2861 = vmatpush1.msra.mxu0 0.0
      %2862 = vmatprep.subr.mxu0 0.0
      %2863 = vmatpush1.msra.mxu0 0.0
      %2864 = vmatprep.subr.mxu0 0.0
      %2865 = vmatpush1.msra.mxu0 0.0
      %2866 = vmatprep.subr.mxu0 0.0
      %2867 = vmatpush1.msra.mxu0 0.0
      %2868 = vmatprep.subr.mxu0 0.0
      %2869 = vmatpush1.msra.mxu0 0.0
      %2870 = vmatprep.subr.mxu0 0.0
      %2871 = vmatpush1.msra.mxu0 0.0
      %2872 = vmatprep.subr.mxu0 0.0
      %2873 = vmatpush1.msra.mxu0 0.0
      %2874 = vmatprep.subr.mxu0 0.0
      %2875 = vmatpush1.msra.mxu0 0.0
      %2876 = vmatprep.subr.mxu0 0.0
      %2877 = vmatpush1.msra.mxu0 0.0
      %2878 = vmatprep.subr.mxu0 0.0
      %2879 = vmatpush1.msra.mxu0 0.0
      %2880 = vmatprep.subr.mxu0 0.0
      %2881 = vmatpush1.msra.mxu0 0.0
      %2882 = vmatprep.subr.mxu0 0.0
      %2883 = vmatpush1.msra.mxu0 0.0
      %2884 = vmatprep.subr.mxu0 0.0
      %2885 = vmatpush1.msra.mxu0 0.0
      %2886 = vmatprep.mubr.f32.mxu0 0.0
      %2887 = vmatmul.mubr.f32.gmra.mrb[0].mxu0 %v824
      %v2888 = vpop.f32.mrb[0].mxu0
      %v2889 = vadd.f32 0.0, %v2888
      %v2890 = vpop.f32.mrb[0].mxu0
      %2891 = vmatprep.mubr.f32.mxu0 0.0
      %2892 = vmatmul.mubr.f32.gmra.mrb[0].mxu0 %v827
      %v2893 = vpop.f32.mrb[0].mxu0
      %v2894 = vadd.f32 0.0, %v2893
      %v2895 = vpop.f32.mrb[0].mxu0
      %2896 = vmatprep.mubr.f32.mxu0 0.0
      %2897 = vmatmul.mubr.f32.gmra.mrb[0].mxu0 %v830
      %v2898 = vpop.f32.mrb[0].mxu0
      %v2899 = vadd.f32 0.0, %v2898
      %v2900 = vpop.f32.mrb[0].mxu0
      %2901 = vmatprep.mubr.f32.mxu0 0.0
      %2902 = vmatmul.mubr.f32.gmra.mrb[0].mxu0 %v833
      %v2903 = vpop.f32.mrb[0].mxu0
      %v2904 = vadd.f32 0.0, %v2903
      %v2905 = vpop.f32.mrb[0].mxu0
      %2906 = vdwg.mxu0
      %2908 = vset.pattern.permute.xlu0 0
      %2909 = vperm.xlu0 %2908, %v2889
      %v2910 = vpop.permute.xlu0 %2909
      %2913 = vset.pattern.permute.xlu0 0
      %2914 = vperm.xlu0 %2913, %v2894
      %v2915 = vpop.permute.xlu0 %2914
      %2918 = vset.pattern.permute.xlu0 0
      %2919 = vperm.xlu0 %2918, %v2899
      %v2920 = vpop.permute.xlu0 %2919
      %2923 = vset.pattern.permute.xlu0 0
      %2924 = vperm.xlu0 %2923, %v2904
      %v2925 = vpop.permute.xlu0 %2924
      %v2927 = vmul.f32 %v2910, %v944
      %v2928 = vmul.f32 %v2915, %v944
      %v2929 = vmul.f32 %v2920, %v944
      %v2930 = vmul.f32 %v2925, %v944
      %v2931 = vadd.f32 %v2818, %v2927
      %v2932 = vadd.f32 %v2819, %v2928
      %v2933 = vadd.f32 %v2820, %v2929
      %v2934 = vadd.f32 %v2821, %v2930
      %2935 = vmatprep.subr.mxu0 0.0
      %2936 = vmatpush1.msra.mxu0 %v2475
      %2937 = vmatprep.subr.mxu0 0.0
      %2938 = vmatpush1.msra.mxu0 %v2476
      %2939 = vmatprep.subr.mxu0 0.0
      %2940 = vmatpush1.msra.mxu0 %v2477
      %2941 = vmatprep.subr.mxu0 0.0
      %2942 = vmatpush1.msra.mxu0 %v2478
      %2943 = vmatprep.subr.mxu0 0.0
      %2944 = vmatpush1.msra.mxu0 %v2479
      %2945 = vmatprep.subr.mxu0 0.0
      %2946 = vmatpush1.msra.mxu0 %v2480
      %2947 = vmatprep.subr.mxu0 0.0
      %2948 = vmatpush1.msra.mxu0 %v2481
      %2949 = vmatprep.subr.mxu0 0.0
      %2950 = vmatpush1.msra.mxu0 %v2482
      %2951 = vmatprep.subr.mxu0 0.0
      %2952 = vmatpush1.msra.mxu0 0.0
      %2953 = vmatprep.subr.mxu0 0.0
      %2954 = vmatpush1.msra.mxu0 0.0
      %2955 = vmatprep.subr.mxu0 0.0
      %2956 = vmatpush1.msra.mxu0 0.0
      %2957 = vmatprep.subr.mxu0 0.0
      %2958 = vmatpush1.msra.mxu0 0.0
      %2959 = vmatprep.subr.mxu0 0.0
      %2960 = vmatpush1.msra.mxu0 0.0
      %2961 = vmatprep.subr.mxu0 0.0
      %2962 = vmatpush1.msra.mxu0 0.0
      %2963 = vmatprep.subr.mxu0 0.0
      %2964 = vmatpush1.msra.mxu0 0.0
      %2965 = vmatprep.subr.mxu0 0.0
      %2966 = vmatpush1.msra.mxu0 0.0
      %2967 = vmatprep.subr.mxu0 0.0
      %2968 = vmatpush1.msra.mxu0 0.0
      %2969 = vmatprep.subr.mxu0 0.0
      %2970 = vmatpush1.msra.mxu0 0.0
      %2971 = vmatprep.subr.mxu0 0.0
      %2972 = vmatpush1.msra.mxu0 0.0
      %2973 = vmatprep.subr.mxu0 0.0
      %2974 = vmatpush1.msra.mxu0 0.0
      %2975 = vmatprep.subr.mxu0 0.0
      %2976 = vmatpush1.msra.mxu0 0.0
      %2977 = vmatprep.subr.mxu0 0.0
      %2978 = vmatpush1.msra.mxu0 0.0
      %2979 = vmatprep.subr.mxu0 0.0
      %2980 = vmatpush1.msra.mxu0 0.0
      %2981 = vmatprep.subr.mxu0 0.0
      %2982 = vmatpush1.msra.mxu0 0.0
      %2983 = vmatprep.subr.mxu0 0.0
      %2984 = vmatpush1.msra.mxu0 0.0
      %2985 = vmatprep.subr.mxu0 0.0
      %2986 = vmatpush1.msra.mxu0 0.0
      %2987 = vmatprep.subr.mxu0 0.0
      %2988 = vmatpush1.msra.mxu0 0.0
      %2989 = vmatprep.subr.mxu0 0.0
      %2990 = vmatpush1.msra.mxu0 0.0
      %2991 = vmatprep.subr.mxu0 0.0
      %2992 = vmatpush1.msra.mxu0 0.0
      %2993 = vmatprep.subr.mxu0 0.0
      %2994 = vmatpush1.msra.mxu0 0.0
      %2995 = vmatprep.subr.mxu0 0.0
      %2996 = vmatpush1.msra.mxu0 0.0
      %2997 = vmatprep.subr.mxu0 0.0
      %2998 = vmatpush1.msra.mxu0 0.0
      %2999 = vmatprep.mubr.f32.mxu0 0.0
      %3000 = vmatmul.mubr.f32.gmra.mrb[0].mxu0 %v959
      %v3001 = vpop.f32.mrb[0].mxu0
      %v3002 = vadd.f32 0.0, %v3001
      %v3003 = vpop.f32.mrb[0].mxu0
      %3004 = vmatprep.mubr.f32.mxu0 0.0
      %3005 = vmatmul.mubr.f32.gmra.mrb[0].mxu0 %v962
      %v3006 = vpop.f32.mrb[0].mxu0
      %v3007 = vadd.f32 0.0, %v3006
      %v3008 = vpop.f32.mrb[0].mxu0
      %3009 = vmatprep.mubr.f32.mxu0 0.0
      %3010 = vmatmul.mubr.f32.gmra.mrb[0].mxu0 %v965
      %v3011 = vpop.f32.mrb[0].mxu0
      %v3012 = vadd.f32 0.0, %v3011
      %v3013 = vpop.f32.mrb[0].mxu0
      %3014 = vmatprep.mubr.f32.mxu0 0.0
      %3015 = vmatmul.mubr.f32.gmra.mrb[0].mxu0 %v968
      %v3016 = vpop.f32.mrb[0].mxu0
      %v3017 = vadd.f32 0.0, %v3016
      %v3018 = vpop.f32.mrb[0].mxu0
      %3019 = vdwg.mxu0
      %3021 = vset.pattern.permute.xlu0 0
      %3022 = vperm.xlu0 %3021, %v3002
      %v3023 = vpop.permute.xlu0 %3022
      %3026 = vset.pattern.permute.xlu0 0
      %3027 = vperm.xlu0 %3026, %v3007
      %v3028 = vpop.permute.xlu0 %3027
      %3031 = vset.pattern.permute.xlu0 0
      %3032 = vperm.xlu0 %3031, %v3012
      %v3033 = vpop.permute.xlu0 %3032
      %3036 = vset.pattern.permute.xlu0 0
      %3037 = vperm.xlu0 %3036, %v3017
      %v3038 = vpop.permute.xlu0 %3037
      %v3040 = vmul.f32 %v3023, %v1079
      %v3041 = vmul.f32 %v3028, %v1079
      %v3042 = vmul.f32 %v3033, %v1079
      %v3043 = vmul.f32 %v3038, %v1079
      %v3044 = vadd.f32 %v2931, %v3040
      %v3045 = vadd.f32 %v2932, %v3041
      %v3046 = vadd.f32 %v2933, %v3042
      %v3047 = vadd.f32 %v2934, %v3043
      %v3048 = vadd.f32 %v3044, %v1093
      %v3049 = vadd.f32 %v3045, %v1093
      %v3050 = vadd.f32 %v3046, %v1093
      %v3051 = vadd.f32 %v3047, %v1093
      %vm3052 = vcmp.ge.f32.partialorder %v3048, 0.0
      %vm3053 = vcmp.ge.f32.partialorder %v3049, 0.0
      %vm3054 = vcmp.ge.f32.partialorder %v3050, 0.0
      %vm3055 = vcmp.ge.f32.partialorder %v3051, 0.0
      %v3056 = vmul.f32 %v3048, 0.1
      %v3057 = vmul.f32 %v3049, 0.1
      %v3058 = vmul.f32 %v3050, 0.1
      %v3059 = vmul.f32 %v3051, 0.1
      %v3060 = vsel %vm3052, %v3048, %v3056
      %v3061 = vsel %vm3053, %v3049, %v3057
      %v3062 = vsel %vm3054, %v3050, %v3058
      %v3063 = vsel %vm3055, %v3051, %v3059
      %3064 = vmatprep.subr.mxu0 0.0
      %3065 = vmatpush1.msra.mxu0 %v3060
      %3066 = vmatprep.subr.mxu0 0.0
      %3067 = vmatpush1.msra.mxu0 %v3061
      %3068 = vmatprep.subr.mxu0 0.0
      %3069 = vmatpush1.msra.mxu0 %v3062
      %3070 = vmatprep.subr.mxu0 0.0
      %3071 = vmatpush1.msra.mxu0 %v3063
      %3072 = vmatprep.subr.mxu0 0.0
      %3073 = vmatpush1.msra.mxu0 0.0
      %3074 = vmatprep.subr.mxu0 0.0
      %3075 = vmatpush1.msra.mxu0 0.0
      %3076 = vmatprep.subr.mxu0 0.0
      %3077 = vmatpush1.msra.mxu0 0.0
      %3078 = vmatprep.subr.mxu0 0.0
      %3079 = vmatpush1.msra.mxu0 0.0
      %3080 = vmatprep.subr.mxu0 0.0
      %3081 = vmatpush1.msra.mxu0 0.0
      %3082 = vmatprep.subr.mxu0 0.0
      %3083 = vmatpush1.msra.mxu0 0.0
      %3084 = vmatprep.subr.mxu0 0.0
      %3085 = vmatpush1.msra.mxu0 0.0
      %3086 = vmatprep.subr.mxu0 0.0
      %3087 = vmatpush1.msra.mxu0 0.0
      %3088 = vmatprep.subr.mxu0 0.0
      %3089 = vmatpush1.msra.mxu0 0.0
      %3090 = vmatprep.subr.mxu0 0.0
      %3091 = vmatpush1.msra.mxu0 0.0
      %3092 = vmatprep.subr.mxu0 0.0
      %3093 = vmatpush1.msra.mxu0 0.0
      %3094 = vmatprep.subr.mxu0 0.0
      %3095 = vmatpush1.msra.mxu0 0.0
      %3096 = vmatprep.subr.mxu0 0.0
      %3097 = vmatpush1.msra.mxu0 0.0
      %3098 = vmatprep.subr.mxu0 0.0
      %3099 = vmatpush1.msra.mxu0 0.0
      %3100 = vmatprep.subr.mxu0 0.0
      %3101 = vmatpush1.msra.mxu0 0.0
      %3102 = vmatprep.subr.mxu0 0.0
      %3103 = vmatpush1.msra.mxu0 0.0
      %3104 = vmatprep.subr.mxu0 0.0
      %3105 = vmatpush1.msra.mxu0 0.0
      %3106 = vmatprep.subr.mxu0 0.0
      %3107 = vmatpush1.msra.mxu0 0.0
      %3108 = vmatprep.subr.mxu0 0.0
      %3109 = vmatpush1.msra.mxu0 0.0
      %3110 = vmatprep.subr.mxu0 0.0
      %3111 = vmatpush1.msra.mxu0 0.0
      %3112 = vmatprep.subr.mxu0 0.0
      %3113 = vmatpush1.msra.mxu0 0.0
      %3114 = vmatprep.subr.mxu0 0.0
      %3115 = vmatpush1.msra.mxu0 0.0
      %3116 = vmatprep.subr.mxu0 0.0
      %3117 = vmatpush1.msra.mxu0 0.0
      %3118 = vmatprep.subr.mxu0 0.0
      %3119 = vmatpush1.msra.mxu0 0.0
      %3120 = vmatprep.subr.mxu0 0.0
      %3121 = vmatpush1.msra.mxu0 0.0
      %3122 = vmatprep.subr.mxu0 0.0
      %3123 = vmatpush1.msra.mxu0 0.0
      %3124 = vmatprep.subr.mxu0 0.0
      %3125 = vmatpush1.msra.mxu0 0.0
      %3126 = vmatprep.subr.mxu0 0.0
      %3127 = vmatpush1.msra.mxu0 0.0
      %3128 = vmatprep.mubr.f32.mxu0 0.0
      %3129 = vmatmul.mubr.f32.gmra.mrb[0].mxu0 %v1115
      %v3130 = vpop.f32.mrb[0].mxu0
      %v3131 = vadd.f32 0.0, %v3130
      %v3132 = vpop.f32.mrb[0].mxu0
      %3133 = vmatprep.mubr.f32.mxu0 0.0
      %3134 = vmatmul.mubr.f32.gmra.mrb[0].mxu0 %v1118
      %v3135 = vpop.f32.mrb[0].mxu0
      %v3136 = vadd.f32 0.0, %v3135
      %v3137 = vpop.f32.mrb[0].mxu0
      %3138 = vdwg.mxu0
      %3139 = vmatprep.subr.mxu0 0.0
      %3140 = vmatpush1.msra.mxu0 %v3060
      %3141 = vmatprep.subr.mxu0 0.0
      %3142 = vmatpush1.msra.mxu0 %v3061
      %3143 = vmatprep.subr.mxu0 0.0
      %3144 = vmatpush1.msra.mxu0 %v3062
      %3145 = vmatprep.subr.mxu0 0.0
      %3146 = vmatpush1.msra.mxu0 %v3063
      %3147 = vmatprep.subr.mxu0 0.0
      %3148 = vmatpush1.msra.mxu0 0.0
      %3149 = vmatprep.subr.mxu0 0.0
      %3150 = vmatpush1.msra.mxu0 0.0
      %3151 = vmatprep.subr.mxu0 0.0
      %3152 = vmatpush1.msra.mxu0 0.0
      %3153 = vmatprep.subr.mxu0 0.0
      %3154 = vmatpush1.msra.mxu0 0.0
      %3155 = vmatprep.subr.mxu0 0.0
      %3156 = vmatpush1.msra.mxu0 0.0
      %3157 = vmatprep.subr.mxu0 0.0
      %3158 = vmatpush1.msra.mxu0 0.0
      %3159 = vmatprep.subr.mxu0 0.0
      %3160 = vmatpush1.msra.mxu0 0.0
      %3161 = vmatprep.subr.mxu0 0.0
      %3162 = vmatpush1.msra.mxu0 0.0
      %3163 = vmatprep.subr.mxu0 0.0
      %3164 = vmatpush1.msra.mxu0 0.0
      %3165 = vmatprep.subr.mxu0 0.0
      %3166 = vmatpush1.msra.mxu0 0.0
      %3167 = vmatprep.subr.mxu0 0.0
      %3168 = vmatpush1.msra.mxu0 0.0
      %3169 = vmatprep.subr.mxu0 0.0
      %3170 = vmatpush1.msra.mxu0 0.0
      %3171 = vmatprep.subr.mxu0 0.0
      %3172 = vmatpush1.msra.mxu0 0.0
      %3173 = vmatprep.subr.mxu0 0.0
      %3174 = vmatpush1.msra.mxu0 0.0
      %3175 = vmatprep.subr.mxu0 0.0
      %3176 = vmatpush1.msra.mxu0 0.0
      %3177 = vmatprep.subr.mxu0 0.0
      %3178 = vmatpush1.msra.mxu0 0.0
      %3179 = vmatprep.subr.mxu0 0.0
      %3180 = vmatpush1.msra.mxu0 0.0
      %3181 = vmatprep.subr.mxu0 0.0
      %3182 = vmatpush1.msra.mxu0 0.0
      %3183 = vmatprep.subr.mxu0 0.0
      %3184 = vmatpush1.msra.mxu0 0.0
      %3185 = vmatprep.subr.mxu0 0.0
      %3186 = vmatpush1.msra.mxu0 0.0
      %3187 = vmatprep.subr.mxu0 0.0
      %3188 = vmatpush1.msra.mxu0 0.0
      %3189 = vmatprep.subr.mxu0 0.0
      %3190 = vmatpush1.msra.mxu0 0.0
      %3191 = vmatprep.subr.mxu0 0.0
      %3192 = vmatpush1.msra.mxu0 0.0
      %3193 = vmatprep.subr.mxu0 0.0
      %3194 = vmatpush1.msra.mxu0 0.0
      %3195 = vmatprep.subr.mxu0 0.0
      %3196 = vmatpush1.msra.mxu0 0.0
      %3197 = vmatprep.subr.mxu0 0.0
      %3198 = vmatpush1.msra.mxu0 0.0
      %3199 = vmatprep.subr.mxu0 0.0
      %3200 = vmatpush1.msra.mxu0 0.0
      %3201 = vmatprep.subr.mxu0 0.0
      %3202 = vmatpush1.msra.mxu0 0.0
      %3203 = vmatprep.mubr.f32.mxu0 0.0
      %3204 = vmatmul.mubr.f32.gmra.mrb[0].mxu0 %v1200
      %v3205 = vpop.f32.mrb[0].mxu0
      %v3206 = vadd.f32 0.0, %v3205
      %v3207 = vpop.f32.mrb[0].mxu0
      %3208 = vmatprep.mubr.f32.mxu0 0.0
      %3209 = vmatmul.mubr.f32.gmra.mrb[0].mxu0 %v1203
      %v3210 = vpop.f32.mrb[0].mxu0
      %v3211 = vadd.f32 0.0, %v3210
      %v3212 = vpop.f32.mrb[0].mxu0
      %3213 = vdwg.mxu0
      %v3215 = vsel %vm1281, %v3206, 0
      %v3218 = vsel %vm1281, %v3211, 0
      %3220 = vmatprep.subr.mxu0 0.0
      %3221 = vmatpush1.msra.mxu0 %v1280
      %3222 = vmatprep.subr.mxu0 0.0
      %3223 = vmatpush1.msra.mxu0 0.0
      %3224 = vmatprep.subr.mxu0 0.0
      %3225 = vmatpush1.msra.mxu0 0.0
      %3226 = vmatprep.subr.mxu0 0.0
      %3227 = vmatpush1.msra.mxu0 0.0
      %3228 = vmatprep.subr.mxu0 0.0
      %3229 = vmatpush1.msra.mxu0 0.0
      %3230 = vmatprep.subr.mxu0 0.0
      %3231 = vmatpush1.msra.mxu0 0.0
      %3232 = vmatprep.subr.mxu0 0.0
      %3233 = vmatpush1.msra.mxu0 0.0
      %3234 = vmatprep.subr.mxu0 0.0
      %3235 = vmatpush1.msra.mxu0 0.0
      %3236 = vmatprep.subr.mxu0 0.0
      %3237 = vmatpush1.msra.mxu0 0.0
      %3238 = vmatprep.subr.mxu0 0.0
      %3239 = vmatpush1.msra.mxu0 0.0
      %3240 = vmatprep.subr.mxu0 0.0
      %3241 = vmatpush1.msra.mxu0 0.0
      %3242 = vmatprep.subr.mxu0 0.0
      %3243 = vmatpush1.msra.mxu0 0.0
      %3244 = vmatprep.subr.mxu0 0.0
      %3245 = vmatpush1.msra.mxu0 0.0
      %3246 = vmatprep.subr.mxu0 0.0
      %3247 = vmatpush1.msra.mxu0 0.0
      %3248 = vmatprep.subr.mxu0 0.0
      %3249 = vmatpush1.msra.mxu0 0.0
      %3250 = vmatprep.subr.mxu0 0.0
      %3251 = vmatpush1.msra.mxu0 0.0
      %3252 = vmatprep.subr.mxu0 0.0
      %3253 = vmatpush1.msra.mxu0 0.0
      %3254 = vmatprep.subr.mxu0 0.0
      %3255 = vmatpush1.msra.mxu0 0.0
      %3256 = vmatprep.subr.mxu0 0.0
      %3257 = vmatpush1.msra.mxu0 0.0
      %3258 = vmatprep.subr.mxu0 0.0
      %3259 = vmatpush1.msra.mxu0 0.0
      %3260 = vmatprep.subr.mxu0 0.0
      %3261 = vmatpush1.msra.mxu0 0.0
      %3262 = vmatprep.subr.mxu0 0.0
      %3263 = vmatpush1.msra.mxu0 0.0
      %3264 = vmatprep.subr.mxu0 0.0
      %3265 = vmatpush1.msra.mxu0 0.0
      %3266 = vmatprep.subr.mxu0 0.0
      %3267 = vmatpush1.msra.mxu0 0.0
      %3268 = vmatprep.subr.mxu0 0.0
      %3269 = vmatpush1.msra.mxu0 0.0
      %3270 = vmatprep.subr.mxu0 0.0
      %3271 = vmatpush1.msra.mxu0 0.0
      %3272 = vmatprep.subr.mxu0 0.0
      %3273 = vmatpush1.msra.mxu0 0.0
      %3274 = vmatprep.subr.mxu0 0.0
      %3275 = vmatpush1.msra.mxu0 0.0
      %3276 = vmatprep.subr.mxu0 0.0
      %3277 = vmatpush1.msra.mxu0 0.0
      %3278 = vmatprep.subr.mxu0 0.0
      %3279 = vmatpush1.msra.mxu0 0.0
      %3280 = vmatprep.subr.mxu0 0.0
      %3281 = vmatpush1.msra.mxu0 0.0
      %3282 = vmatprep.subr.mxu0 0.0
      %3283 = vmatpush1.msra.mxu0 0.0
      %3284 = vmatprep.mubr.f32.mxu0 0.0
      %3285 = vmatmul.mubr.f32.gmra.mrb[0].mxu0 %v3215
      %v3286 = vpop.f32.mrb[0].mxu0
      %v3287 = vadd.f32 0.0, %v3286
      %v3288 = vpop.f32.mrb[0].mxu0
      %3289 = vmatprep.mubr.f32.mxu0 0.0
      %3290 = vmatmul.mubr.f32.gmra.mrb[0].mxu0 %v3218
      %v3291 = vpop.f32.mrb[0].mxu0
      %v3292 = vadd.f32 0.0, %v3291
      %v3293 = vpop.f32.mrb[0].mxu0
      %3294 = vdwg.mxu0
      %v3296 = vsel %vm1281, %v3131, 0
      %v3299 = vsel %vm1281, %v3136, 0
      %3301 = vmatprep.subr.mxu0 0.0
      %3302 = vmatpush1.msra.mxu0 %v1195
      %3303 = vmatprep.subr.mxu0 0.0
      %3304 = vmatpush1.msra.mxu0 0.0
      %3305 = vmatprep.subr.mxu0 0.0
      %3306 = vmatpush1.msra.mxu0 0.0
      %3307 = vmatprep.subr.mxu0 0.0
      %3308 = vmatpush1.msra.mxu0 0.0
      %3309 = vmatprep.subr.mxu0 0.0
      %3310 = vmatpush1.msra.mxu0 0.0
      %3311 = vmatprep.subr.mxu0 0.0
      %3312 = vmatpush1.msra.mxu0 0.0
      %3313 = vmatprep.subr.mxu0 0.0
      %3314 = vmatpush1.msra.mxu0 0.0
      %3315 = vmatprep.subr.mxu0 0.0
      %3316 = vmatpush1.msra.mxu0 0.0
      %3317 = vmatprep.subr.mxu0 0.0
      %3318 = vmatpush1.msra.mxu0 0.0
      %3319 = vmatprep.subr.mxu0 0.0
      %3320 = vmatpush1.msra.mxu0 0.0
      %3321 = vmatprep.subr.mxu0 0.0
      %3322 = vmatpush1.msra.mxu0 0.0
      %3323 = vmatprep.subr.mxu0 0.0
      %3324 = vmatpush1.msra.mxu0 0.0
      %3325 = vmatprep.subr.mxu0 0.0
      %3326 = vmatpush1.msra.mxu0 0.0
      %3327 = vmatprep.subr.mxu0 0.0
      %3328 = vmatpush1.msra.mxu0 0.0
      %3329 = vmatprep.subr.mxu0 0.0
      %3330 = vmatpush1.msra.mxu0 0.0
      %3331 = vmatprep.subr.mxu0 0.0
      %3332 = vmatpush1.msra.mxu0 0.0
      %3333 = vmatprep.subr.mxu0 0.0
      %3334 = vmatpush1.msra.mxu0 0.0
      %3335 = vmatprep.subr.mxu0 0.0
      %3336 = vmatpush1.msra.mxu0 0.0
      %3337 = vmatprep.subr.mxu0 0.0
      %3338 = vmatpush1.msra.mxu0 0.0
      %3339 = vmatprep.subr.mxu0 0.0
      %3340 = vmatpush1.msra.mxu0 0.0
      %3341 = vmatprep.subr.mxu0 0.0
      %3342 = vmatpush1.msra.mxu0 0.0
      %3343 = vmatprep.subr.mxu0 0.0
      %3344 = vmatpush1.msra.mxu0 0.0
      %3345 = vmatprep.subr.mxu0 0.0
      %3346 = vmatpush1.msra.mxu0 0.0
      %3347 = vmatprep.subr.mxu0 0.0
      %3348 = vmatpush1.msra.mxu0 0.0
      %3349 = vmatprep.subr.mxu0 0.0
      %3350 = vmatpush1.msra.mxu0 0.0
      %3351 = vmatprep.subr.mxu0 0.0
      %3352 = vmatpush1.msra.mxu0 0.0
      %3353 = vmatprep.subr.mxu0 0.0
      %3354 = vmatpush1.msra.mxu0 0.0
      %3355 = vmatprep.subr.mxu0 0.0
      %3356 = vmatpush1.msra.mxu0 0.0
      %3357 = vmatprep.subr.mxu0 0.0
      %3358 = vmatpush1.msra.mxu0 0.0
      %3359 = vmatprep.subr.mxu0 0.0
      %3360 = vmatpush1.msra.mxu0 0.0
      %3361 = vmatprep.subr.mxu0 0.0
      %3362 = vmatpush1.msra.mxu0 0.0
      %3363 = vmatprep.subr.mxu0 0.0
      %3364 = vmatpush1.msra.mxu0 0.0
      %3365 = vmatprep.mubr.f32.mxu0 0.0
      %3366 = vmatmul.mubr.f32.gmra.mrb[0].mxu0 %v3296
      %v3367 = vpop.f32.mrb[0].mxu0
      %v3368 = vadd.f32 %v3287, %v3367
      %v3369 = vpop.f32.mrb[0].mxu0
      %3370 = vmatprep.mubr.f32.mxu0 0.0
      %3371 = vmatmul.mubr.f32.gmra.mrb[0].mxu0 %v3299
      %v3372 = vpop.f32.mrb[0].mxu0
      %v3373 = vadd.f32 %v3292, %v3372
      %v3374 = vpop.f32.mrb[0].mxu0
      %3375 = vdwg.mxu0
      %3376 = vmatprep.subr.mxu0 0.0
      %3377 = vmatpush1.msra.mxu0 %v3060
      %3378 = vmatprep.subr.mxu0 0.0
      %3379 = vmatpush1.msra.mxu0 %v3061
      %3380 = vmatprep.subr.mxu0 0.0
      %3381 = vmatpush1.msra.mxu0 %v3062
      %3382 = vmatprep.subr.mxu0 0.0
      %3383 = vmatpush1.msra.mxu0 %v3063
      %3384 = vmatprep.subr.mxu0 0.0
      %3385 = vmatpush1.msra.mxu0 0.0
      %3386 = vmatprep.subr.mxu0 0.0
      %3387 = vmatpush1.msra.mxu0 0.0
      %3388 = vmatprep.subr.mxu0 0.0
      %3389 = vmatpush1.msra.mxu0 0.0
      %3390 = vmatprep.subr.mxu0 0.0
      %3391 = vmatpush1.msra.mxu0 0.0
      %3392 = vmatprep.subr.mxu0 0.0
      %3393 = vmatpush1.msra.mxu0 0.0
      %3394 = vmatprep.subr.mxu0 0.0
      %3395 = vmatpush1.msra.mxu0 0.0
      %3396 = vmatprep.subr.mxu0 0.0
      %3397 = vmatpush1.msra.mxu0 0.0
      %3398 = vmatprep.subr.mxu0 0.0
      %3399 = vmatpush1.msra.mxu0 0.0
      %3400 = vmatprep.subr.mxu0 0.0
      %3401 = vmatpush1.msra.mxu0 0.0
      %3402 = vmatprep.subr.mxu0 0.0
      %3403 = vmatpush1.msra.mxu0 0.0
      %3404 = vmatprep.subr.mxu0 0.0
      %3405 = vmatpush1.msra.mxu0 0.0
      %3406 = vmatprep.subr.mxu0 0.0
      %3407 = vmatpush1.msra.mxu0 0.0
      %3408 = vmatprep.subr.mxu0 0.0
      %3409 = vmatpush1.msra.mxu0 0.0
      %3410 = vmatprep.subr.mxu0 0.0
      %3411 = vmatpush1.msra.mxu0 0.0
      %3412 = vmatprep.subr.mxu0 0.0
      %3413 = vmatpush1.msra.mxu0 0.0
      %3414 = vmatprep.subr.mxu0 0.0
      %3415 = vmatpush1.msra.mxu0 0.0
      %3416 = vmatprep.subr.mxu0 0.0
      %3417 = vmatpush1.msra.mxu0 0.0
      %3418 = vmatprep.subr.mxu0 0.0
      %3419 = vmatpush1.msra.mxu0 0.0
      %3420 = vmatprep.subr.mxu0 0.0
      %3421 = vmatpush1.msra.mxu0 0.0
      %3422 = vmatprep.subr.mxu0 0.0
      %3423 = vmatpush1.msra.mxu0 0.0
      %3424 = vmatprep.subr.mxu0 0.0
      %3425 = vmatpush1.msra.mxu0 0.0
      %3426 = vmatprep.subr.mxu0 0.0
      %3427 = vmatpush1.msra.mxu0 0.0
      %3428 = vmatprep.subr.mxu0 0.0
      %3429 = vmatpush1.msra.mxu0 0.0
      %3430 = vmatprep.subr.mxu0 0.0
      %3431 = vmatpush1.msra.mxu0 0.0
      %3432 = vmatprep.subr.mxu0 0.0
      %3433 = vmatpush1.msra.mxu0 0.0
      %3434 = vmatprep.subr.mxu0 0.0
      %3435 = vmatpush1.msra.mxu0 0.0
      %3436 = vmatprep.subr.mxu0 0.0
      %3437 = vmatpush1.msra.mxu0 0.0
      %3438 = vmatprep.subr.mxu0 0.0
      %3439 = vmatpush1.msra.mxu0 0.0
      %3440 = vmatprep.mubr.f32.mxu0 0.0
      %3441 = vmatmul.mubr.f32.gmra.mrb[0].mxu0 %v1448
      %v3442 = vpop.f32.mrb[0].mxu0
      %v3443 = vadd.f32 0.0, %v3442
      %v3444 = vpop.f32.mrb[0].mxu0
      %3445 = vmatprep.mubr.f32.mxu0 0.0
      %3446 = vmatmul.mubr.f32.gmra.mrb[0].mxu0 %v1451
      %v3447 = vpop.f32.mrb[0].mxu0
      %v3448 = vadd.f32 0.0, %v3447
      %v3449 = vpop.f32.mrb[0].mxu0
      %3450 = vdwg.mxu0
      %v3452 = vsel %vm1281, %v3443, 0
      %v3455 = vsel %vm1281, %v3448, 0
      %3457 = vmatprep.subr.mxu0 0.0
      %3458 = vmatpush1.msra.mxu0 %v1528
      %3459 = vmatprep.subr.mxu0 0.0
      %3460 = vmatpush1.msra.mxu0 0.0
      %3461 = vmatprep.subr.mxu0 0.0
      %3462 = vmatpush1.msra.mxu0 0.0
      %3463 = vmatprep.subr.mxu0 0.0
      %3464 = vmatpush1.msra.mxu0 0.0
      %3465 = vmatprep.subr.mxu0 0.0
      %3466 = vmatpush1.msra.mxu0 0.0
      %3467 = vmatprep.subr.mxu0 0.0
      %3468 = vmatpush1.msra.mxu0 0.0
      %3469 = vmatprep.subr.mxu0 0.0
      %3470 = vmatpush1.msra.mxu0 0.0
      %3471 = vmatprep.subr.mxu0 0.0
      %3472 = vmatpush1.msra.mxu0 0.0
      %3473 = vmatprep.subr.mxu0 0.0
      %3474 = vmatpush1.msra.mxu0 0.0
      %3475 = vmatprep.subr.mxu0 0.0
      %3476 = vmatpush1.msra.mxu0 0.0
      %3477 = vmatprep.subr.mxu0 0.0
      %3478 = vmatpush1.msra.mxu0 0.0
      %3479 = vmatprep.subr.mxu0 0.0
      %3480 = vmatpush1.msra.mxu0 0.0
      %3481 = vmatprep.subr.mxu0 0.0
      %3482 = vmatpush1.msra.mxu0 0.0
      %3483 = vmatprep.subr.mxu0 0.0
      %3484 = vmatpush1.msra.mxu0 0.0
      %3485 = vmatprep.subr.mxu0 0.0
      %3486 = vmatpush1.msra.mxu0 0.0
      %3487 = vmatprep.subr.mxu0 0.0
      %3488 = vmatpush1.msra.mxu0 0.0
      %3489 = vmatprep.subr.mxu0 0.0
      %3490 = vmatpush1.msra.mxu0 0.0
      %3491 = vmatprep.subr.mxu0 0.0
      %3492 = vmatpush1.msra.mxu0 0.0
      %3493 = vmatprep.subr.mxu0 0.0
      %3494 = vmatpush1.msra.mxu0 0.0
      %3495 = vmatprep.subr.mxu0 0.0
      %3496 = vmatpush1.msra.mxu0 0.0
      %3497 = vmatprep.subr.mxu0 0.0
      %3498 = vmatpush1.msra.mxu0 0.0
      %3499 = vmatprep.subr.mxu0 0.0
      %3500 = vmatpush1.msra.mxu0 0.0
      %3501 = vmatprep.subr.mxu0 0.0
      %3502 = vmatpush1.msra.mxu0 0.0
      %3503 = vmatprep.subr.mxu0 0.0
      %3504 = vmatpush1.msra.mxu0 0.0
      %3505 = vmatprep.subr.mxu0 0.0
      %3506 = vmatpush1.msra.mxu0 0.0
      %3507 = vmatprep.subr.mxu0 0.0
      %3508 = vmatpush1.msra.mxu0 0.0
      %3509 = vmatprep.subr.mxu0 0.0
      %3510 = vmatpush1.msra.mxu0 0.0
      %3511 = vmatprep.subr.mxu0 0.0
      %3512 = vmatpush1.msra.mxu0 0.0
      %3513 = vmatprep.subr.mxu0 0.0
      %3514 = vmatpush1.msra.mxu0 0.0
      %3515 = vmatprep.subr.mxu0 0.0
      %3516 = vmatpush1.msra.mxu0 0.0
      %3517 = vmatprep.subr.mxu0 0.0
      %3518 = vmatpush1.msra.mxu0 0.0
      %3519 = vmatprep.subr.mxu0 0.0
      %3520 = vmatpush1.msra.mxu0 0.0
      %3521 = vmatprep.mubr.f32.mxu0 0.0
      %3522 = vmatmul.mubr.f32.gmra.mrb[0].mxu0 %v3452
      %v3523 = vpop.f32.mrb[0].mxu0
      %v3524 = vadd.f32 0.0, %v3523
      %v3525 = vpop.f32.mrb[0].mxu0
      %3526 = vmatprep.mubr.f32.mxu0 0.0
      %3527 = vmatmul.mubr.f32.gmra.mrb[0].mxu0 %v3455
      %v3528 = vpop.f32.mrb[0].mxu0
      %v3529 = vadd.f32 0.0, %v3528
      %v3530 = vpop.f32.mrb[0].mxu0
      %3531 = vdwg.mxu0
      %v3532 = vadd.f32 %v3368, %v3524
      %v3533 = vadd.f32 %v3373, %v3529
      %3534 = vmatprep.subr.mxu0 0.0
      %3535 = vmatpush1.msra.mxu0 %v3060
      %3536 = vmatprep.subr.mxu0 0.0
      %3537 = vmatpush1.msra.mxu0 %v3061
      %3538 = vmatprep.subr.mxu0 0.0
      %3539 = vmatpush1.msra.mxu0 %v3062
      %3540 = vmatprep.subr.mxu0 0.0
      %3541 = vmatpush1.msra.mxu0 %v3063
      %3542 = vmatprep.subr.mxu0 0.0
      %3543 = vmatpush1.msra.mxu0 0.0
      %3544 = vmatprep.subr.mxu0 0.0
      %3545 = vmatpush1.msra.mxu0 0.0
      %3546 = vmatprep.subr.mxu0 0.0
      %3547 = vmatpush1.msra.mxu0 0.0
      %3548 = vmatprep.subr.mxu0 0.0
      %3549 = vmatpush1.msra.mxu0 0.0
      %3550 = vmatprep.subr.mxu0 0.0
      %3551 = vmatpush1.msra.mxu0 0.0
      %3552 = vmatprep.subr.mxu0 0.0
      %3553 = vmatpush1.msra.mxu0 0.0
      %3554 = vmatprep.subr.mxu0 0.0
      %3555 = vmatpush1.msra.mxu0 0.0
      %3556 = vmatprep.subr.mxu0 0.0
      %3557 = vmatpush1.msra.mxu0 0.0
      %3558 = vmatprep.subr.mxu0 0.0
      %3559 = vmatpush1.msra.mxu0 0.0
      %3560 = vmatprep.subr.mxu0 0.0
      %3561 = vmatpush1.msra.mxu0 0.0
      %3562 = vmatprep.subr.mxu0 0.0
      %3563 = vmatpush1.msra.mxu0 0.0
      %3564 = vmatprep.subr.mxu0 0.0
      %3565 = vmatpush1.msra.mxu0 0.0
      %3566 = vmatprep.subr.mxu0 0.0
      %3567 = vmatpush1.msra.mxu0 0.0
      %3568 = vmatprep.subr.mxu0 0.0
      %3569 = vmatpush1.msra.mxu0 0.0
      %3570 = vmatprep.subr.mxu0 0.0
      %3571 = vmatpush1.msra.mxu0 0.0
      %3572 = vmatprep.subr.mxu0 0.0
      %3573 = vmatpush1.msra.mxu0 0.0
      %3574 = vmatprep.subr.mxu0 0.0
      %3575 = vmatpush1.msra.mxu0 0.0
      %3576 = vmatprep.subr.mxu0 0.0
      %3577 = vmatpush1.msra.mxu0 0.0
      %3578 = vmatprep.subr.mxu0 0.0
      %3579 = vmatpush1.msra.mxu0 0.0
      %3580 = vmatprep.subr.mxu0 0.0
      %3581 = vmatpush1.msra.mxu0 0.0
      %3582 = vmatprep.subr.mxu0 0.0
      %3583 = vmatpush1.msra.mxu0 0.0
      %3584 = vmatprep.subr.mxu0 0.0
      %3585 = vmatpush1.msra.mxu0 0.0
      %3586 = vmatprep.subr.mxu0 0.0
      %3587 = vmatpush1.msra.mxu0 0.0
      %3588 = vmatprep.subr.mxu0 0.0
      %3589 = vmatpush1.msra.mxu0 0.0
      %3590 = vmatprep.subr.mxu0 0.0
      %3591 = vmatpush1.msra.mxu0 0.0
      %3592 = vmatprep.subr.mxu0 0.0
      %3593 = vmatpush1.msra.mxu0 0.0
      %3594 = vmatprep.subr.mxu0 0.0
      %3595 = vmatpush1.msra.mxu0 0.0
      %3596 = vmatprep.subr.mxu0 0.0
      %3597 = vmatpush1.msra.mxu0 0.0
      %3598 = vmatprep.mubr.f32.mxu0 0.0
      %3599 = vmatmul.mubr.f32.gmra.mrb[0].mxu0 %v1616
      %v3600 = vpop.f32.mrb[0].mxu0
      %v3601 = vadd.f32 0.0, %v3600
      %v3602 = vpop.f32.mrb[0].mxu0
      %3603 = vmatprep.mubr.f32.mxu0 0.0
      %3604 = vmatmul.mubr.f32.gmra.mrb[0].mxu0 %v1619
      %v3605 = vpop.f32.mrb[0].mxu0
      %v3606 = vadd.f32 0.0, %v3605
      %v3607 = vpop.f32.mrb[0].mxu0
      %3608 = vdwg.mxu0
      %v3610 = vsel %vm1281, %v3601, 0
      %v3613 = vsel %vm1281, %v3606, 0
      %3615 = vmatprep.subr.mxu0 0.0
      %3616 = vmatpush1.msra.mxu0 %v1696
      %3617 = vmatprep.subr.mxu0 0.0
      %3618 = vmatpush1.msra.mxu0 0.0
      %3619 = vmatprep.subr.mxu0 0.0
      %3620 = vmatpush1.msra.mxu0 0.0
      %3621 = vmatprep.subr.mxu0 0.0
      %3622 = vmatpush1.msra.mxu0 0.0
      %3623 = vmatprep.subr.mxu0 0.0
      %3624 = vmatpush1.msra.mxu0 0.0
      %3625 = vmatprep.subr.mxu0 0.0
      %3626 = vmatpush1.msra.mxu0 0.0
      %3627 = vmatprep.subr.mxu0 0.0
      %3628 = vmatpush1.msra.mxu0 0.0
      %3629 = vmatprep.subr.mxu0 0.0
      %3630 = vmatpush1.msra.mxu0 0.0
      %3631 = vmatprep.subr.mxu0 0.0
      %3632 = vmatpush1.msra.mxu0 0.0
      %3633 = vmatprep.subr.mxu0 0.0
      %3634 = vmatpush1.msra.mxu0 0.0
      %3635 = vmatprep.subr.mxu0 0.0
      %3636 = vmatpush1.msra.mxu0 0.0
      %3637 = vmatprep.subr.mxu0 0.0
      %3638 = vmatpush1.msra.mxu0 0.0
      %3639 = vmatprep.subr.mxu0 0.0
      %3640 = vmatpush1.msra.mxu0 0.0
      %3641 = vmatprep.subr.mxu0 0.0
      %3642 = vmatpush1.msra.mxu0 0.0
      %3643 = vmatprep.subr.mxu0 0.0
      %3644 = vmatpush1.msra.mxu0 0.0
      %3645 = vmatprep.subr.mxu0 0.0
      %3646 = vmatpush1.msra.mxu0 0.0
      %3647 = vmatprep.subr.mxu0 0.0
      %3648 = vmatpush1.msra.mxu0 0.0
      %3649 = vmatprep.subr.mxu0 0.0
      %3650 = vmatpush1.msra.mxu0 0.0
      %3651 = vmatprep.subr.mxu0 0.0
      %3652 = vmatpush1.msra.mxu0 0.0
      %3653 = vmatprep.subr.mxu0 0.0
      %3654 = vmatpush1.msra.mxu0 0.0
      %3655 = vmatprep.subr.mxu0 0.0
      %3656 = vmatpush1.msra.mxu0 0.0
      %3657 = vmatprep.subr.mxu0 0.0
      %3658 = vmatpush1.msra.mxu0 0.0
      %3659 = vmatprep.subr.mxu0 0.0
      %3660 = vmatpush1.msra.mxu0 0.0
      %3661 = vmatprep.subr.mxu0 0.0
      %3662 = vmatpush1.msra.mxu0 0.0
      %3663 = vmatprep.subr.mxu0 0.0
      %3664 = vmatpush1.msra.mxu0 0.0
      %3665 = vmatprep.subr.mxu0 0.0
      %3666 = vmatpush1.msra.mxu0 0.0
      %3667 = vmatprep.subr.mxu0 0.0
      %3668 = vmatpush1.msra.mxu0 0.0
      %3669 = vmatprep.subr.mxu0 0.0
      %3670 = vmatpush1.msra.mxu0 0.0
      %3671 = vmatprep.subr.mxu0 0.0
      %3672 = vmatpush1.msra.mxu0 0.0
      %3673 = vmatprep.subr.mxu0 0.0
      %3674 = vmatpush1.msra.mxu0 0.0
      %3675 = vmatprep.subr.mxu0 0.0
      %3676 = vmatpush1.msra.mxu0 0.0
      %3677 = vmatprep.subr.mxu0 0.0
      %3678 = vmatpush1.msra.mxu0 0.0
      %3679 = vmatprep.mubr.f32.mxu0 0.0
      %3680 = vmatmul.mubr.f32.gmra.mrb[0].mxu0 %v3610
      %v3681 = vpop.f32.mrb[0].mxu0
      %v3682 = vadd.f32 0.0, %v3681
      %v3683 = vpop.f32.mrb[0].mxu0
      %3684 = vmatprep.mubr.f32.mxu0 0.0
      %3685 = vmatmul.mubr.f32.gmra.mrb[0].mxu0 %v3613
      %v3686 = vpop.f32.mrb[0].mxu0
      %v3687 = vadd.f32 0.0, %v3686
      %v3688 = vpop.f32.mrb[0].mxu0
      %3689 = vdwg.mxu0
      %v3690 = vadd.f32 %v3532, %v3682
      %v3691 = vadd.f32 %v3533, %v3687
      %3692 = vmatprep.subr.mxu0 0.0
      %3693 = vmatpush1.msra.mxu0 %v3060
      %3694 = vmatprep.subr.mxu0 0.0
      %3695 = vmatpush1.msra.mxu0 %v3061
      %3696 = vmatprep.subr.mxu0 0.0
      %3697 = vmatpush1.msra.mxu0 %v3062
      %3698 = vmatprep.subr.mxu0 0.0
      %3699 = vmatpush1.msra.mxu0 %v3063
      %3700 = vmatprep.subr.mxu0 0.0
      %3701 = vmatpush1.msra.mxu0 0.0
      %3702 = vmatprep.subr.mxu0 0.0
      %3703 = vmatpush1.msra.mxu0 0.0
      %3704 = vmatprep.subr.mxu0 0.0
      %3705 = vmatpush1.msra.mxu0 0.0
      %3706 = vmatprep.subr.mxu0 0.0
      %3707 = vmatpush1.msra.mxu0 0.0
      %3708 = vmatprep.subr.mxu0 0.0
      %3709 = vmatpush1.msra.mxu0 0.0
      %3710 = vmatprep.subr.mxu0 0.0
      %3711 = vmatpush1.msra.mxu0 0.0
      %3712 = vmatprep.subr.mxu0 0.0
      %3713 = vmatpush1.msra.mxu0 0.0
      %3714 = vmatprep.subr.mxu0 0.0
      %3715 = vmatpush1.msra.mxu0 0.0
      %3716 = vmatprep.subr.mxu0 0.0
      %3717 = vmatpush1.msra.mxu0 0.0
      %3718 = vmatprep.subr.mxu0 0.0
      %3719 = vmatpush1.msra.mxu0 0.0
      %3720 = vmatprep.subr.mxu0 0.0
      %3721 = vmatpush1.msra.mxu0 0.0
      %3722 = vmatprep.subr.mxu0 0.0
      %3723 = vmatpush1.msra.mxu0 0.0
      %3724 = vmatprep.subr.mxu0 0.0
      %3725 = vmatpush1.msra.mxu0 0.0
      %3726 = vmatprep.subr.mxu0 0.0
      %3727 = vmatpush1.msra.mxu0 0.0
      %3728 = vmatprep.subr.mxu0 0.0
      %3729 = vmatpush1.msra.mxu0 0.0
      %3730 = vmatprep.subr.mxu0 0.0
      %3731 = vmatpush1.msra.mxu0 0.0
      %3732 = vmatprep.subr.mxu0 0.0
      %3733 = vmatpush1.msra.mxu0 0.0
      %3734 = vmatprep.subr.mxu0 0.0
      %3735 = vmatpush1.msra.mxu0 0.0
      %3736 = vmatprep.subr.mxu0 0.0
      %3737 = vmatpush1.msra.mxu0 0.0
      %3738 = vmatprep.subr.mxu0 0.0
      %3739 = vmatpush1.msra.mxu0 0.0
      %3740 = vmatprep.subr.mxu0 0.0
      %3741 = vmatpush1.msra.mxu0 0.0
      %3742 = vmatprep.subr.mxu0 0.0
      %3743 = vmatpush1.msra.mxu0 0.0
      %3744 = vmatprep.subr.mxu0 0.0
      %3745 = vmatpush1.msra.mxu0 0.0
      %3746 = vmatprep.subr.mxu0 0.0
      %3747 = vmatpush1.msra.mxu0 0.0
      %3748 = vmatprep.subr.mxu0 0.0
      %3749 = vmatpush1.msra.mxu0 0.0
      %3750 = vmatprep.subr.mxu0 0.0
      %3751 = vmatpush1.msra.mxu0 0.0
      %3752 = vmatprep.subr.mxu0 0.0
      %3753 = vmatpush1.msra.mxu0 0.0
      %3754 = vmatprep.subr.mxu0 0.0
      %3755 = vmatpush1.msra.mxu0 0.0
      %3756 = vmatprep.mubr.f32.mxu0 0.0
      %3757 = vmatmul.mubr.f32.gmra.mrb[0].mxu0 %v1784
      %v3758 = vpop.f32.mrb[0].mxu0
      %v3759 = vadd.f32 0.0, %v3758
      %v3760 = vpop.f32.mrb[0].mxu0
      %3761 = vmatprep.mubr.f32.mxu0 0.0
      %3762 = vmatmul.mubr.f32.gmra.mrb[0].mxu0 %v1787
      %v3763 = vpop.f32.mrb[0].mxu0
      %v3764 = vadd.f32 0.0, %v3763
      %v3765 = vpop.f32.mrb[0].mxu0
      %3766 = vdwg.mxu0
      %v3768 = vsel %vm1281, %v3759, 0
      %v3771 = vsel %vm1281, %v3764, 0
      %3773 = vmatprep.subr.mxu0 0.0
      %3774 = vmatpush1.msra.mxu0 %v1864
      %3775 = vmatprep.subr.mxu0 0.0
      %3776 = vmatpush1.msra.mxu0 0.0
      %3777 = vmatprep.subr.mxu0 0.0
      %3778 = vmatpush1.msra.mxu0 0.0
      %3779 = vmatprep.subr.mxu0 0.0
      %3780 = vmatpush1.msra.mxu0 0.0
      %3781 = vmatprep.subr.mxu0 0.0
      %3782 = vmatpush1.msra.mxu0 0.0
      %3783 = vmatprep.subr.mxu0 0.0
      %3784 = vmatpush1.msra.mxu0 0.0
      %3785 = vmatprep.subr.mxu0 0.0
      %3786 = vmatpush1.msra.mxu0 0.0
      %3787 = vmatprep.subr.mxu0 0.0
      %3788 = vmatpush1.msra.mxu0 0.0
      %3789 = vmatprep.subr.mxu0 0.0
      %3790 = vmatpush1.msra.mxu0 0.0
      %3791 = vmatprep.subr.mxu0 0.0
      %3792 = vmatpush1.msra.mxu0 0.0
      %3793 = vmatprep.subr.mxu0 0.0
      %3794 = vmatpush1.msra.mxu0 0.0
      %3795 = vmatprep.subr.mxu0 0.0
      %3796 = vmatpush1.msra.mxu0 0.0
      %3797 = vmatprep.subr.mxu0 0.0
      %3798 = vmatpush1.msra.mxu0 0.0
      %3799 = vmatprep.subr.mxu0 0.0
      %3800 = vmatpush1.msra.mxu0 0.0
      %3801 = vmatprep.subr.mxu0 0.0
      %3802 = vmatpush1.msra.mxu0 0.0
      %3803 = vmatprep.subr.mxu0 0.0
      %3804 = vmatpush1.msra.mxu0 0.0
      %3805 = vmatprep.subr.mxu0 0.0
      %3806 = vmatpush1.msra.mxu0 0.0
      %3807 = vmatprep.subr.mxu0 0.0
      %3808 = vmatpush1.msra.mxu0 0.0
      %3809 = vmatprep.subr.mxu0 0.0
      %3810 = vmatpush1.msra.mxu0 0.0
      %3811 = vmatprep.subr.mxu0 0.0
      %3812 = vmatpush1.msra.mxu0 0.0
      %3813 = vmatprep.subr.mxu0 0.0
      %3814 = vmatpush1.msra.mxu0 0.0
      %3815 = vmatprep.subr.mxu0 0.0
      %3816 = vmatpush1.msra.mxu0 0.0
      %3817 = vmatprep.subr.mxu0 0.0
      %3818 = vmatpush1.msra.mxu0 0.0
      %3819 = vmatprep.subr.mxu0 0.0
      %3820 = vmatpush1.msra.mxu0 0.0
      %3821 = vmatprep.subr.mxu0 0.0
      %3822 = vmatpush1.msra.mxu0 0.0
      %3823 = vmatprep.subr.mxu0 0.0
      %3824 = vmatpush1.msra.mxu0 0.0
      %3825 = vmatprep.subr.mxu0 0.0
      %3826 = vmatpush1.msra.mxu0 0.0
      %3827 = vmatprep.subr.mxu0 0.0
      %3828 = vmatpush1.msra.mxu0 0.0
      %3829 = vmatprep.subr.mxu0 0.0
      %3830 = vmatpush1.msra.mxu0 0.0
      %3831 = vmatprep.subr.mxu0 0.0
      %3832 = vmatpush1.msra.mxu0 0.0
      %3833 = vmatprep.subr.mxu0 0.0
      %3834 = vmatpush1.msra.mxu0 0.0
      %3835 = vmatprep.subr.mxu0 0.0
      %3836 = vmatpush1.msra.mxu0 0.0
      %3837 = vmatprep.mubr.f32.mxu0 0.0
      %3838 = vmatmul.mubr.f32.gmra.mrb[0].mxu0 %v3768
      %v3839 = vpop.f32.mrb[0].mxu0
      %v3840 = vadd.f32 0.0, %v3839
      %v3841 = vpop.f32.mrb[0].mxu0
      %3842 = vmatprep.mubr.f32.mxu0 0.0
      %3843 = vmatmul.mubr.f32.gmra.mrb[0].mxu0 %v3771
      %v3844 = vpop.f32.mrb[0].mxu0
      %v3845 = vadd.f32 0.0, %v3844
      %v3846 = vpop.f32.mrb[0].mxu0
      %3847 = vdwg.mxu0
      %v3848 = vadd.f32 %v3690, %v3840
      %v3849 = vadd.f32 %v3691, %v3845
      %v3850 = vadd.f32 %v3848, %v1953
      %v3851 = vadd.f32 %v3849, %v1953
      %vm3852 = vcmp.ge.f32.partialorder %v3850, 0.0
      %vm3853 = vcmp.ge.f32.partialorder %v3851, 0.0
      %v3854 = vmul.f32 %v3850, 0.1
      %v3855 = vmul.f32 %v3851, 0.1
      %v3856 = vsel %vm3852, %v3850, %v3854
      %v3857 = vsel %vm3853, %v3851, %v3855
      %v3858 = vsub.f32 1.0, %v2473
      %v3859 = vsub.f32 1.0, %v2474
      %v3860 = vmul.f32 %v3858, %v3858
      %v3861 = vmul.f32 %v3859, %v3859
      %vm3862 = vcmask 7168
      %v3863 = vsel %vm3862, %v3860, 0.0
      %v3864 = vsel %vm3862, %v3861, 0.0
      %v3865 = vadd.f32 %v3863, %v3864
      %3866 = vadd.xlane.f32.xlu0 %v3865
      %v3867 = vpop.xlane.xlu0 %3866
      %v3868 = vrot.slane %v3867, 4
      %v3869 = vadd.f32 %v3867, %v3868
      %v3870 = vrot.slane %v3869, 2
      %v3871 = vadd.f32 %v3869, %v3870
      %v3872 = vrot.slane %v3871, 1
      %v3873 = vadd.f32 %v3871, %v3872
      %s3874 = vtos %v3873
      %v3875 = vsub.f32 %v3060, %v1107
      %v3876 = vsub.f32 %v3061, %v1108
      %v3877 = vsub.f32 %v3062, %v1109
      %v3878 = vsub.f32 %v3063, %v1110
      %v3879 = vand.u32 2147483647, %v3875
      %v3880 = vand.u32 2147483647, %v3876
      %v3881 = vand.u32 2147483647, %v3877
      %v3882 = vand.u32 2147483647, %v3878
      %v3883 = vsel %vm1281, %v3879, 0.0
      %v3884 = vsel %vm1281, %v3880, 0.0
      %v3885 = vadd.f32 %v3883, %v3884
      %v3886 = vsel %vm1281, %v3881, 0.0
      %v3887 = vadd.f32 %v3885, %v3886
      %v3888 = vsel %vm1281, %v3882, 0.0
      %v3889 = vadd.f32 %v3887, %v3888
      %3890 = vadd.xlane.f32.xlu0 %v3889
      %v3891 = vpop.xlane.xlu0 %3890
      %v3892 = vrot.slane %v3891, 4
      %v3893 = vadd.f32 %v3891, %v3892
      %v3894 = vrot.slane %v3893, 2
      %v3895 = vadd.f32 %v3893, %v3894
      %v3896 = vrot.slane %v3895, 1
      %v3897 = vadd.f32 %v3895, %v3896
      %s3898 = vtos %v3897
      %v3899 = vsub.f32 %v3856, %v1961
      %v3900 = vsub.f32 %v3857, %v1962
      %v3901 = vand.u32 2147483647, %v3899
      %v3902 = vand.u32 2147483647, %v3900
      %v3903 = vsel %vm1965, %v3901, 0.0
      %v3904 = vsel %vm1965, %v3902, 0.0
      %v3905 = vadd.f32 %v3903, %v3904
      %3906 = vadd.xlane.f32.xlu0 %v3905
      %v3907 = vpop.xlane.xlu0 %3906
      %v3908 = vrot.slane %v3907, 4
      %v3909 = vadd.f32 %v3907, %v3908
      %v3910 = vrot.slane %v3909, 2
      %v3911 = vadd.f32 %v3909, %v3910
      %v3912 = vrot.slane %v3911, 1
      %v3913 = vadd.f32 %v3911, %v3912
      %s3914 = vtos %v3913
      %v3915 = vlaneseq
      %v3916 = vand.u32 %v3915, 127
      %vm3917 = vcmp.eq.s32.totalorder %v3916, 0
      %v3918 = vstv %s3874
      %v3919 = vsel %vm3917, %v3918, 0.0
      %vm3920 = vcmp.eq.s32.totalorder %v3916, 1
      %v3921 = vstv %s3898
      %v3922 = vsel %vm3920, %v3921, 0.0
      %v3923 = vadd.f32 %v3919, %v3922
      %vm3924 = vcmp.eq.s32.totalorder %v3916, 2
      %v3925 = vstv %s3914
      %v3926 = vsel %vm3924, %v3925, 0.0
      %v3927 = vadd.f32 %v3923, %v3926
      %vm3928 = vcmask 24576
      %3929 = vst.msk [vmem:[%s404] sm:$0x1] %vm3928, %v3927
      %p3930 = scmp.lt.s32.totalorder %s24, 1
      %s3931 = scalar_select %p3930, %s24, 1
      %s3932 = scalar_lea.vmem %s11, %s3931
      // Predicated region
      $region65: #{forward.5} parent=63 // pred_check
        %p3933 = pneg %p283
      $region66: #{forward.5} parent=63 // pred_check_branch
        %3935 = sbr.rel (%p3933) target = $region68
      $region67: #{forward.5} parent=63 // pred_region
        _
      $region68: #{forward.5} parent=63 // pred_fallthru
        _
    $region64: #{forward.5} parent=5 // pred_fallthru
      _
    %p3936 = scmp.le.s32.totalorder 2, %s19
    // Predicated region
    $region69: #{forward.5} parent=5 // pred_check
      %p3937 = pneg %p3936
    $region70: #{forward.5} parent=5 // pred_check_branch
      %3939 = sbr.rel (%p3937) target = $region72
    $region71: #{forward.5} parent=5 // pred_region
      %s3940 = ssub.s32 %s19, 2
      // Predicated region
      $region73: #{forward.5} parent=71 // pred_check
        %p3941 = pneg %p289
      $region74: #{forward.5} parent=71 // pred_check_branch
        %3943 = sbr.rel (%p3941) target = $region76
      $region75: #{forward.5} parent=71 // pred_region
        %p3944 = scmp.lt.s32.totalorder %s25, 1
        %s3945 = scalar_select %p3944, %s25, 1
        %s3946 = scalar_lea.vmem %s11, %s3945
      $region76: #{forward.5} parent=71 // pred_fallthru
        _
    $region72: #{forward.5} parent=5 // pred_fallthru
      _
  $region6: #{forward.5} parent=0 // loop_footer
    %s23 = sadd.s32 1, %s19
  $region7: #{forward.5} parent=0 // loop_footer_branch
    %18 = sbr.rel target = $region3
  $region8: #{forward.5} parent=0 // loop_exit
    _

</llo_original>
